<compile_context>
chip_gen: v6e
topology: v6e:2x2x1
jax: 0.10.0
libtpu: 0.0.40
codegen_flags: <defaults>
</compile_context>

<pallas_src>
import functools
import math

import jax
import jax.numpy as jnp
from jax.experimental import pallas as pl
from jax.experimental.pallas import tpu as pltpu

channels_factors = [1, 1, 1, 1, 1 / 2, 1 / 4, 1 / 8, 1 / 16, 1 / 32]

# <= physical VMEM on every target (v5e/v6e: 128 MiB, v7x: 64 MiB); raises v5e's 16 MiB
# default scoped limit.
_VMEM_LIMIT = 64 * 1024 * 1024


def _round_up(x, m):
    return ((x + m - 1) // m) * m


def _pad_rows(x, m=8):
    # Tiny-matrix helper (mapping / AdaIN style matmuls): keep >=8 sublane rows.
    r = (-x.shape[0]) % m
    return x if r == 0 else jnp.pad(x, ((0, r), (0, 0)))


# ----------------------------- Pallas kernels ------------------------------

def _matmul_bias_kernel(x_ref, w_ref, b_ref, o_ref):
    o_ref[...] = (jnp.dot(x_ref[...], w_ref[...], preferred_element_type=jnp.float32)
                  + b_ref[...])


def _rgb_blend_kernel(xa_ref, xb_ref, wa_ref, wb_ref, b_ref, o_ref):
    # (1-alpha)*rgb_prev(x_up) + alpha*rgb_new(y): alpha pre-folded into wa/wb/bias.
    o_ref[...] = (jnp.dot(xa_ref[...], wa_ref[...], preferred_element_type=jnp.float32)
                  + jnp.dot(xb_ref[...], wb_ref[...], preferred_element_type=jnp.float32)
                  + b_ref[...])


def _conv3x3_row_kernel(x0_ref, x1_ref, x2_ref, w_ref, b_ref, o_ref, *, W):
    # Direct 3x3 cross-correlation for one output row: 9 shifted bf16 MXU dots
    # accumulated in f32 (no im2col materialization).
    rows = (x0_ref[0, 0], x1_ref[0, 0], x2_ref[0, 0])        # each (W+2, Cin) bf16
    cout = o_ref.shape[-1]
    acc = jnp.zeros((W, cout), jnp.float32)
    for dy in range(3):
        r = rows[dy]
        for dx in range(3):
            full = jnp.dot(r, w_ref[dy, dx], preferred_element_type=jnp.float32)
            acc = acc + full[dx:dx + W, :]                   # f32 sublane-offset slice
    o_ref[0, 0] = acc + b_ref[...]


def _mapping_kernel(x_ref, w7_ref, b7_ref, wl_ref, bl_ref, o_ref, *, eps):
    # PixelNorm + 7x(WSLinear + ReLU) + final WSLinear fused (weights pre-scaled).
    x = x_ref[...]
    x = x * jax.lax.rsqrt(jnp.mean(x * x, axis=-1, keepdims=True) + eps)
    for i in range(w7_ref.shape[0]):
        x = jnp.maximum(jnp.dot(x, w7_ref[i], preferred_element_type=jnp.float32)
                        + b7_ref[i], 0.0)
    o_ref[...] = jnp.dot(x, wl_ref[...], preferred_element_type=jnp.float32) + bl_ref[...]


def _noise_in_adain_kernel(x_ref, n_ref, cs_ref, st_ref, sh_ref, o_ref, *,
                           apply_act, slope, eps):
    # y = x + noise * channel_scaler ; optional LeakyReLU ;
    # InstanceNorm over (H, W) ; y * style + shift.
    x = x_ref[0]                         # (H, W, TC) f32
    n = n_ref[0]                         # (H, W, 1)
    y = x + n * cs_ref[0, 0]             # channel_scaler (TC,) broadcasts over lanes
    if apply_act:
        y = jnp.where(y > 0, y, slope * y)
    mean = jnp.mean(y, axis=(0, 1), keepdims=True)
    var = jnp.mean(jnp.square(y - mean), axis=(0, 1), keepdims=True)
    yn = (y - mean) * jax.lax.rsqrt(var + eps)
    o_ref[0] = yn * st_ref[0, 0] + sh_ref[0, 0]


# ----------------------------- kernel wrappers ------------------------------

def ws_conv3x3(x, weight, bias, scale):
    """PyTorch-style 3x3 cross-correlation, pad=1, NHWC. Fused direct-conv kernel."""
    B, H, W, Cin = x.shape
    Cout = weight.shape[0]
    xp = jnp.pad(x.astype(jnp.bfloat16), ((0, 0), (1, 1), (1, 1), (0, 0)))
    # Fold the WS scale into the (tiny) weight; layout [3, 3, Cin, Cout], bf16 for MXU.
    wt = (jnp.transpose(weight, (2, 3, 1, 0)) * scale).astype(jnp.bfloat16)
    b2 = bias.reshape(1, Cout).astype(jnp.float32)

    def row_spec(off):
        return pl.BlockSpec((1, 1, W + 2, Cin), lambda b, h, o=off: (b, h + o, 0, 0))

    return pl.pallas_call(
        functools.partial(_conv3x3_row_kernel, W=W),
        out_shape=jax.ShapeDtypeStruct((B, H, W, Cout), jnp.float32),
        grid=(B, H),
        in_specs=[row_spec(0), row_spec(1), row_spec(2),
                  pl.BlockSpec((3, 3, Cin, Cout), lambda b, h: (0, 0, 0, 0)),
                  pl.BlockSpec((1, Cout), lambda b, h: (0, 0))],
        out_specs=pl.BlockSpec((1, 1, W, Cout), lambda b, h: (b, h, 0, 0)),
        compiler_params=pltpu.CompilerParams(
            dimension_semantics=("parallel", "parallel"),
            vmem_limit_bytes=_VMEM_LIMIT),
    )(xp, xp, xp, wt, b2)


def conv1x1(x, weight, bias, scale):
    """1x1 WSConv (to_rgb): [M, Cin] x [Cin, Cout] tiled matmul, NHWC in/out."""
    B, H, W, Cin = x.shape
    Cout = weight.shape[0]
    M = B * H * W
    xm = x.astype(jnp.bfloat16).reshape(M, Cin)
    wt = (weight.reshape(Cout, Cin).T * scale).astype(jnp.bfloat16)
    b2 = bias.reshape(1, Cout).astype(jnp.float32)
    TM = min(512, _round_up(M, 8))
    out = pl.pallas_call(
        _matmul_bias_kernel,
        out_shape=jax.ShapeDtypeStruct((M, Cout), jnp.float32),
        grid=(pl.cdiv(M, TM),),
        in_specs=[pl.BlockSpec((TM, Cin), lambda i: (i, 0)),
                  pl.BlockSpec((Cin, Cout), lambda i: (0, 0)),
                  pl.BlockSpec((1, Cout), lambda i: (0, 0))],
        out_specs=pl.BlockSpec((TM, Cout), lambda i: (i, 0)),
        compiler_params=pltpu.CompilerParams(
            dimension_semantics=("parallel",),
            vmem_limit_bytes=_VMEM_LIMIT),
    )(xm, wt, b2)
    return out.reshape(B, H, W, Cout)


def rgb_transition(x_up, y_new, rp_prev, rp_new, alpha):
    """Fused fade-in: (1-alpha)*to_rgb_prev(x_up) + alpha*to_rgb_new(y_new)."""
    B, H, W, C1 = x_up.shape
    C2 = y_new.shape[-1]
    M = B * H * W
    sa = math.sqrt(2.0 / C1)
    sb = math.sqrt(2.0 / C2)
    wa = ((1.0 - alpha) * sa * rp_prev['w'].reshape(3, C1).T).astype(jnp.bfloat16)
    wb = (alpha * sb * rp_new['w'].reshape(3, C2).T).astype(jnp.bfloat16)
    bias = ((1.0 - alpha) * rp_prev['b'] + alpha * rp_new['b']).reshape(1, 3)
    xa = x_up.astype(jnp.bfloat16).reshape(M, C1)
    xb = y_new.astype(jnp.bfloat16).reshape(M, C2)
    TM = min(512, _round_up(M, 8))
    # TODO(synk): Cout=3 output forces masked partial stores; unavoidable for RGB.
    out = pl.pallas_call(
        _rgb_blend_kernel,
        out_shape=jax.ShapeDtypeStruct((M, 3), jnp.float32),
        grid=(pl.cdiv(M, TM),),
        in_specs=[pl.BlockSpec((TM, C1), lambda i: (i, 0)),
                  pl.BlockSpec((TM, C2), lambda i: (i, 0)),
                  pl.BlockSpec((C1, 3), lambda i: (0, 0)),
                  pl.BlockSpec((C2, 3), lambda i: (0, 0)),
                  pl.BlockSpec((1, 3), lambda i: (0, 0))],
        out_specs=pl.BlockSpec((TM, 3), lambda i: (i, 0)),
        compiler_params=pltpu.CompilerParams(
            dimension_semantics=("parallel",),
            vmem_limit_bytes=_VMEM_LIMIT),
    )(xa, xb, wa, wb, bias)
    return out.reshape(B, H, W, 3)


def _pick_channel_tile(C, HW):
    # Lane dim of the block must be a multiple of 128 or the whole channel dim.
    # TODO(synk): very large H*W with C < 128 would need a two-pass (stats+apply) variant.
    if C % 128 == 0:
        tc = 128
        while C % (tc * 2) == 0 and HW * (tc * 2) * 4 <= (2 << 20):
            tc *= 2
        return tc
    return C


def noise_act_adain(x, noise, channel_scaler, style, shift, apply_act):
    """Fused NOISE + (LeakyReLU) + InstanceNorm2d + AdaIN.

    x:[Bx,H,W,C] noise:[Bn,H,W,1] channel_scaler:[C] style/shift:[Bw,C]  (NHWC).
    """
    Bx, H, W, C = x.shape
    Bw = style.shape[0]
    if Bx != Bw:                       # explicit batch broadcast (first layer: const input)
        x = jnp.broadcast_to(x, (Bw, H, W, C))
    B = Bw
    Bn = noise.shape[0]
    TC = _pick_channel_tile(C, H * W)
    nidx = (lambda b, c: (b, 0, 0, 0)) if Bn == B else (lambda b, c: (0, 0, 0, 0))
    cs3 = channel_scaler.reshape(1, 1, C)
    st3 = style.reshape(B, 1, C)
    sh3 = shift.reshape(B, 1, C)
    return pl.pallas_call(
        functools.partial(_noise_in_adain_kernel, apply_act=apply_act,
                          slope=0.2, eps=1e-5),
        out_shape=jax.ShapeDtypeStruct((B, H, W, C), jnp.float32),
        grid=(B, C // TC),
        in_specs=[pl.BlockSpec((1, H, W, TC), lambda b, c: (b, 0, 0, c)),
                  pl.BlockSpec((1, H, W, 1), nidx),
                  pl.BlockSpec((1, 1, TC), lambda b, c: (0, 0, c)),
                  pl.BlockSpec((1, 1, TC), lambda b, c: (b, 0, c)),
                  pl.BlockSpec((1, 1, TC), lambda b, c: (b, 0, c))],
        out_specs=pl.BlockSpec((1, H, W, TC), lambda b, c: (b, 0, 0, c)),
        compiler_params=pltpu.CompilerParams(
            dimension_semantics=("parallel", "parallel"),
            vmem_limit_bytes=_VMEM_LIMIT),
    )(x, noise, cs3, st3, sh3)


def mapping_forward(mp, z):
    """PixelNorm + 8 WSLinear layers fused into one kernel (WS scales pre-folded)."""
    w7 = jnp.stack([mp['w'][i].T * math.sqrt(2.0 / mp['w'][i].shape[1])
                    for i in range(7)])                        # [7, z, z]
    b7 = jnp.stack(mp['b'][:7])                                # [7, z]
    wl = mp['w'][7].T * math.sqrt(2.0 / mp['w'][7].shape[1])   # [z, w]
    bl = mp['b'][7].reshape(1, -1)
    zp = _pad_rows(z)
    out = pl.pallas_call(
        functools.partial(_mapping_kernel, eps=1e-8),
        out_shape=jax.ShapeDtypeStruct((zp.shape[0], wl.shape[1]), jnp.float32),
    )(zp, w7, b7, wl, bl)
    return out[:z.shape[0]]


def adain_styles(wlat, adain_params):
    """Every AdaIN style/shift WSLinear of this forward pass fused into ONE matmul."""
    wcols, bcols, widths = [], [], []
    for ap in adain_params:
        s = math.sqrt(2.0 / ap['style_w'].shape[1])
        wcols += [ap['style_w'].T * s, ap['shift_w'].T * s]
        bcols += [ap['style_b'], ap['shift_b']]
        widths.append(ap['style_w'].shape[0])
    wcat = jnp.concatenate(wcols, axis=1)                      # [w_dim, sum(2C)]
    bcat = jnp.concatenate(bcols, axis=0).reshape(1, -1)
    wp = _pad_rows(wlat)
    out = pl.pallas_call(
        _matmul_bias_kernel,
        out_shape=jax.ShapeDtypeStruct((wp.shape[0], wcat.shape[1]), jnp.float32),
    )(wp, wcat, bcat)
    out = out[:wlat.shape[0]]
    res, off = [], 0
    for c in widths:
        res.append((out[:, off:off + c], out[:, off + c:off + 2 * c]))
        off += 2 * c
    return res


# ----------------------------- JAX glue layers ------------------------------

def upsample2x(x):
    # TODO(synk): bilinear 2x upsample kept in plain JAX glue (jax.image.resize matches
    # torch nn.Upsample(scale_factor=2, mode='bilinear', align_corners=False)).
    B, H, W, C = x.shape
    return jax.image.resize(x, (B, 2 * H, 2 * W, C), method="bilinear")


def gen_block_forward(x, bp, ss1, ss2, key):
    k1, k2 = jax.random.split(key)
    cout, cin = bp['conv1_w'].shape[0], bp['conv1_w'].shape[1]
    x = ws_conv3x3(x, bp['conv1_w'], bp['conv1_b'], math.sqrt(2.0 / (cin * 9)))
    # TODO(synk): noise could be drawn in-kernel (pltpu.prng_seed + stateful_normal) to
    # skip the HBM round trip; kept in glue to preserve the jax.random stream.
    n1 = jax.random.normal(k1, (x.shape[0], x.shape[1], x.shape[2], 1), jnp.float32)
    x = noise_act_adain(x, n1, bp['noise1'], ss1[0], ss1[1], apply_act=True)
    x = ws_conv3x3(x, bp['conv2_w'], bp['conv2_b'], math.sqrt(2.0 / (cout * 9)))
    n2 = jax.random.normal(k2, (x.shape[0], x.shape[1], x.shape[2], 1), jnp.float32)
    x = noise_act_adain(x, n2, bp['noise2'], ss2[0], ss2[1], apply_act=True)
    return x


def generator_forward(params, z, alpha, step, noise_key):
    nkeys = jax.random.split(noise_key, step + 3)
    w = mapping_forward(params['map'], z)

    # All AdaIN style/shift linears used at this step -> one tiny fused matmul.
    aps = [params['first_adain1'], params['first_adain2']]
    for i in range(step):
        aps += [params['blocks'][i]['adain1'], params['blocks'][i]['adain2']]
    st_sh = adain_styles(w, aps)

    const = jnp.transpose(params['const_noise'], (0, 2, 3, 1))   # [1, 4, 4, C] NHWC
    n1 = jax.random.normal(nkeys[0], (1, 4, 4, 1), jnp.float32)
    x = noise_act_adain(const, n1, params['first_noise1'], st_sh[0][0], st_sh[0][1],
                        apply_act=False)

    y = ws_conv3x3(x, params['first_conv_w'], params['first_conv_b'], 1.0)
    n2 = jax.random.normal(nkeys[1], (y.shape[0], 4, 4, 1), jnp.float32)
    x = noise_act_adain(y, n2, params['first_noise2'], st_sh[1][0], st_sh[1][1],
                        apply_act=True)

    if step == 0:
        # Spec-faithful: the PyTorch module returns first_rgb(y) (conv output, pre-AdaIN).
        rp = params['rgb'][0]
        out = conv1x1(y, rp['w'], rp['b'], math.sqrt(2.0 / rp['w'].shape[1]))
        return jnp.transpose(out, (0, 3, 1, 2))

    for i in range(step - 1):
        x = upsample2x(x)
        x = gen_block_forward(x, params['blocks'][i], st_sh[2 + 2 * i],
                              st_sh[3 + 2 * i], nkeys[2 + i])

    x_up = upsample2x(x)
    yb = gen_block_forward(x_up, params['blocks'][step - 1],
                           st_sh[2 * step], st_sh[2 * step + 1], nkeys[step + 1])
    out = rgb_transition(x_up, yb, params['rgb'][step - 1], params['rgb'][step], alpha)
    return jnp.transpose(out, (0, 3, 1, 2))


# ----------------------------- parameter init -------------------------------

def init_params(key, in_channels, z_dim, w_dim):
    keys = iter(jax.random.split(key, 256))

    def nrm(shape, scl=1.0):
        return jax.random.normal(next(keys), shape, jnp.float32) * scl

    def zeros(shape):
        return jnp.zeros(shape, jnp.float32)

    def adain(out_c, wd):
        return {'style_w': nrm((out_c, wd)), 'style_b': zeros((out_c,)),
                'shift_w': nrm((out_c, wd)), 'shift_b': zeros((out_c,))}

    params = {}
    params['const_noise'] = nrm((1, in_channels, 4, 4))
    dims = [(z_dim, z_dim)] * 7 + [(z_dim, w_dim)]
    params['map'] = {'w': [nrm((o, i)) for (i, o) in dims],
                     'b': [zeros((o,)) for (_, o) in dims]}
    params['first_adain1'] = adain(in_channels, w_dim)
    params['first_adain2'] = adain(in_channels, w_dim)
    params['first_noise1'] = zeros((in_channels,))
    params['first_noise2'] = zeros((in_channels,))
    # plain nn.Conv2d: deterministic small-normal weight, zero bias (synthetic init)
    params['first_conv_w'] = nrm((in_channels, in_channels, 3, 3), 0.05)
    params['first_conv_b'] = zeros((in_channels,))

    rgb = [{'w': nrm((3, in_channels, 1, 1)), 'b': zeros((3,))}]
    blocks = []
    for i in range(len(channels_factors) - 1):
        cin = int(in_channels * channels_factors[i])
        cout = int(in_channels * channels_factors[i + 1])
        blocks.append({
            'conv1_w': nrm((cout, cin, 3, 3)), 'conv1_b': zeros((cout,)),
            'conv2_w': nrm((cout, cout, 3, 3)), 'conv2_b': zeros((cout,)),
            'noise1': zeros((cout,)), 'noise2': zeros((cout,)),
            'adain1': adain(cout, z_dim), 'adain2': adain(cout, z_dim),
        })
        rgb.append({'w': nrm((3, cout, 1, 1)), 'b': zeros((3,))})
    params['blocks'] = blocks
    params['rgb'] = rgb
    return params


# ---------------------------------- main -------------------------------------

if __name__ == "__main__":
    IN_CHANNELS = 32
    Z_DIM = 32
    W_DIM = 32
    BATCH = 2
    STEP = 2
    ALPHA = 0.5

    root = jax.random.PRNGKey(0)
    pkey, zkey, nkey = jax.random.split(root, 3)
    params = init_params(pkey, IN_CHANNELS, Z_DIM, W_DIM)
    z = jax.random.normal(zkey, (BATCH, Z_DIM), jnp.float32)

    fwd = jax.jit(generator_forward, static_argnums=(3,))
    out = jax.block_until_ready(fwd(params, z, ALPHA, STEP, nkey))

    expected_res = 4 * (2 ** STEP)
    assert out.shape == (BATCH, 3, expected_res, expected_res), out.shape
    assert bool(jnp.all(jnp.isfinite(out)))
    print("KERNEL_OK")
</pallas_src>

<mosaic_0001>
module attributes {stable_mosaic.version = 11 : i64} {
  func.func @_matmul_bias_kernel(%arg0: memref<8x32xf32, #tpu.memory_space<vmem>>, %arg1: memref<32x384xf32, #tpu.memory_space<vmem>>, %arg2: memref<1x384xf32, #tpu.memory_space<vmem>>, %arg3: memref<8x384xf32, #tpu.memory_space<vmem>>) attributes {dimension_semantics = [], scalar_prefetch = 0 : i64, scratch_operands = 0 : i64, tpu.core_type = #tpu.core_type<tc>} {
    %c0 = arith.constant 0 : index
    %c0_0 = arith.constant 0 : index
    %0 = vector.load %arg0[%c0, %c0_0] : memref<8x32xf32, #tpu.memory_space<vmem>>, vector<8x32xf32>
    %c0_1 = arith.constant 0 : index
    %c0_2 = arith.constant 0 : index
    %1 = vector.load %arg1[%c0_1, %c0_2] : memref<32x384xf32, #tpu.memory_space<vmem>>, vector<32x384xf32>
    %cst = arith.constant dense<0.000000e+00> : vector<8x384xf32>
    %2 = tpu.matmul %0, %1, %cst {dimension_numbers = #tpu.dot_dimension_numbers<[1], [0], [0], [1], [0, 0, 1, 1], [], []>} : vector<8x32xf32>, vector<32x384xf32>, vector<8x384xf32> -> vector<8x384xf32>
    %c0_3 = arith.constant 0 : index
    %c0_4 = arith.constant 0 : index
    %3 = vector.load %arg2[%c0_3, %c0_4] : memref<1x384xf32, #tpu.memory_space<vmem>>, vector<1x384xf32>
    %4 = vector.broadcast %3 : vector<1x384xf32> to vector<8x384xf32>
    %5 = arith.addf %2, %4 : vector<8x384xf32>
    %c0_5 = arith.constant 0 : index
    %c0_6 = arith.constant 0 : index
    %6 = vector.load %arg3[%c0_5, %c0_6] : memref<8x384xf32, #tpu.memory_space<vmem>>, vector<8x384xf32>
    tpu.vector_store %arg3[%c0_5, %c0_6], %5 {strides = array<i32>} : memref<8x384xf32, #tpu.memory_space<vmem>>, vector<8x384xf32>,
    return
  }
}

module attributes {stable_mosaic.version = 11 : i64} {
  func.func @_mapping_kernel(%arg0: memref<8x32xf32, #tpu.memory_space<vmem>>, %arg1: memref<7x32x32xf32, #tpu.memory_space<vmem>>, %arg2: memref<7x32xf32, #tpu.memory_space<vmem>>, %arg3: memref<32x32xf32, #tpu.memory_space<vmem>>, %arg4: memref<1x32xf32, #tpu.memory_space<vmem>>, %arg5: memref<8x32xf32, #tpu.memory_space<vmem>>) attributes {dimension_semantics = [], scalar_prefetch = 0 : i64, scratch_operands = 0 : i64, tpu.core_type = #tpu.core_type<tc>} {
    %c0 = arith.constant 0 : index
    %c0_0 = arith.constant 0 : index
    %0 = vector.load %arg0[%c0, %c0_0] : memref<8x32xf32, #tpu.memory_space<vmem>>, vector<8x32xf32>
    %1 = arith.mulf %0, %0 : vector<8x32xf32>
    %cst = arith.constant dense<0.000000e+00> : vector<8xf32>
    %2 = vector.multi_reduction <add>, %1, %cst [1] : vector<8x32xf32> to vector<8xf32>
    %3 = vector.shape_cast %2 : vector<8xf32> to vector<8x1xf32>
    %cst_1 = arith.constant 3.200000e+01 : f32
    %4 = vector.broadcast %cst_1 : f32 to vector<8x1xf32>
    %5 = arith.divf %3, %4 : vector<8x1xf32>
    %cst_2 = arith.constant 9.99999993E-9 : f32
    %6 = vector.broadcast %cst_2 : f32 to vector<8x1xf32>
    %7 = arith.addf %5, %6 : vector<8x1xf32>
    %8 = math.rsqrt %7 : vector<8x1xf32>
    %9 = vector.broadcast %8 : vector<8x1xf32> to vector<8x32xf32>
    %10 = arith.mulf %0, %9 : vector<8x32xf32>
    %c0_3 = arith.constant 0 : index
    %c0_4 = arith.constant 0 : index
    %c0_5 = arith.constant 0 : index
    %11 = vector.load %arg1[%c0_3, %c0_4, %c0_5] : memref<7x32x32xf32, #tpu.memory_space<vmem>>, vector<1x32x32xf32>
    %12 = vector.shape_cast %11 : vector<1x32x32xf32> to vector<32x32xf32>
    %cst_6 = arith.constant dense<0.000000e+00> : vector<8x32xf32>
    %13 = tpu.matmul %10, %12, %cst_6 {dimension_numbers = #tpu.dot_dimension_numbers<[1], [0], [0], [1], [0, 0, 1, 1], [], []>} : vector<8x32xf32>, vector<32x32xf32>, vector<8x32xf32> -> vector<8x32xf32>
    %c0_7 = arith.constant 0 : index
    %c0_8 = arith.constant 0 : index
    %14 = vector.load %arg2[%c0_7, %c0_8] : memref<7x32xf32, #tpu.memory_space<vmem>>, vector<1x32xf32>
    %15 = vector.shape_cast %14 : vector<1x32xf32> to vector<32xf32>
    %16 = vector.shape_cast %15 : vector<32xf32> to vector<1x32xf32>
    %17 = vector.broadcast %16 : vector<1x32xf32> to vector<8x32xf32>
    %18 = arith.addf %13, %17 : vector<8x32xf32>
    %cst_9 = arith.constant 0.000000e+00 : f32
    %19 = vector.broadcast %cst_9 : f32 to vector<8x32xf32>
    %20 = arith.maximumf %18, %19 : vector<8x32xf32>
    %c1 = arith.constant 1 : index
    %c0_10 = arith.constant 0 : index
    %c0_11 = arith.constant 0 : index
    %21 = vector.load %arg1[%c1, %c0_10, %c0_11] : memref<7x32x32xf32, #tpu.memory_space<vmem>>, vector<1x32x32xf32>
    %22 = vector.shape_cast %21 : vector<1x32x32xf32> to vector<32x32xf32>
    %cst_12 = arith.constant dense<0.000000e+00> : vector<8x32xf32>
    %23 = tpu.matmul %20, %22, %cst_12 {dimension_numbers = #tpu.dot_dimension_numbers<[1], [0], [0], [1], [0, 0, 1, 1], [], []>} : vector<8x32xf32>, vector<32x32xf32>, vector<8x32xf32> -> vector<8x32xf32>
    %c1_13 = arith.constant 1 : index
    %c0_14 = arith.constant 0 : index
    %24 = vector.load %arg2[%c1_13, %c0_14] : memref<7x32xf32, #tpu.memory_space<vmem>>, vector<1x32xf32>
    %25 = vector.shape_cast %24 : vector<1x32xf32> to vector<32xf32>
    %26 = vector.shape_cast %25 : vector<32xf32> to vector<1x32xf32>
    %27 = vector.broadcast %26 : vector<1x32xf32> to vector<8x32xf32>
    %28 = arith.addf %23, %27 : vector<8x32xf32>
    %cst_15 = arith.constant 0.000000e+00 : f32
    %29 = vector.broadcast %cst_15 : f32 to vector<8x32xf32>
    %30 = arith.maximumf %28, %29 : vector<8x32xf32>
    %c2 = arith.constant 2 : index
    %c0_16 = arith.constant 0 : index
    %c0_17 = arith.constant 0 : index
    %31 = vector.load %arg1[%c2, %c0_16, %c0_17] : memref<7x32x32xf32, #tpu.memory_space<vmem>>, vector<1x32x32xf32>
    %32 = vector.shape_cast %31 : vector<1x32x32xf32> to vector<32x32xf32>
    %cst_18 = arith.constant dense<0.000000e+00> : vector<8x32xf32>
    %33 = tpu.matmul %30, %32, %cst_18 {dimension_numbers = #tpu.dot_dimension_numbers<[1], [0], [0], [1], [0, 0, 1, 1], [], []>} : vector<8x32xf32>, vector<32x32xf32>, vector<8x32xf32> -> vector<8x32xf32>
    %c2_19 = arith.constant 2 : index
    %c0_20 = arith.constant 0 : index
    %34 = vector.load %arg2[%c2_19, %c0_20] : memref<7x32xf32, #tpu.memory_space<vmem>>, vector<1x32xf32>
    %35 = vector.shape_cast %34 : vector<1x32xf32> to vector<32xf32>
    %36 = vector.shape_cast %35 : vector<32xf32> to vector<1x32xf32>
    %37 = vector.broadcast %36 : vector<1x32xf32> to vector<8x32xf32>
    %38 = arith.addf %33, %37 : vector<8x32xf32>
    %cst_21 = arith.constant 0.000000e+00 : f32
    %39 = vector.broadcast %cst_21 : f32 to vector<8x32xf32>
    %40 = arith.maximumf %38, %39 : vector<8x32xf32>
    %c3 = arith.constant 3 : index
    %c0_22 = arith.constant 0 : index
    %c0_23 = arith.constant 0 : index
    %41 = vector.load %arg1[%c3, %c0_22, %c0_23] : memref<7x32x32xf32, #tpu.memory_space<vmem>>, vector<1x32x32xf32>
    %42 = vector.shape_cast %41 : vector<1x32x32xf32> to vector<32x32xf32>
    %cst_24 = arith.constant dense<0.000000e+00> : vector<8x32xf32>
    %43 = tpu.matmul %40, %42, %cst_24 {dimension_numbers = #tpu.dot_dimension_numbers<[1], [0], [0], [1], [0, 0, 1, 1], [], []>} : vector<8x32xf32>, vector<32x32xf32>, vector<8x32xf32> -> vector<8x32xf32>
    %c3_25 = arith.constant 3 : index
    %c0_26 = arith.constant 0 : index
    %44 = vector.load %arg2[%c3_25, %c0_26] : memref<7x32xf32, #tpu.memory_space<vmem>>, vector<1x32xf32>
    %45 = vector.shape_cast %44 : vector<1x32xf32> to vector<32xf32>
    %46 = vector.shape_cast %45 : vector<32xf32> to vector<1x32xf32>
    %47 = vector.broadcast %46 : vector<1x32xf32> to vector<8x32xf32>
    %48 = arith.addf %43, %47 : vector<8x32xf32>
    %cst_27 = arith.constant 0.000000e+00 : f32
    %49 = vector.broadcast %cst_27 : f32 to vector<8x32xf32>
    %50 = arith.maximumf %48, %49 : vector<8x32xf32>
    %c4 = arith.constant 4 : index
    %c0_28 = arith.constant 0 : index
    %c0_29 = arith.constant 0 : index
    %51 = vector.load %arg1[%c4, %c0_28, %c0_29] : memref<7x32x32xf32, #tpu.memory_space<vmem>>, vector<1x32x32xf32>
    %52 = vector.shape_cast %51 : vector<1x32x32xf32> to vector<32x32xf32>
    %cst_30 = arith.constant dense<0.000000e+00> : vector<8x32xf32>
    %53 = tpu.matmul %50, %52, %cst_30 {dimension_numbers = #tpu.dot_dimension_numbers<[1], [0], [0], [1], [0, 0, 1, 1], [], []>} : vector<8x32xf32>, vector<32x32xf32>, vector<8x32xf32> -> vector<8x32xf32>
    %c4_31 = arith.constant 4 : index
    %c0_32 = arith.constant 0 : index
    %54 = vector.load %arg2[%c4_31, %c0_32] : memref<7x32xf32, #tpu.memory_space<vmem>>, vector<1x32xf32>
    %55 = vector.shape_cast %54 : vector<1x32xf32> to vector<32xf32>
    %56 = vector.shape_cast %55 : vector<32xf32> to vector<1x32xf32>
    %57 = vector.broadcast %56 : vector<1x32xf32> to vector<8x32xf32>
    %58 = arith.addf %53, %57 : vector<8x32xf32>
    %cst_33 = arith.constant 0.000000e+00 : f32
    %59 = vector.broadcast %cst_33 : f32 to vector<8x32xf32>
    %60 = arith.maximumf %58, %59 : vector<8x32xf32>
    %c5 = arith.constant 5 : index
    %c0_34 = arith.constant 0 : index
    %c0_35 = arith.constant 0 : index
    %61 = vector.load %arg1[%c5, %c0_34, %c0_35] : memref<7x32x32xf32, #tpu.memory_space<vmem>>, vector<1x32x32xf32>
    %62 = vector.shape_cast %61 : vector<1x32x32xf32> to vector<32x32xf32>
    %cst_36 = arith.constant dense<0.000000e+00> : vector<8x32xf32>
    %63 = tpu.matmul %60, %62, %cst_36 {dimension_numbers = #tpu.dot_dimension_numbers<[1], [0], [0], [1], [0, 0, 1, 1], [], []>} : vector<8x32xf32>, vector<32x32xf32>, vector<8x32xf32> -> vector<8x32xf32>
    %c5_37 = arith.constant 5 : index
    %c0_38 = arith.constant 0 : index
    %64 = vector.load %arg2[%c5_37, %c0_38] : memref<7x32xf32, #tpu.memory_space<vmem>>, vector<1x32xf32>
    %65 = vector.shape_cast %64 : vector<1x32xf32> to vector<32xf32>
    %66 = vector.shape_cast %65 : vector<32xf32> to vector<1x32xf32>
    %67 = vector.broadcast %66 : vector<1x32xf32> to vector<8x32xf32>
    %68 = arith.addf %63, %67 : vector<8x32xf32>
    %cst_39 = arith.constant 0.000000e+00 : f32
    %69 = vector.broadcast %cst_39 : f32 to vector<8x32xf32>
    %70 = arith.maximumf %68, %69 : vector<8x32xf32>
    %c6 = arith.constant 6 : index
    %c0_40 = arith.constant 0 : index
    %c0_41 = arith.constant 0 : index
    %71 = vector.load %arg1[%c6, %c0_40, %c0_41] : memref<7x32x32xf32, #tpu.memory_space<vmem>>, vector<1x32x32xf32>
    %72 = vector.shape_cast %71 : vector<1x32x32xf32> to vector<32x32xf32>
    %cst_42 = arith.constant dense<0.000000e+00> : vector<8x32xf32>
    %73 = tpu.matmul %70, %72, %cst_42 {dimension_numbers = #tpu.dot_dimension_numbers<[1], [0], [0], [1], [0, 0, 1, 1], [], []>} : vector<8x32xf32>, vector<32x32xf32>, vector<8x32xf32> -> vector<8x32xf32>
    %c6_43 = arith.constant 6 : index
    %c0_44 = arith.constant 0 : index
    %74 = vector.load %arg2[%c6_43, %c0_44] : memref<7x32xf32, #tpu.memory_space<vmem>>, vector<1x32xf32>
    %75 = vector.shape_cast %74 : vector<1x32xf32> to vector<32xf32>
    %76 = vector.shape_cast %75 : vector<32xf32> to vector<1x32xf32>
    %77 = vector.broadcast %76 : vector<1x32xf32> to vector<8x32xf32>
    %78 = arith.addf %73, %77 : vector<8x32xf32>
    %cst_45 = arith.constant 0.000000e+00 : f32
    %79 = vector.broadcast %cst_45 : f32 to vector<8x32xf32>
    %80 = arith.maximumf %78, %79 : vector<8x32xf32>
    %c0_46 = arith.constant 0 : index
    %c0_47 = arith.constant 0 : index
    %81 = vector.load %arg3[%c0_46, %c0_47] : memref<32x32xf32, #tpu.memory_space<vmem>>, vector<32x32xf32>
    %cst_48 = arith.constant dense<0.000000e+00> : vector<8x32xf32>
    %82 = tpu.matmul %80, %81, %cst_48 {dimension_numbers = #tpu.dot_dimension_numbers<[1], [0], [0], [1], [0, 0, 1, 1], [], []>} : vector<8x32xf32>, vector<32x32xf32>, vector<8x32xf32> -> vector<8x32xf32>
    %c0_49 = arith.constant 0 : index
    %c0_50 = arith.constant 0 : index
    %83 = vector.load %arg4[%c0_49, %c0_50] : memref<1x32xf32, #tpu.memory_space<vmem>>, vector<1x32xf32>
    %84 = vector.broadcast %83 : vector<1x32xf32> to vector<8x32xf32>
    %85 = arith.addf %82, %84 : vector<8x32xf32>
    %c0_51 = arith.constant 0 : index
    %c0_52 = arith.constant 0 : index
    %86 = vector.load %arg5[%c0_51, %c0_52] : memref<8x32xf32, #tpu.memory_space<vmem>>, vector<8x32xf32>
    tpu.vector_store %arg5[%c0_51, %c0_52], %85 {strides = array<i32>} : memref<8x32xf32, #tpu.memory_space<vmem>>, vector<8x32xf32>,
    return
  }
}

module attributes {stable_mosaic.version = 11 : i64} {
  func.func @_noise_in_adain_kernel(%arg0: i32, %arg1: i32, %arg2: memref<1x4x4x32xf32, #tpu.memory_space<vmem>>, %arg3: memref<1x4x4x1xf32, #tpu.memory_space<vmem>>, %arg4: memref<1x1x32xf32, #tpu.memory_space<vmem>>, %arg5: memref<1x1x32xf32, #tpu.memory_space<vmem>>, %arg6: memref<1x1x32xf32, #tpu.memory_space<vmem>>, %arg7: memref<1x4x4x32xf32, #tpu.memory_space<vmem>>) attributes {dimension_semantics = [#tpu.dimension_semantics<parallel>, #tpu.dimension_semantics<parallel>], iteration_bounds = array<i64: 2, 1>, scalar_prefetch = 0 : i64, scratch_operands = 0 : i64, tpu.core_type = #tpu.core_type<tc>, window_params = [{transform_indices = @transform_0, window_bounds = array<i64: 1, 4, 4, 32>}, {pipeline_mode = #tpu.pipeline_mode<synchronous>, transform_indices = @transform_1, window_bounds = array<i64: 1, 4, 4, 1>}, {transform_indices = @transform_2, window_bounds = array<i64: 1, 1, 32>}, {transform_indices = @transform_3, window_bounds = array<i64: 1, 1, 32>}, {transform_indices = @transform_4, window_bounds = array<i64: 1, 1, 32>}, {transform_indices = @transform_5, window_bounds = array<i64: 1, 4, 4, 32>}]} {
    %c0 = arith.constant 0 : index
    %c0_0 = arith.constant 0 : index
    %c0_1 = arith.constant 0 : index
    %c0_2 = arith.constant 0 : index
    %0 = vector.load %arg2[%c0, %c0_0, %c0_1, %c0_2] : memref<1x4x4x32xf32, #tpu.memory_space<vmem>>, vector<1x4x4x32xf32>
    %1 = vector.shape_cast %0 : vector<1x4x4x32xf32> to vector<4x4x32xf32>
    %c0_3 = arith.constant 0 : index
    %c0_4 = arith.constant 0 : index
    %c0_5 = arith.constant 0 : index
    %c0_6 = arith.constant 0 : index
    %2 = vector.load %arg3[%c0_3, %c0_4, %c0_5, %c0_6] : memref<1x4x4x1xf32, #tpu.memory_space<vmem>>, vector<1x4x4x1xf32>
    %3 = vector.shape_cast %2 : vector<1x4x4x1xf32> to vector<4x4x1xf32>
    %c0_7 = arith.constant 0 : index
    %c0_8 = arith.constant 0 : index
    %c0_9 = arith.constant 0 : index
    %4 = vector.load %arg4[%c0_7, %c0_8, %c0_9] : memref<1x1x32xf32, #tpu.memory_space<vmem>>, vector<1x1x32xf32>
    %5 = vector.shape_cast %4 : vector<1x1x32xf32> to vector<32xf32>
    %6 = vector.shape_cast %5 : vector<32xf32> to vector<1x1x32xf32>
    %7 = vector.broadcast %3 : vector<4x4x1xf32> to vector<4x4x32xf32>
    %8 = vector.broadcast %6 : vector<1x1x32xf32> to vector<4x4x32xf32>
    %9 = arith.mulf %7, %8 : vector<4x4x32xf32>
    %10 = arith.addf %1, %9 : vector<4x4x32xf32>
    %cst = arith.constant dense<0.000000e+00> : vector<32xf32>
    %11 = vector.multi_reduction <add>, %10, %cst [0, 1] : vector<4x4x32xf32> to vector<32xf32>
    %12 = vector.shape_cast %11 : vector<32xf32> to vector<1x1x32xf32>
    %cst_10 = arith.constant 1.600000e+01 : f32
    %13 = vector.broadcast %cst_10 : f32 to vector<1x1x32xf32>
    %14 = arith.divf %12, %13 : vector<1x1x32xf32>
    %15 = vector.broadcast %14 : vector<1x1x32xf32> to vector<4x4x32xf32>
    %16 = arith.subf %10, %15 : vector<4x4x32xf32>
    %17 = arith.mulf %16, %16 : vector<4x4x32xf32>
    %cst_11 = arith.constant dense<0.000000e+00> : vector<32xf32>
    %18 = vector.multi_reduction <add>, %17, %cst_11 [0, 1] : vector<4x4x32xf32> to vector<32xf32>
    %19 = vector.shape_cast %18 : vector<32xf32> to vector<1x1x32xf32>
    %cst_12 = arith.constant 1.600000e+01 : f32
    %20 = vector.broadcast %cst_12 : f32 to vector<1x1x32xf32>
    %21 = arith.divf %19, %20 : vector<1x1x32xf32>
    %22 = vector.broadcast %14 : vector<1x1x32xf32> to vector<4x4x32xf32>
    %23 = arith.subf %10, %22 : vector<4x4x32xf32>
    %cst_13 = arith.constant 9.99999974E-6 : f32
    %24 = vector.broadcast %cst_13 : f32 to vector<1x1x32xf32>
    %25 = arith.addf %21, %24 : vector<1x1x32xf32>
    %26 = math.rsqrt %25 : vector<1x1x32xf32>
    %27 = vector.broadcast %26 : vector<1x1x32xf32> to vector<4x4x32xf32>
    %28 = arith.mulf %23, %27 : vector<4x4x32xf32>
    %c0_14 = arith.constant 0 : index
    %c0_15 = arith.constant 0 : index
    %c0_16 = arith.constant 0 : index
    %29 = vector.load %arg5[%c0_14, %c0_15, %c0_16] : memref<1x1x32xf32, #tpu.memory_space<vmem>>, vector<1x1x32xf32>
    %30 = vector.shape_cast %29 : vector<1x1x32xf32> to vector<32xf32>
    %31 = vector.shape_cast %30 : vector<32xf32> to vector<1x1x32xf32>
    %32 = vector.broadcast %31 : vector<1x1x32xf32> to vector<4x4x32xf32>
    %33 = arith.mulf %28, %32 : vector<4x4x32xf32>
    %c0_17 = arith.constant 0 : index
    %c0_18 = arith.constant 0 : index
    %c0_19 = arith.constant 0 : index
    %34 = vector.load %arg6[%c0_17, %c0_18, %c0_19] : memref<1x1x32xf32, #tpu.memory_space<vmem>>, vector<1x1x32xf32>
    %35 = vector.shape_cast %34 : vector<1x1x32xf32> to vector<32xf32>
    %36 = vector.shape_cast %35 : vector<32xf32> to vector<1x1x32xf32>
    %37 = vector.broadcast %36 : vector<1x1x32xf32> to vector<4x4x32xf32>
    %38 = arith.addf %33, %37 : vector<4x4x32xf32>
    %c0_20 = arith.constant 0 : index
    %c0_21 = arith.constant 0 : index
    %c0_22 = arith.constant 0 : index
    %c0_23 = arith.constant 0 : index
    %39 = vector.load %arg7[%c0_20, %c0_21, %c0_22, %c0_23] : memref<1x4x4x32xf32, #tpu.memory_space<vmem>>, vector<1x4x4x32xf32>
    %40 = vector.shape_cast %39 : vector<1x4x4x32xf32> to vector<4x4x32xf32>
    %41 = vector.shape_cast %38 : vector<4x4x32xf32> to vector<1x4x4x32xf32>
    tpu.vector_store %arg7[%c0_20, %c0_21, %c0_22, %c0_23], %41 {strides = array<i32>} : memref<1x4x4x32xf32, #tpu.memory_space<vmem>>, vector<1x4x4x32xf32>,
    return
  }
  func.func @transform_0(%arg0: i32, %arg1: i32) -> (i32, i32, i32, i32) {
    %c0_i32 = arith.constant 0 : i32
    %c0_i32_0 = arith.constant 0 : i32
    %c0_i32_1 = arith.constant 0 : i32
    return %arg0, %c0_i32, %c0_i32_0, %arg1 : i32, i32, i32, i32
  }
  func.func @transform_1(%arg0: i32, %arg1: i32) -> (i32, i32, i32, i32) {
    %c0_i32 = arith.constant 0 : i32
    %c0_i32_0 = arith.constant 0 : i32
    %c0_i32_1 = arith.constant 0 : i32
    %c0_i32_2 = arith.constant 0 : i32
    %c0_i32_3 = arith.constant 0 : i32
    return %c0_i32, %c0_i32_0, %c0_i32_1, %c0_i32_2 : i32, i32, i32, i32
  }
  func.func @transform_2(%arg0: i32, %arg1: i32) -> (i32, i32, i32) {
    %c0_i32 = arith.constant 0 : i32
    %c0_i32_0 = arith.constant 0 : i32
    %c0_i32_1 = arith.constant 0 : i32
    return %c0_i32, %c0_i32_0, %arg1 : i32, i32, i32
  }
  func.func @transform_3(%arg0: i32, %arg1: i32) -> (i32, i32, i32) {
    %c0_i32 = arith.constant 0 : i32
    %c0_i32_0 = arith.constant 0 : i32
    return %arg0, %c0_i32, %arg1 : i32, i32, i32
  }
  func.func @transform_4(%arg0: i32, %arg1: i32) -> (i32, i32, i32) {
    %c0_i32 = arith.constant 0 : i32
    %c0_i32_0 = arith.constant 0 : i32
    return %arg0, %c0_i32, %arg1 : i32, i32, i32
  }
  func.func @transform_5(%arg0: i32, %arg1: i32) -> (i32, i32, i32, i32) {
    %c0_i32 = arith.constant 0 : i32
    %c0_i32_0 = arith.constant 0 : i32
    %c0_i32_1 = arith.constant 0 : i32
    return %arg0, %c0_i32, %c0_i32_0, %arg1 : i32, i32, i32, i32
  }
}

module attributes {stable_mosaic.version = 11 : i64} {
  func.func @_noise_in_adain_kernel(%arg0: i32, %arg1: i32, %arg2: memref<1x4x4x32xf32, #tpu.memory_space<vmem>>, %arg3: memref<1x4x4x1xf32, #tpu.memory_space<vmem>>, %arg4: memref<1x1x32xf32, #tpu.memory_space<vmem>>, %arg5: memref<1x1x32xf32, #tpu.memory_space<vmem>>, %arg6: memref<1x1x32xf32, #tpu.memory_space<vmem>>, %arg7: memref<1x4x4x32xf32, #tpu.memory_space<vmem>>) attributes {dimension_semantics = [#tpu.dimension_semantics<parallel>, #tpu.dimension_semantics<parallel>], iteration_bounds = array<i64: 2, 1>, scalar_prefetch = 0 : i64, scratch_operands = 0 : i64, tpu.core_type = #tpu.core_type<tc>, window_params = [{transform_indices = @transform_0, window_bounds = array<i64: 1, 4, 4, 32>}, {transform_indices = @transform_1, window_bounds = array<i64: 1, 4, 4, 1>}, {transform_indices = @transform_2, window_bounds = array<i64: 1, 1, 32>}, {transform_indices = @transform_3, window_bounds = array<i64: 1, 1, 32>}, {transform_indices = @transform_4, window_bounds = array<i64: 1, 1, 32>}, {transform_indices = @transform_5, window_bounds = array<i64: 1, 4, 4, 32>}]} {
    %c0 = arith.constant 0 : index
    %c0_0 = arith.constant 0 : index
    %c0_1 = arith.constant 0 : index
    %c0_2 = arith.constant 0 : index
    %0 = vector.load %arg2[%c0, %c0_0, %c0_1, %c0_2] : memref<1x4x4x32xf32, #tpu.memory_space<vmem>>, vector<1x4x4x32xf32>
    %1 = vector.shape_cast %0 : vector<1x4x4x32xf32> to vector<4x4x32xf32>
    %c0_3 = arith.constant 0 : index
    %c0_4 = arith.constant 0 : index
    %c0_5 = arith.constant 0 : index
    %c0_6 = arith.constant 0 : index
    %2 = vector.load %arg3[%c0_3, %c0_4, %c0_5, %c0_6] : memref<1x4x4x1xf32, #tpu.memory_space<vmem>>, vector<1x4x4x1xf32>
    %3 = vector.shape_cast %2 : vector<1x4x4x1xf32> to vector<4x4x1xf32>
    %c0_7 = arith.constant 0 : index
    %c0_8 = arith.constant 0 : index
    %c0_9 = arith.constant 0 : index
    %4 = vector.load %arg4[%c0_7, %c0_8, %c0_9] : memref<1x1x32xf32, #tpu.memory_space<vmem>>, vector<1x1x32xf32>
    %5 = vector.shape_cast %4 : vector<1x1x32xf32> to vector<32xf32>
    %6 = vector.shape_cast %5 : vector<32xf32> to vector<1x1x32xf32>
    %7 = vector.broadcast %3 : vector<4x4x1xf32> to vector<4x4x32xf32>
    %8 = vector.broadcast %6 : vector<1x1x32xf32> to vector<4x4x32xf32>
    %9 = arith.mulf %7, %8 : vector<4x4x32xf32>
    %10 = arith.addf %1, %9 : vector<4x4x32xf32>
    %cst = arith.constant 0.000000e+00 : f32
    %11 = vector.broadcast %cst : f32 to vector<4x4x32xf32>
    %12 = arith.cmpf ogt, %10, %11 : vector<4x4x32xf32>
    %cst_10 = arith.constant 2.000000e-01 : f32
    %13 = vector.broadcast %cst_10 : f32 to vector<4x4x32xf32>
    %14 = arith.mulf %13, %10 : vector<4x4x32xf32>
    %15 = arith.select %12, %10, %14 : vector<4x4x32xi1>, vector<4x4x32xf32>
    %cst_11 = arith.constant dense<0.000000e+00> : vector<32xf32>
    %16 = vector.multi_reduction <add>, %15, %cst_11 [0, 1] : vector<4x4x32xf32> to vector<32xf32>
    %17 = vector.shape_cast %16 : vector<32xf32> to vector<1x1x32xf32>
    %cst_12 = arith.constant 1.600000e+01 : f32
    %18 = vector.broadcast %cst_12 : f32 to vector<1x1x32xf32>
    %19 = arith.divf %17, %18 : vector<1x1x32xf32>
    %20 = vector.broadcast %19 : vector<1x1x32xf32> to vector<4x4x32xf32>
    %21 = arith.subf %15, %20 : vector<4x4x32xf32>
    %22 = arith.mulf %21, %21 : vector<4x4x32xf32>
    %cst_13 = arith.constant dense<0.000000e+00> : vector<32xf32>
    %23 = vector.multi_reduction <add>, %22, %cst_13 [0, 1] : vector<4x4x32xf32> to vector<32xf32>
    %24 = vector.shape_cast %23 : vector<32xf32> to vector<1x1x32xf32>
    %cst_14 = arith.constant 1.600000e+01 : f32
    %25 = vector.broadcast %cst_14 : f32 to vector<1x1x32xf32>
    %26 = arith.divf %24, %25 : vector<1x1x32xf32>
    %27 = vector.broadcast %19 : vector<1x1x32xf32> to vector<4x4x32xf32>
    %28 = arith.subf %15, %27 : vector<4x4x32xf32>
    %cst_15 = arith.constant 9.99999974E-6 : f32
    %29 = vector.broadcast %cst_15 : f32 to vector<1x1x32xf32>
    %30 = arith.addf %26, %29 : vector<1x1x32xf32>
    %31 = math.rsqrt %30 : vector<1x1x32xf32>
    %32 = vector.broadcast %31 : vector<1x1x32xf32> to vector<4x4x32xf32>
    %33 = arith.mulf %28, %32 : vector<4x4x32xf32>
    %c0_16 = arith.constant 0 : index
    %c0_17 = arith.constant 0 : index
    %c0_18 = arith.constant 0 : index
    %34 = vector.load %arg5[%c0_16, %c0_17, %c0_18] : memref<1x1x32xf32, #tpu.memory_space<vmem>>, vector<1x1x32xf32>
    %35 = vector.shape_cast %34 : vector<1x1x32xf32> to vector<32xf32>
    %36 = vector.shape_cast %35 : vector<32xf32> to vector<1x1x32xf32>
    %37 = vector.broadcast %36 : vector<1x1x32xf32> to vector<4x4x32xf32>
    %38 = arith.mulf %33, %37 : vector<4x4x32xf32>
    %c0_19 = arith.constant 0 : index
    %c0_20 = arith.constant 0 : index
    %c0_21 = arith.constant 0 : index
    %39 = vector.load %arg6[%c0_19, %c0_20, %c0_21] : memref<1x1x32xf32, #tpu.memory_space<vmem>>, vector<1x1x32xf32>
    %40 = vector.shape_cast %39 : vector<1x1x32xf32> to vector<32xf32>
    %41 = vector.shape_cast %40 : vector<32xf32> to vector<1x1x32xf32>
    %42 = vector.broadcast %41 : vector<1x1x32xf32> to vector<4x4x32xf32>
    %43 = arith.addf %38, %42 : vector<4x4x32xf32>
    %c0_22 = arith.constant 0 : index
    %c0_23 = arith.constant 0 : index
    %c0_24 = arith.constant 0 : index
    %c0_25 = arith.constant 0 : index
    %44 = vector.load %arg7[%c0_22, %c0_23, %c0_24, %c0_25] : memref<1x4x4x32xf32, #tpu.memory_space<vmem>>, vector<1x4x4x32xf32>
    %45 = vector.shape_cast %44 : vector<1x4x4x32xf32> to vector<4x4x32xf32>
    %46 = vector.shape_cast %43 : vector<4x4x32xf32> to vector<1x4x4x32xf32>
    tpu.vector_store %arg7[%c0_22, %c0_23, %c0_24, %c0_25], %46 {strides = array<i32>} : memref<1x4x4x32xf32, #tpu.memory_space<vmem>>, vector<1x4x4x32xf32>,
    return
  }
  func.func @transform_0(%arg0: i32, %arg1: i32) -> (i32, i32, i32, i32) {
    %c0_i32 = arith.constant 0 : i32
    %c0_i32_0 = arith.constant 0 : i32
    %c0_i32_1 = arith.constant 0 : i32
    return %arg0, %c0_i32, %c0_i32_0, %arg1 : i32, i32, i32, i32
  }
  func.func @transform_1(%arg0: i32, %arg1: i32) -> (i32, i32, i32, i32) {
    %c0_i32 = arith.constant 0 : i32
    %c0_i32_0 = arith.constant 0 : i32
    %c0_i32_1 = arith.constant 0 : i32
    %c0_i32_2 = arith.constant 0 : i32
    return %arg0, %c0_i32, %c0_i32_0, %c0_i32_1 : i32, i32, i32, i32
  }
  func.func @transform_2(%arg0: i32, %arg1: i32) -> (i32, i32, i32) {
    %c0_i32 = arith.constant 0 : i32
    %c0_i32_0 = arith.constant 0 : i32
    %c0_i32_1 = arith.constant 0 : i32
    return %c0_i32, %c0_i32_0, %arg1 : i32, i32, i32
  }
  func.func @transform_3(%arg0: i32, %arg1: i32) -> (i32, i32, i32) {
    %c0_i32 = arith.constant 0 : i32
    %c0_i32_0 = arith.constant 0 : i32
    return %arg0, %c0_i32, %arg1 : i32, i32, i32
  }
  func.func @transform_4(%arg0: i32, %arg1: i32) -> (i32, i32, i32) {
    %c0_i32 = arith.constant 0 : i32
    %c0_i32_0 = arith.constant 0 : i32
    return %arg0, %c0_i32, %arg1 : i32, i32, i32
  }
  func.func @transform_5(%arg0: i32, %arg1: i32) -> (i32, i32, i32, i32) {
    %c0_i32 = arith.constant 0 : i32
    %c0_i32_0 = arith.constant 0 : i32
    %c0_i32_1 = arith.constant 0 : i32
    return %arg0, %c0_i32, %c0_i32_0, %arg1 : i32, i32, i32, i32
  }
}

module attributes {stable_mosaic.version = 11 : i64} {
  func.func @_conv3x3_row_kernel(%arg0: i32, %arg1: i32, %arg2: memref<1x1x6x32xbf16, #tpu.memory_space<vmem>>, %arg3: memref<1x1x6x32xbf16, #tpu.memory_space<vmem>>, %arg4: memref<1x1x6x32xbf16, #tpu.memory_space<vmem>>, %arg5: memref<3x3x32x32xbf16, #tpu.memory_space<vmem>>, %arg6: memref<1x32xf32, #tpu.memory_space<vmem>>, %arg7: memref<1x1x4x32xf32, #tpu.memory_space<vmem>>) attributes {dimension_semantics = [#tpu.dimension_semantics<parallel>, #tpu.dimension_semantics<parallel>], iteration_bounds = array<i64: 2, 4>, scalar_prefetch = 0 : i64, scratch_operands = 0 : i64, tpu.core_type = #tpu.core_type<tc>, window_params = [{transform_indices = @transform_0, window_bounds = array<i64: 1, 1, 6, 32>}, {transform_indices = @transform_1, window_bounds = array<i64: 1, 1, 6, 32>}, {transform_indices = @transform_2, window_bounds = array<i64: 1, 1, 6, 32>}, {pipeline_mode = #tpu.pipeline_mode<synchronous>, transform_indices = @transform_3, window_bounds = array<i64: 3, 3, 32, 32>}, {pipeline_mode = #tpu.pipeline_mode<synchronous>, transform_indices = @transform_4, window_bounds = array<i64: 1, 32>}, {transform_indices = @transform_5, window_bounds = array<i64: 1, 1, 4, 32>}]} {
    %c0 = arith.constant 0 : index
    %c0_0 = arith.constant 0 : index
    %c0_1 = arith.constant 0 : index
    %c0_2 = arith.constant 0 : index
    %0 = vector.load %arg2[%c0, %c0_0, %c0_1, %c0_2] : memref<1x1x6x32xbf16, #tpu.memory_space<vmem>>, vector<1x1x6x32xbf16>
    %1 = vector.shape_cast %0 : vector<1x1x6x32xbf16> to vector<6x32xbf16>
    %c0_3 = arith.constant 0 : index
    %c0_4 = arith.constant 0 : index
    %c0_5 = arith.constant 0 : index
    %c0_6 = arith.constant 0 : index
    %2 = vector.load %arg3[%c0_3, %c0_4, %c0_5, %c0_6] : memref<1x1x6x32xbf16, #tpu.memory_space<vmem>>, vector<1x1x6x32xbf16>
    %3 = vector.shape_cast %2 : vector<1x1x6x32xbf16> to vector<6x32xbf16>
    %c0_7 = arith.constant 0 : index
    %c0_8 = arith.constant 0 : index
    %c0_9 = arith.constant 0 : index
    %c0_10 = arith.constant 0 : index
    %4 = vector.load %arg4[%c0_7, %c0_8, %c0_9, %c0_10] : memref<1x1x6x32xbf16, #tpu.memory_space<vmem>>, vector<1x1x6x32xbf16>
    %5 = vector.shape_cast %4 : vector<1x1x6x32xbf16> to vector<6x32xbf16>
    %cst = arith.constant 0.000000e+00 : f32
    %6 = vector.broadcast %cst : f32 to vector<4x32xf32>
    %c0_11 = arith.constant 0 : index
    %c0_12 = arith.constant 0 : index
    %c0_13 = arith.constant 0 : index
    %c0_14 = arith.constant 0 : index
    %7 = vector.load %arg5[%c0_11, %c0_12, %c0_13, %c0_14] : memref<3x3x32x32xbf16, #tpu.memory_space<vmem>>, vector<1x1x32x32xbf16>
    %8 = vector.shape_cast %7 : vector<1x1x32x32xbf16> to vector<32x32xbf16>
    %cst_15 = arith.constant dense<0.000000e+00> : vector<6x32xf32>
    %9 = tpu.matmul %1, %8, %cst_15 {dimension_numbers = #tpu.dot_dimension_numbers<[1], [0], [0], [1], [0, 0, 1, 1], [], []>} : vector<6x32xbf16>, vector<32x32xbf16>, vector<6x32xf32> -> vector<6x32xf32>
    %10 = vector.extract_strided_slice %9 {offsets = [0, 0], sizes = [4, 32], strides = [1, 1]} : vector<6x32xf32> to vector<4x32xf32>
    %11 = arith.addf %6, %10 : vector<4x32xf32>
    %c0_16 = arith.constant 0 : index
    %c1 = arith.constant 1 : index
    %c0_17 = arith.constant 0 : index
    %c0_18 = arith.constant 0 : index
    %12 = vector.load %arg5[%c0_16, %c1, %c0_17, %c0_18] : memref<3x3x32x32xbf16, #tpu.memory_space<vmem>>, vector<1x1x32x32xbf16>
    %13 = vector.shape_cast %12 : vector<1x1x32x32xbf16> to vector<32x32xbf16>
    %cst_19 = arith.constant dense<0.000000e+00> : vector<6x32xf32>
    %14 = tpu.matmul %1, %13, %cst_19 {dimension_numbers = #tpu.dot_dimension_numbers<[1], [0], [0], [1], [0, 0, 1, 1], [], []>} : vector<6x32xbf16>, vector<32x32xbf16>, vector<6x32xf32> -> vector<6x32xf32>
    %15 = vector.extract_strided_slice %14 {offsets = [1, 0], sizes = [4, 32], strides = [1, 1]} : vector<6x32xf32> to vector<4x32xf32>
    %16 = arith.addf %11, %15 : vector<4x32xf32>
    %c0_20 = arith.constant 0 : index
    %c2 = arith.constant 2 : index
    %c0_21 = arith.constant 0 : index
    %c0_22 = arith.constant 0 : index
    %17 = vector.load %arg5[%c0_20, %c2, %c0_21, %c0_22] : memref<3x3x32x32xbf16, #tpu.memory_space<vmem>>, vector<1x1x32x32xbf16>
    %18 = vector.shape_cast %17 : vector<1x1x32x32xbf16> to vector<32x32xbf16>
    %cst_23 = arith.constant dense<0.000000e+00> : vector<6x32xf32>
    %19 = tpu.matmul %1, %18, %cst_23 {dimension_numbers = #tpu.dot_dimension_numbers<[1], [0], [0], [1], [0, 0, 1, 1], [], []>} : vector<6x32xbf16>, vector<32x32xbf16>, vector<6x32xf32> -> vector<6x32xf32>
    %20 = vector.extract_strided_slice %19 {offsets = [2, 0], sizes = [4, 32], strides = [1, 1]} : vector<6x32xf32> to vector<4x32xf32>
    %21 = arith.addf %16, %20 : vector<4x32xf32>
    %c1_24 = arith.constant 1 : index
    %c0_25 = arith.constant 0 : index
    %c0_26 = arith.constant 0 : index
    %c0_27 = arith.constant 0 : index
    %22 = vector.load %arg5[%c1_24, %c0_25, %c0_26, %c0_27] : memref<3x3x32x32xbf16, #tpu.memory_space<vmem>>, vector<1x1x32x32xbf16>
    %23 = vector.shape_cast %22 : vector<1x1x32x32xbf16> to vector<32x32xbf16>
    %cst_28 = arith.constant dense<0.000000e+00> : vector<6x32xf32>
    %24 = tpu.matmul %3, %23, %cst_28 {dimension_numbers = #tpu.dot_dimension_numbers<[1], [0], [0], [1], [0, 0, 1, 1], [], []>} : vector<6x32xbf16>, vector<32x32xbf16>, vector<6x32xf32> -> vector<6x32xf32>
    %25 = vector.extract_strided_slice %24 {offsets = [0, 0], sizes = [4, 32], strides = [1, 1]} : vector<6x32xf32> to vector<4x32xf32>
    %26 = arith.addf %21, %25 : vector<4x32xf32>
    %c1_29 = arith.constant 1 : index
    %c1_30 = arith.constant 1 : index
    %c0_31 = arith.constant 0 : index
    %c0_32 = arith.constant 0 : index
    %27 = vector.load %arg5[%c1_29, %c1_30, %c0_31, %c0_32] : memref<3x3x32x32xbf16, #tpu.memory_space<vmem>>, vector<1x1x32x32xbf16>
    %28 = vector.shape_cast %27 : vector<1x1x32x32xbf16> to vector<32x32xbf16>
    %cst_33 = arith.constant dense<0.000000e+00> : vector<6x32xf32>
    %29 = tpu.matmul %3, %28, %cst_33 {dimension_numbers = #tpu.dot_dimension_numbers<[1], [0], [0], [1], [0, 0, 1, 1], [], []>} : vector<6x32xbf16>, vector<32x32xbf16>, vector<6x32xf32> -> vector<6x32xf32>
    %30 = vector.extract_strided_slice %29 {offsets = [1, 0], sizes = [4, 32], strides = [1, 1]} : vector<6x32xf32> to vector<4x32xf32>
    %31 = arith.addf %26, %30 : vector<4x32xf32>
    %c1_34 = arith.constant 1 : index
    %c2_35 = arith.constant 2 : index
    %c0_36 = arith.constant 0 : index
    %c0_37 = arith.constant 0 : index
    %32 = vector.load %arg5[%c1_34, %c2_35, %c0_36, %c0_37] : memref<3x3x32x32xbf16, #tpu.memory_space<vmem>>, vector<1x1x32x32xbf16>
    %33 = vector.shape_cast %32 : vector<1x1x32x32xbf16> to vector<32x32xbf16>
    %cst_38 = arith.constant dense<0.000000e+00> : vector<6x32xf32>
    %34 = tpu.matmul %3, %33, %cst_38 {dimension_numbers = #tpu.dot_dimension_numbers<[1], [0], [0], [1], [0, 0, 1, 1], [], []>} : vector<6x32xbf16>, vector<32x32xbf16>, vector<6x32xf32> -> vector<6x32xf32>
    %35 = vector.extract_strided_slice %34 {offsets = [2, 0], sizes = [4, 32], strides = [1, 1]} : vector<6x32xf32> to vector<4x32xf32>
    %36 = arith.addf %31, %35 : vector<4x32xf32>
    %c2_39 = arith.constant 2 : index
    %c0_40 = arith.constant 0 : index
    %c0_41 = arith.constant 0 : index
    %c0_42 = arith.constant 0 : index
    %37 = vector.load %arg5[%c2_39, %c0_40, %c0_41, %c0_42] : memref<3x3x32x32xbf16, #tpu.memory_space<vmem>>, vector<1x1x32x32xbf16>
    %38 = vector.shape_cast %37 : vector<1x1x32x32xbf16> to vector<32x32xbf16>
    %cst_43 = arith.constant dense<0.000000e+00> : vector<6x32xf32>
    %39 = tpu.matmul %5, %38, %cst_43 {dimension_numbers = #tpu.dot_dimension_numbers<[1], [0], [0], [1], [0, 0, 1, 1], [], []>} : vector<6x32xbf16>, vector<32x32xbf16>, vector<6x32xf32> -> vector<6x32xf32>
    %40 = vector.extract_strided_slice %39 {offsets = [0, 0], sizes = [4, 32], strides = [1, 1]} : vector<6x32xf32> to vector<4x32xf32>
    %41 = arith.addf %36, %40 : vector<4x32xf32>
    %c2_44 = arith.constant 2 : index
    %c1_45 = arith.constant 1 : index
    %c0_46 = arith.constant 0 : index
    %c0_47 = arith.constant 0 : index
    %42 = vector.load %arg5[%c2_44, %c1_45, %c0_46, %c0_47] : memref<3x3x32x32xbf16, #tpu.memory_space<vmem>>, vector<1x1x32x32xbf16>
    %43 = vector.shape_cast %42 : vector<1x1x32x32xbf16> to vector<32x32xbf16>
    %cst_48 = arith.constant dense<0.000000e+00> : vector<6x32xf32>
    %44 = tpu.matmul %5, %43, %cst_48 {dimension_numbers = #tpu.dot_dimension_numbers<[1], [0], [0], [1], [0, 0, 1, 1], [], []>} : vector<6x32xbf16>, vector<32x32xbf16>, vector<6x32xf32> -> vector<6x32xf32>
    %45 = vector.extract_strided_slice %44 {offsets = [1, 0], sizes = [4, 32], strides = [1, 1]} : vector<6x32xf32> to vector<4x32xf32>
    %46 = arith.addf %41, %45 : vector<4x32xf32>
    %c2_49 = arith.constant 2 : index
    %c2_50 = arith.constant 2 : index
    %c0_51 = arith.constant 0 : index
    %c0_52 = arith.constant 0 : index
    %47 = vector.load %arg5[%c2_49, %c2_50, %c0_51, %c0_52] : memref<3x3x32x32xbf16, #tpu.memory_space<vmem>>, vector<1x1x32x32xbf16>
    %48 = vector.shape_cast %47 : vector<1x1x32x32xbf16> to vector<32x32xbf16>
    %cst_53 = arith.constant dense<0.000000e+00> : vector<6x32xf32>
    %49 = tpu.matmul %5, %48, %cst_53 {dimension_numbers = #tpu.dot_dimension_numbers<[1], [0], [0], [1], [0, 0, 1, 1], [], []>} : vector<6x32xbf16>, vector<32x32xbf16>, vector<6x32xf32> -> vector<6x32xf32>
    %50 = vector.extract_strided_slice %49 {offsets = [2, 0], sizes = [4, 32], strides = [1, 1]} : vector<6x32xf32> to vector<4x32xf32>
    %51 = arith.addf %46, %50 : vector<4x32xf32>
    %c0_54 = arith.constant 0 : index
    %c0_55 = arith.constant 0 : index
    %52 = vector.load %arg6[%c0_54, %c0_55] : memref<1x32xf32, #tpu.memory_space<vmem>>, vector<1x32xf32>
    %53 = vector.broadcast %52 : vector<1x32xf32> to vector<4x32xf32>
    %54 = arith.addf %51, %53 : vector<4x32xf32>
    %c0_56 = arith.constant 0 : index
    %c0_57 = arith.constant 0 : index
    %c0_58 = arith.constant 0 : index
    %c0_59 = arith.constant 0 : index
    %55 = vector.load %arg7[%c0_56, %c0_57, %c0_58, %c0_59] : memref<1x1x4x32xf32, #tpu.memory_space<vmem>>, vector<1x1x4x32xf32>
    %56 = vector.shape_cast %55 : vector<1x1x4x32xf32> to vector<4x32xf32>
    %57 = vector.shape_cast %54 : vector<4x32xf32> to vector<1x1x4x32xf32>
    tpu.vector_store %arg7[%c0_56, %c0_57, %c0_58, %c0_59], %57 {strides = array<i32>} : memref<1x1x4x32xf32, #tpu.memory_space<vmem>>, vector<1x1x4x32xf32>,
    return
  }
  func.func @transform_0(%arg0: i32, %arg1: i32) -> (i32, i32, i32, i32) {
    %c0_i32 = arith.constant 0 : i32
    %0 = arith.addi %arg1, %c0_i32 : i32
    %c0_i32_0 = arith.constant 0 : i32
    %c0_i32_1 = arith.constant 0 : i32
    %c0_i32_2 = arith.constant 0 : i32
    return %arg0, %0, %c0_i32_0, %c0_i32_1 : i32, i32, i32, i32
  }
  func.func @transform_1(%arg0: i32, %arg1: i32) -> (i32, i32, i32, i32) {
    %c1_i32 = arith.constant 1 : i32
    %0 = arith.addi %arg1, %c1_i32 : i32
    %c0_i32 = arith.constant 0 : i32
    %c0_i32_0 = arith.constant 0 : i32
    %c0_i32_1 = arith.constant 0 : i32
    return %arg0, %0, %c0_i32, %c0_i32_0 : i32, i32, i32, i32
  }
  func.func @transform_2(%arg0: i32, %arg1: i32) -> (i32, i32, i32, i32) {
    %c2_i32 = arith.constant 2 : i32
    %0 = arith.addi %arg1, %c2_i32 : i32
    %c0_i32 = arith.constant 0 : i32
    %c0_i32_0 = arith.constant 0 : i32
    %c0_i32_1 = arith.constant 0 : i32
    return %arg0, %0, %c0_i32, %c0_i32_0 : i32, i32, i32, i32
  }
  func.func @transform_3(%arg0: i32, %arg1: i32) -> (i32, i32, i32, i32) {
    %c0_i32 = arith.constant 0 : i32
    %c0_i32_0 = arith.constant 0 : i32
    %c0_i32_1 = arith.constant 0 : i32
    %c0_i32_2 = arith.constant 0 : i32
    %c0_i32_3 = arith.constant 0 : i32
    return %c0_i32, %c0_i32_0, %c0_i32_1, %c0_i32_2 : i32, i32, i32, i32
  }
  func.func @transform_4(%arg0: i32, %arg1: i32) -> (i32, i32) {
    %c0_i32 = arith.constant 0 : i32
    %c0_i32_0 = arith.constant 0 : i32
    %c0_i32_1 = arith.constant 0 : i32
    return %c0_i32, %c0_i32_0 : i32, i32
  }
  func.func @transform_5(%arg0: i32, %arg1: i32) -> (i32, i32, i32, i32) {
    %c0_i32 = arith.constant 0 : i32
    %c0_i32_0 = arith.constant 0 : i32
    %c0_i32_1 = arith.constant 0 : i32
    return %arg0, %arg1, %c0_i32, %c0_i32_0 : i32, i32, i32, i32
  }
}

module attributes {stable_mosaic.version = 11 : i64} {
  func.func @_conv3x3_row_kernel(%arg0: i32, %arg1: i32, %arg2: memref<1x1x10x32xbf16, #tpu.memory_space<vmem>>, %arg3: memref<1x1x10x32xbf16, #tpu.memory_space<vmem>>, %arg4: memref<1x1x10x32xbf16, #tpu.memory_space<vmem>>, %arg5: memref<3x3x32x32xbf16, #tpu.memory_space<vmem>>, %arg6: memref<1x32xf32, #tpu.memory_space<vmem>>, %arg7: memref<1x1x8x32xf32, #tpu.memory_space<vmem>>) attributes {dimension_semantics = [#tpu.dimension_semantics<parallel>, #tpu.dimension_semantics<parallel>], iteration_bounds = array<i64: 2, 8>, scalar_prefetch = 0 : i64, scratch_operands = 0 : i64, tpu.core_type = #tpu.core_type<tc>, window_params = [{transform_indices = @transform_0, window_bounds = array<i64: 1, 1, 10, 32>}, {transform_indices = @transform_1, window_bounds = array<i64: 1, 1, 10, 32>}, {transform_indices = @transform_2, window_bounds = array<i64: 1, 1, 10, 32>}, {pipeline_mode = #tpu.pipeline_mode<synchronous>, transform_indices = @transform_3, window_bounds = array<i64: 3, 3, 32, 32>}, {pipeline_mode = #tpu.pipeline_mode<synchronous>, transform_indices = @transform_4, window_bounds = array<i64: 1, 32>}, {transform_indices = @transform_5, window_bounds = array<i64: 1, 1, 8, 32>}]} {
    %c0 = arith.constant 0 : index
    %c0_0 = arith.constant 0 : index
    %c0_1 = arith.constant 0 : index
    %c0_2 = arith.constant 0 : index
    %0 = vector.load %arg2[%c0, %c0_0, %c0_1, %c0_2] : memref<1x1x10x32xbf16, #tpu.memory_space<vmem>>, vector<1x1x10x32xbf16>
    %1 = vector.shape_cast %0 : vector<1x1x10x32xbf16> to vector<10x32xbf16>
    %c0_3 = arith.constant 0 : index
    %c0_4 = arith.constant 0 : index
    %c0_5 = arith.constant 0 : index
    %c0_6 = arith.constant 0 : index
    %2 = vector.load %arg3[%c0_3, %c0_4, %c0_5, %c0_6] : memref<1x1x10x32xbf16, #tpu.memory_space<vmem>>, vector<1x1x10x32xbf16>
    %3 = vector.shape_cast %2 : vector<1x1x10x32xbf16> to vector<10x32xbf16>
    %c0_7 = arith.constant 0 : index
    %c0_8 = arith.constant 0 : index
    %c0_9 = arith.constant 0 : index
    %c0_10 = arith.constant 0 : index
    %4 = vector.load %arg4[%c0_7, %c0_8, %c0_9, %c0_10] : memref<1x1x10x32xbf16, #tpu.memory_space<vmem>>, vector<1x1x10x32xbf16>
    %5 = vector.shape_cast %4 : vector<1x1x10x32xbf16> to vector<10x32xbf16>
    %cst = arith.constant 0.000000e+00 : f32
    %6 = vector.broadcast %cst : f32 to vector<8x32xf32>
    %c0_11 = arith.constant 0 : index
    %c0_12 = arith.constant 0 : index
    %c0_13 = arith.constant 0 : index
    %c0_14 = arith.constant 0 : index
    %7 = vector.load %arg5[%c0_11, %c0_12, %c0_13, %c0_14] : memref<3x3x32x32xbf16, #tpu.memory_space<vmem>>, vector<1x1x32x32xbf16>
    %8 = vector.shape_cast %7 : vector<1x1x32x32xbf16> to vector<32x32xbf16>
    %cst_15 = arith.constant dense<0.000000e+00> : vector<10x32xf32>
    %9 = tpu.matmul %1, %8, %cst_15 {dimension_numbers = #tpu.dot_dimension_numbers<[1], [0], [0], [1], [0, 0, 1, 1], [], []>} : vector<10x32xbf16>, vector<32x32xbf16>, vector<10x32xf32> -> vector<10x32xf32>
    %10 = vector.extract_strided_slice %9 {offsets = [0, 0], sizes = [8, 32], strides = [1, 1]} : vector<10x32xf32> to vector<8x32xf32>
    %11 = arith.addf %6, %10 : vector<8x32xf32>
    %c0_16 = arith.constant 0 : index
    %c1 = arith.constant 1 : index
    %c0_17 = arith.constant 0 : index
    %c0_18 = arith.constant 0 : index
    %12 = vector.load %arg5[%c0_16, %c1, %c0_17, %c0_18] : memref<3x3x32x32xbf16, #tpu.memory_space<vmem>>, vector<1x1x32x32xbf16>
    %13 = vector.shape_cast %12 : vector<1x1x32x32xbf16> to vector<32x32xbf16>
    %cst_19 = arith.constant dense<0.000000e+00> : vector<10x32xf32>
    %14 = tpu.matmul %1, %13, %cst_19 {dimension_numbers = #tpu.dot_dimension_numbers<[1], [0], [0], [1], [0, 0, 1, 1], [], []>} : vector<10x32xbf16>, vector<32x32xbf16>, vector<10x32xf32> -> vector<10x32xf32>
    %15 = vector.extract_strided_slice %14 {offsets = [1, 0], sizes = [8, 32], strides = [1, 1]} : vector<10x32xf32> to vector<8x32xf32>
    %16 = arith.addf %11, %15 : vector<8x32xf32>
    %c0_20 = arith.constant 0 : index
    %c2 = arith.constant 2 : index
    %c0_21 = arith.constant 0 : index
    %c0_22 = arith.constant 0 : index
    %17 = vector.load %arg5[%c0_20, %c2, %c0_21, %c0_22] : memref<3x3x32x32xbf16, #tpu.memory_space<vmem>>, vector<1x1x32x32xbf16>
    %18 = vector.shape_cast %17 : vector<1x1x32x32xbf16> to vector<32x32xbf16>
    %cst_23 = arith.constant dense<0.000000e+00> : vector<10x32xf32>
    %19 = tpu.matmul %1, %18, %cst_23 {dimension_numbers = #tpu.dot_dimension_numbers<[1], [0], [0], [1], [0, 0, 1, 1], [], []>} : vector<10x32xbf16>, vector<32x32xbf16>, vector<10x32xf32> -> vector<10x32xf32>
    %20 = vector.extract_strided_slice %19 {offsets = [2, 0], sizes = [8, 32], strides = [1, 1]} : vector<10x32xf32> to vector<8x32xf32>
    %21 = arith.addf %16, %20 : vector<8x32xf32>
    %c1_24 = arith.constant 1 : index
    %c0_25 = arith.constant 0 : index
    %c0_26 = arith.constant 0 : index
    %c0_27 = arith.constant 0 : index
    %22 = vector.load %arg5[%c1_24, %c0_25, %c0_26, %c0_27] : memref<3x3x32x32xbf16, #tpu.memory_space<vmem>>, vector<1x1x32x32xbf16>
    %23 = vector.shape_cast %22 : vector<1x1x32x32xbf16> to vector<32x32xbf16>
    %cst_28 = arith.constant dense<0.000000e+00> : vector<10x32xf32>
    %24 = tpu.matmul %3, %23, %cst_28 {dimension_numbers = #tpu.dot_dimension_numbers<[1], [0], [0], [1], [0, 0, 1, 1], [], []>} : vector<10x32xbf16>, vector<32x32xbf16>, vector<10x32xf32> -> vector<10x32xf32>
    %25 = vector.extract_strided_slice %24 {offsets = [0, 0], sizes = [8, 32], strides = [1, 1]} : vector<10x32xf32> to vector<8x32xf32>
    %26 = arith.addf %21, %25 : vector<8x32xf32>
    %c1_29 = arith.constant 1 : index
    %c1_30 = arith.constant 1 : index
    %c0_31 = arith.constant 0 : index
    %c0_32 = arith.constant 0 : index
    %27 = vector.load %arg5[%c1_29, %c1_30, %c0_31, %c0_32] : memref<3x3x32x32xbf16, #tpu.memory_space<vmem>>, vector<1x1x32x32xbf16>
    %28 = vector.shape_cast %27 : vector<1x1x32x32xbf16> to vector<32x32xbf16>
    %cst_33 = arith.constant dense<0.000000e+00> : vector<10x32xf32>
    %29 = tpu.matmul %3, %28, %cst_33 {dimension_numbers = #tpu.dot_dimension_numbers<[1], [0], [0], [1], [0, 0, 1, 1], [], []>} : vector<10x32xbf16>, vector<32x32xbf16>, vector<10x32xf32> -> vector<10x32xf32>
    %30 = vector.extract_strided_slice %29 {offsets = [1, 0], sizes = [8, 32], strides = [1, 1]} : vector<10x32xf32> to vector<8x32xf32>
    %31 = arith.addf %26, %30 : vector<8x32xf32>
    %c1_34 = arith.constant 1 : index
    %c2_35 = arith.constant 2 : index
    %c0_36 = arith.constant 0 : index
    %c0_37 = arith.constant 0 : index
    %32 = vector.load %arg5[%c1_34, %c2_35, %c0_36, %c0_37] : memref<3x3x32x32xbf16, #tpu.memory_space<vmem>>, vector<1x1x32x32xbf16>
    %33 = vector.shape_cast %32 : vector<1x1x32x32xbf16> to vector<32x32xbf16>
    %cst_38 = arith.constant dense<0.000000e+00> : vector<10x32xf32>
    %34 = tpu.matmul %3, %33, %cst_38 {dimension_numbers = #tpu.dot_dimension_numbers<[1], [0], [0], [1], [0, 0, 1, 1], [], []>} : vector<10x32xbf16>, vector<32x32xbf16>, vector<10x32xf32> -> vector<10x32xf32>
    %35 = vector.extract_strided_slice %34 {offsets = [2, 0], sizes = [8, 32], strides = [1, 1]} : vector<10x32xf32> to vector<8x32xf32>
    %36 = arith.addf %31, %35 : vector<8x32xf32>
    %c2_39 = arith.constant 2 : index
    %c0_40 = arith.constant 0 : index
    %c0_41 = arith.constant 0 : index
    %c0_42 = arith.constant 0 : index
    %37 = vector.load %arg5[%c2_39, %c0_40, %c0_41, %c0_42] : memref<3x3x32x32xbf16, #tpu.memory_space<vmem>>, vector<1x1x32x32xbf16>
    %38 = vector.shape_cast %37 : vector<1x1x32x32xbf16> to vector<32x32xbf16>
    %cst_43 = arith.constant dense<0.000000e+00> : vector<10x32xf32>
    %39 = tpu.matmul %5, %38, %cst_43 {dimension_numbers = #tpu.dot_dimension_numbers<[1], [0], [0], [1], [0, 0, 1, 1], [], []>} : vector<10x32xbf16>, vector<32x32xbf16>, vector<10x32xf32> -> vector<10x32xf32>
    %40 = vector.extract_strided_slice %39 {offsets = [0, 0], sizes = [8, 32], strides = [1, 1]} : vector<10x32xf32> to vector<8x32xf32>
    %41 = arith.addf %36, %40 : vector<8x32xf32>
    %c2_44 = arith.constant 2 : index
    %c1_45 = arith.constant 1 : index
    %c0_46 = arith.constant 0 : index
    %c0_47 = arith.constant 0 : index
    %42 = vector.load %arg5[%c2_44, %c1_45, %c0_46, %c0_47] : memref<3x3x32x32xbf16, #tpu.memory_space<vmem>>, vector<1x1x32x32xbf16>
    %43 = vector.shape_cast %42 : vector<1x1x32x32xbf16> to vector<32x32xbf16>
    %cst_48 = arith.constant dense<0.000000e+00> : vector<10x32xf32>
    %44 = tpu.matmul %5, %43, %cst_48 {dimension_numbers = #tpu.dot_dimension_numbers<[1], [0], [0], [1], [0, 0, 1, 1], [], []>} : vector<10x32xbf16>, vector<32x32xbf16>, vector<10x32xf32> -> vector<10x32xf32>
    %45 = vector.extract_strided_slice %44 {offsets = [1, 0], sizes = [8, 32], strides = [1, 1]} : vector<10x32xf32> to vector<8x32xf32>
    %46 = arith.addf %41, %45 : vector<8x32xf32>
    %c2_49 = arith.constant 2 : index
    %c2_50 = arith.constant 2 : index
    %c0_51 = arith.constant 0 : index
    %c0_52 = arith.constant 0 : index
    %47 = vector.load %arg5[%c2_49, %c2_50, %c0_51, %c0_52] : memref<3x3x32x32xbf16, #tpu.memory_space<vmem>>, vector<1x1x32x32xbf16>
    %48 = vector.shape_cast %47 : vector<1x1x32x32xbf16> to vector<32x32xbf16>
    %cst_53 = arith.constant dense<0.000000e+00> : vector<10x32xf32>
    %49 = tpu.matmul %5, %48, %cst_53 {dimension_numbers = #tpu.dot_dimension_numbers<[1], [0], [0], [1], [0, 0, 1, 1], [], []>} : vector<10x32xbf16>, vector<32x32xbf16>, vector<10x32xf32> -> vector<10x32xf32>
    %50 = vector.extract_strided_slice %49 {offsets = [2, 0], sizes = [8, 32], strides = [1, 1]} : vector<10x32xf32> to vector<8x32xf32>
    %51 = arith.addf %46, %50 : vector<8x32xf32>
    %c0_54 = arith.constant 0 : index
    %c0_55 = arith.constant 0 : index
    %52 = vector.load %arg6[%c0_54, %c0_55] : memref<1x32xf32, #tpu.memory_space<vmem>>, vector<1x32xf32>
    %53 = vector.broadcast %52 : vector<1x32xf32> to vector<8x32xf32>
    %54 = arith.addf %51, %53 : vector<8x32xf32>
    %c0_56 = arith.constant 0 : index
    %c0_57 = arith.constant 0 : index
    %c0_58 = arith.constant 0 : index
    %c0_59 = arith.constant 0 : index
    %55 = vector.load %arg7[%c0_56, %c0_57, %c0_58, %c0_59] : memref<1x1x8x32xf32, #tpu.memory_space<vmem>>, vector<1x1x8x32xf32>
    %56 = vector.shape_cast %55 : vector<1x1x8x32xf32> to vector<8x32xf32>
    %57 = vector.shape_cast %54 : vector<8x32xf32> to vector<1x1x8x32xf32>
    tpu.vector_store %arg7[%c0_56, %c0_57, %c0_58, %c0_59], %57 {strides = array<i32>} : memref<1x1x8x32xf32, #tpu.memory_space<vmem>>, vector<1x1x8x32xf32>,
    return
  }
  func.func @transform_0(%arg0: i32, %arg1: i32) -> (i32, i32, i32, i32) {
    %c0_i32 = arith.constant 0 : i32
    %0 = arith.addi %arg1, %c0_i32 : i32
    %c0_i32_0 = arith.constant 0 : i32
    %c0_i32_1 = arith.constant 0 : i32
    %c0_i32_2 = arith.constant 0 : i32
    return %arg0, %0, %c0_i32_0, %c0_i32_1 : i32, i32, i32, i32
  }
  func.func @transform_1(%arg0: i32, %arg1: i32) -> (i32, i32, i32, i32) {
    %c1_i32 = arith.constant 1 : i32
    %0 = arith.addi %arg1, %c1_i32 : i32
    %c0_i32 = arith.constant 0 : i32
    %c0_i32_0 = arith.constant 0 : i32
    %c0_i32_1 = arith.constant 0 : i32
    return %arg0, %0, %c0_i32, %c0_i32_0 : i32, i32, i32, i32
  }
  func.func @transform_2(%arg0: i32, %arg1: i32) -> (i32, i32, i32, i32) {
    %c2_i32 = arith.constant 2 : i32
    %0 = arith.addi %arg1, %c2_i32 : i32
    %c0_i32 = arith.constant 0 : i32
    %c0_i32_0 = arith.constant 0 : i32
    %c0_i32_1 = arith.constant 0 : i32
    return %arg0, %0, %c0_i32, %c0_i32_0 : i32, i32, i32, i32
  }
  func.func @transform_3(%arg0: i32, %arg1: i32) -> (i32, i32, i32, i32) {
    %c0_i32 = arith.constant 0 : i32
    %c0_i32_0 = arith.constant 0 : i32
    %c0_i32_1 = arith.constant 0 : i32
    %c0_i32_2 = arith.constant 0 : i32
    %c0_i32_3 = arith.constant 0 : i32
    return %c0_i32, %c0_i32_0, %c0_i32_1, %c0_i32_2 : i32, i32, i32, i32
  }
  func.func @transform_4(%arg0: i32, %arg1: i32) -> (i32, i32) {
    %c0_i32 = arith.constant 0 : i32
    %c0_i32_0 = arith.constant 0 : i32
    %c0_i32_1 = arith.constant 0 : i32
    return %c0_i32, %c0_i32_0 : i32, i32
  }
  func.func @transform_5(%arg0: i32, %arg1: i32) -> (i32, i32, i32, i32) {
    %c0_i32 = arith.constant 0 : i32
    %c0_i32_0 = arith.constant 0 : i32
    %c0_i32_1 = arith.constant 0 : i32
    return %arg0, %arg1, %c0_i32, %c0_i32_0 : i32, i32, i32, i32
  }
}

module attributes {stable_mosaic.version = 11 : i64} {
  func.func @_noise_in_adain_kernel(%arg0: i32, %arg1: i32, %arg2: memref<1x8x8x32xf32, #tpu.memory_space<vmem>>, %arg3: memref<1x8x8x1xf32, #tpu.memory_space<vmem>>, %arg4: memref<1x1x32xf32, #tpu.memory_space<vmem>>, %arg5: memref<1x1x32xf32, #tpu.memory_space<vmem>>, %arg6: memref<1x1x32xf32, #tpu.memory_space<vmem>>, %arg7: memref<1x8x8x32xf32, #tpu.memory_space<vmem>>) attributes {dimension_semantics = [#tpu.dimension_semantics<parallel>, #tpu.dimension_semantics<parallel>], iteration_bounds = array<i64: 2, 1>, scalar_prefetch = 0 : i64, scratch_operands = 0 : i64, tpu.core_type = #tpu.core_type<tc>, window_params = [{transform_indices = @transform_0, window_bounds = array<i64: 1, 8, 8, 32>}, {transform_indices = @transform_1, window_bounds = array<i64: 1, 8, 8, 1>}, {transform_indices = @transform_2, window_bounds = array<i64: 1, 1, 32>}, {transform_indices = @transform_3, window_bounds = array<i64: 1, 1, 32>}, {transform_indices = @transform_4, window_bounds = array<i64: 1, 1, 32>}, {transform_indices = @transform_5, window_bounds = array<i64: 1, 8, 8, 32>}]} {
    %c0 = arith.constant 0 : index
    %c0_0 = arith.constant 0 : index
    %c0_1 = arith.constant 0 : index
    %c0_2 = arith.constant 0 : index
    %0 = vector.load %arg2[%c0, %c0_0, %c0_1, %c0_2] : memref<1x8x8x32xf32, #tpu.memory_space<vmem>>, vector<1x8x8x32xf32>
    %1 = vector.shape_cast %0 : vector<1x8x8x32xf32> to vector<8x8x32xf32>
    %c0_3 = arith.constant 0 : index
    %c0_4 = arith.constant 0 : index
    %c0_5 = arith.constant 0 : index
    %c0_6 = arith.constant 0 : index
    %2 = vector.load %arg3[%c0_3, %c0_4, %c0_5, %c0_6] : memref<1x8x8x1xf32, #tpu.memory_space<vmem>>, vector<1x8x8x1xf32>
    %3 = vector.shape_cast %2 : vector<1x8x8x1xf32> to vector<8x8x1xf32>
    %c0_7 = arith.constant 0 : index
    %c0_8 = arith.constant 0 : index
    %c0_9 = arith.constant 0 : index
    %4 = vector.load %arg4[%c0_7, %c0_8, %c0_9] : memref<1x1x32xf32, #tpu.memory_space<vmem>>, vector<1x1x32xf32>
    %5 = vector.shape_cast %4 : vector<1x1x32xf32> to vector<32xf32>
    %6 = vector.shape_cast %5 : vector<32xf32> to vector<1x1x32xf32>
    %7 = vector.broadcast %3 : vector<8x8x1xf32> to vector<8x8x32xf32>
    %8 = vector.broadcast %6 : vector<1x1x32xf32> to vector<8x8x32xf32>
    %9 = arith.mulf %7, %8 : vector<8x8x32xf32>
    %10 = arith.addf %1, %9 : vector<8x8x32xf32>
    %cst = arith.constant 0.000000e+00 : f32
    %11 = vector.broadcast %cst : f32 to vector<8x8x32xf32>
    %12 = arith.cmpf ogt, %10, %11 : vector<8x8x32xf32>
    %cst_10 = arith.constant 2.000000e-01 : f32
    %13 = vector.broadcast %cst_10 : f32 to vector<8x8x32xf32>
    %14 = arith.mulf %13, %10 : vector<8x8x32xf32>
    %15 = arith.select %12, %10, %14 : vector<8x8x32xi1>, vector<8x8x32xf32>
    %cst_11 = arith.constant dense<0.000000e+00> : vector<32xf32>
    %16 = vector.multi_reduction <add>, %15, %cst_11 [0, 1] : vector<8x8x32xf32> to vector<32xf32>
    %17 = vector.shape_cast %16 : vector<32xf32> to vector<1x1x32xf32>
    %cst_12 = arith.constant 6.400000e+01 : f32
    %18 = vector.broadcast %cst_12 : f32 to vector<1x1x32xf32>
    %19 = arith.divf %17, %18 : vector<1x1x32xf32>
    %20 = vector.broadcast %19 : vector<1x1x32xf32> to vector<8x8x32xf32>
    %21 = arith.subf %15, %20 : vector<8x8x32xf32>
    %22 = arith.mulf %21, %21 : vector<8x8x32xf32>
    %cst_13 = arith.constant dense<0.000000e+00> : vector<32xf32>
    %23 = vector.multi_reduction <add>, %22, %cst_13 [0, 1] : vector<8x8x32xf32> to vector<32xf32>
    %24 = vector.shape_cast %23 : vector<32xf32> to vector<1x1x32xf32>
    %cst_14 = arith.constant 6.400000e+01 : f32
    %25 = vector.broadcast %cst_14 : f32 to vector<1x1x32xf32>
    %26 = arith.divf %24, %25 : vector<1x1x32xf32>
    %27 = vector.broadcast %19 : vector<1x1x32xf32> to vector<8x8x32xf32>
    %28 = arith.subf %15, %27 : vector<8x8x32xf32>
    %cst_15 = arith.constant 9.99999974E-6 : f32
    %29 = vector.broadcast %cst_15 : f32 to vector<1x1x32xf32>
    %30 = arith.addf %26, %29 : vector<1x1x32xf32>
    %31 = math.rsqrt %30 : vector<1x1x32xf32>
    %32 = vector.broadcast %31 : vector<1x1x32xf32> to vector<8x8x32xf32>
    %33 = arith.mulf %28, %32 : vector<8x8x32xf32>
    %c0_16 = arith.constant 0 : index
    %c0_17 = arith.constant 0 : index
    %c0_18 = arith.constant 0 : index
    %34 = vector.load %arg5[%c0_16, %c0_17, %c0_18] : memref<1x1x32xf32, #tpu.memory_space<vmem>>, vector<1x1x32xf32>
    %35 = vector.shape_cast %34 : vector<1x1x32xf32> to vector<32xf32>
    %36 = vector.shape_cast %35 : vector<32xf32> to vector<1x1x32xf32>
    %37 = vector.broadcast %36 : vector<1x1x32xf32> to vector<8x8x32xf32>
    %38 = arith.mulf %33, %37 : vector<8x8x32xf32>
    %c0_19 = arith.constant 0 : index
    %c0_20 = arith.constant 0 : index
    %c0_21 = arith.constant 0 : index
    %39 = vector.load %arg6[%c0_19, %c0_20, %c0_21] : memref<1x1x32xf32, #tpu.memory_space<vmem>>, vector<1x1x32xf32>
    %40 = vector.shape_cast %39 : vector<1x1x32xf32> to vector<32xf32>
    %41 = vector.shape_cast %40 : vector<32xf32> to vector<1x1x32xf32>
    %42 = vector.broadcast %41 : vector<1x1x32xf32> to vector<8x8x32xf32>
    %43 = arith.addf %38, %42 : vector<8x8x32xf32>
    %c0_22 = arith.constant 0 : index
    %c0_23 = arith.constant 0 : index
    %c0_24 = arith.constant 0 : index
    %c0_25 = arith.constant 0 : index
    %44 = vector.load %arg7[%c0_22, %c0_23, %c0_24, %c0_25] : memref<1x8x8x32xf32, #tpu.memory_space<vmem>>, vector<1x8x8x32xf32>
    %45 = vector.shape_cast %44 : vector<1x8x8x32xf32> to vector<8x8x32xf32>
    %46 = vector.shape_cast %43 : vector<8x8x32xf32> to vector<1x8x8x32xf32>
    tpu.vector_store %arg7[%c0_22, %c0_23, %c0_24, %c0_25], %46 {strides = array<i32>} : memref<1x8x8x32xf32, #tpu.memory_space<vmem>>, vector<1x8x8x32xf32>,
    return
  }
  func.func @transform_0(%arg0: i32, %arg1: i32) -> (i32, i32, i32, i32) {
    %c0_i32 = arith.constant 0 : i32
    %c0_i32_0 = arith.constant 0 : i32
    %c0_i32_1 = arith.constant 0 : i32
    return %arg0, %c0_i32, %c0_i32_0, %arg1 : i32, i32, i32, i32
  }
  func.func @transform_1(%arg0: i32, %arg1: i32) -> (i32, i32, i32, i32) {
    %c0_i32 = arith.constant 0 : i32
    %c0_i32_0 = arith.constant 0 : i32
    %c0_i32_1 = arith.constant 0 : i32
    %c0_i32_2 = arith.constant 0 : i32
    return %arg0, %c0_i32, %c0_i32_0, %c0_i32_1 : i32, i32, i32, i32
  }
  func.func @transform_2(%arg0: i32, %arg1: i32) -> (i32, i32, i32) {
    %c0_i32 = arith.constant 0 : i32
    %c0_i32_0 = arith.constant 0 : i32
    %c0_i32_1 = arith.constant 0 : i32
    return %c0_i32, %c0_i32_0, %arg1 : i32, i32, i32
  }
  func.func @transform_3(%arg0: i32, %arg1: i32) -> (i32, i32, i32) {
    %c0_i32 = arith.constant 0 : i32
    %c0_i32_0 = arith.constant 0 : i32
    return %arg0, %c0_i32, %arg1 : i32, i32, i32
  }
  func.func @transform_4(%arg0: i32, %arg1: i32) -> (i32, i32, i32) {
    %c0_i32 = arith.constant 0 : i32
    %c0_i32_0 = arith.constant 0 : i32
    return %arg0, %c0_i32, %arg1 : i32, i32, i32
  }
  func.func @transform_5(%arg0: i32, %arg1: i32) -> (i32, i32, i32, i32) {
    %c0_i32 = arith.constant 0 : i32
    %c0_i32_0 = arith.constant 0 : i32
    %c0_i32_1 = arith.constant 0 : i32
    return %arg0, %c0_i32, %c0_i32_0, %arg1 : i32, i32, i32, i32
  }
}

module attributes {stable_mosaic.version = 11 : i64} {
  func.func @_conv3x3_row_kernel(%arg0: i32, %arg1: i32, %arg2: memref<1x1x18x32xbf16, #tpu.memory_space<vmem>>, %arg3: memref<1x1x18x32xbf16, #tpu.memory_space<vmem>>, %arg4: memref<1x1x18x32xbf16, #tpu.memory_space<vmem>>, %arg5: memref<3x3x32x32xbf16, #tpu.memory_space<vmem>>, %arg6: memref<1x32xf32, #tpu.memory_space<vmem>>, %arg7: memref<1x1x16x32xf32, #tpu.memory_space<vmem>>) attributes {dimension_semantics = [#tpu.dimension_semantics<parallel>, #tpu.dimension_semantics<parallel>], iteration_bounds = array<i64: 2, 16>, scalar_prefetch = 0 : i64, scratch_operands = 0 : i64, tpu.core_type = #tpu.core_type<tc>, window_params = [{transform_indices = @transform_0, window_bounds = array<i64: 1, 1, 18, 32>}, {transform_indices = @transform_1, window_bounds = array<i64: 1, 1, 18, 32>}, {transform_indices = @transform_2, window_bounds = array<i64: 1, 1, 18, 32>}, {pipeline_mode = #tpu.pipeline_mode<synchronous>, transform_indices = @transform_3, window_bounds = array<i64: 3, 3, 32, 32>}, {pipeline_mode = #tpu.pipeline_mode<synchronous>, transform_indices = @transform_4, window_bounds = array<i64: 1, 32>}, {transform_indices = @transform_5, window_bounds = array<i64: 1, 1, 16, 32>}]} {
    %c0 = arith.constant 0 : index
    %c0_0 = arith.constant 0 : index
    %c0_1 = arith.constant 0 : index
    %c0_2 = arith.constant 0 : index
    %0 = vector.load %arg2[%c0, %c0_0, %c0_1, %c0_2] : memref<1x1x18x32xbf16, #tpu.memory_space<vmem>>, vector<1x1x18x32xbf16>
    %1 = vector.shape_cast %0 : vector<1x1x18x32xbf16> to vector<18x32xbf16>
    %c0_3 = arith.constant 0 : index
    %c0_4 = arith.constant 0 : index
    %c0_5 = arith.constant 0 : index
    %c0_6 = arith.constant 0 : index
    %2 = vector.load %arg3[%c0_3, %c0_4, %c0_5, %c0_6] : memref<1x1x18x32xbf16, #tpu.memory_space<vmem>>, vector<1x1x18x32xbf16>
    %3 = vector.shape_cast %2 : vector<1x1x18x32xbf16> to vector<18x32xbf16>
    %c0_7 = arith.constant 0 : index
    %c0_8 = arith.constant 0 : index
    %c0_9 = arith.constant 0 : index
    %c0_10 = arith.constant 0 : index
    %4 = vector.load %arg4[%c0_7, %c0_8, %c0_9, %c0_10] : memref<1x1x18x32xbf16, #tpu.memory_space<vmem>>, vector<1x1x18x32xbf16>
    %5 = vector.shape_cast %4 : vector<1x1x18x32xbf16> to vector<18x32xbf16>
    %cst = arith.constant 0.000000e+00 : f32
    %6 = vector.broadcast %cst : f32 to vector<16x32xf32>
    %c0_11 = arith.constant 0 : index
    %c0_12 = arith.constant 0 : index
    %c0_13 = arith.constant 0 : index
    %c0_14 = arith.constant 0 : index
    %7 = vector.load %arg5[%c0_11, %c0_12, %c0_13, %c0_14] : memref<3x3x32x32xbf16, #tpu.memory_space<vmem>>, vector<1x1x32x32xbf16>
    %8 = vector.shape_cast %7 : vector<1x1x32x32xbf16> to vector<32x32xbf16>
    %cst_15 = arith.constant dense<0.000000e+00> : vector<18x32xf32>
    %9 = tpu.matmul %1, %8, %cst_15 {dimension_numbers = #tpu.dot_dimension_numbers<[1], [0], [0], [1], [0, 0, 1, 1], [], []>} : vector<18x32xbf16>, vector<32x32xbf16>, vector<18x32xf32> -> vector<18x32xf32>
    %10 = vector.extract_strided_slice %9 {offsets = [0, 0], sizes = [16, 32], strides = [1, 1]} : vector<18x32xf32> to vector<16x32xf32>
    %11 = arith.addf %6, %10 : vector<16x32xf32>
    %c0_16 = arith.constant 0 : index
    %c1 = arith.constant 1 : index
    %c0_17 = arith.constant 0 : index
    %c0_18 = arith.constant 0 : index
    %12 = vector.load %arg5[%c0_16, %c1, %c0_17, %c0_18] : memref<3x3x32x32xbf16, #tpu.memory_space<vmem>>, vector<1x1x32x32xbf16>
    %13 = vector.shape_cast %12 : vector<1x1x32x32xbf16> to vector<32x32xbf16>
    %cst_19 = arith.constant dense<0.000000e+00> : vector<18x32xf32>
    %14 = tpu.matmul %1, %13, %cst_19 {dimension_numbers = #tpu.dot_dimension_numbers<[1], [0], [0], [1], [0, 0, 1, 1], [], []>} : vector<18x32xbf16>, vector<32x32xbf16>, vector<18x32xf32> -> vector<18x32xf32>
    %15 = vector.extract_strided_slice %14 {offsets = [1, 0], sizes = [16, 32], strides = [1, 1]} : vector<18x32xf32> to vector<16x32xf32>
    %16 = arith.addf %11, %15 : vector<16x32xf32>
    %c0_20 = arith.constant 0 : index
    %c2 = arith.constant 2 : index
    %c0_21 = arith.constant 0 : index
    %c0_22 = arith.constant 0 : index
    %17 = vector.load %arg5[%c0_20, %c2, %c0_21, %c0_22] : memref<3x3x32x32xbf16, #tpu.memory_space<vmem>>, vector<1x1x32x32xbf16>
    %18 = vector.shape_cast %17 : vector<1x1x32x32xbf16> to vector<32x32xbf16>
    %cst_23 = arith.constant dense<0.000000e+00> : vector<18x32xf32>
    %19 = tpu.matmul %1, %18, %cst_23 {dimension_numbers = #tpu.dot_dimension_numbers<[1], [0], [0], [1], [0, 0, 1, 1], [], []>} : vector<18x32xbf16>, vector<32x32xbf16>, vector<18x32xf32> -> vector<18x32xf32>
    %20 = vector.extract_strided_slice %19 {offsets = [2, 0], sizes = [16, 32], strides = [1, 1]} : vector<18x32xf32> to vector<16x32xf32>
    %21 = arith.addf %16, %20 : vector<16x32xf32>
    %c1_24 = arith.constant 1 : index
    %c0_25 = arith.constant 0 : index
    %c0_26 = arith.constant 0 : index
    %c0_27 = arith.constant 0 : index
    %22 = vector.load %arg5[%c1_24, %c0_25, %c0_26, %c0_27] : memref<3x3x32x32xbf16, #tpu.memory_space<vmem>>, vector<1x1x32x32xbf16>
    %23 = vector.shape_cast %22 : vector<1x1x32x32xbf16> to vector<32x32xbf16>
    %cst_28 = arith.constant dense<0.000000e+00> : vector<18x32xf32>
    %24 = tpu.matmul %3, %23, %cst_28 {dimension_numbers = #tpu.dot_dimension_numbers<[1], [0], [0], [1], [0, 0, 1, 1], [], []>} : vector<18x32xbf16>, vector<32x32xbf16>, vector<18x32xf32> -> vector<18x32xf32>
    %25 = vector.extract_strided_slice %24 {offsets = [0, 0], sizes = [16, 32], strides = [1, 1]} : vector<18x32xf32> to vector<16x32xf32>
    %26 = arith.addf %21, %25 : vector<16x32xf32>
    %c1_29 = arith.constant 1 : index
    %c1_30 = arith.constant 1 : index
    %c0_31 = arith.constant 0 : index
    %c0_32 = arith.constant 0 : index
    %27 = vector.load %arg5[%c1_29, %c1_30, %c0_31, %c0_32] : memref<3x3x32x32xbf16, #tpu.memory_space<vmem>>, vector<1x1x32x32xbf16>
    %28 = vector.shape_cast %27 : vector<1x1x32x32xbf16> to vector<32x32xbf16>
    %cst_33 = arith.constant dense<0.000000e+00> : vector<18x32xf32>
    %29 = tpu.matmul %3, %28, %cst_33 {dimension_numbers = #tpu.dot_dimension_numbers<[1], [0], [0], [1], [0, 0, 1, 1], [], []>} : vector<18x32xbf16>, vector<32x32xbf16>, vector<18x32xf32> -> vector<18x32xf32>
    %30 = vector.extract_strided_slice %29 {offsets = [1, 0], sizes = [16, 32], strides = [1, 1]} : vector<18x32xf32> to vector<16x32xf32>
    %31 = arith.addf %26, %30 : vector<16x32xf32>
    %c1_34 = arith.constant 1 : index
    %c2_35 = arith.constant 2 : index
    %c0_36 = arith.constant 0 : index
    %c0_37 = arith.constant 0 : index
    %32 = vector.load %arg5[%c1_34, %c2_35, %c0_36, %c0_37] : memref<3x3x32x32xbf16, #tpu.memory_space<vmem>>, vector<1x1x32x32xbf16>
    %33 = vector.shape_cast %32 : vector<1x1x32x32xbf16> to vector<32x32xbf16>
    %cst_38 = arith.constant dense<0.000000e+00> : vector<18x32xf32>
    %34 = tpu.matmul %3, %33, %cst_38 {dimension_numbers = #tpu.dot_dimension_numbers<[1], [0], [0], [1], [0, 0, 1, 1], [], []>} : vector<18x32xbf16>, vector<32x32xbf16>, vector<18x32xf32> -> vector<18x32xf32>
    %35 = vector.extract_strided_slice %34 {offsets = [2, 0], sizes = [16, 32], strides = [1, 1]} : vector<18x32xf32> to vector<16x32xf32>
    %36 = arith.addf %31, %35 : vector<16x32xf32>
    %c2_39 = arith.constant 2 : index
    %c0_40 = arith.constant 0 : index
    %c0_41 = arith.constant 0 : index
    %c0_42 = arith.constant 0 : index
    %37 = vector.load %arg5[%c2_39, %c0_40, %c0_41, %c0_42] : memref<3x3x32x32xbf16, #tpu.memory_space<vmem>>, vector<1x1x32x32xbf16>
    %38 = vector.shape_cast %37 : vector<1x1x32x32xbf16> to vector<32x32xbf16>
    %cst_43 = arith.constant dense<0.000000e+00> : vector<18x32xf32>
    %39 = tpu.matmul %5, %38, %cst_43 {dimension_numbers = #tpu.dot_dimension_numbers<[1], [0], [0], [1], [0, 0, 1, 1], [], []>} : vector<18x32xbf16>, vector<32x32xbf16>, vector<18x32xf32> -> vector<18x32xf32>
    %40 = vector.extract_strided_slice %39 {offsets = [0, 0], sizes = [16, 32], strides = [1, 1]} : vector<18x32xf32> to vector<16x32xf32>
    %41 = arith.addf %36, %40 : vector<16x32xf32>
    %c2_44 = arith.constant 2 : index
    %c1_45 = arith.constant 1 : index
    %c0_46 = arith.constant 0 : index
    %c0_47 = arith.constant 0 : index
    %42 = vector.load %arg5[%c2_44, %c1_45, %c0_46, %c0_47] : memref<3x3x32x32xbf16, #tpu.memory_space<vmem>>, vector<1x1x32x32xbf16>
    %43 = vector.shape_cast %42 : vector<1x1x32x32xbf16> to vector<32x32xbf16>
    %cst_48 = arith.constant dense<0.000000e+00> : vector<18x32xf32>
    %44 = tpu.matmul %5, %43, %cst_48 {dimension_numbers = #tpu.dot_dimension_numbers<[1], [0], [0], [1], [0, 0, 1, 1], [], []>} : vector<18x32xbf16>, vector<32x32xbf16>, vector<18x32xf32> -> vector<18x32xf32>
    %45 = vector.extract_strided_slice %44 {offsets = [1, 0], sizes = [16, 32], strides = [1, 1]} : vector<18x32xf32> to vector<16x32xf32>
    %46 = arith.addf %41, %45 : vector<16x32xf32>
    %c2_49 = arith.constant 2 : index
    %c2_50 = arith.constant 2 : index
    %c0_51 = arith.constant 0 : index
    %c0_52 = arith.constant 0 : index
    %47 = vector.load %arg5[%c2_49, %c2_50, %c0_51, %c0_52] : memref<3x3x32x32xbf16, #tpu.memory_space<vmem>>, vector<1x1x32x32xbf16>
    %48 = vector.shape_cast %47 : vector<1x1x32x32xbf16> to vector<32x32xbf16>
    %cst_53 = arith.constant dense<0.000000e+00> : vector<18x32xf32>
    %49 = tpu.matmul %5, %48, %cst_53 {dimension_numbers = #tpu.dot_dimension_numbers<[1], [0], [0], [1], [0, 0, 1, 1], [], []>} : vector<18x32xbf16>, vector<32x32xbf16>, vector<18x32xf32> -> vector<18x32xf32>
    %50 = vector.extract_strided_slice %49 {offsets = [2, 0], sizes = [16, 32], strides = [1, 1]} : vector<18x32xf32> to vector<16x32xf32>
    %51 = arith.addf %46, %50 : vector<16x32xf32>
    %c0_54 = arith.constant 0 : index
    %c0_55 = arith.constant 0 : index
    %52 = vector.load %arg6[%c0_54, %c0_55] : memref<1x32xf32, #tpu.memory_space<vmem>>, vector<1x32xf32>
    %53 = vector.broadcast %52 : vector<1x32xf32> to vector<16x32xf32>
    %54 = arith.addf %51, %53 : vector<16x32xf32>
    %c0_56 = arith.constant 0 : index
    %c0_57 = arith.constant 0 : index
    %c0_58 = arith.constant 0 : index
    %c0_59 = arith.constant 0 : index
    %55 = vector.load %arg7[%c0_56, %c0_57, %c0_58, %c0_59] : memref<1x1x16x32xf32, #tpu.memory_space<vmem>>, vector<1x1x16x32xf32>
    %56 = vector.shape_cast %55 : vector<1x1x16x32xf32> to vector<16x32xf32>
    %57 = vector.shape_cast %54 : vector<16x32xf32> to vector<1x1x16x32xf32>
    tpu.vector_store %arg7[%c0_56, %c0_57, %c0_58, %c0_59], %57 {strides = array<i32>} : memref<1x1x16x32xf32, #tpu.memory_space<vmem>>, vector<1x1x16x32xf32>,
    return
  }
  func.func @transform_0(%arg0: i32, %arg1: i32) -> (i32, i32, i32, i32) {
    %c0_i32 = arith.constant 0 : i32
    %0 = arith.addi %arg1, %c0_i32 : i32
    %c0_i32_0 = arith.constant 0 : i32
    %c0_i32_1 = arith.constant 0 : i32
    %c0_i32_2 = arith.constant 0 : i32
    return %arg0, %0, %c0_i32_0, %c0_i32_1 : i32, i32, i32, i32
  }
  func.func @transform_1(%arg0: i32, %arg1: i32) -> (i32, i32, i32, i32) {
    %c1_i32 = arith.constant 1 : i32
    %0 = arith.addi %arg1, %c1_i32 : i32
    %c0_i32 = arith.constant 0 : i32
    %c0_i32_0 = arith.constant 0 : i32
    %c0_i32_1 = arith.constant 0 : i32
    return %arg0, %0, %c0_i32, %c0_i32_0 : i32, i32, i32, i32
  }
  func.func @transform_2(%arg0: i32, %arg1: i32) -> (i32, i32, i32, i32) {
    %c2_i32 = arith.constant 2 : i32
    %0 = arith.addi %arg1, %c2_i32 : i32
    %c0_i32 = arith.constant 0 : i32
    %c0_i32_0 = arith.constant 0 : i32
    %c0_i32_1 = arith.constant 0 : i32
    return %arg0, %0, %c0_i32, %c0_i32_0 : i32, i32, i32, i32
  }
  func.func @transform_3(%arg0: i32, %arg1: i32) -> (i32, i32, i32, i32) {
    %c0_i32 = arith.constant 0 : i32
    %c0_i32_0 = arith.constant 0 : i32
    %c0_i32_1 = arith.constant 0 : i32
    %c0_i32_2 = arith.constant 0 : i32
    %c0_i32_3 = arith.constant 0 : i32
    return %c0_i32, %c0_i32_0, %c0_i32_1, %c0_i32_2 : i32, i32, i32, i32
  }
  func.func @transform_4(%arg0: i32, %arg1: i32) -> (i32, i32) {
    %c0_i32 = arith.constant 0 : i32
    %c0_i32_0 = arith.constant 0 : i32
    %c0_i32_1 = arith.constant 0 : i32
    return %c0_i32, %c0_i32_0 : i32, i32
  }
  func.func @transform_5(%arg0: i32, %arg1: i32) -> (i32, i32, i32, i32) {
    %c0_i32 = arith.constant 0 : i32
    %c0_i32_0 = arith.constant 0 : i32
    %c0_i32_1 = arith.constant 0 : i32
    return %arg0, %arg1, %c0_i32, %c0_i32_0 : i32, i32, i32, i32
  }
}

module attributes {stable_mosaic.version = 11 : i64} {
  func.func @_noise_in_adain_kernel(%arg0: i32, %arg1: i32, %arg2: memref<1x16x16x32xf32, #tpu.memory_space<vmem>>, %arg3: memref<1x16x16x1xf32, #tpu.memory_space<vmem>>, %arg4: memref<1x1x32xf32, #tpu.memory_space<vmem>>, %arg5: memref<1x1x32xf32, #tpu.memory_space<vmem>>, %arg6: memref<1x1x32xf32, #tpu.memory_space<vmem>>, %arg7: memref<1x16x16x32xf32, #tpu.memory_space<vmem>>) attributes {dimension_semantics = [#tpu.dimension_semantics<parallel>, #tpu.dimension_semantics<parallel>], iteration_bounds = array<i64: 2, 1>, scalar_prefetch = 0 : i64, scratch_operands = 0 : i64, tpu.core_type = #tpu.core_type<tc>, window_params = [{transform_indices = @transform_0, window_bounds = array<i64: 1, 16, 16, 32>}, {transform_indices = @transform_1, window_bounds = array<i64: 1, 16, 16, 1>}, {transform_indices = @transform_2, window_bounds = array<i64: 1, 1, 32>}, {transform_indices = @transform_3, window_bounds = array<i64: 1, 1, 32>}, {transform_indices = @transform_4, window_bounds = array<i64: 1, 1, 32>}, {transform_indices = @transform_5, window_bounds = array<i64: 1, 16, 16, 32>}]} {
    %c0 = arith.constant 0 : index
    %c0_0 = arith.constant 0 : index
    %c0_1 = arith.constant 0 : index
    %c0_2 = arith.constant 0 : index
    %0 = vector.load %arg2[%c0, %c0_0, %c0_1, %c0_2] : memref<1x16x16x32xf32, #tpu.memory_space<vmem>>, vector<1x16x16x32xf32>
    %1 = vector.shape_cast %0 : vector<1x16x16x32xf32> to vector<16x16x32xf32>
    %c0_3 = arith.constant 0 : index
    %c0_4 = arith.constant 0 : index
    %c0_5 = arith.constant 0 : index
    %c0_6 = arith.constant 0 : index
    %2 = vector.load %arg3[%c0_3, %c0_4, %c0_5, %c0_6] : memref<1x16x16x1xf32, #tpu.memory_space<vmem>>, vector<1x16x16x1xf32>
    %3 = vector.shape_cast %2 : vector<1x16x16x1xf32> to vector<16x16x1xf32>
    %c0_7 = arith.constant 0 : index
    %c0_8 = arith.constant 0 : index
    %c0_9 = arith.constant 0 : index
    %4 = vector.load %arg4[%c0_7, %c0_8, %c0_9] : memref<1x1x32xf32, #tpu.memory_space<vmem>>, vector<1x1x32xf32>
    %5 = vector.shape_cast %4 : vector<1x1x32xf32> to vector<32xf32>
    %6 = vector.shape_cast %5 : vector<32xf32> to vector<1x1x32xf32>
    %7 = vector.broadcast %3 : vector<16x16x1xf32> to vector<16x16x32xf32>
    %8 = vector.broadcast %6 : vector<1x1x32xf32> to vector<16x16x32xf32>
    %9 = arith.mulf %7, %8 : vector<16x16x32xf32>
    %10 = arith.addf %1, %9 : vector<16x16x32xf32>
    %cst = arith.constant 0.000000e+00 : f32
    %11 = vector.broadcast %cst : f32 to vector<16x16x32xf32>
    %12 = arith.cmpf ogt, %10, %11 : vector<16x16x32xf32>
    %cst_10 = arith.constant 2.000000e-01 : f32
    %13 = vector.broadcast %cst_10 : f32 to vector<16x16x32xf32>
    %14 = arith.mulf %13, %10 : vector<16x16x32xf32>
    %15 = arith.select %12, %10, %14 : vector<16x16x32xi1>, vector<16x16x32xf32>
    %cst_11 = arith.constant dense<0.000000e+00> : vector<32xf32>
    %16 = vector.multi_reduction <add>, %15, %cst_11 [0, 1] : vector<16x16x32xf32> to vector<32xf32>
    %17 = vector.shape_cast %16 : vector<32xf32> to vector<1x1x32xf32>
    %cst_12 = arith.constant 2.560000e+02 : f32
    %18 = vector.broadcast %cst_12 : f32 to vector<1x1x32xf32>
    %19 = arith.divf %17, %18 : vector<1x1x32xf32>
    %20 = vector.broadcast %19 : vector<1x1x32xf32> to vector<16x16x32xf32>
    %21 = arith.subf %15, %20 : vector<16x16x32xf32>
    %22 = arith.mulf %21, %21 : vector<16x16x32xf32>
    %cst_13 = arith.constant dense<0.000000e+00> : vector<32xf32>
    %23 = vector.multi_reduction <add>, %22, %cst_13 [0, 1] : vector<16x16x32xf32> to vector<32xf32>
    %24 = vector.shape_cast %23 : vector<32xf32> to vector<1x1x32xf32>
    %cst_14 = arith.constant 2.560000e+02 : f32
    %25 = vector.broadcast %cst_14 : f32 to vector<1x1x32xf32>
    %26 = arith.divf %24, %25 : vector<1x1x32xf32>
    %27 = vector.broadcast %19 : vector<1x1x32xf32> to vector<16x16x32xf32>
    %28 = arith.subf %15, %27 : vector<16x16x32xf32>
    %cst_15 = arith.constant 9.99999974E-6 : f32
    %29 = vector.broadcast %cst_15 : f32 to vector<1x1x32xf32>
    %30 = arith.addf %26, %29 : vector<1x1x32xf32>
    %31 = math.rsqrt %30 : vector<1x1x32xf32>
    %32 = vector.broadcast %31 : vector<1x1x32xf32> to vector<16x16x32xf32>
    %33 = arith.mulf %28, %32 : vector<16x16x32xf32>
    %c0_16 = arith.constant 0 : index
    %c0_17 = arith.constant 0 : index
    %c0_18 = arith.constant 0 : index
    %34 = vector.load %arg5[%c0_16, %c0_17, %c0_18] : memref<1x1x32xf32, #tpu.memory_space<vmem>>, vector<1x1x32xf32>
    %35 = vector.shape_cast %34 : vector<1x1x32xf32> to vector<32xf32>
    %36 = vector.shape_cast %35 : vector<32xf32> to vector<1x1x32xf32>
    %37 = vector.broadcast %36 : vector<1x1x32xf32> to vector<16x16x32xf32>
    %38 = arith.mulf %33, %37 : vector<16x16x32xf32>
    %c0_19 = arith.constant 0 : index
    %c0_20 = arith.constant 0 : index
    %c0_21 = arith.constant 0 : index
    %39 = vector.load %arg6[%c0_19, %c0_20, %c0_21] : memref<1x1x32xf32, #tpu.memory_space<vmem>>, vector<1x1x32xf32>
    %40 = vector.shape_cast %39 : vector<1x1x32xf32> to vector<32xf32>
    %41 = vector.shape_cast %40 : vector<32xf32> to vector<1x1x32xf32>
    %42 = vector.broadcast %41 : vector<1x1x32xf32> to vector<16x16x32xf32>
    %43 = arith.addf %38, %42 : vector<16x16x32xf32>
    %c0_22 = arith.constant 0 : index
    %c0_23 = arith.constant 0 : index
    %c0_24 = arith.constant 0 : index
    %c0_25 = arith.constant 0 : index
    %44 = vector.load %arg7[%c0_22, %c0_23, %c0_24, %c0_25] : memref<1x16x16x32xf32, #tpu.memory_space<vmem>>, vector<1x16x16x32xf32>
    %45 = vector.shape_cast %44 : vector<1x16x16x32xf32> to vector<16x16x32xf32>
    %46 = vector.shape_cast %43 : vector<16x16x32xf32> to vector<1x16x16x32xf32>
    tpu.vector_store %arg7[%c0_22, %c0_23, %c0_24, %c0_25], %46 {strides = array<i32>} : memref<1x16x16x32xf32, #tpu.memory_space<vmem>>, vector<1x16x16x32xf32>,
    return
  }
  func.func @transform_0(%arg0: i32, %arg1: i32) -> (i32, i32, i32, i32) {
    %c0_i32 = arith.constant 0 : i32
    %c0_i32_0 = arith.constant 0 : i32
    %c0_i32_1 = arith.constant 0 : i32
    return %arg0, %c0_i32, %c0_i32_0, %arg1 : i32, i32, i32, i32
  }
  func.func @transform_1(%arg0: i32, %arg1: i32) -> (i32, i32, i32, i32) {
    %c0_i32 = arith.constant 0 : i32
    %c0_i32_0 = arith.constant 0 : i32
    %c0_i32_1 = arith.constant 0 : i32
    %c0_i32_2 = arith.constant 0 : i32
    return %arg0, %c0_i32, %c0_i32_0, %c0_i32_1 : i32, i32, i32, i32
  }
  func.func @transform_2(%arg0: i32, %arg1: i32) -> (i32, i32, i32) {
    %c0_i32 = arith.constant 0 : i32
    %c0_i32_0 = arith.constant 0 : i32
    %c0_i32_1 = arith.constant 0 : i32
    return %c0_i32, %c0_i32_0, %arg1 : i32, i32, i32
  }
  func.func @transform_3(%arg0: i32, %arg1: i32) -> (i32, i32, i32) {
    %c0_i32 = arith.constant 0 : i32
    %c0_i32_0 = arith.constant 0 : i32
    return %arg0, %c0_i32, %arg1 : i32, i32, i32
  }
  func.func @transform_4(%arg0: i32, %arg1: i32) -> (i32, i32, i32) {
    %c0_i32 = arith.constant 0 : i32
    %c0_i32_0 = arith.constant 0 : i32
    return %arg0, %c0_i32, %arg1 : i32, i32, i32
  }
  func.func @transform_5(%arg0: i32, %arg1: i32) -> (i32, i32, i32, i32) {
    %c0_i32 = arith.constant 0 : i32
    %c0_i32_0 = arith.constant 0 : i32
    %c0_i32_1 = arith.constant 0 : i32
    return %arg0, %c0_i32, %c0_i32_0, %arg1 : i32, i32, i32, i32
  }
}

module attributes {stable_mosaic.version = 11 : i64} {
  func.func @_rgb_blend_kernel(%arg0: i32, %arg1: memref<512x32xbf16, #tpu.memory_space<vmem>>, %arg2: memref<512x32xbf16, #tpu.memory_space<vmem>>, %arg3: memref<32x3xbf16, #tpu.memory_space<vmem>>, %arg4: memref<32x3xbf16, #tpu.memory_space<vmem>>, %arg5: memref<1x3xf32, #tpu.memory_space<vmem>>, %arg6: memref<512x3xf32, #tpu.memory_space<vmem>>) attributes {dimension_semantics = [#tpu.dimension_semantics<parallel>], iteration_bounds = array<i64: 1>, scalar_prefetch = 0 : i64, scratch_operands = 0 : i64, tpu.core_type = #tpu.core_type<tc>, window_params = [{transform_indices = @transform_0, window_bounds = array<i64: 512, 32>}, {transform_indices = @transform_1, window_bounds = array<i64: 512, 32>}, {pipeline_mode = #tpu.pipeline_mode<synchronous>, transform_indices = @transform_2, window_bounds = array<i64: 32, 3>}, {pipeline_mode = #tpu.pipeline_mode<synchronous>, transform_indices = @transform_3, window_bounds = array<i64: 32, 3>}, {pipeline_mode = #tpu.pipeline_mode<synchronous>, transform_indices = @transform_4, window_bounds = array<i64: 1, 3>}, {transform_indices = @transform_5, window_bounds = array<i64: 512, 3>}]} {
    %c0 = arith.constant 0 : index
    %c0_0 = arith.constant 0 : index
    %0 = vector.load %arg1[%c0, %c0_0] : memref<512x32xbf16, #tpu.memory_space<vmem>>, vector<512x32xbf16>
    %c0_1 = arith.constant 0 : index
    %c0_2 = arith.constant 0 : index
    %1 = vector.load %arg3[%c0_1, %c0_2] : memref<32x3xbf16, #tpu.memory_space<vmem>>, vector<32x3xbf16>
    %cst = arith.constant dense<0.000000e+00> : vector<512x3xf32>
    %2 = tpu.matmul %0, %1, %cst {dimension_numbers = #tpu.dot_dimension_numbers<[1], [0], [0], [1], [0, 0, 1, 1], [], []>} : vector<512x32xbf16>, vector<32x3xbf16>, vector<512x3xf32> -> vector<512x3xf32>
    %c0_3 = arith.constant 0 : index
    %c0_4 = arith.constant 0 : index
    %3 = vector.load %arg2[%c0_3, %c0_4] : memref<512x32xbf16, #tpu.memory_space<vmem>>, vector<512x32xbf16>
    %c0_5 = arith.constant 0 : index
    %c0_6 = arith.constant 0 : index
    %4 = vector.load %arg4[%c0_5, %c0_6] : memref<32x3xbf16, #tpu.memory_space<vmem>>, vector<32x3xbf16>
    %cst_7 = arith.constant dense<0.000000e+00> : vector<512x3xf32>
    %5 = tpu.matmul %3, %4, %cst_7 {dimension_numbers = #tpu.dot_dimension_numbers<[1], [0], [0], [1], [0, 0, 1, 1], [], []>} : vector<512x32xbf16>, vector<32x3xbf16>, vector<512x3xf32> -> vector<512x3xf32>
    %6 = arith.addf %2, %5 : vector<512x3xf32>
    %c0_8 = arith.constant 0 : index
    %c0_9 = arith.constant 0 : index
    %7 = vector.load %arg5[%c0_8, %c0_9] : memref<1x3xf32, #tpu.memory_space<vmem>>, vector<1x3xf32>
    %8 = vector.broadcast %7 : vector<1x3xf32> to vector<512x3xf32>
    %9 = arith.addf %6, %8 : vector<512x3xf32>
    %c0_10 = arith.constant 0 : index
    %c0_11 = arith.constant 0 : index
    %10 = vector.load %arg6[%c0_10, %c0_11] : memref<512x3xf32, #tpu.memory_space<vmem>>, vector<512x3xf32>
    tpu.vector_store %arg6[%c0_10, %c0_11], %9 {strides = array<i32>} : memref<512x3xf32, #tpu.memory_space<vmem>>, vector<512x3xf32>,
    return
  }
  func.func @transform_0(%arg0: i32) -> (i32, i32) {
    %c0_i32 = arith.constant 0 : i32
    %c0_i32_0 = arith.constant 0 : i32
    return %arg0, %c0_i32 : i32, i32
  }
  func.func @transform_1(%arg0: i32) -> (i32, i32) {
    %c0_i32 = arith.constant 0 : i32
    %c0_i32_0 = arith.constant 0 : i32
    return %arg0, %c0_i32 : i32, i32
  }
  func.func @transform_2(%arg0: i32) -> (i32, i32) {
    %c0_i32 = arith.constant 0 : i32
    %c0_i32_0 = arith.constant 0 : i32
    %c0_i32_1 = arith.constant 0 : i32
    return %c0_i32, %c0_i32_0 : i32, i32
  }
  func.func @transform_3(%arg0: i32) -> (i32, i32) {
    %c0_i32 = arith.constant 0 : i32
    %c0_i32_0 = arith.constant 0 : i32
    %c0_i32_1 = arith.constant 0 : i32
    return %c0_i32, %c0_i32_0 : i32, i32
  }
  func.func @transform_4(%arg0: i32) -> (i32, i32) {
    %c0_i32 = arith.constant 0 : i32
    %c0_i32_0 = arith.constant 0 : i32
    %c0_i32_1 = arith.constant 0 : i32
    return %c0_i32, %c0_i32_0 : i32, i32
  }
  func.func @transform_5(%arg0: i32) -> (i32, i32) {
    %c0_i32 = arith.constant 0 : i32
    %c0_i32_0 = arith.constant 0 : i32
    return %arg0, %c0_i32 : i32, i32
  }
}

</mosaic_0001>

<llo_original>
// kernel: generator_forward.17
$region0: #{generator_forward.17}
  #allocation0 [shape = 'u32[]', space=smem, size = 0x4, offset = 0x4, fixed_abs, tag = 'smem constant byte address 0x4 - core index']
  #allocation1 [shape = 'u32[144,128]{1,0:T(1,128)}', space=vmem, size = 0x12000, scoped, tag = 'internal scratch']
  %s0 = inlined_call_operand.vmem [shape: f32[8,32], index: 0, kind: input, shape index: {}]
  %s1 = inlined_call_operand.vmem [shape: f32[32,384], index: 1, kind: input, shape index: {}]
  %s2 = inlined_call_operand.vmem [shape: f32[1,384], index: 2, kind: input, shape index: {}]
  %s3 = inlined_call_operand.vmem [shape: f32[8,384], index: 3, kind: output, shape index: {}]
  %s4 = sld [smem:[#allocation0]]
  $region22: #{generator_forward.17} parent=0
    _
  %s6 = ssub.s32 1, %s4
  %s7 = scalar_select 0, %s6, %s4
  // Predicated region
  $region2: #{generator_forward.17} parent=0 // pred_check
    _
  $region3: #{generator_forward.17} parent=0 // pred_check_branch
    %9 = sbr.rel (0) target = $region5
  $region4: #{generator_forward.17} parent=0 // pred_region
    _
  $region5: #{generator_forward.17} parent=0 // pred_fallthru
    _
  // Predicated region
  $region6: #{generator_forward.17} parent=0 // pred_check
    _
  $region7: #{generator_forward.17} parent=0 // pred_check_branch
    %11 = sbr.rel (0) target = $region9
  $region8: #{generator_forward.17} parent=0 // pred_region
    _
  $region9: #{generator_forward.17} parent=0 // pred_fallthru
    _
  // Predicated region
  $region10: #{generator_forward.17} parent=0 // pred_check
    _
  $region11: #{generator_forward.17} parent=0 // pred_check_branch
    %13 = sbr.rel (0) target = $region13
  $region12: #{generator_forward.17} parent=0 // pred_region
    _
  $region13: #{generator_forward.17} parent=0 // pred_fallthru
    _
  %v14 = vld [vmem:[%s0] sm:$0xff]
  %v15 = vld [vmem:[%s1] sm:$0xff]
  %v16 = vld [vmem:[%s1 + $0x8] sm:$0xff]
  %v17 = vld [vmem:[%s1 + $0x10] sm:$0xff]
  %v18 = vld [vmem:[%s1 + $0x18] sm:$0xff]
  %v19 = vld [vmem:[%s1 + $0x20] sm:$0xff]
  %v20 = vld [vmem:[%s1 + $0x28] sm:$0xff]
  %v21 = vld [vmem:[%s1 + $0x30] sm:$0xff]
  %v22 = vld [vmem:[%s1 + $0x38] sm:$0xff]
  %v23 = vld [vmem:[%s1 + $0x40] sm:$0xff]
  %v24 = vld [vmem:[%s1 + $0x48] sm:$0xff]
  %v25 = vld [vmem:[%s1 + $0x50] sm:$0xff]
  %v26 = vld [vmem:[%s1 + $0x58] sm:$0xff]
  %v27 = vld [vmem:[%s2] sm:$0x7]
  %v29 = vlaneseq
  %v30 = vshrl.u32 %v29, 7
  %v31 = vsub.s32 0, %v30
  %v32 = vrot.slane %v27, %v31
  %v33 = vlaneseq
  %v34 = vshrl.u32 %v33, 7
  %v35 = vsub.s32 1, %v34
  %v36 = vrot.slane %v27, %v35
  %v37 = vlaneseq
  %v38 = vshrl.u32 %v37, 7
  %v39 = vsub.s32 2, %v38
  %v40 = vrot.slane %v27, %v39
  %vm44 = vcmask 261120
  %v46 = vsel %vm44, %v14, 0
  %48 = vmatprep.subr.mxu0 0.0
  %49 = vmatpush1.msra.mxu0 0.0
  %50 = vmatprep.subr.mxu0 0.0
  %51 = vmatpush1.msra.mxu0 0.0
  %52 = vmatprep.subr.mxu0 0.0
  %53 = vmatpush1.msra.mxu0 0.0
  %54 = vmatprep.subr.mxu0 0.0
  %55 = vmatpush1.msra.mxu0 0.0
  %56 = vmatprep.subr.mxu0 0.0
  %57 = vmatpush1.msra.mxu0 0.0
  %58 = vmatprep.subr.mxu0 0.0
  %59 = vmatpush1.msra.mxu0 0.0
  %60 = vmatprep.subr.mxu0 0.0
  %61 = vmatpush1.msra.mxu0 0.0
  %62 = vmatprep.subr.mxu0 0.0
  %63 = vmatpush1.msra.mxu0 0.0
  %64 = vmatprep.subr.mxu0 0.0
  %65 = vmatpush1.msra.mxu0 0.0
  %66 = vmatprep.subr.mxu0 0.0
  %67 = vmatpush1.msra.mxu0 0.0
  %68 = vmatprep.subr.mxu0 0.0
  %69 = vmatpush1.msra.mxu0 0.0
  %70 = vmatprep.subr.mxu0 0.0
  %71 = vmatpush1.msra.mxu0 0.0
  %72 = vmatprep.subr.mxu0 %v25
  %73 = vmatpush1.msra.mxu0 %v24
  %74 = vmatprep.subr.mxu0 %v22
  %75 = vmatpush1.msra.mxu0 %v21
  %76 = vmatprep.subr.mxu0 %v19
  %77 = vmatpush1.msra.mxu0 %v18
  %78 = vmatprep.subr.mxu0 %v16
  %79 = vmatpush1.msra.mxu0 %v15
  %80 = vmatprep.subr.mxu0 0.0
  %81 = vmatpush2.msra.mxu0 0.0
  %82 = vmatprep.subr.mxu0 0.0
  %83 = vmatpush2.msra.mxu0 0.0
  %84 = vmatprep.subr.mxu0 0.0
  %85 = vmatpush2.msra.mxu0 0.0
  %86 = vmatprep.subr.mxu0 0.0
  %87 = vmatpush2.msra.mxu0 0.0
  %88 = vmatprep.subr.mxu0 0.0
  %89 = vmatpush2.msra.mxu0 0.0
  %90 = vmatprep.subr.mxu0 0.0
  %91 = vmatpush2.msra.mxu0 0.0
  %92 = vmatprep.subr.mxu0 0.0
  %93 = vmatpush2.msra.mxu0 0.0
  %94 = vmatprep.subr.mxu0 0.0
  %95 = vmatpush2.msra.mxu0 0.0
  %96 = vmatprep.subr.mxu0 0.0
  %97 = vmatpush2.msra.mxu0 0.0
  %98 = vmatprep.subr.mxu0 0.0
  %99 = vmatpush2.msra.mxu0 0.0
  %100 = vmatprep.subr.mxu0 0.0
  %101 = vmatpush2.msra.mxu0 0.0
  %102 = vmatprep.subr.mxu0 0.0
  %103 = vmatpush2.msra.mxu0 0.0
  %104 = vmatprep.subr.mxu0 0.0
  %105 = vmatpush2.msra.mxu0 0.0
  %106 = vmatprep.subr.mxu0 0.0
  %107 = vmatpush2.msra.mxu0 0.0
  %108 = vmatprep.subr.mxu0 0.0
  %109 = vmatpush2.msra.mxu0 0.0
  %110 = vmatprep.subr.mxu0 0.0
  %111 = vmatpush2.msra.mxu0 0.0
  %112 = vmatprep.mubr.f32.mxu0 0.0
  %113 = vmatmul.mubr.f32.gmra.mxu0 %v46
  %v114 = vpop.f32.mrf.mxu0
  %v115 = vadd.f32 %v32, %v114
  %v116 = vpop.f32.mrf.mxu0
  %v117 = vadd.f32 %v36, %v116
  %118 = vdwg.mxu0
  %119 = vmatprep.subr.mxu0 0.0
  %120 = vmatpush1.msra.mxu0 0.0
  %121 = vmatprep.subr.mxu0 0.0
  %122 = vmatpush1.msra.mxu0 0.0
  %123 = vmatprep.subr.mxu0 0.0
  %124 = vmatpush1.msra.mxu0 0.0
  %125 = vmatprep.subr.mxu0 0.0
  %126 = vmatpush1.msra.mxu0 0.0
  %127 = vmatprep.subr.mxu0 0.0
  %128 = vmatpush1.msra.mxu0 0.0
  %129 = vmatprep.subr.mxu0 0.0
  %130 = vmatpush1.msra.mxu0 0.0
  %131 = vmatprep.subr.mxu0 0.0
  %132 = vmatpush1.msra.mxu0 0.0
  %133 = vmatprep.subr.mxu0 0.0
  %134 = vmatpush1.msra.mxu0 0.0
  %135 = vmatprep.subr.mxu0 0.0
  %136 = vmatpush1.msra.mxu0 0.0
  %137 = vmatprep.subr.mxu0 0.0
  %138 = vmatpush1.msra.mxu0 0.0
  %139 = vmatprep.subr.mxu0 0.0
  %140 = vmatpush1.msra.mxu0 0.0
  %141 = vmatprep.subr.mxu0 0.0
  %142 = vmatpush1.msra.mxu0 0.0
  %143 = vmatprep.subr.mxu0 0.0
  %144 = vmatpush1.msra.mxu0 %v26
  %145 = vmatprep.subr.mxu0 0.0
  %146 = vmatpush1.msra.mxu0 %v23
  %147 = vmatprep.subr.mxu0 0.0
  %148 = vmatpush1.msra.mxu0 %v20
  %149 = vmatprep.subr.mxu0 0.0
  %150 = vmatpush1.msra.mxu0 %v17
  %151 = vmatprep.subr.mxu0 0.0
  %152 = vmatpush2.msra.mxu0 0.0
  %153 = vmatprep.subr.mxu0 0.0
  %154 = vmatpush2.msra.mxu0 0.0
  %155 = vmatprep.subr.mxu0 0.0
  %156 = vmatpush2.msra.mxu0 0.0
  %157 = vmatprep.subr.mxu0 0.0
  %158 = vmatpush2.msra.mxu0 0.0
  %159 = vmatprep.subr.mxu0 0.0
  %160 = vmatpush2.msra.mxu0 0.0
  %161 = vmatprep.subr.mxu0 0.0
  %162 = vmatpush2.msra.mxu0 0.0
  %163 = vmatprep.subr.mxu0 0.0
  %164 = vmatpush2.msra.mxu0 0.0
  %165 = vmatprep.subr.mxu0 0.0
  %166 = vmatpush2.msra.mxu0 0.0
  %167 = vmatprep.subr.mxu0 0.0
  %168 = vmatpush2.msra.mxu0 0.0
  %169 = vmatprep.subr.mxu0 0.0
  %170 = vmatpush2.msra.mxu0 0.0
  %171 = vmatprep.subr.mxu0 0.0
  %172 = vmatpush2.msra.mxu0 0.0
  %173 = vmatprep.subr.mxu0 0.0
  %174 = vmatpush2.msra.mxu0 0.0
  %175 = vmatprep.subr.mxu0 0.0
  %176 = vmatpush2.msra.mxu0 0.0
  %177 = vmatprep.subr.mxu0 0.0
  %178 = vmatpush2.msra.mxu0 0.0
  %179 = vmatprep.subr.mxu0 0.0
  %180 = vmatpush2.msra.mxu0 0.0
  %181 = vmatprep.subr.mxu0 0.0
  %182 = vmatpush2.msra.mxu0 0.0
  %183 = vmatprep.mubr.f32.mxu0 0.0
  %184 = vmatmul.mubr.f32.gmra.mxu0 %v46
  %v185 = vpop.f32.mrf.mxu0
  %v186 = vadd.f32 %v40, %v185
  %v187 = vpop.f32.mrf.mxu0
  %188 = vdwg.mxu0
  %189 = vst [vmem:[%s3] sm:$0xff] %v115
  %190 = vst [vmem:[%s3 + $0x8] sm:$0xff] %v117
  %191 = vst [vmem:[%s3 + $0x10] sm:$0xff] %v186
  // Predicated region
  $region14: #{generator_forward.17} parent=0 // pred_check
    _
  $region15: #{generator_forward.17} parent=0 // pred_check_branch
    %193 = sbr.rel (0) target = $region17
  $region16: #{generator_forward.17} parent=0 // pred_region
    _
  $region17: #{generator_forward.17} parent=0 // pred_fallthru
    _
  // Predicated region
  $region18: #{generator_forward.17} parent=0 // pred_check
    _
  $region19: #{generator_forward.17} parent=0 // pred_check_branch
    %195 = sbr.rel (0) target = $region21
  $region20: #{generator_forward.17} parent=0 // pred_region
    _
  $region21: #{generator_forward.17} parent=0 // pred_fallthru
    _

// kernel: generator_forward.18
$region0: #{generator_forward.18}
  #allocation0 [shape = 'u32[]', space=smem, size = 0x4, offset = 0x4, fixed_abs, tag = 'smem constant byte address 0x4 - core index']
  #allocation1 [shape = 'u32[144,128]{1,0:T(1,128)}', space=vmem, size = 0x12000, scoped, tag = 'internal scratch']
  %s0 = inlined_call_operand.vmem [shape: f32[2,4,4,32], index: 0, kind: input, shape index: {}]
  %s1 = inlined_call_operand.vmem [shape: f32[1,4,4,1], index: 1, kind: input, shape index: {}]
  %s2 = inlined_call_operand.vmem [shape: f32[1,1,32], index: 2, kind: input, shape index: {}]
  %s3 = inlined_call_operand.vmem [shape: f32[2,1,32], index: 3, kind: input, shape index: {}]
  %s4 = inlined_call_operand.vmem [shape: f32[2,1,32], index: 4, kind: input, shape index: {}]
  %s5 = inlined_call_operand.vmem [shape: f32[2,4,4,32], index: 5, kind: output, shape index: {}]
  %s6 = sld [smem:[#allocation0]]
  $region53: #{generator_forward.18} parent=0
    _
  %s8 = ssub.s32 1, %s6
  %s9 = scalar_select 0, %s8, %s6
  loop: start=0, step=1, limit=4
  $region2: #{generator_forward.18} parent=0 // loop_pre_header
    _
  $region3: #{generator_forward.18} parent=0 // loop_header
    %s11 = sphi 0, %s15
    %p12 = scmp.ge.s32.totalorder %s11, 4
    %s18 = sphi 0, %s30
    %s19 = sphi 0, %s26
    %s20 = sphi 0, %s18
    %s21 = sphi 0, %s19
    %s22 = sphi 0, %s20
    %s23 = sphi 0, %s21
    %s35 = sphi 0, %s37
    %s38 = sphi 0, %s35
    %s39 = sphi 0, %s38
    %s55 = sphi 0, %s39
    %s59 = sphi 0, %s59
    %s61 = sphi 0, %s59
    %s62 = sphi 0, %s61
    %s76 = sphi 0, %s62
    %s82 = sphi 0, %s84
    %s85 = sphi 0, %s82
    %s86 = sphi 0, %s85
    %s102 = sphi 0, %s86
    %s110 = sphi 0, %s112
    %s113 = sphi 0, %s110
    %s114 = sphi 0, %s113
    %s130 = sphi 0, %s114
    %s138 = sphi 0, %s140
    %s141 = sphi 0, %s138
    %s142 = sphi 0, %s141
    %s158 = sphi 0, %s142
    %s166 = sphi 0, %s168
    %s169 = sphi 0, %s166
    %s170 = sphi 0, %s169
    %s186 = sphi 0, %s170
  $region4: #{generator_forward.18} parent=0 // loop_header_branch
    %14 = sbr.rel (%p12) target = $region8
  $region5: #{generator_forward.18} parent=0 // loop_body
    %s16 = ssub.s32 %s11, 1
    %s17 = ssub.s32 %s11, 2
    %s24 = sadd.s32 1, %s19
    %p25 = scmp.ge.s32.totalorder %s24, 1
    %s26 = scalar_select %p25, 0, %s24
    %s27 = sadd.s32 1, %s18
    %s28 = scalar_select %p25, %s27, %s18
    %p29 = scmp.ge.s32.totalorder %s28, 2
    %s30 = scalar_select %p29, 0, %s28
    %s31 = ssub.s32 %s18, %s30
    %s32 = ssub.s32 %s19, %s26
    %s33 = sor.u32 %s31, %s32
    %p34 = scmp.eq.s32.totalorder %s33, 0
    %s36 = sadd.s32 %s35, 1
    %s37 = scalar_select %p34, %s35, %s36
    %p40 = pneg %p34
    %p41 = scmp.eq.s32.totalorder %s11, 1
    %p42 = por %p40, %p41
    %p43 = scmp.ne.s32.totalorder %s35, %s38
    %p44 = scmp.eq.s32.totalorder %s11, 0
    %p45 = por %p43, %p44
    %p46 = scmp.ne.s32.totalorder %s35, %s38
    %p47 = scmp.eq.s32.totalorder %s16, 1
    %p48 = por %p46, %p47
    %p49 = scmp.ne.s32.totalorder %s38, %s39
    %p50 = scmp.eq.s32.totalorder %s16, 0
    %p51 = por %p49, %p50
    %p52 = scmp.ne.s32.totalorder %s38, %s39
    %p53 = scmp.eq.s32.totalorder %s17, 1
    %p54 = por %p52, %p53
    %p56 = scmp.ne.s32.totalorder %s39, %s55
    %p57 = scmp.eq.s32.totalorder %s17, 0
    %p58 = por %p56, %p57
    %s60 = sadd.s32 %s59, 1
    %p63 = scmp.eq.s32.totalorder %s11, 1
    %p64 = scmp.ne.s32.totalorder %s59, %s61
    %p65 = scmp.eq.s32.totalorder %s11, 0
    %p66 = por %p64, %p65
    %p67 = scmp.ne.s32.totalorder %s59, %s61
    %p68 = scmp.eq.s32.totalorder %s16, 1
    %p69 = por %p67, %p68
    %p70 = scmp.ne.s32.totalorder %s61, %s62
    %p71 = scmp.eq.s32.totalorder %s16, 0
    %p72 = por %p70, %p71
    %p73 = scmp.ne.s32.totalorder %s61, %s62
    %p74 = scmp.eq.s32.totalorder %s17, 1
    %p75 = por %p73, %p74
    %p77 = scmp.ne.s32.totalorder %s62, %s76
    %p78 = scmp.eq.s32.totalorder %s17, 0
    %p79 = por %p77, %p78
    %s80 = ssub.s32 %s19, %s26
    %p81 = scmp.eq.s32.totalorder %s80, 0
    %s83 = sadd.s32 %s82, 1
    %s84 = scalar_select %p81, %s82, %s83
    %p87 = pneg %p81
    %p88 = scmp.eq.s32.totalorder %s11, 1
    %p89 = por %p87, %p88
    %p90 = scmp.ne.s32.totalorder %s82, %s85
    %p91 = scmp.eq.s32.totalorder %s11, 0
    %p92 = por %p90, %p91
    %p93 = scmp.ne.s32.totalorder %s82, %s85
    %p94 = scmp.eq.s32.totalorder %s16, 1
    %p95 = por %p93, %p94
    %p96 = scmp.ne.s32.totalorder %s85, %s86
    %p97 = scmp.eq.s32.totalorder %s16, 0
    %p98 = por %p96, %p97
    %p99 = scmp.ne.s32.totalorder %s85, %s86
    %p100 = scmp.eq.s32.totalorder %s17, 1
    %p101 = por %p99, %p100
    %p103 = scmp.ne.s32.totalorder %s86, %s102
    %p104 = scmp.eq.s32.totalorder %s17, 0
    %p105 = por %p103, %p104
    %s106 = ssub.s32 %s18, %s30
    %s107 = ssub.s32 %s19, %s26
    %s108 = sor.u32 %s106, %s107
    %p109 = scmp.eq.s32.totalorder %s108, 0
    %s111 = sadd.s32 %s110, 1
    %s112 = scalar_select %p109, %s110, %s111
    %p115 = pneg %p109
    %p116 = scmp.eq.s32.totalorder %s11, 1
    %p117 = por %p115, %p116
    %p118 = scmp.ne.s32.totalorder %s110, %s113
    %p119 = scmp.eq.s32.totalorder %s11, 0
    %p120 = por %p118, %p119
    %p121 = scmp.ne.s32.totalorder %s110, %s113
    %p122 = scmp.eq.s32.totalorder %s16, 1
    %p123 = por %p121, %p122
    %p124 = scmp.ne.s32.totalorder %s113, %s114
    %p125 = scmp.eq.s32.totalorder %s16, 0
    %p126 = por %p124, %p125
    %p127 = scmp.ne.s32.totalorder %s113, %s114
    %p128 = scmp.eq.s32.totalorder %s17, 1
    %p129 = por %p127, %p128
    %p131 = scmp.ne.s32.totalorder %s114, %s130
    %p132 = scmp.eq.s32.totalorder %s17, 0
    %p133 = por %p131, %p132
    %s134 = ssub.s32 %s18, %s30
    %s135 = ssub.s32 %s19, %s26
    %s136 = sor.u32 %s134, %s135
    %p137 = scmp.eq.s32.totalorder %s136, 0
    %s139 = sadd.s32 %s138, 1
    %s140 = scalar_select %p137, %s138, %s139
    %p143 = pneg %p137
    %p144 = scmp.eq.s32.totalorder %s11, 1
    %p145 = por %p143, %p144
    %p146 = scmp.ne.s32.totalorder %s138, %s141
    %p147 = scmp.eq.s32.totalorder %s11, 0
    %p148 = por %p146, %p147
    %p149 = scmp.ne.s32.totalorder %s138, %s141
    %p150 = scmp.eq.s32.totalorder %s16, 1
    %p151 = por %p149, %p150
    %p152 = scmp.ne.s32.totalorder %s141, %s142
    %p153 = scmp.eq.s32.totalorder %s16, 0
    %p154 = por %p152, %p153
    %p155 = scmp.ne.s32.totalorder %s141, %s142
    %p156 = scmp.eq.s32.totalorder %s17, 1
    %p157 = por %p155, %p156
    %p159 = scmp.ne.s32.totalorder %s142, %s158
    %p160 = scmp.eq.s32.totalorder %s17, 0
    %p161 = por %p159, %p160
    %s162 = ssub.s32 %s18, %s30
    %s163 = ssub.s32 %s19, %s26
    %s164 = sor.u32 %s162, %s163
    %p165 = scmp.eq.s32.totalorder %s164, 0
    %s167 = sadd.s32 %s166, 1
    %s168 = scalar_select %p165, %s166, %s167
    %p171 = pneg %p165
    %p172 = scmp.eq.s32.totalorder %s11, 1
    %p173 = por %p171, %p172
    %p174 = scmp.ne.s32.totalorder %s166, %s169
    %p175 = scmp.eq.s32.totalorder %s11, 0
    %p176 = por %p174, %p175
    %p177 = scmp.ne.s32.totalorder %s166, %s169
    %p178 = scmp.eq.s32.totalorder %s16, 1
    %p179 = por %p177, %p178
    %p180 = scmp.ne.s32.totalorder %s169, %s170
    %p181 = scmp.eq.s32.totalorder %s16, 0
    %p182 = por %p180, %p181
    %p183 = scmp.ne.s32.totalorder %s169, %s170
    %p184 = scmp.eq.s32.totalorder %s17, 1
    %p185 = por %p183, %p184
    %p187 = scmp.ne.s32.totalorder %s170, %s186
    %p188 = scmp.eq.s32.totalorder %s17, 0
    %p189 = por %p187, %p188
    %p190 = scmp.le.s32.totalorder 1, %s11
    %p191 = scmp.lt.s32.totalorder %s11, 3
    %p192 = pnand %p190, %p191
    %p193 = pneg %p192
    // Predicated region
    $region9: #{generator_forward.18} parent=5 // pred_check
      _
    $region10: #{generator_forward.18} parent=5 // pred_check_branch
      %195 = sbr.rel (%p192) target = $region12
    $region11: #{generator_forward.18} parent=5 // pred_region
      %s196 = ssub.s32 %s11, 1
      // Predicated region
      $region13: #{generator_forward.18} parent=11 // pred_check
        %p197 = pneg %p72
      $region14: #{generator_forward.18} parent=11 // pred_check_branch
        %199 = sbr.rel (%p197) target = $region16
      $region15: #{generator_forward.18} parent=11 // pred_region
        _
      $region16: #{generator_forward.18} parent=11 // pred_fallthru
        _
      // Predicated region
      $region17: #{generator_forward.18} parent=11 // pred_check
        %p200 = pneg %p98
      $region18: #{generator_forward.18} parent=11 // pred_check_branch
        %202 = sbr.rel (%p200) target = $region20
      $region19: #{generator_forward.18} parent=11 // pred_region
        %p203 = scmp.lt.s32.totalorder %s21, 0
        %s204 = scalar_select %p203, %s21, 0
        %s205 = scalar_lea.vmem %s2, %s204
      $region20: #{generator_forward.18} parent=11 // pred_fallthru
        _
    $region12: #{generator_forward.18} parent=5 // pred_fallthru
      _
    %p206 = scmp.lt.s32.totalorder %s11, 2
    // Predicated region
    $region21: #{generator_forward.18} parent=5 // pred_check
      %p207 = pneg %p206
    $region22: #{generator_forward.18} parent=5 // pred_check_branch
      %209 = sbr.rel (%p207) target = $region24
    $region23: #{generator_forward.18} parent=5 // pred_region
      // Predicated region
      $region25: #{generator_forward.18} parent=23 // pred_check
        %p210 = pneg %p45
      $region26: #{generator_forward.18} parent=23 // pred_check_branch
        %212 = sbr.rel (%p210) target = $region28
      $region27: #{generator_forward.18} parent=23 // pred_region
        %p213 = scmp.lt.s32.totalorder %s18, 1
        %s214 = scalar_select %p213, %s18, 1
        %p215 = scmp.lt.s32.totalorder %s19, 0
        %s216 = scalar_select %p215, %s19, 0
        %s217 = smul.addr %s214, 4
        %s218 = sadd.s32 %s216, %s217
        %s219 = smul.addr %s218, 4
        %s220 = scalar_lea.vmem %s0, %s219
      $region28: #{generator_forward.18} parent=23 // pred_fallthru
        _
      // Predicated region
      $region29: #{generator_forward.18} parent=23 // pred_check
        %p221 = pneg %p120
      $region30: #{generator_forward.18} parent=23 // pred_check_branch
        %223 = sbr.rel (%p221) target = $region32
      $region31: #{generator_forward.18} parent=23 // pred_region
        %p224 = scmp.lt.s32.totalorder %s18, 1
        %s225 = scalar_select %p224, %s18, 1
        %p226 = scmp.lt.s32.totalorder %s19, 0
        %s227 = scalar_select %p226, %s19, 0
        %s228 = sadd.s32 %s227, %s225
        %s229 = scalar_lea.vmem %s3, %s228
      $region32: #{generator_forward.18} parent=23 // pred_fallthru
        _
      // Predicated region
      $region33: #{generator_forward.18} parent=23 // pred_check
        %p230 = pneg %p148
      $region34: #{generator_forward.18} parent=23 // pred_check_branch
        %232 = sbr.rel (%p230) target = $region36
      $region35: #{generator_forward.18} parent=23 // pred_region
        %p233 = scmp.lt.s32.totalorder %s18, 1
        %s234 = scalar_select %p233, %s18, 1
        %p235 = scmp.lt.s32.totalorder %s19, 0
        %s236 = scalar_select %p235, %s19, 0
        %s237 = sadd.s32 %s236, %s234
        %s238 = scalar_lea.vmem %s4, %s237
      $region36: #{generator_forward.18} parent=23 // pred_fallthru
        _
    $region24: #{generator_forward.18} parent=5 // pred_fallthru
      _
    %p239 = scmp.le.s32.totalorder 1, %s11
    %p240 = scmp.lt.s32.totalorder %s11, 3
    %p241 = pnand %p239, %p240
    %p242 = pneg %p241
    // Predicated region
    $region37: #{generator_forward.18} parent=5 // pred_check
      _
    $region38: #{generator_forward.18} parent=5 // pred_check_branch
      %244 = sbr.rel (%p241) target = $region40
    $region39: #{generator_forward.18} parent=5 // pred_region
      %s245 = ssub.s32 %s11, 1
      %p246 = scmp.lt.s32.totalorder %s20, 1
      %s247 = scalar_select %p246, %s20, 1
      %p248 = scmp.lt.s32.totalorder %s21, 0
      %s249 = scalar_select %p248, %s21, 0
      %s250 = smul.addr %s247, 4
      %s251 = sadd.s32 %s249, %s250
      %s252 = smul.addr %s251, 4
      %s253 = scalar_lea.vmem %s0, %s252
      %p254 = pneg %p51
      %p255 = pneg %p48
      %p256 = pneg %p72
      %p257 = pneg %p69
      %p258 = scmp.lt.s32.totalorder %s21, 0
      %s259 = scalar_select %p258, %s21, 0
      %s260 = scalar_lea.vmem %s2, %s259
      %p261 = pneg %p98
      %p262 = pneg %p95
      %p263 = scmp.lt.s32.totalorder %s20, 1
      %s264 = scalar_select %p263, %s20, 1
      %p265 = scmp.lt.s32.totalorder %s21, 0
      %s266 = scalar_select %p265, %s21, 0
      %s267 = sadd.s32 %s266, %s264
      %s268 = scalar_lea.vmem %s3, %s267
      %p269 = pneg %p126
      %p270 = pneg %p123
      %p271 = scmp.lt.s32.totalorder %s20, 1
      %s272 = scalar_select %p271, %s20, 1
      %p273 = scmp.lt.s32.totalorder %s21, 0
      %s274 = scalar_select %p273, %s21, 0
      %s275 = sadd.s32 %s274, %s272
      %s276 = scalar_lea.vmem %s4, %s275
      %p277 = pneg %p154
      %p278 = pneg %p151
      %p279 = pneg %p182
      %p280 = pneg %p179
      %p281 = scmp.lt.s32.totalorder %s20, 1
      %s282 = scalar_select %p281, %s20, 1
      %p283 = scmp.lt.s32.totalorder %s21, 0
      %s284 = scalar_select %p283, %s21, 0
      %s285 = smul.addr %s282, 4
      %s286 = sadd.s32 %s284, %s285
      %s287 = smul.addr %s286, 4
      %s288 = scalar_lea.vmem %s5, %s287
      %p289 = scmp.lt.s32.totalorder %s20, 1
      %s290 = scalar_select %p289, %s20, 1
      %p291 = scmp.lt.s32.totalorder %s21, 0
      %s292 = scalar_select %p291, %s21, 0
      %s293 = smul.addr %s290, 4
      %s294 = sadd.s32 %s292, %s293
      %s295 = smul.addr %s294, 4
      %s296 = scalar_lea.vmem %s0, %s295
      %p297 = scmp.lt.s32.totalorder %s21, 0
      %s298 = scalar_select %p297, %s21, 0
      %s299 = scalar_lea.vmem %s2, %s298
      %p300 = scmp.lt.s32.totalorder %s20, 1
      %s301 = scalar_select %p300, %s20, 1
      %p302 = scmp.lt.s32.totalorder %s21, 0
      %s303 = scalar_select %p302, %s21, 0
      %s304 = sadd.s32 %s303, %s301
      %s305 = scalar_lea.vmem %s3, %s304
      %p306 = scmp.lt.s32.totalorder %s20, 1
      %s307 = scalar_select %p306, %s20, 1
      %p308 = scmp.lt.s32.totalorder %s21, 0
      %s309 = scalar_select %p308, %s21, 0
      %s310 = sadd.s32 %s309, %s307
      %s311 = scalar_lea.vmem %s4, %s310
      %p312 = scmp.lt.s32.totalorder %s20, 1
      %s313 = scalar_select %p312, %s20, 1
      %p314 = scmp.lt.s32.totalorder %s21, 0
      %s315 = scalar_select %p314, %s21, 0
      %s316 = smul.addr %s313, 4
      %s317 = sadd.s32 %s315, %s316
      %s318 = smul.addr %s317, 4
      %s319 = scalar_lea.vmem %s5, %s318
      %v320 = vld [vmem:[%s296] sm:$0xf]
      %v321 = vld [vmem:[%s296 + $0x4] sm:$0xf]
      %v322 = vld [vmem:[%s296 + $0x8] sm:$0xf]
      %v323 = vld [vmem:[%s296 + $0xc] sm:$0xf]
      %v324 = vld [vmem:[%s1] sm:$0xf]
      %v325 = vld [vmem:[%s1 + $0x4] sm:$0xf]
      %v326 = vld [vmem:[%s1 + $0x8] sm:$0xf]
      %v327 = vld [vmem:[%s1 + $0xc] sm:$0xf]
      %v328 = vld [vmem:[%s299] sm:$0x1]
      %330 = vset.pattern.permute.xlu0 0
      %331 = vperm.xlu0 %330, %v324
      %v332 = vpop.permute.xlu0 %331
      %335 = vset.pattern.permute.xlu0 0
      %336 = vperm.xlu0 %335, %v325
      %v337 = vpop.permute.xlu0 %336
      %340 = vset.pattern.permute.xlu0 0
      %341 = vperm.xlu0 %340, %v326
      %v342 = vpop.permute.xlu0 %341
      %345 = vset.pattern.permute.xlu0 0
      %346 = vperm.xlu0 %345, %v327
      %v347 = vpop.permute.xlu0 %346
      %v350 = vlaneseq
      %v351 = vshrl.u32 %v350, 7
      %v352 = vsub.s32 0, %v351
      %v353 = vrot.slane %v328, %v352
      %v355 = vmul.f32 %v332, %v353
      %v356 = vmul.f32 %v337, %v353
      %v357 = vmul.f32 %v342, %v353
      %v358 = vmul.f32 %v347, %v353
      %v359 = vadd.f32 %v320, %v355
      %v360 = vadd.f32 %v321, %v356
      %v361 = vadd.f32 %v322, %v357
      %v362 = vadd.f32 %v323, %v358
      %vm363 = vcmask 257024
      %v364 = vsel %vm363, %v359, 0.0
      %v365 = vsel %vm363, %v360, 0.0
      %v366 = vadd.f32 %v364, %v365
      %v367 = vsel %vm363, %v361, 0.0
      %v368 = vadd.f32 %v366, %v367
      %v369 = vsel %vm363, %v362, 0.0
      %v370 = vadd.f32 %v368, %v369
      %v371 = vrot.slane %v370, 4
      %v372 = vadd.f32 %v370, %v371
      %v373 = vrot.slane %v372, 2
      %v374 = vadd.f32 %v372, %v373
      %v375 = vrot.slane %v374, 1
      %v376 = vadd.f32 %v374, %v375
      %v377 = vrcp.pop 16.0
      %v378 = vmul.f32 %v376, %v377
      %v379 = vsub.f32 %v359, %v378
      %v380 = vsub.f32 %v360, %v378
      %v381 = vsub.f32 %v361, %v378
      %v382 = vsub.f32 %v362, %v378
      %v383 = vmul.f32 %v379, %v379
      %v384 = vmul.f32 %v380, %v380
      %v385 = vmul.f32 %v381, %v381
      %v386 = vmul.f32 %v382, %v382
      %v387 = vsel %vm363, %v383, 0.0
      %v388 = vsel %vm363, %v384, 0.0
      %v389 = vadd.f32 %v387, %v388
      %v390 = vsel %vm363, %v385, 0.0
      %v391 = vadd.f32 %v389, %v390
      %v392 = vsel %vm363, %v386, 0.0
      %v393 = vadd.f32 %v391, %v392
      %v394 = vrot.slane %v393, 4
      %v395 = vadd.f32 %v393, %v394
      %v396 = vrot.slane %v395, 2
      %v397 = vadd.f32 %v395, %v396
      %v398 = vrot.slane %v397, 1
      %v399 = vadd.f32 %v397, %v398
      %v400 = vmul.f32 %v399, %v377
      %v401 = vadd.f32 %v400, 1e-05
      %v402 = vrsqrt.pop %v401
      %v403 = vmul.f32 %v379, %v402
      %v404 = vmul.f32 %v380, %v402
      %v405 = vmul.f32 %v381, %v402
      %v406 = vmul.f32 %v382, %v402
      %v407 = vld [vmem:[%s305] sm:$0x1]
      %v409 = vlaneseq
      %v410 = vshrl.u32 %v409, 7
      %v411 = vsub.s32 0, %v410
      %v412 = vrot.slane %v407, %v411
      %v414 = vmul.f32 %v403, %v412
      %v415 = vmul.f32 %v404, %v412
      %v416 = vmul.f32 %v405, %v412
      %v417 = vmul.f32 %v406, %v412
      %v418 = vld [vmem:[%s311] sm:$0x1]
      %v420 = vlaneseq
      %v421 = vshrl.u32 %v420, 7
      %v422 = vsub.s32 0, %v421
      %v423 = vrot.slane %v418, %v422
      %v425 = vadd.f32 %v414, %v423
      %v426 = vadd.f32 %v415, %v423
      %v427 = vadd.f32 %v416, %v423
      %v428 = vadd.f32 %v417, %v423
      %429 = vst.msk [vmem:[%s319] sm:$0xf] %vm363, %v425
      %430 = vst.msk [vmem:[%s319 + $0x4] sm:$0xf] %vm363, %v426
      %431 = vst.msk [vmem:[%s319 + $0x8] sm:$0xf] %vm363, %v427
      %432 = vst.msk [vmem:[%s319 + $0xc] sm:$0xf] %vm363, %v428
      %p433 = scmp.lt.s32.totalorder %s20, 1
      %s434 = scalar_select %p433, %s20, 1
      %p435 = scmp.lt.s32.totalorder %s21, 0
      %s436 = scalar_select %p435, %s21, 0
      %s437 = smul.addr %s434, 4
      %s438 = sadd.s32 %s436, %s437
      %s439 = smul.addr %s438, 4
      %s440 = scalar_lea.vmem %s5, %s439
      // Predicated region
      $region41: #{generator_forward.18} parent=39 // pred_check
        %p441 = pneg %p179
      $region42: #{generator_forward.18} parent=39 // pred_check_branch
        %443 = sbr.rel (%p441) target = $region44
      $region43: #{generator_forward.18} parent=39 // pred_region
        _
      $region44: #{generator_forward.18} parent=39 // pred_fallthru
        _
    $region40: #{generator_forward.18} parent=5 // pred_fallthru
      _
    %p444 = scmp.le.s32.totalorder 2, %s11
    // Predicated region
    $region45: #{generator_forward.18} parent=5 // pred_check
      %p445 = pneg %p444
    $region46: #{generator_forward.18} parent=5 // pred_check_branch
      %447 = sbr.rel (%p445) target = $region48
    $region47: #{generator_forward.18} parent=5 // pred_region
      %s448 = ssub.s32 %s11, 2
      // Predicated region
      $region49: #{generator_forward.18} parent=47 // pred_check
        %p449 = pneg %p185
      $region50: #{generator_forward.18} parent=47 // pred_check_branch
        %451 = sbr.rel (%p449) target = $region52
      $region51: #{generator_forward.18} parent=47 // pred_region
        %p452 = scmp.lt.s32.totalorder %s22, 1
        %s453 = scalar_select %p452, %s22, 1
        %p454 = scmp.lt.s32.totalorder %s23, 0
        %s455 = scalar_select %p454, %s23, 0
        %s456 = smul.addr %s453, 4
        %s457 = sadd.s32 %s455, %s456
        %s458 = smul.addr %s457, 4
        %s459 = scalar_lea.vmem %s5, %s458
      $region52: #{generator_forward.18} parent=47 // pred_fallthru
        _
    $region48: #{generator_forward.18} parent=5 // pred_fallthru
      _
  $region6: #{generator_forward.18} parent=0 // loop_footer
    %s15 = sadd.s32 1, %s11
  $region7: #{generator_forward.18} parent=0 // loop_footer_branch
    %10 = sbr.rel target = $region3
  $region8: #{generator_forward.18} parent=0 // loop_exit
    _

// kernel: generator_forward.16
$region0: #{generator_forward.16}
  #allocation0 [shape = 'u32[]', space=smem, size = 0x4, offset = 0x4, fixed_abs, tag = 'smem constant byte address 0x4 - core index']
  #allocation1 [shape = 'u32[144,128]{1,0:T(1,128)}', space=vmem, size = 0x12000, scoped, tag = 'internal scratch']
  %s0 = inlined_call_operand.vmem [shape: f32[8,32], index: 0, kind: input, shape index: {}]
  %s1 = inlined_call_operand.vmem [shape: f32[7,32,32], index: 1, kind: input, shape index: {}]
  %s2 = inlined_call_operand.vmem [shape: f32[7,32], index: 2, kind: input, shape index: {}]
  %s3 = inlined_call_operand.vmem [shape: f32[32,32], index: 3, kind: input, shape index: {}]
  %s4 = inlined_call_operand.vmem [shape: f32[1,32], index: 4, kind: input, shape index: {}]
  %s5 = inlined_call_operand.vmem [shape: f32[8,32], index: 5, kind: output, shape index: {}]
  %s6 = sld [smem:[#allocation0]]
  $region30: #{generator_forward.16} parent=0
    _
  %s8 = ssub.s32 1, %s6
  %s9 = scalar_select 0, %s8, %s6
  // Predicated region
  $region2: #{generator_forward.16} parent=0 // pred_check
    _
  $region3: #{generator_forward.16} parent=0 // pred_check_branch
    %11 = sbr.rel (0) target = $region5
  $region4: #{generator_forward.16} parent=0 // pred_region
    _
  $region5: #{generator_forward.16} parent=0 // pred_fallthru
    _
  // Predicated region
  $region6: #{generator_forward.16} parent=0 // pred_check
    _
  $region7: #{generator_forward.16} parent=0 // pred_check_branch
    %13 = sbr.rel (0) target = $region9
  $region8: #{generator_forward.16} parent=0 // pred_region
    _
  $region9: #{generator_forward.16} parent=0 // pred_fallthru
    _
  // Predicated region
  $region10: #{generator_forward.16} parent=0 // pred_check
    _
  $region11: #{generator_forward.16} parent=0 // pred_check_branch
    %15 = sbr.rel (0) target = $region13
  $region12: #{generator_forward.16} parent=0 // pred_region
    _
  $region13: #{generator_forward.16} parent=0 // pred_fallthru
    _
  // Predicated region
  $region14: #{generator_forward.16} parent=0 // pred_check
    _
  $region15: #{generator_forward.16} parent=0 // pred_check_branch
    %17 = sbr.rel (0) target = $region17
  $region16: #{generator_forward.16} parent=0 // pred_region
    _
  $region17: #{generator_forward.16} parent=0 // pred_fallthru
    _
  // Predicated region
  $region18: #{generator_forward.16} parent=0 // pred_check
    _
  $region19: #{generator_forward.16} parent=0 // pred_check_branch
    %19 = sbr.rel (0) target = $region21
  $region20: #{generator_forward.16} parent=0 // pred_region
    _
  $region21: #{generator_forward.16} parent=0 // pred_fallthru
    _
  %v20 = vld [vmem:[%s0] sm:$0xff]
  %v21 = vmul.f32 %v20, %v20
  %vm22 = vcmask 261120
  %v23 = vsel %vm22, %v21, 0.0
  %24 = vadd.xlane.f32.xlu0 %v23
  %v25 = vpop.xlane.xlu0 %24
  %v26 = vrcp.pop 32.0
  %v27 = vmul.f32 %v25, %v26
  %v28 = vadd.f32 %v27, 1e-08
  %v29 = vrsqrt.pop %v28
  %v30 = vmul.f32 %v20, %v29
  %v31 = vld [vmem:[%s1] sm:$0xff]
  %v32 = vld [vmem:[%s1 + $0x8] sm:$0xff]
  %v33 = vld [vmem:[%s1 + $0x10] sm:$0xff]
  %v34 = vld [vmem:[%s1 + $0x18] sm:$0xff]
  %v35 = vld [vmem:[%s2] sm:$0x1]
  %v36 = vlaneseq
  %v37 = vshrl.u32 %v36, 7
  %v38 = vsub.s32 0, %v37
  %v39 = vrot.slane %v35, %v38
  %v41 = vsel %vm22, %v30, 0
  %43 = vmatprep.subr.mxu0 0.0
  %44 = vmatpush1.msra.mxu0 0.0
  %45 = vmatprep.subr.mxu0 0.0
  %46 = vmatpush1.msra.mxu0 0.0
  %47 = vmatprep.subr.mxu0 0.0
  %48 = vmatpush1.msra.mxu0 0.0
  %49 = vmatprep.subr.mxu0 0.0
  %50 = vmatpush1.msra.mxu0 0.0
  %51 = vmatprep.subr.mxu0 0.0
  %52 = vmatpush1.msra.mxu0 0.0
  %53 = vmatprep.subr.mxu0 0.0
  %54 = vmatpush1.msra.mxu0 0.0
  %55 = vmatprep.subr.mxu0 0.0
  %56 = vmatpush1.msra.mxu0 0.0
  %57 = vmatprep.subr.mxu0 0.0
  %58 = vmatpush1.msra.mxu0 0.0
  %59 = vmatprep.subr.mxu0 0.0
  %60 = vmatpush1.msra.mxu0 0.0
  %61 = vmatprep.subr.mxu0 0.0
  %62 = vmatpush1.msra.mxu0 0.0
  %63 = vmatprep.subr.mxu0 0.0
  %64 = vmatpush1.msra.mxu0 0.0
  %65 = vmatprep.subr.mxu0 0.0
  %66 = vmatpush1.msra.mxu0 0.0
  %67 = vmatprep.subr.mxu0 0.0
  %68 = vmatpush1.msra.mxu0 %v34
  %69 = vmatprep.subr.mxu0 0.0
  %70 = vmatpush1.msra.mxu0 %v33
  %71 = vmatprep.subr.mxu0 0.0
  %72 = vmatpush1.msra.mxu0 %v32
  %73 = vmatprep.subr.mxu0 0.0
  %74 = vmatpush1.msra.mxu0 %v31
  %75 = vmatprep.subr.mxu0 0.0
  %76 = vmatpush2.msra.mxu0 0.0
  %77 = vmatprep.subr.mxu0 0.0
  %78 = vmatpush2.msra.mxu0 0.0
  %79 = vmatprep.subr.mxu0 0.0
  %80 = vmatpush2.msra.mxu0 0.0
  %81 = vmatprep.subr.mxu0 0.0
  %82 = vmatpush2.msra.mxu0 0.0
  %83 = vmatprep.subr.mxu0 0.0
  %84 = vmatpush2.msra.mxu0 0.0
  %85 = vmatprep.subr.mxu0 0.0
  %86 = vmatpush2.msra.mxu0 0.0
  %87 = vmatprep.subr.mxu0 0.0
  %88 = vmatpush2.msra.mxu0 0.0
  %89 = vmatprep.subr.mxu0 0.0
  %90 = vmatpush2.msra.mxu0 0.0
  %91 = vmatprep.subr.mxu0 0.0
  %92 = vmatpush2.msra.mxu0 0.0
  %93 = vmatprep.subr.mxu0 0.0
  %94 = vmatpush2.msra.mxu0 0.0
  %95 = vmatprep.subr.mxu0 0.0
  %96 = vmatpush2.msra.mxu0 0.0
  %97 = vmatprep.subr.mxu0 0.0
  %98 = vmatpush2.msra.mxu0 0.0
  %99 = vmatprep.subr.mxu0 0.0
  %100 = vmatpush2.msra.mxu0 0.0
  %101 = vmatprep.subr.mxu0 0.0
  %102 = vmatpush2.msra.mxu0 0.0
  %103 = vmatprep.subr.mxu0 0.0
  %104 = vmatpush2.msra.mxu0 0.0
  %105 = vmatprep.subr.mxu0 0.0
  %106 = vmatpush2.msra.mxu0 0.0
  %107 = vmatprep.mubr.f32.mxu0 0.0
  %108 = vmatmul.mubr.f32.gmra.mxu0 %v41
  %v109 = vpop.f32.mrf.mxu0
  %v110 = vadd.f32 %v39, %v109
  %v111 = vpop.f32.mrf.mxu0
  %112 = vdwg.mxu0
  %v113 = vmax.f32 %v110, 0.0
  %s114 = scalar_lea.vmem %s1, 32
  %v115 = vld [vmem:[%s114] sm:$0xff]
  %v116 = vld [vmem:[%s114 + $0x8] sm:$0xff]
  %v117 = vld [vmem:[%s114 + $0x10] sm:$0xff]
  %v118 = vld [vmem:[%s114 + $0x18] sm:$0xff]
  %v119 = vld [vmem:[%s2 + $0x1] sm:$0x1]
  %v120 = vlaneseq
  %v121 = vshrl.u32 %v120, 7
  %v122 = vsub.s32 0, %v121
  %v123 = vrot.slane %v119, %v122
  %v125 = vsel %vm22, %v113, 0
  %127 = vmatprep.subr.mxu0 0.0
  %128 = vmatpush1.msra.mxu0 0.0
  %129 = vmatprep.subr.mxu0 0.0
  %130 = vmatpush1.msra.mxu0 0.0
  %131 = vmatprep.subr.mxu0 0.0
  %132 = vmatpush1.msra.mxu0 0.0
  %133 = vmatprep.subr.mxu0 0.0
  %134 = vmatpush1.msra.mxu0 0.0
  %135 = vmatprep.subr.mxu0 0.0
  %136 = vmatpush1.msra.mxu0 0.0
  %137 = vmatprep.subr.mxu0 0.0
  %138 = vmatpush1.msra.mxu0 0.0
  %139 = vmatprep.subr.mxu0 0.0
  %140 = vmatpush1.msra.mxu0 0.0
  %141 = vmatprep.subr.mxu0 0.0
  %142 = vmatpush1.msra.mxu0 0.0
  %143 = vmatprep.subr.mxu0 0.0
  %144 = vmatpush1.msra.mxu0 0.0
  %145 = vmatprep.subr.mxu0 0.0
  %146 = vmatpush1.msra.mxu0 0.0
  %147 = vmatprep.subr.mxu0 0.0
  %148 = vmatpush1.msra.mxu0 0.0
  %149 = vmatprep.subr.mxu0 0.0
  %150 = vmatpush1.msra.mxu0 0.0
  %151 = vmatprep.subr.mxu0 0.0
  %152 = vmatpush1.msra.mxu0 %v118
  %153 = vmatprep.subr.mxu0 0.0
  %154 = vmatpush1.msra.mxu0 %v117
  %155 = vmatprep.subr.mxu0 0.0
  %156 = vmatpush1.msra.mxu0 %v116
  %157 = vmatprep.subr.mxu0 0.0
  %158 = vmatpush1.msra.mxu0 %v115
  %159 = vmatprep.subr.mxu0 0.0
  %160 = vmatpush2.msra.mxu0 0.0
  %161 = vmatprep.subr.mxu0 0.0
  %162 = vmatpush2.msra.mxu0 0.0
  %163 = vmatprep.subr.mxu0 0.0
  %164 = vmatpush2.msra.mxu0 0.0
  %165 = vmatprep.subr.mxu0 0.0
  %166 = vmatpush2.msra.mxu0 0.0
  %167 = vmatprep.subr.mxu0 0.0
  %168 = vmatpush2.msra.mxu0 0.0
  %169 = vmatprep.subr.mxu0 0.0
  %170 = vmatpush2.msra.mxu0 0.0
  %171 = vmatprep.subr.mxu0 0.0
  %172 = vmatpush2.msra.mxu0 0.0
  %173 = vmatprep.subr.mxu0 0.0
  %174 = vmatpush2.msra.mxu0 0.0
  %175 = vmatprep.subr.mxu0 0.0
  %176 = vmatpush2.msra.mxu0 0.0
  %177 = vmatprep.subr.mxu0 0.0
  %178 = vmatpush2.msra.mxu0 0.0
  %179 = vmatprep.subr.mxu0 0.0
  %180 = vmatpush2.msra.mxu0 0.0
  %181 = vmatprep.subr.mxu0 0.0
  %182 = vmatpush2.msra.mxu0 0.0
  %183 = vmatprep.subr.mxu0 0.0
  %184 = vmatpush2.msra.mxu0 0.0
  %185 = vmatprep.subr.mxu0 0.0
  %186 = vmatpush2.msra.mxu0 0.0
  %187 = vmatprep.subr.mxu0 0.0
  %188 = vmatpush2.msra.mxu0 0.0
  %189 = vmatprep.subr.mxu0 0.0
  %190 = vmatpush2.msra.mxu0 0.0
  %191 = vmatprep.mubr.f32.mxu0 0.0
  %192 = vmatmul.mubr.f32.gmra.mxu0 %v125
  %v193 = vpop.f32.mrf.mxu0
  %v194 = vadd.f32 %v123, %v193
  %v195 = vpop.f32.mrf.mxu0
  %196 = vdwg.mxu0
  %v197 = vmax.f32 %v194, 0.0
  %s198 = scalar_lea.vmem %s1, 64
  %v199 = vld [vmem:[%s198] sm:$0xff]
  %v200 = vld [vmem:[%s198 + $0x8] sm:$0xff]
  %v201 = vld [vmem:[%s198 + $0x10] sm:$0xff]
  %v202 = vld [vmem:[%s198 + $0x18] sm:$0xff]
  %v203 = vld [vmem:[%s2 + $0x2] sm:$0x1]
  %v204 = vlaneseq
  %v205 = vshrl.u32 %v204, 7
  %v206 = vsub.s32 0, %v205
  %v207 = vrot.slane %v203, %v206
  %v209 = vsel %vm22, %v197, 0
  %211 = vmatprep.subr.mxu0 0.0
  %212 = vmatpush1.msra.mxu0 0.0
  %213 = vmatprep.subr.mxu0 0.0
  %214 = vmatpush1.msra.mxu0 0.0
  %215 = vmatprep.subr.mxu0 0.0
  %216 = vmatpush1.msra.mxu0 0.0
  %217 = vmatprep.subr.mxu0 0.0
  %218 = vmatpush1.msra.mxu0 0.0
  %219 = vmatprep.subr.mxu0 0.0
  %220 = vmatpush1.msra.mxu0 0.0
  %221 = vmatprep.subr.mxu0 0.0
  %222 = vmatpush1.msra.mxu0 0.0
  %223 = vmatprep.subr.mxu0 0.0
  %224 = vmatpush1.msra.mxu0 0.0
  %225 = vmatprep.subr.mxu0 0.0
  %226 = vmatpush1.msra.mxu0 0.0
  %227 = vmatprep.subr.mxu0 0.0
  %228 = vmatpush1.msra.mxu0 0.0
  %229 = vmatprep.subr.mxu0 0.0
  %230 = vmatpush1.msra.mxu0 0.0
  %231 = vmatprep.subr.mxu0 0.0
  %232 = vmatpush1.msra.mxu0 0.0
  %233 = vmatprep.subr.mxu0 0.0
  %234 = vmatpush1.msra.mxu0 0.0
  %235 = vmatprep.subr.mxu0 0.0
  %236 = vmatpush1.msra.mxu0 %v202
  %237 = vmatprep.subr.mxu0 0.0
  %238 = vmatpush1.msra.mxu0 %v201
  %239 = vmatprep.subr.mxu0 0.0
  %240 = vmatpush1.msra.mxu0 %v200
  %241 = vmatprep.subr.mxu0 0.0
  %242 = vmatpush1.msra.mxu0 %v199
  %243 = vmatprep.subr.mxu0 0.0
  %244 = vmatpush2.msra.mxu0 0.0
  %245 = vmatprep.subr.mxu0 0.0
  %246 = vmatpush2.msra.mxu0 0.0
  %247 = vmatprep.subr.mxu0 0.0
  %248 = vmatpush2.msra.mxu0 0.0
  %249 = vmatprep.subr.mxu0 0.0
  %250 = vmatpush2.msra.mxu0 0.0
  %251 = vmatprep.subr.mxu0 0.0
  %252 = vmatpush2.msra.mxu0 0.0
  %253 = vmatprep.subr.mxu0 0.0
  %254 = vmatpush2.msra.mxu0 0.0
  %255 = vmatprep.subr.mxu0 0.0
  %256 = vmatpush2.msra.mxu0 0.0
  %257 = vmatprep.subr.mxu0 0.0
  %258 = vmatpush2.msra.mxu0 0.0
  %259 = vmatprep.subr.mxu0 0.0
  %260 = vmatpush2.msra.mxu0 0.0
  %261 = vmatprep.subr.mxu0 0.0
  %262 = vmatpush2.msra.mxu0 0.0
  %263 = vmatprep.subr.mxu0 0.0
  %264 = vmatpush2.msra.mxu0 0.0
  %265 = vmatprep.subr.mxu0 0.0
  %266 = vmatpush2.msra.mxu0 0.0
  %267 = vmatprep.subr.mxu0 0.0
  %268 = vmatpush2.msra.mxu0 0.0
  %269 = vmatprep.subr.mxu0 0.0
  %270 = vmatpush2.msra.mxu0 0.0
  %271 = vmatprep.subr.mxu0 0.0
  %272 = vmatpush2.msra.mxu0 0.0
  %273 = vmatprep.subr.mxu0 0.0
  %274 = vmatpush2.msra.mxu0 0.0
  %275 = vmatprep.mubr.f32.mxu0 0.0
  %276 = vmatmul.mubr.f32.gmra.mxu0 %v209
  %v277 = vpop.f32.mrf.mxu0
  %v278 = vadd.f32 %v207, %v277
  %v279 = vpop.f32.mrf.mxu0
  %280 = vdwg.mxu0
  %v281 = vmax.f32 %v278, 0.0
  %s282 = scalar_lea.vmem %s1, 96
  %v283 = vld [vmem:[%s282] sm:$0xff]
  %v284 = vld [vmem:[%s282 + $0x8] sm:$0xff]
  %v285 = vld [vmem:[%s282 + $0x10] sm:$0xff]
  %v286 = vld [vmem:[%s282 + $0x18] sm:$0xff]
  %v287 = vld [vmem:[%s2 + $0x3] sm:$0x1]
  %v288 = vlaneseq
  %v289 = vshrl.u32 %v288, 7
  %v290 = vsub.s32 0, %v289
  %v291 = vrot.slane %v287, %v290
  %v293 = vsel %vm22, %v281, 0
  %295 = vmatprep.subr.mxu0 0.0
  %296 = vmatpush1.msra.mxu0 0.0
  %297 = vmatprep.subr.mxu0 0.0
  %298 = vmatpush1.msra.mxu0 0.0
  %299 = vmatprep.subr.mxu0 0.0
  %300 = vmatpush1.msra.mxu0 0.0
  %301 = vmatprep.subr.mxu0 0.0
  %302 = vmatpush1.msra.mxu0 0.0
  %303 = vmatprep.subr.mxu0 0.0
  %304 = vmatpush1.msra.mxu0 0.0
  %305 = vmatprep.subr.mxu0 0.0
  %306 = vmatpush1.msra.mxu0 0.0
  %307 = vmatprep.subr.mxu0 0.0
  %308 = vmatpush1.msra.mxu0 0.0
  %309 = vmatprep.subr.mxu0 0.0
  %310 = vmatpush1.msra.mxu0 0.0
  %311 = vmatprep.subr.mxu0 0.0
  %312 = vmatpush1.msra.mxu0 0.0
  %313 = vmatprep.subr.mxu0 0.0
  %314 = vmatpush1.msra.mxu0 0.0
  %315 = vmatprep.subr.mxu0 0.0
  %316 = vmatpush1.msra.mxu0 0.0
  %317 = vmatprep.subr.mxu0 0.0
  %318 = vmatpush1.msra.mxu0 0.0
  %319 = vmatprep.subr.mxu0 0.0
  %320 = vmatpush1.msra.mxu0 %v286
  %321 = vmatprep.subr.mxu0 0.0
  %322 = vmatpush1.msra.mxu0 %v285
  %323 = vmatprep.subr.mxu0 0.0
  %324 = vmatpush1.msra.mxu0 %v284
  %325 = vmatprep.subr.mxu0 0.0
  %326 = vmatpush1.msra.mxu0 %v283
  %327 = vmatprep.subr.mxu0 0.0
  %328 = vmatpush2.msra.mxu0 0.0
  %329 = vmatprep.subr.mxu0 0.0
  %330 = vmatpush2.msra.mxu0 0.0
  %331 = vmatprep.subr.mxu0 0.0
  %332 = vmatpush2.msra.mxu0 0.0
  %333 = vmatprep.subr.mxu0 0.0
  %334 = vmatpush2.msra.mxu0 0.0
  %335 = vmatprep.subr.mxu0 0.0
  %336 = vmatpush2.msra.mxu0 0.0
  %337 = vmatprep.subr.mxu0 0.0
  %338 = vmatpush2.msra.mxu0 0.0
  %339 = vmatprep.subr.mxu0 0.0
  %340 = vmatpush2.msra.mxu0 0.0
  %341 = vmatprep.subr.mxu0 0.0
  %342 = vmatpush2.msra.mxu0 0.0
  %343 = vmatprep.subr.mxu0 0.0
  %344 = vmatpush2.msra.mxu0 0.0
  %345 = vmatprep.subr.mxu0 0.0
  %346 = vmatpush2.msra.mxu0 0.0
  %347 = vmatprep.subr.mxu0 0.0
  %348 = vmatpush2.msra.mxu0 0.0
  %349 = vmatprep.subr.mxu0 0.0
  %350 = vmatpush2.msra.mxu0 0.0
  %351 = vmatprep.subr.mxu0 0.0
  %352 = vmatpush2.msra.mxu0 0.0
  %353 = vmatprep.subr.mxu0 0.0
  %354 = vmatpush2.msra.mxu0 0.0
  %355 = vmatprep.subr.mxu0 0.0
  %356 = vmatpush2.msra.mxu0 0.0
  %357 = vmatprep.subr.mxu0 0.0
  %358 = vmatpush2.msra.mxu0 0.0
  %359 = vmatprep.mubr.f32.mxu0 0.0
  %360 = vmatmul.mubr.f32.gmra.mxu0 %v293
  %v361 = vpop.f32.mrf.mxu0
  %v362 = vadd.f32 %v291, %v361
  %v363 = vpop.f32.mrf.mxu0
  %364 = vdwg.mxu0
  %v365 = vmax.f32 %v362, 0.0
  %s366 = scalar_lea.vmem %s1, 128
  %v367 = vld [vmem:[%s366] sm:$0xff]
  %v368 = vld [vmem:[%s366 + $0x8] sm:$0xff]
  %v369 = vld [vmem:[%s366 + $0x10] sm:$0xff]
  %v370 = vld [vmem:[%s366 + $0x18] sm:$0xff]
  %v371 = vld [vmem:[%s2 + $0x4] sm:$0x1]
  %v372 = vlaneseq
  %v373 = vshrl.u32 %v372, 7
  %v374 = vsub.s32 0, %v373
  %v375 = vrot.slane %v371, %v374
  %v377 = vsel %vm22, %v365, 0
  %379 = vmatprep.subr.mxu0 0.0
  %380 = vmatpush1.msra.mxu0 0.0
  %381 = vmatprep.subr.mxu0 0.0
  %382 = vmatpush1.msra.mxu0 0.0
  %383 = vmatprep.subr.mxu0 0.0
  %384 = vmatpush1.msra.mxu0 0.0
  %385 = vmatprep.subr.mxu0 0.0
  %386 = vmatpush1.msra.mxu0 0.0
  %387 = vmatprep.subr.mxu0 0.0
  %388 = vmatpush1.msra.mxu0 0.0
  %389 = vmatprep.subr.mxu0 0.0
  %390 = vmatpush1.msra.mxu0 0.0
  %391 = vmatprep.subr.mxu0 0.0
  %392 = vmatpush1.msra.mxu0 0.0
  %393 = vmatprep.subr.mxu0 0.0
  %394 = vmatpush1.msra.mxu0 0.0
  %395 = vmatprep.subr.mxu0 0.0
  %396 = vmatpush1.msra.mxu0 0.0
  %397 = vmatprep.subr.mxu0 0.0
  %398 = vmatpush1.msra.mxu0 0.0
  %399 = vmatprep.subr.mxu0 0.0
  %400 = vmatpush1.msra.mxu0 0.0
  %401 = vmatprep.subr.mxu0 0.0
  %402 = vmatpush1.msra.mxu0 0.0
  %403 = vmatprep.subr.mxu0 0.0
  %404 = vmatpush1.msra.mxu0 %v370
  %405 = vmatprep.subr.mxu0 0.0
  %406 = vmatpush1.msra.mxu0 %v369
  %407 = vmatprep.subr.mxu0 0.0
  %408 = vmatpush1.msra.mxu0 %v368
  %409 = vmatprep.subr.mxu0 0.0
  %410 = vmatpush1.msra.mxu0 %v367
  %411 = vmatprep.subr.mxu0 0.0
  %412 = vmatpush2.msra.mxu0 0.0
  %413 = vmatprep.subr.mxu0 0.0
  %414 = vmatpush2.msra.mxu0 0.0
  %415 = vmatprep.subr.mxu0 0.0
  %416 = vmatpush2.msra.mxu0 0.0
  %417 = vmatprep.subr.mxu0 0.0
  %418 = vmatpush2.msra.mxu0 0.0
  %419 = vmatprep.subr.mxu0 0.0
  %420 = vmatpush2.msra.mxu0 0.0
  %421 = vmatprep.subr.mxu0 0.0
  %422 = vmatpush2.msra.mxu0 0.0
  %423 = vmatprep.subr.mxu0 0.0
  %424 = vmatpush2.msra.mxu0 0.0
  %425 = vmatprep.subr.mxu0 0.0
  %426 = vmatpush2.msra.mxu0 0.0
  %427 = vmatprep.subr.mxu0 0.0
  %428 = vmatpush2.msra.mxu0 0.0
  %429 = vmatprep.subr.mxu0 0.0
  %430 = vmatpush2.msra.mxu0 0.0
  %431 = vmatprep.subr.mxu0 0.0
  %432 = vmatpush2.msra.mxu0 0.0
  %433 = vmatprep.subr.mxu0 0.0
  %434 = vmatpush2.msra.mxu0 0.0
  %435 = vmatprep.subr.mxu0 0.0
  %436 = vmatpush2.msra.mxu0 0.0
  %437 = vmatprep.subr.mxu0 0.0
  %438 = vmatpush2.msra.mxu0 0.0
  %439 = vmatprep.subr.mxu0 0.0
  %440 = vmatpush2.msra.mxu0 0.0
  %441 = vmatprep.subr.mxu0 0.0
  %442 = vmatpush2.msra.mxu0 0.0
  %443 = vmatprep.mubr.f32.mxu0 0.0
  %444 = vmatmul.mubr.f32.gmra.mxu0 %v377
  %v445 = vpop.f32.mrf.mxu0
  %v446 = vadd.f32 %v375, %v445
  %v447 = vpop.f32.mrf.mxu0
  %448 = vdwg.mxu0
  %v449 = vmax.f32 %v446, 0.0
  %s450 = scalar_lea.vmem %s1, 160
  %v451 = vld [vmem:[%s450] sm:$0xff]
  %v452 = vld [vmem:[%s450 + $0x8] sm:$0xff]
  %v453 = vld [vmem:[%s450 + $0x10] sm:$0xff]
  %v454 = vld [vmem:[%s450 + $0x18] sm:$0xff]
  %v455 = vld [vmem:[%s2 + $0x5] sm:$0x1]
  %v456 = vlaneseq
  %v457 = vshrl.u32 %v456, 7
  %v458 = vsub.s32 0, %v457
  %v459 = vrot.slane %v455, %v458
  %v461 = vsel %vm22, %v449, 0
  %463 = vmatprep.subr.mxu0 0.0
  %464 = vmatpush1.msra.mxu0 0.0
  %465 = vmatprep.subr.mxu0 0.0
  %466 = vmatpush1.msra.mxu0 0.0
  %467 = vmatprep.subr.mxu0 0.0
  %468 = vmatpush1.msra.mxu0 0.0
  %469 = vmatprep.subr.mxu0 0.0
  %470 = vmatpush1.msra.mxu0 0.0
  %471 = vmatprep.subr.mxu0 0.0
  %472 = vmatpush1.msra.mxu0 0.0
  %473 = vmatprep.subr.mxu0 0.0
  %474 = vmatpush1.msra.mxu0 0.0
  %475 = vmatprep.subr.mxu0 0.0
  %476 = vmatpush1.msra.mxu0 0.0
  %477 = vmatprep.subr.mxu0 0.0
  %478 = vmatpush1.msra.mxu0 0.0
  %479 = vmatprep.subr.mxu0 0.0
  %480 = vmatpush1.msra.mxu0 0.0
  %481 = vmatprep.subr.mxu0 0.0
  %482 = vmatpush1.msra.mxu0 0.0
  %483 = vmatprep.subr.mxu0 0.0
  %484 = vmatpush1.msra.mxu0 0.0
  %485 = vmatprep.subr.mxu0 0.0
  %486 = vmatpush1.msra.mxu0 0.0
  %487 = vmatprep.subr.mxu0 0.0
  %488 = vmatpush1.msra.mxu0 %v454
  %489 = vmatprep.subr.mxu0 0.0
  %490 = vmatpush1.msra.mxu0 %v453
  %491 = vmatprep.subr.mxu0 0.0
  %492 = vmatpush1.msra.mxu0 %v452
  %493 = vmatprep.subr.mxu0 0.0
  %494 = vmatpush1.msra.mxu0 %v451
  %495 = vmatprep.subr.mxu0 0.0
  %496 = vmatpush2.msra.mxu0 0.0
  %497 = vmatprep.subr.mxu0 0.0
  %498 = vmatpush2.msra.mxu0 0.0
  %499 = vmatprep.subr.mxu0 0.0
  %500 = vmatpush2.msra.mxu0 0.0
  %501 = vmatprep.subr.mxu0 0.0
  %502 = vmatpush2.msra.mxu0 0.0
  %503 = vmatprep.subr.mxu0 0.0
  %504 = vmatpush2.msra.mxu0 0.0
  %505 = vmatprep.subr.mxu0 0.0
  %506 = vmatpush2.msra.mxu0 0.0
  %507 = vmatprep.subr.mxu0 0.0
  %508 = vmatpush2.msra.mxu0 0.0
  %509 = vmatprep.subr.mxu0 0.0
  %510 = vmatpush2.msra.mxu0 0.0
  %511 = vmatprep.subr.mxu0 0.0
  %512 = vmatpush2.msra.mxu0 0.0
  %513 = vmatprep.subr.mxu0 0.0
  %514 = vmatpush2.msra.mxu0 0.0
  %515 = vmatprep.subr.mxu0 0.0
  %516 = vmatpush2.msra.mxu0 0.0
  %517 = vmatprep.subr.mxu0 0.0
  %518 = vmatpush2.msra.mxu0 0.0
  %519 = vmatprep.subr.mxu0 0.0
  %520 = vmatpush2.msra.mxu0 0.0
  %521 = vmatprep.subr.mxu0 0.0
  %522 = vmatpush2.msra.mxu0 0.0
  %523 = vmatprep.subr.mxu0 0.0
  %524 = vmatpush2.msra.mxu0 0.0
  %525 = vmatprep.subr.mxu0 0.0
  %526 = vmatpush2.msra.mxu0 0.0
  %527 = vmatprep.mubr.f32.mxu0 0.0
  %528 = vmatmul.mubr.f32.gmra.mxu0 %v461
  %v529 = vpop.f32.mrf.mxu0
  %v530 = vadd.f32 %v459, %v529
  %v531 = vpop.f32.mrf.mxu0
  %532 = vdwg.mxu0
  %v533 = vmax.f32 %v530, 0.0
  %s534 = scalar_lea.vmem %s1, 192
  %v535 = vld [vmem:[%s534] sm:$0xff]
  %v536 = vld [vmem:[%s534 + $0x8] sm:$0xff]
  %v537 = vld [vmem:[%s534 + $0x10] sm:$0xff]
  %v538 = vld [vmem:[%s534 + $0x18] sm:$0xff]
  %v539 = vld [vmem:[%s2 + $0x6] sm:$0x1]
  %v540 = vlaneseq
  %v541 = vshrl.u32 %v540, 7
  %v542 = vsub.s32 0, %v541
  %v543 = vrot.slane %v539, %v542
  %v545 = vsel %vm22, %v533, 0
  %547 = vmatprep.subr.mxu0 0.0
  %548 = vmatpush1.msra.mxu0 0.0
  %549 = vmatprep.subr.mxu0 0.0
  %550 = vmatpush1.msra.mxu0 0.0
  %551 = vmatprep.subr.mxu0 0.0
  %552 = vmatpush1.msra.mxu0 0.0
  %553 = vmatprep.subr.mxu0 0.0
  %554 = vmatpush1.msra.mxu0 0.0
  %555 = vmatprep.subr.mxu0 0.0
  %556 = vmatpush1.msra.mxu0 0.0
  %557 = vmatprep.subr.mxu0 0.0
  %558 = vmatpush1.msra.mxu0 0.0
  %559 = vmatprep.subr.mxu0 0.0
  %560 = vmatpush1.msra.mxu0 0.0
  %561 = vmatprep.subr.mxu0 0.0
  %562 = vmatpush1.msra.mxu0 0.0
  %563 = vmatprep.subr.mxu0 0.0
  %564 = vmatpush1.msra.mxu0 0.0
  %565 = vmatprep.subr.mxu0 0.0
  %566 = vmatpush1.msra.mxu0 0.0
  %567 = vmatprep.subr.mxu0 0.0
  %568 = vmatpush1.msra.mxu0 0.0
  %569 = vmatprep.subr.mxu0 0.0
  %570 = vmatpush1.msra.mxu0 0.0
  %571 = vmatprep.subr.mxu0 0.0
  %572 = vmatpush1.msra.mxu0 %v538
  %573 = vmatprep.subr.mxu0 0.0
  %574 = vmatpush1.msra.mxu0 %v537
  %575 = vmatprep.subr.mxu0 0.0
  %576 = vmatpush1.msra.mxu0 %v536
  %577 = vmatprep.subr.mxu0 0.0
  %578 = vmatpush1.msra.mxu0 %v535
  %579 = vmatprep.subr.mxu0 0.0
  %580 = vmatpush2.msra.mxu0 0.0
  %581 = vmatprep.subr.mxu0 0.0
  %582 = vmatpush2.msra.mxu0 0.0
  %583 = vmatprep.subr.mxu0 0.0
  %584 = vmatpush2.msra.mxu0 0.0
  %585 = vmatprep.subr.mxu0 0.0
  %586 = vmatpush2.msra.mxu0 0.0
  %587 = vmatprep.subr.mxu0 0.0
  %588 = vmatpush2.msra.mxu0 0.0
  %589 = vmatprep.subr.mxu0 0.0
  %590 = vmatpush2.msra.mxu0 0.0
  %591 = vmatprep.subr.mxu0 0.0
  %592 = vmatpush2.msra.mxu0 0.0
  %593 = vmatprep.subr.mxu0 0.0
  %594 = vmatpush2.msra.mxu0 0.0
  %595 = vmatprep.subr.mxu0 0.0
  %596 = vmatpush2.msra.mxu0 0.0
  %597 = vmatprep.subr.mxu0 0.0
  %598 = vmatpush2.msra.mxu0 0.0
  %599 = vmatprep.subr.mxu0 0.0
  %600 = vmatpush2.msra.mxu0 0.0
  %601 = vmatprep.subr.mxu0 0.0
  %602 = vmatpush2.msra.mxu0 0.0
  %603 = vmatprep.subr.mxu0 0.0
  %604 = vmatpush2.msra.mxu0 0.0
  %605 = vmatprep.subr.mxu0 0.0
  %606 = vmatpush2.msra.mxu0 0.0
  %607 = vmatprep.subr.mxu0 0.0
  %608 = vmatpush2.msra.mxu0 0.0
  %609 = vmatprep.subr.mxu0 0.0
  %610 = vmatpush2.msra.mxu0 0.0
  %611 = vmatprep.mubr.f32.mxu0 0.0
  %612 = vmatmul.mubr.f32.gmra.mxu0 %v545
  %v613 = vpop.f32.mrf.mxu0
  %v614 = vadd.f32 %v543, %v613
  %v615 = vpop.f32.mrf.mxu0
  %616 = vdwg.mxu0
  %v617 = vmax.f32 %v614, 0.0
  %v618 = vld [vmem:[%s3] sm:$0xff]
  %v619 = vld [vmem:[%s3 + $0x8] sm:$0xff]
  %v620 = vld [vmem:[%s3 + $0x10] sm:$0xff]
  %v621 = vld [vmem:[%s3 + $0x18] sm:$0xff]
  %v622 = vld [vmem:[%s4] sm:$0x1]
  %v624 = vlaneseq
  %v625 = vshrl.u32 %v624, 7
  %v626 = vsub.s32 0, %v625
  %v627 = vrot.slane %v622, %v626
  %v630 = vsel %vm22, %v617, 0
  %632 = vmatprep.subr.mxu0 0.0
  %633 = vmatpush1.msra.mxu0 0.0
  %634 = vmatprep.subr.mxu0 0.0
  %635 = vmatpush1.msra.mxu0 0.0
  %636 = vmatprep.subr.mxu0 0.0
  %637 = vmatpush1.msra.mxu0 0.0
  %638 = vmatprep.subr.mxu0 0.0
  %639 = vmatpush1.msra.mxu0 0.0
  %640 = vmatprep.subr.mxu0 0.0
  %641 = vmatpush1.msra.mxu0 0.0
  %642 = vmatprep.subr.mxu0 0.0
  %643 = vmatpush1.msra.mxu0 0.0
  %644 = vmatprep.subr.mxu0 0.0
  %645 = vmatpush1.msra.mxu0 0.0
  %646 = vmatprep.subr.mxu0 0.0
  %647 = vmatpush1.msra.mxu0 0.0
  %648 = vmatprep.subr.mxu0 0.0
  %649 = vmatpush1.msra.mxu0 0.0
  %650 = vmatprep.subr.mxu0 0.0
  %651 = vmatpush1.msra.mxu0 0.0
  %652 = vmatprep.subr.mxu0 0.0
  %653 = vmatpush1.msra.mxu0 0.0
  %654 = vmatprep.subr.mxu0 0.0
  %655 = vmatpush1.msra.mxu0 0.0
  %656 = vmatprep.subr.mxu0 0.0
  %657 = vmatpush1.msra.mxu0 %v621
  %658 = vmatprep.subr.mxu0 0.0
  %659 = vmatpush1.msra.mxu0 %v620
  %660 = vmatprep.subr.mxu0 0.0
  %661 = vmatpush1.msra.mxu0 %v619
  %662 = vmatprep.subr.mxu0 0.0
  %663 = vmatpush1.msra.mxu0 %v618
  %664 = vmatprep.subr.mxu0 0.0
  %665 = vmatpush2.msra.mxu0 0.0
  %666 = vmatprep.subr.mxu0 0.0
  %667 = vmatpush2.msra.mxu0 0.0
  %668 = vmatprep.subr.mxu0 0.0
  %669 = vmatpush2.msra.mxu0 0.0
  %670 = vmatprep.subr.mxu0 0.0
  %671 = vmatpush2.msra.mxu0 0.0
  %672 = vmatprep.subr.mxu0 0.0
  %673 = vmatpush2.msra.mxu0 0.0
  %674 = vmatprep.subr.mxu0 0.0
  %675 = vmatpush2.msra.mxu0 0.0
  %676 = vmatprep.subr.mxu0 0.0
  %677 = vmatpush2.msra.mxu0 0.0
  %678 = vmatprep.subr.mxu0 0.0
  %679 = vmatpush2.msra.mxu0 0.0
  %680 = vmatprep.subr.mxu0 0.0
  %681 = vmatpush2.msra.mxu0 0.0
  %682 = vmatprep.subr.mxu0 0.0
  %683 = vmatpush2.msra.mxu0 0.0
  %684 = vmatprep.subr.mxu0 0.0
  %685 = vmatpush2.msra.mxu0 0.0
  %686 = vmatprep.subr.mxu0 0.0
  %687 = vmatpush2.msra.mxu0 0.0
  %688 = vmatprep.subr.mxu0 0.0
  %689 = vmatpush2.msra.mxu0 0.0
  %690 = vmatprep.subr.mxu0 0.0
  %691 = vmatpush2.msra.mxu0 0.0
  %692 = vmatprep.subr.mxu0 0.0
  %693 = vmatpush2.msra.mxu0 0.0
  %694 = vmatprep.subr.mxu0 0.0
  %695 = vmatpush2.msra.mxu0 0.0
  %696 = vmatprep.mubr.f32.mxu0 0.0
  %697 = vmatmul.mubr.f32.gmra.mxu0 %v630
  %v698 = vpop.f32.mrf.mxu0
  %v699 = vadd.f32 %v627, %v698
  %v700 = vpop.f32.mrf.mxu0
  %701 = vdwg.mxu0
  %702 = vst.msk [vmem:[%s5] sm:$0xff] %vm22, %v699
  // Predicated region
  $region22: #{generator_forward.16} parent=0 // pred_check
    _
  $region23: #{generator_forward.16} parent=0 // pred_check_branch
    %704 = sbr.rel (0) target = $region25
  $region24: #{generator_forward.16} parent=0 // pred_region
    _
  $region25: #{generator_forward.16} parent=0 // pred_fallthru
    _
  // Predicated region
  $region26: #{generator_forward.16} parent=0 // pred_check
    _
  $region27: #{generator_forward.16} parent=0 // pred_check_branch
    %706 = sbr.rel (0) target = $region29
  $region28: #{generator_forward.16} parent=0 // pred_region
    _
  $region29: #{generator_forward.16} parent=0 // pred_fallthru
    _

// kernel: generator_forward.20
$region0: #{generator_forward.20}
  #allocation0 [shape = 'u32[]', space=smem, size = 0x4, offset = 0x4, fixed_abs, tag = 'smem constant byte address 0x4 - core index']
  #allocation1 [shape = 'u32[144,128]{1,0:T(1,128)}', space=vmem, size = 0x12000, scoped, tag = 'internal scratch']
  %s0 = inlined_call_operand.vmem [shape: f32[2,4,4,32], index: 0, kind: input, shape index: {}]
  %s1 = inlined_call_operand.vmem [shape: f32[2,4,4,1], index: 1, kind: input, shape index: {}]
  %s2 = inlined_call_operand.vmem [shape: f32[1,1,32], index: 2, kind: input, shape index: {}]
  %s3 = inlined_call_operand.vmem [shape: f32[2,1,32], index: 3, kind: input, shape index: {}]
  %s4 = inlined_call_operand.vmem [shape: f32[2,1,32], index: 4, kind: input, shape index: {}]
  %s5 = inlined_call_operand.vmem [shape: f32[2,4,4,32], index: 5, kind: output, shape index: {}]
  %s6 = sld [smem:[#allocation0]]
  $region53: #{generator_forward.20} parent=0
    _
  %s8 = ssub.s32 1, %s6
  %s9 = scalar_select 0, %s8, %s6
  loop: start=0, step=1, limit=4
  $region2: #{generator_forward.20} parent=0 // loop_pre_header
    _
  $region3: #{generator_forward.20} parent=0 // loop_header
    %s11 = sphi 0, %s15
    %p12 = scmp.ge.s32.totalorder %s11, 4
    %s18 = sphi 0, %s30
    %s19 = sphi 0, %s26
    %s20 = sphi 0, %s18
    %s21 = sphi 0, %s19
    %s22 = sphi 0, %s20
    %s23 = sphi 0, %s21
    %s35 = sphi 0, %s37
    %s38 = sphi 0, %s35
    %s39 = sphi 0, %s38
    %s55 = sphi 0, %s39
    %s61 = sphi 0, %s63
    %s64 = sphi 0, %s61
    %s65 = sphi 0, %s64
    %s81 = sphi 0, %s65
    %s87 = sphi 0, %s89
    %s90 = sphi 0, %s87
    %s91 = sphi 0, %s90
    %s107 = sphi 0, %s91
    %s115 = sphi 0, %s117
    %s118 = sphi 0, %s115
    %s119 = sphi 0, %s118
    %s135 = sphi 0, %s119
    %s143 = sphi 0, %s145
    %s146 = sphi 0, %s143
    %s147 = sphi 0, %s146
    %s163 = sphi 0, %s147
    %s171 = sphi 0, %s173
    %s174 = sphi 0, %s171
    %s175 = sphi 0, %s174
    %s191 = sphi 0, %s175
  $region4: #{generator_forward.20} parent=0 // loop_header_branch
    %14 = sbr.rel (%p12) target = $region8
  $region5: #{generator_forward.20} parent=0 // loop_body
    %s16 = ssub.s32 %s11, 1
    %s17 = ssub.s32 %s11, 2
    %s24 = sadd.s32 1, %s19
    %p25 = scmp.ge.s32.totalorder %s24, 1
    %s26 = scalar_select %p25, 0, %s24
    %s27 = sadd.s32 1, %s18
    %s28 = scalar_select %p25, %s27, %s18
    %p29 = scmp.ge.s32.totalorder %s28, 2
    %s30 = scalar_select %p29, 0, %s28
    %s31 = ssub.s32 %s18, %s30
    %s32 = ssub.s32 %s19, %s26
    %s33 = sor.u32 %s31, %s32
    %p34 = scmp.eq.s32.totalorder %s33, 0
    %s36 = sadd.s32 %s35, 1
    %s37 = scalar_select %p34, %s35, %s36
    %p40 = pneg %p34
    %p41 = scmp.eq.s32.totalorder %s11, 1
    %p42 = por %p40, %p41
    %p43 = scmp.ne.s32.totalorder %s35, %s38
    %p44 = scmp.eq.s32.totalorder %s11, 0
    %p45 = por %p43, %p44
    %p46 = scmp.ne.s32.totalorder %s35, %s38
    %p47 = scmp.eq.s32.totalorder %s16, 1
    %p48 = por %p46, %p47
    %p49 = scmp.ne.s32.totalorder %s38, %s39
    %p50 = scmp.eq.s32.totalorder %s16, 0
    %p51 = por %p49, %p50
    %p52 = scmp.ne.s32.totalorder %s38, %s39
    %p53 = scmp.eq.s32.totalorder %s17, 1
    %p54 = por %p52, %p53
    %p56 = scmp.ne.s32.totalorder %s39, %s55
    %p57 = scmp.eq.s32.totalorder %s17, 0
    %p58 = por %p56, %p57
    %s59 = ssub.s32 %s18, %s30
    %p60 = scmp.eq.s32.totalorder %s59, 0
    %s62 = sadd.s32 %s61, 1
    %s63 = scalar_select %p60, %s61, %s62
    %p66 = pneg %p60
    %p67 = scmp.eq.s32.totalorder %s11, 1
    %p68 = por %p66, %p67
    %p69 = scmp.ne.s32.totalorder %s61, %s64
    %p70 = scmp.eq.s32.totalorder %s11, 0
    %p71 = por %p69, %p70
    %p72 = scmp.ne.s32.totalorder %s61, %s64
    %p73 = scmp.eq.s32.totalorder %s16, 1
    %p74 = por %p72, %p73
    %p75 = scmp.ne.s32.totalorder %s64, %s65
    %p76 = scmp.eq.s32.totalorder %s16, 0
    %p77 = por %p75, %p76
    %p78 = scmp.ne.s32.totalorder %s64, %s65
    %p79 = scmp.eq.s32.totalorder %s17, 1
    %p80 = por %p78, %p79
    %p82 = scmp.ne.s32.totalorder %s65, %s81
    %p83 = scmp.eq.s32.totalorder %s17, 0
    %p84 = por %p82, %p83
    %s85 = ssub.s32 %s19, %s26
    %p86 = scmp.eq.s32.totalorder %s85, 0
    %s88 = sadd.s32 %s87, 1
    %s89 = scalar_select %p86, %s87, %s88
    %p92 = pneg %p86
    %p93 = scmp.eq.s32.totalorder %s11, 1
    %p94 = por %p92, %p93
    %p95 = scmp.ne.s32.totalorder %s87, %s90
    %p96 = scmp.eq.s32.totalorder %s11, 0
    %p97 = por %p95, %p96
    %p98 = scmp.ne.s32.totalorder %s87, %s90
    %p99 = scmp.eq.s32.totalorder %s16, 1
    %p100 = por %p98, %p99
    %p101 = scmp.ne.s32.totalorder %s90, %s91
    %p102 = scmp.eq.s32.totalorder %s16, 0
    %p103 = por %p101, %p102
    %p104 = scmp.ne.s32.totalorder %s90, %s91
    %p105 = scmp.eq.s32.totalorder %s17, 1
    %p106 = por %p104, %p105
    %p108 = scmp.ne.s32.totalorder %s91, %s107
    %p109 = scmp.eq.s32.totalorder %s17, 0
    %p110 = por %p108, %p109
    %s111 = ssub.s32 %s18, %s30
    %s112 = ssub.s32 %s19, %s26
    %s113 = sor.u32 %s111, %s112
    %p114 = scmp.eq.s32.totalorder %s113, 0
    %s116 = sadd.s32 %s115, 1
    %s117 = scalar_select %p114, %s115, %s116
    %p120 = pneg %p114
    %p121 = scmp.eq.s32.totalorder %s11, 1
    %p122 = por %p120, %p121
    %p123 = scmp.ne.s32.totalorder %s115, %s118
    %p124 = scmp.eq.s32.totalorder %s11, 0
    %p125 = por %p123, %p124
    %p126 = scmp.ne.s32.totalorder %s115, %s118
    %p127 = scmp.eq.s32.totalorder %s16, 1
    %p128 = por %p126, %p127
    %p129 = scmp.ne.s32.totalorder %s118, %s119
    %p130 = scmp.eq.s32.totalorder %s16, 0
    %p131 = por %p129, %p130
    %p132 = scmp.ne.s32.totalorder %s118, %s119
    %p133 = scmp.eq.s32.totalorder %s17, 1
    %p134 = por %p132, %p133
    %p136 = scmp.ne.s32.totalorder %s119, %s135
    %p137 = scmp.eq.s32.totalorder %s17, 0
    %p138 = por %p136, %p137
    %s139 = ssub.s32 %s18, %s30
    %s140 = ssub.s32 %s19, %s26
    %s141 = sor.u32 %s139, %s140
    %p142 = scmp.eq.s32.totalorder %s141, 0
    %s144 = sadd.s32 %s143, 1
    %s145 = scalar_select %p142, %s143, %s144
    %p148 = pneg %p142
    %p149 = scmp.eq.s32.totalorder %s11, 1
    %p150 = por %p148, %p149
    %p151 = scmp.ne.s32.totalorder %s143, %s146
    %p152 = scmp.eq.s32.totalorder %s11, 0
    %p153 = por %p151, %p152
    %p154 = scmp.ne.s32.totalorder %s143, %s146
    %p155 = scmp.eq.s32.totalorder %s16, 1
    %p156 = por %p154, %p155
    %p157 = scmp.ne.s32.totalorder %s146, %s147
    %p158 = scmp.eq.s32.totalorder %s16, 0
    %p159 = por %p157, %p158
    %p160 = scmp.ne.s32.totalorder %s146, %s147
    %p161 = scmp.eq.s32.totalorder %s17, 1
    %p162 = por %p160, %p161
    %p164 = scmp.ne.s32.totalorder %s147, %s163
    %p165 = scmp.eq.s32.totalorder %s17, 0
    %p166 = por %p164, %p165
    %s167 = ssub.s32 %s18, %s30
    %s168 = ssub.s32 %s19, %s26
    %s169 = sor.u32 %s167, %s168
    %p170 = scmp.eq.s32.totalorder %s169, 0
    %s172 = sadd.s32 %s171, 1
    %s173 = scalar_select %p170, %s171, %s172
    %p176 = pneg %p170
    %p177 = scmp.eq.s32.totalorder %s11, 1
    %p178 = por %p176, %p177
    %p179 = scmp.ne.s32.totalorder %s171, %s174
    %p180 = scmp.eq.s32.totalorder %s11, 0
    %p181 = por %p179, %p180
    %p182 = scmp.ne.s32.totalorder %s171, %s174
    %p183 = scmp.eq.s32.totalorder %s16, 1
    %p184 = por %p182, %p183
    %p185 = scmp.ne.s32.totalorder %s174, %s175
    %p186 = scmp.eq.s32.totalorder %s16, 0
    %p187 = por %p185, %p186
    %p188 = scmp.ne.s32.totalorder %s174, %s175
    %p189 = scmp.eq.s32.totalorder %s17, 1
    %p190 = por %p188, %p189
    %p192 = scmp.ne.s32.totalorder %s175, %s191
    %p193 = scmp.eq.s32.totalorder %s17, 0
    %p194 = por %p192, %p193
    %p195 = scmp.le.s32.totalorder 1, %s11
    %p196 = scmp.lt.s32.totalorder %s11, 3
    %p197 = pnand %p195, %p196
    %p198 = pneg %p197
    // Predicated region
    $region9: #{generator_forward.20} parent=5 // pred_check
      _
    $region10: #{generator_forward.20} parent=5 // pred_check_branch
      %200 = sbr.rel (%p197) target = $region12
    $region11: #{generator_forward.20} parent=5 // pred_region
      %s201 = ssub.s32 %s11, 1
      // Predicated region
      $region13: #{generator_forward.20} parent=11 // pred_check
        %p202 = pneg %p103
      $region14: #{generator_forward.20} parent=11 // pred_check_branch
        %204 = sbr.rel (%p202) target = $region16
      $region15: #{generator_forward.20} parent=11 // pred_region
        %p205 = scmp.lt.s32.totalorder %s21, 0
        %s206 = scalar_select %p205, %s21, 0
        %s207 = scalar_lea.vmem %s2, %s206
      $region16: #{generator_forward.20} parent=11 // pred_fallthru
        _
    $region12: #{generator_forward.20} parent=5 // pred_fallthru
      _
    %p208 = scmp.lt.s32.totalorder %s11, 2
    // Predicated region
    $region17: #{generator_forward.20} parent=5 // pred_check
      %p209 = pneg %p208
    $region18: #{generator_forward.20} parent=5 // pred_check_branch
      %211 = sbr.rel (%p209) target = $region20
    $region19: #{generator_forward.20} parent=5 // pred_region
      // Predicated region
      $region21: #{generator_forward.20} parent=19 // pred_check
        %p212 = pneg %p45
      $region22: #{generator_forward.20} parent=19 // pred_check_branch
        %214 = sbr.rel (%p212) target = $region24
      $region23: #{generator_forward.20} parent=19 // pred_region
        %p215 = scmp.lt.s32.totalorder %s18, 1
        %s216 = scalar_select %p215, %s18, 1
        %p217 = scmp.lt.s32.totalorder %s19, 0
        %s218 = scalar_select %p217, %s19, 0
        %s219 = smul.addr %s216, 4
        %s220 = sadd.s32 %s218, %s219
        %s221 = smul.addr %s220, 4
        %s222 = scalar_lea.vmem %s0, %s221
      $region24: #{generator_forward.20} parent=19 // pred_fallthru
        _
      // Predicated region
      $region25: #{generator_forward.20} parent=19 // pred_check
        %p223 = pneg %p71
      $region26: #{generator_forward.20} parent=19 // pred_check_branch
        %225 = sbr.rel (%p223) target = $region28
      $region27: #{generator_forward.20} parent=19 // pred_region
        %p226 = scmp.lt.s32.totalorder %s18, 1
        %s227 = scalar_select %p226, %s18, 1
        %s228 = smul.addr %s227, 4
        %s229 = smul.addr %s228, 4
        %s230 = scalar_lea.vmem %s1, %s229
      $region28: #{generator_forward.20} parent=19 // pred_fallthru
        _
      // Predicated region
      $region29: #{generator_forward.20} parent=19 // pred_check
        %p231 = pneg %p125
      $region30: #{generator_forward.20} parent=19 // pred_check_branch
        %233 = sbr.rel (%p231) target = $region32
      $region31: #{generator_forward.20} parent=19 // pred_region
        %p234 = scmp.lt.s32.totalorder %s18, 1
        %s235 = scalar_select %p234, %s18, 1
        %p236 = scmp.lt.s32.totalorder %s19, 0
        %s237 = scalar_select %p236, %s19, 0
        %s238 = sadd.s32 %s237, %s235
        %s239 = scalar_lea.vmem %s3, %s238
      $region32: #{generator_forward.20} parent=19 // pred_fallthru
        _
      // Predicated region
      $region33: #{generator_forward.20} parent=19 // pred_check
        %p240 = pneg %p153
      $region34: #{generator_forward.20} parent=19 // pred_check_branch
        %242 = sbr.rel (%p240) target = $region36
      $region35: #{generator_forward.20} parent=19 // pred_region
        %p243 = scmp.lt.s32.totalorder %s18, 1
        %s244 = scalar_select %p243, %s18, 1
        %p245 = scmp.lt.s32.totalorder %s19, 0
        %s246 = scalar_select %p245, %s19, 0
        %s247 = sadd.s32 %s246, %s244
        %s248 = scalar_lea.vmem %s4, %s247
      $region36: #{generator_forward.20} parent=19 // pred_fallthru
        _
    $region20: #{generator_forward.20} parent=5 // pred_fallthru
      _
    %p249 = scmp.le.s32.totalorder 1, %s11
    %p250 = scmp.lt.s32.totalorder %s11, 3
    %p251 = pnand %p249, %p250
    %p252 = pneg %p251
    // Predicated region
    $region37: #{generator_forward.20} parent=5 // pred_check
      _
    $region38: #{generator_forward.20} parent=5 // pred_check_branch
      %254 = sbr.rel (%p251) target = $region40
    $region39: #{generator_forward.20} parent=5 // pred_region
      %s255 = ssub.s32 %s11, 1
      %p256 = scmp.lt.s32.totalorder %s20, 1
      %s257 = scalar_select %p256, %s20, 1
      %p258 = scmp.lt.s32.totalorder %s21, 0
      %s259 = scalar_select %p258, %s21, 0
      %s260 = smul.addr %s257, 4
      %s261 = sadd.s32 %s259, %s260
      %s262 = smul.addr %s261, 4
      %s263 = scalar_lea.vmem %s0, %s262
      %p264 = pneg %p51
      %p265 = pneg %p48
      %p266 = scmp.lt.s32.totalorder %s20, 1
      %s267 = scalar_select %p266, %s20, 1
      %s268 = smul.addr %s267, 4
      %s269 = smul.addr %s268, 4
      %s270 = scalar_lea.vmem %s1, %s269
      %p271 = pneg %p77
      %p272 = pneg %p74
      %p273 = scmp.lt.s32.totalorder %s21, 0
      %s274 = scalar_select %p273, %s21, 0
      %s275 = scalar_lea.vmem %s2, %s274
      %p276 = pneg %p103
      %p277 = pneg %p100
      %p278 = scmp.lt.s32.totalorder %s20, 1
      %s279 = scalar_select %p278, %s20, 1
      %p280 = scmp.lt.s32.totalorder %s21, 0
      %s281 = scalar_select %p280, %s21, 0
      %s282 = sadd.s32 %s281, %s279
      %s283 = scalar_lea.vmem %s3, %s282
      %p284 = pneg %p131
      %p285 = pneg %p128
      %p286 = scmp.lt.s32.totalorder %s20, 1
      %s287 = scalar_select %p286, %s20, 1
      %p288 = scmp.lt.s32.totalorder %s21, 0
      %s289 = scalar_select %p288, %s21, 0
      %s290 = sadd.s32 %s289, %s287
      %s291 = scalar_lea.vmem %s4, %s290
      %p292 = pneg %p159
      %p293 = pneg %p156
      %p294 = pneg %p187
      %p295 = pneg %p184
      %p296 = scmp.lt.s32.totalorder %s20, 1
      %s297 = scalar_select %p296, %s20, 1
      %p298 = scmp.lt.s32.totalorder %s21, 0
      %s299 = scalar_select %p298, %s21, 0
      %s300 = smul.addr %s297, 4
      %s301 = sadd.s32 %s299, %s300
      %s302 = smul.addr %s301, 4
      %s303 = scalar_lea.vmem %s5, %s302
      %p304 = scmp.lt.s32.totalorder %s20, 1
      %s305 = scalar_select %p304, %s20, 1
      %p306 = scmp.lt.s32.totalorder %s21, 0
      %s307 = scalar_select %p306, %s21, 0
      %s308 = smul.addr %s305, 4
      %s309 = sadd.s32 %s307, %s308
      %s310 = smul.addr %s309, 4
      %s311 = scalar_lea.vmem %s0, %s310
      %p312 = scmp.lt.s32.totalorder %s20, 1
      %s313 = scalar_select %p312, %s20, 1
      %s314 = smul.addr %s313, 4
      %s315 = smul.addr %s314, 4
      %s316 = scalar_lea.vmem %s1, %s315
      %p317 = scmp.lt.s32.totalorder %s21, 0
      %s318 = scalar_select %p317, %s21, 0
      %s319 = scalar_lea.vmem %s2, %s318
      %p320 = scmp.lt.s32.totalorder %s20, 1
      %s321 = scalar_select %p320, %s20, 1
      %p322 = scmp.lt.s32.totalorder %s21, 0
      %s323 = scalar_select %p322, %s21, 0
      %s324 = sadd.s32 %s323, %s321
      %s325 = scalar_lea.vmem %s3, %s324
      %p326 = scmp.lt.s32.totalorder %s20, 1
      %s327 = scalar_select %p326, %s20, 1
      %p328 = scmp.lt.s32.totalorder %s21, 0
      %s329 = scalar_select %p328, %s21, 0
      %s330 = sadd.s32 %s329, %s327
      %s331 = scalar_lea.vmem %s4, %s330
      %p332 = scmp.lt.s32.totalorder %s20, 1
      %s333 = scalar_select %p332, %s20, 1
      %p334 = scmp.lt.s32.totalorder %s21, 0
      %s335 = scalar_select %p334, %s21, 0
      %s336 = smul.addr %s333, 4
      %s337 = sadd.s32 %s335, %s336
      %s338 = smul.addr %s337, 4
      %s339 = scalar_lea.vmem %s5, %s338
      %v340 = vld [vmem:[%s311] sm:$0xf]
      %v341 = vld [vmem:[%s311 + $0x4] sm:$0xf]
      %v342 = vld [vmem:[%s311 + $0x8] sm:$0xf]
      %v343 = vld [vmem:[%s311 + $0xc] sm:$0xf]
      %v344 = vld [vmem:[%s316] sm:$0xf]
      %v345 = vld [vmem:[%s316 + $0x4] sm:$0xf]
      %v346 = vld [vmem:[%s316 + $0x8] sm:$0xf]
      %v347 = vld [vmem:[%s316 + $0xc] sm:$0xf]
      %v348 = vld [vmem:[%s319] sm:$0x1]
      %350 = vset.pattern.permute.xlu0 0
      %351 = vperm.xlu0 %350, %v344
      %v352 = vpop.permute.xlu0 %351
      %355 = vset.pattern.permute.xlu0 0
      %356 = vperm.xlu0 %355, %v345
      %v357 = vpop.permute.xlu0 %356
      %360 = vset.pattern.permute.xlu0 0
      %361 = vperm.xlu0 %360, %v346
      %v362 = vpop.permute.xlu0 %361
      %365 = vset.pattern.permute.xlu0 0
      %366 = vperm.xlu0 %365, %v347
      %v367 = vpop.permute.xlu0 %366
      %v370 = vlaneseq
      %v371 = vshrl.u32 %v370, 7
      %v372 = vsub.s32 0, %v371
      %v373 = vrot.slane %v348, %v372
      %v375 = vmul.f32 %v352, %v373
      %v376 = vmul.f32 %v357, %v373
      %v377 = vmul.f32 %v362, %v373
      %v378 = vmul.f32 %v367, %v373
      %v379 = vadd.f32 %v340, %v375
      %v380 = vadd.f32 %v341, %v376
      %v381 = vadd.f32 %v342, %v377
      %v382 = vadd.f32 %v343, %v378
      %vm383 = vcmp.gt.f32.partialorder %v379, 0.0
      %vm384 = vcmp.gt.f32.partialorder %v380, 0.0
      %vm385 = vcmp.gt.f32.partialorder %v381, 0.0
      %vm386 = vcmp.gt.f32.partialorder %v382, 0.0
      %v387 = vmul.f32 %v379, 0.2
      %v388 = vmul.f32 %v380, 0.2
      %v389 = vmul.f32 %v381, 0.2
      %v390 = vmul.f32 %v382, 0.2
      %v391 = vsel %vm383, %v379, %v387
      %v392 = vsel %vm384, %v380, %v388
      %v393 = vsel %vm385, %v381, %v389
      %v394 = vsel %vm386, %v382, %v390
      %vm395 = vcmask 257024
      %v396 = vsel %vm395, %v391, 0.0
      %v397 = vsel %vm395, %v392, 0.0
      %v398 = vadd.f32 %v396, %v397
      %v399 = vsel %vm395, %v393, 0.0
      %v400 = vadd.f32 %v398, %v399
      %v401 = vsel %vm395, %v394, 0.0
      %v402 = vadd.f32 %v400, %v401
      %v403 = vrot.slane %v402, 4
      %v404 = vadd.f32 %v402, %v403
      %v405 = vrot.slane %v404, 2
      %v406 = vadd.f32 %v404, %v405
      %v407 = vrot.slane %v406, 1
      %v408 = vadd.f32 %v406, %v407
      %v409 = vrcp.pop 16.0
      %v410 = vmul.f32 %v408, %v409
      %v411 = vsub.f32 %v391, %v410
      %v412 = vsub.f32 %v392, %v410
      %v413 = vsub.f32 %v393, %v410
      %v414 = vsub.f32 %v394, %v410
      %v415 = vmul.f32 %v411, %v411
      %v416 = vmul.f32 %v412, %v412
      %v417 = vmul.f32 %v413, %v413
      %v418 = vmul.f32 %v414, %v414
      %v419 = vsel %vm395, %v415, 0.0
      %v420 = vsel %vm395, %v416, 0.0
      %v421 = vadd.f32 %v419, %v420
      %v422 = vsel %vm395, %v417, 0.0
      %v423 = vadd.f32 %v421, %v422
      %v424 = vsel %vm395, %v418, 0.0
      %v425 = vadd.f32 %v423, %v424
      %v426 = vrot.slane %v425, 4
      %v427 = vadd.f32 %v425, %v426
      %v428 = vrot.slane %v427, 2
      %v429 = vadd.f32 %v427, %v428
      %v430 = vrot.slane %v429, 1
      %v431 = vadd.f32 %v429, %v430
      %v432 = vmul.f32 %v431, %v409
      %v433 = vadd.f32 %v432, 1e-05
      %v434 = vrsqrt.pop %v433
      %v435 = vmul.f32 %v411, %v434
      %v436 = vmul.f32 %v412, %v434
      %v437 = vmul.f32 %v413, %v434
      %v438 = vmul.f32 %v414, %v434
      %v439 = vld [vmem:[%s325] sm:$0x1]
      %v441 = vlaneseq
      %v442 = vshrl.u32 %v441, 7
      %v443 = vsub.s32 0, %v442
      %v444 = vrot.slane %v439, %v443
      %v446 = vmul.f32 %v435, %v444
      %v447 = vmul.f32 %v436, %v444
      %v448 = vmul.f32 %v437, %v444
      %v449 = vmul.f32 %v438, %v444
      %v450 = vld [vmem:[%s331] sm:$0x1]
      %v452 = vlaneseq
      %v453 = vshrl.u32 %v452, 7
      %v454 = vsub.s32 0, %v453
      %v455 = vrot.slane %v450, %v454
      %v457 = vadd.f32 %v446, %v455
      %v458 = vadd.f32 %v447, %v455
      %v459 = vadd.f32 %v448, %v455
      %v460 = vadd.f32 %v449, %v455
      %461 = vst.msk [vmem:[%s339] sm:$0xf] %vm395, %v457
      %462 = vst.msk [vmem:[%s339 + $0x4] sm:$0xf] %vm395, %v458
      %463 = vst.msk [vmem:[%s339 + $0x8] sm:$0xf] %vm395, %v459
      %464 = vst.msk [vmem:[%s339 + $0xc] sm:$0xf] %vm395, %v460
      %p465 = scmp.lt.s32.totalorder %s20, 1
      %s466 = scalar_select %p465, %s20, 1
      %p467 = scmp.lt.s32.totalorder %s21, 0
      %s468 = scalar_select %p467, %s21, 0
      %s469 = smul.addr %s466, 4
      %s470 = sadd.s32 %s468, %s469
      %s471 = smul.addr %s470, 4
      %s472 = scalar_lea.vmem %s5, %s471
      // Predicated region
      $region41: #{generator_forward.20} parent=39 // pred_check
        %p473 = pneg %p184
      $region42: #{generator_forward.20} parent=39 // pred_check_branch
        %475 = sbr.rel (%p473) target = $region44
      $region43: #{generator_forward.20} parent=39 // pred_region
        _
      $region44: #{generator_forward.20} parent=39 // pred_fallthru
        _
    $region40: #{generator_forward.20} parent=5 // pred_fallthru
      _
    %p476 = scmp.le.s32.totalorder 2, %s11
    // Predicated region
    $region45: #{generator_forward.20} parent=5 // pred_check
      %p477 = pneg %p476
    $region46: #{generator_forward.20} parent=5 // pred_check_branch
      %479 = sbr.rel (%p477) target = $region48
    $region47: #{generator_forward.20} parent=5 // pred_region
      %s480 = ssub.s32 %s11, 2
      // Predicated region
      $region49: #{generator_forward.20} parent=47 // pred_check
        %p481 = pneg %p190
      $region50: #{generator_forward.20} parent=47 // pred_check_branch
        %483 = sbr.rel (%p481) target = $region52
      $region51: #{generator_forward.20} parent=47 // pred_region
        %p484 = scmp.lt.s32.totalorder %s22, 1
        %s485 = scalar_select %p484, %s22, 1
        %p486 = scmp.lt.s32.totalorder %s23, 0
        %s487 = scalar_select %p486, %s23, 0
        %s488 = smul.addr %s485, 4
        %s489 = sadd.s32 %s487, %s488
        %s490 = smul.addr %s489, 4
        %s491 = scalar_lea.vmem %s5, %s490
      $region52: #{generator_forward.20} parent=47 // pred_fallthru
        _
    $region48: #{generator_forward.20} parent=5 // pred_fallthru
      _
  $region6: #{generator_forward.20} parent=0 // loop_footer
    %s15 = sadd.s32 1, %s11
  $region7: #{generator_forward.20} parent=0 // loop_footer_branch
    %10 = sbr.rel target = $region3
  $region8: #{generator_forward.20} parent=0 // loop_exit
    _

// kernel: generator_forward.19
$region0: #{generator_forward.19}
  #allocation0 [shape = 'u32[]', space=smem, size = 0x4, offset = 0x4, fixed_abs, tag = 'smem constant byte address 0x4 - core index']
  #allocation1 [shape = 'u32[144,128]{1,0:T(1,128)}', space=vmem, size = 0x12000, scoped, tag = 'internal scratch']
  %s0 = inlined_call_operand.vmem [shape: bf16[2,6,6,32], index: 0, kind: input, shape index: {}, may-alias: {0,1,2}]
  %s1 = inlined_call_operand.vmem [shape: bf16[2,6,6,32], index: 1, kind: input, shape index: {}, may-alias: {0,1,2}]
  %s2 = inlined_call_operand.vmem [shape: bf16[2,6,6,32], index: 2, kind: input, shape index: {}, may-alias: {0,1,2}]
  %s3 = inlined_call_operand.vmem [shape: bf16[3,3,32,32], index: 3, kind: input, shape index: {}]
  %s4 = inlined_call_operand.vmem [shape: f32[1,32], index: 4, kind: input, shape index: {}]
  %s5 = inlined_call_operand.vmem [shape: f32[2,4,4,32], index: 5, kind: output, shape index: {}]
  %s6 = sld [smem:[#allocation0]]
  $region53: #{generator_forward.19} parent=0
    _
  %s8 = ssub.s32 1, %s6
  %s9 = scalar_select 0, %s8, %s6
  loop: start=0, step=1, limit=10
  $region2: #{generator_forward.19} parent=0 // loop_pre_header
    _
  $region3: #{generator_forward.19} parent=0 // loop_header
    %s11 = sphi 0, %s15
    %p12 = scmp.ge.s32.totalorder %s11, 10
    %s18 = sphi 0, %s30
    %s19 = sphi 0, %s26
    %s20 = sphi 0, %s18
    %s21 = sphi 0, %s19
    %s22 = sphi 0, %s20
    %s23 = sphi 0, %s21
    %s35 = sphi 0, %s37
    %s38 = sphi 0, %s35
    %s39 = sphi 0, %s38
    %s55 = sphi 0, %s39
    %s65 = sphi 0, %s67
    %s68 = sphi 0, %s65
    %s69 = sphi 0, %s68
    %s85 = sphi 0, %s69
    %s95 = sphi 0, %s97
    %s98 = sphi 0, %s95
    %s99 = sphi 0, %s98
    %s115 = sphi 0, %s99
    %s119 = sphi 0, %s119
    %s121 = sphi 0, %s119
    %s122 = sphi 0, %s121
    %s136 = sphi 0, %s122
    %s140 = sphi 0, %s140
    %s142 = sphi 0, %s140
    %s143 = sphi 0, %s142
    %s157 = sphi 0, %s143
    %s165 = sphi 0, %s167
    %s168 = sphi 0, %s165
    %s169 = sphi 0, %s168
    %s185 = sphi 0, %s169
  $region4: #{generator_forward.19} parent=0 // loop_header_branch
    %14 = sbr.rel (%p12) target = $region8
  $region5: #{generator_forward.19} parent=0 // loop_body
    %s16 = ssub.s32 %s11, 1
    %s17 = ssub.s32 %s11, 2
    %s24 = sadd.s32 1, %s19
    %p25 = scmp.ge.s32.totalorder %s24, 4
    %s26 = scalar_select %p25, 0, %s24
    %s27 = sadd.s32 1, %s18
    %s28 = scalar_select %p25, %s27, %s18
    %p29 = scmp.ge.s32.totalorder %s28, 2
    %s30 = scalar_select %p29, 0, %s28
    %s31 = ssub.s32 %s18, %s30
    %s32 = ssub.s32 %s19, %s26
    %s33 = sor.u32 %s31, %s32
    %p34 = scmp.eq.s32.totalorder %s33, 0
    %s36 = sadd.s32 %s35, 1
    %s37 = scalar_select %p34, %s35, %s36
    %p40 = pneg %p34
    %p41 = scmp.eq.s32.totalorder %s11, 7
    %p42 = por %p40, %p41
    %p43 = scmp.ne.s32.totalorder %s35, %s38
    %p44 = scmp.eq.s32.totalorder %s11, 0
    %p45 = por %p43, %p44
    %p46 = scmp.ne.s32.totalorder %s35, %s38
    %p47 = scmp.eq.s32.totalorder %s16, 7
    %p48 = por %p46, %p47
    %p49 = scmp.ne.s32.totalorder %s38, %s39
    %p50 = scmp.eq.s32.totalorder %s16, 0
    %p51 = por %p49, %p50
    %p52 = scmp.ne.s32.totalorder %s38, %s39
    %p53 = scmp.eq.s32.totalorder %s17, 7
    %p54 = por %p52, %p53
    %p56 = scmp.ne.s32.totalorder %s39, %s55
    %p57 = scmp.eq.s32.totalorder %s17, 0
    %p58 = por %p56, %p57
    %s59 = sadd.s32 %s19, 1
    %s60 = sadd.s32 %s26, 1
    %s61 = ssub.s32 %s18, %s30
    %s62 = ssub.s32 %s59, %s60
    %s63 = sor.u32 %s61, %s62
    %p64 = scmp.eq.s32.totalorder %s63, 0
    %s66 = sadd.s32 %s65, 1
    %s67 = scalar_select %p64, %s65, %s66
    %p70 = pneg %p64
    %p71 = scmp.eq.s32.totalorder %s11, 7
    %p72 = por %p70, %p71
    %p73 = scmp.ne.s32.totalorder %s65, %s68
    %p74 = scmp.eq.s32.totalorder %s11, 0
    %p75 = por %p73, %p74
    %p76 = scmp.ne.s32.totalorder %s65, %s68
    %p77 = scmp.eq.s32.totalorder %s16, 7
    %p78 = por %p76, %p77
    %p79 = scmp.ne.s32.totalorder %s68, %s69
    %p80 = scmp.eq.s32.totalorder %s16, 0
    %p81 = por %p79, %p80
    %p82 = scmp.ne.s32.totalorder %s68, %s69
    %p83 = scmp.eq.s32.totalorder %s17, 7
    %p84 = por %p82, %p83
    %p86 = scmp.ne.s32.totalorder %s69, %s85
    %p87 = scmp.eq.s32.totalorder %s17, 0
    %p88 = por %p86, %p87
    %s89 = sadd.s32 %s19, 2
    %s90 = sadd.s32 %s26, 2
    %s91 = ssub.s32 %s18, %s30
    %s92 = ssub.s32 %s89, %s90
    %s93 = sor.u32 %s91, %s92
    %p94 = scmp.eq.s32.totalorder %s93, 0
    %s96 = sadd.s32 %s95, 1
    %s97 = scalar_select %p94, %s95, %s96
    %p100 = pneg %p94
    %p101 = scmp.eq.s32.totalorder %s11, 7
    %p102 = por %p100, %p101
    %p103 = scmp.ne.s32.totalorder %s95, %s98
    %p104 = scmp.eq.s32.totalorder %s11, 0
    %p105 = por %p103, %p104
    %p106 = scmp.ne.s32.totalorder %s95, %s98
    %p107 = scmp.eq.s32.totalorder %s16, 7
    %p108 = por %p106, %p107
    %p109 = scmp.ne.s32.totalorder %s98, %s99
    %p110 = scmp.eq.s32.totalorder %s16, 0
    %p111 = por %p109, %p110
    %p112 = scmp.ne.s32.totalorder %s98, %s99
    %p113 = scmp.eq.s32.totalorder %s17, 7
    %p114 = por %p112, %p113
    %p116 = scmp.ne.s32.totalorder %s99, %s115
    %p117 = scmp.eq.s32.totalorder %s17, 0
    %p118 = por %p116, %p117
    %s120 = sadd.s32 %s119, 1
    %p123 = scmp.eq.s32.totalorder %s11, 7
    %p124 = scmp.ne.s32.totalorder %s119, %s121
    %p125 = scmp.eq.s32.totalorder %s11, 0
    %p126 = por %p124, %p125
    %p127 = scmp.ne.s32.totalorder %s119, %s121
    %p128 = scmp.eq.s32.totalorder %s16, 7
    %p129 = por %p127, %p128
    %p130 = scmp.ne.s32.totalorder %s121, %s122
    %p131 = scmp.eq.s32.totalorder %s16, 0
    %p132 = por %p130, %p131
    %p133 = scmp.ne.s32.totalorder %s121, %s122
    %p134 = scmp.eq.s32.totalorder %s17, 7
    %p135 = por %p133, %p134
    %p137 = scmp.ne.s32.totalorder %s122, %s136
    %p138 = scmp.eq.s32.totalorder %s17, 0
    %p139 = por %p137, %p138
    %s141 = sadd.s32 %s140, 1
    %p144 = scmp.eq.s32.totalorder %s11, 7
    %p145 = scmp.ne.s32.totalorder %s140, %s142
    %p146 = scmp.eq.s32.totalorder %s11, 0
    %p147 = por %p145, %p146
    %p148 = scmp.ne.s32.totalorder %s140, %s142
    %p149 = scmp.eq.s32.totalorder %s16, 7
    %p150 = por %p148, %p149
    %p151 = scmp.ne.s32.totalorder %s142, %s143
    %p152 = scmp.eq.s32.totalorder %s16, 0
    %p153 = por %p151, %p152
    %p154 = scmp.ne.s32.totalorder %s142, %s143
    %p155 = scmp.eq.s32.totalorder %s17, 7
    %p156 = por %p154, %p155
    %p158 = scmp.ne.s32.totalorder %s143, %s157
    %p159 = scmp.eq.s32.totalorder %s17, 0
    %p160 = por %p158, %p159
    %s161 = ssub.s32 %s18, %s30
    %s162 = ssub.s32 %s19, %s26
    %s163 = sor.u32 %s161, %s162
    %p164 = scmp.eq.s32.totalorder %s163, 0
    %s166 = sadd.s32 %s165, 1
    %s167 = scalar_select %p164, %s165, %s166
    %p170 = pneg %p164
    %p171 = scmp.eq.s32.totalorder %s11, 7
    %p172 = por %p170, %p171
    %p173 = scmp.ne.s32.totalorder %s165, %s168
    %p174 = scmp.eq.s32.totalorder %s11, 0
    %p175 = por %p173, %p174
    %p176 = scmp.ne.s32.totalorder %s165, %s168
    %p177 = scmp.eq.s32.totalorder %s16, 7
    %p178 = por %p176, %p177
    %p179 = scmp.ne.s32.totalorder %s168, %s169
    %p180 = scmp.eq.s32.totalorder %s16, 0
    %p181 = por %p179, %p180
    %p182 = scmp.ne.s32.totalorder %s168, %s169
    %p183 = scmp.eq.s32.totalorder %s17, 7
    %p184 = por %p182, %p183
    %p186 = scmp.ne.s32.totalorder %s169, %s185
    %p187 = scmp.eq.s32.totalorder %s17, 0
    %p188 = por %p186, %p187
    %p189 = scmp.le.s32.totalorder 1, %s11
    %p190 = scmp.lt.s32.totalorder %s11, 9
    %p191 = pnand %p189, %p190
    %p192 = pneg %p191
    // Predicated region
    $region9: #{generator_forward.19} parent=5 // pred_check
      _
    $region10: #{generator_forward.19} parent=5 // pred_check_branch
      %194 = sbr.rel (%p191) target = $region12
    $region11: #{generator_forward.19} parent=5 // pred_region
      %s195 = ssub.s32 %s11, 1
      // Predicated region
      $region13: #{generator_forward.19} parent=11 // pred_check
        %p196 = pneg %p132
      $region14: #{generator_forward.19} parent=11 // pred_check_branch
        %198 = sbr.rel (%p196) target = $region16
      $region15: #{generator_forward.19} parent=11 // pred_region
        _
      $region16: #{generator_forward.19} parent=11 // pred_fallthru
        _
      // Predicated region
      $region17: #{generator_forward.19} parent=11 // pred_check
        %p199 = pneg %p153
      $region18: #{generator_forward.19} parent=11 // pred_check_branch
        %201 = sbr.rel (%p199) target = $region20
      $region19: #{generator_forward.19} parent=11 // pred_region
        _
      $region20: #{generator_forward.19} parent=11 // pred_fallthru
        _
    $region12: #{generator_forward.19} parent=5 // pred_fallthru
      _
    %p202 = scmp.lt.s32.totalorder %s11, 8
    // Predicated region
    $region21: #{generator_forward.19} parent=5 // pred_check
      %p203 = pneg %p202
    $region22: #{generator_forward.19} parent=5 // pred_check_branch
      %205 = sbr.rel (%p203) target = $region24
    $region23: #{generator_forward.19} parent=5 // pred_region
      // Predicated region
      $region25: #{generator_forward.19} parent=23 // pred_check
        %p206 = pneg %p45
      $region26: #{generator_forward.19} parent=23 // pred_check_branch
        %208 = sbr.rel (%p206) target = $region28
      $region27: #{generator_forward.19} parent=23 // pred_region
        %p209 = scmp.lt.s32.totalorder %s18, 1
        %s210 = scalar_select %p209, %s18, 1
        %p211 = scmp.lt.s32.totalorder %s19, 5
        %s212 = scalar_select %p211, %s19, 5
        %s213 = smul.addr %s210, 6
        %s214 = sadd.s32 %s212, %s213
        %s215 = smul.addr %s214, 4
        %s216 = scalar_lea.vmem %s0, %s215
      $region28: #{generator_forward.19} parent=23 // pred_fallthru
        _
      // Predicated region
      $region29: #{generator_forward.19} parent=23 // pred_check
        %p217 = pneg %p75
      $region30: #{generator_forward.19} parent=23 // pred_check_branch
        %219 = sbr.rel (%p217) target = $region32
      $region31: #{generator_forward.19} parent=23 // pred_region
        %s220 = sadd.s32 %s19, 1
        %p221 = scmp.lt.s32.totalorder %s18, 1
        %s222 = scalar_select %p221, %s18, 1
        %p223 = scmp.lt.s32.totalorder %s220, 5
        %s224 = scalar_select %p223, %s220, 5
        %s225 = smul.addr %s222, 6
        %s226 = sadd.s32 %s224, %s225
        %s227 = smul.addr %s226, 4
        %s228 = scalar_lea.vmem %s1, %s227
        %s229 = sadd.s32 %s19, 1
      $region32: #{generator_forward.19} parent=23 // pred_fallthru
        _
      // Predicated region
      $region33: #{generator_forward.19} parent=23 // pred_check
        %p230 = pneg %p105
      $region34: #{generator_forward.19} parent=23 // pred_check_branch
        %232 = sbr.rel (%p230) target = $region36
      $region35: #{generator_forward.19} parent=23 // pred_region
        %s233 = sadd.s32 %s19, 2
        %p234 = scmp.lt.s32.totalorder %s18, 1
        %s235 = scalar_select %p234, %s18, 1
        %p236 = scmp.lt.s32.totalorder %s233, 5
        %s237 = scalar_select %p236, %s233, 5
        %s238 = smul.addr %s235, 6
        %s239 = sadd.s32 %s237, %s238
        %s240 = smul.addr %s239, 4
        %s241 = scalar_lea.vmem %s2, %s240
        %s242 = sadd.s32 %s19, 2
      $region36: #{generator_forward.19} parent=23 // pred_fallthru
        _
    $region24: #{generator_forward.19} parent=5 // pred_fallthru
      _
    %p243 = scmp.le.s32.totalorder 1, %s11
    %p244 = scmp.lt.s32.totalorder %s11, 9
    %p245 = pnand %p243, %p244
    %p246 = pneg %p245
    // Predicated region
    $region37: #{generator_forward.19} parent=5 // pred_check
      _
    $region38: #{generator_forward.19} parent=5 // pred_check_branch
      %248 = sbr.rel (%p245) target = $region40
    $region39: #{generator_forward.19} parent=5 // pred_region
      %s249 = ssub.s32 %s11, 1
      %p250 = scmp.lt.s32.totalorder %s20, 1
      %s251 = scalar_select %p250, %s20, 1
      %p252 = scmp.lt.s32.totalorder %s21, 5
      %s253 = scalar_select %p252, %s21, 5
      %s254 = smul.addr %s251, 6
      %s255 = sadd.s32 %s253, %s254
      %s256 = smul.addr %s255, 4
      %s257 = scalar_lea.vmem %s0, %s256
      %p258 = pneg %p51
      %p259 = pneg %p48
      %s260 = sadd.s32 %s21, 1
      %p261 = scmp.lt.s32.totalorder %s20, 1
      %s262 = scalar_select %p261, %s20, 1
      %p263 = scmp.lt.s32.totalorder %s260, 5
      %s264 = scalar_select %p263, %s260, 5
      %s265 = smul.addr %s262, 6
      %s266 = sadd.s32 %s264, %s265
      %s267 = smul.addr %s266, 4
      %s268 = scalar_lea.vmem %s1, %s267
      %p269 = pneg %p81
      %p270 = pneg %p78
      %s271 = sadd.s32 %s21, 2
      %p272 = scmp.lt.s32.totalorder %s20, 1
      %s273 = scalar_select %p272, %s20, 1
      %p274 = scmp.lt.s32.totalorder %s271, 5
      %s275 = scalar_select %p274, %s271, 5
      %s276 = smul.addr %s273, 6
      %s277 = sadd.s32 %s275, %s276
      %s278 = smul.addr %s277, 4
      %s279 = scalar_lea.vmem %s2, %s278
      %p280 = pneg %p111
      %p281 = pneg %p108
      %p282 = pneg %p132
      %p283 = pneg %p129
      %p284 = pneg %p153
      %p285 = pneg %p150
      %p286 = pneg %p181
      %p287 = pneg %p178
      %p288 = scmp.lt.s32.totalorder %s20, 1
      %s289 = scalar_select %p288, %s20, 1
      %p290 = scmp.lt.s32.totalorder %s21, 3
      %s291 = scalar_select %p290, %s21, 3
      %s292 = smul.addr %s289, 4
      %s293 = sadd.s32 %s291, %s292
      %s294 = smul.addr %s293, 4
      %s295 = scalar_lea.vmem %s5, %s294
      %p296 = scmp.lt.s32.totalorder %s20, 1
      %s297 = scalar_select %p296, %s20, 1
      %p298 = scmp.lt.s32.totalorder %s21, 5
      %s299 = scalar_select %p298, %s21, 5
      %s300 = smul.addr %s297, 6
      %s301 = sadd.s32 %s299, %s300
      %s302 = smul.addr %s301, 4
      %s303 = scalar_lea.vmem %s0, %s302
      %s304 = sadd.s32 %s21, 1
      %p305 = scmp.lt.s32.totalorder %s20, 1
      %s306 = scalar_select %p305, %s20, 1
      %p307 = scmp.lt.s32.totalorder %s304, 5
      %s308 = scalar_select %p307, %s304, 5
      %s309 = smul.addr %s306, 6
      %s310 = sadd.s32 %s308, %s309
      %s311 = smul.addr %s310, 4
      %s312 = scalar_lea.vmem %s1, %s311
      %s313 = sadd.s32 %s21, 1
      %s314 = sadd.s32 %s21, 2
      %p315 = scmp.lt.s32.totalorder %s20, 1
      %s316 = scalar_select %p315, %s20, 1
      %p317 = scmp.lt.s32.totalorder %s314, 5
      %s318 = scalar_select %p317, %s314, 5
      %s319 = smul.addr %s316, 6
      %s320 = sadd.s32 %s318, %s319
      %s321 = smul.addr %s320, 4
      %s322 = scalar_lea.vmem %s2, %s321
      %s323 = sadd.s32 %s21, 2
      %p324 = scmp.lt.s32.totalorder %s20, 1
      %s325 = scalar_select %p324, %s20, 1
      %p326 = scmp.lt.s32.totalorder %s21, 3
      %s327 = scalar_select %p326, %s21, 3
      %s328 = smul.addr %s325, 4
      %s329 = sadd.s32 %s327, %s328
      %s330 = smul.addr %s329, 4
      %s331 = scalar_lea.vmem %s5, %s330
      %v333 = vld [vmem:[%s303] sm:$0x7]
      %v334 = vld [vmem:[%s312] sm:$0x7]
      %v335 = vld [vmem:[%s322] sm:$0x7]
      %v336 = vld [vmem:[%s3] sm:$0xf]
      %v337 = vld [vmem:[%s3 + $0x4] sm:$0xf]
      %v338 = vld [vmem:[%s3 + $0x8] sm:$0xf]
      %v339 = vld [vmem:[%s3 + $0xc] sm:$0xf]
      %v344 = vunpack.c.l.b16 %v336
      %v345 = vunpack.c.l.b16 %v337
      %v346 = vunpack.c.l.b16 %v338
      %v347 = vunpack.c.l.b16 %v339
      %v348 = vpack.c.b16 %v345, %v344
      %v349 = vpack.c.b16 %v347, %v346
      %vm352 = vcmask 261120
      %v354 = vsel %vm352, %v333, 0
      %356 = vmatprep.subr.bf16.mxu0 0
      %357 = vmatpush1.bf16.msra.mxu0 0
      %358 = vmatprep.subr.bf16.mxu0 0
      %359 = vmatpush1.bf16.msra.mxu0 0
      %360 = vmatprep.subr.bf16.mxu0 0
      %361 = vmatpush1.bf16.msra.mxu0 0
      %362 = vmatprep.subr.bf16.mxu0 0
      %363 = vmatpush1.bf16.msra.mxu0 0
      %364 = vmatprep.subr.bf16.mxu0 0
      %365 = vmatpush1.bf16.msra.mxu0 0
      %366 = vmatprep.subr.bf16.mxu0 0
      %367 = vmatpush1.bf16.msra.mxu0 0
      %368 = vmatprep.subr.bf16.mxu0 0
      %369 = vmatpush1.bf16.msra.mxu0 %v349
      %370 = vmatprep.subr.bf16.mxu0 0
      %371 = vmatpush1.bf16.msra.mxu0 %v348
      %372 = vmatprep.subr.bf16.mxu0 0
      %373 = vmatpush2.bf16.msra.mxu0 0
      %374 = vmatprep.subr.bf16.mxu0 0
      %375 = vmatpush2.bf16.msra.mxu0 0
      %376 = vmatprep.subr.bf16.mxu0 0
      %377 = vmatpush2.bf16.msra.mxu0 0
      %378 = vmatprep.subr.bf16.mxu0 0
      %379 = vmatpush2.bf16.msra.mxu0 0
      %380 = vmatprep.subr.bf16.mxu0 0
      %381 = vmatpush2.bf16.msra.mxu0 0
      %382 = vmatprep.subr.bf16.mxu0 0
      %383 = vmatpush2.bf16.msra.mxu0 0
      %384 = vmatprep.subr.bf16.mxu0 0
      %385 = vmatpush2.bf16.msra.mxu0 0
      %386 = vmatprep.subr.bf16.mxu0 0
      %387 = vmatpush2.bf16.msra.mxu0 0
      %388 = vmatprep.mubr.bf16.mxu0 0
      %389 = vmatmul.mubr.bf16.gmra.mxu0 %v354
      %v390 = vpop.f32.mrf.mxu0
      %v391 = vadd.f32 0.0, %v390
      %v392 = vpop.f32.mrf.mxu0
      %v393 = vpop.f32.mrf.mxu0
      %v394 = vpop.f32.mrf.mxu0
      %395 = vdwg.mxu0
      %v396 = vadd.f32 %v391, 0.0
      %s397 = scalar_lea.vmem %s3, 16
      %v398 = vld [vmem:[%s397] sm:$0xf]
      %v399 = vld [vmem:[%s397 + $0x4] sm:$0xf]
      %v400 = vld [vmem:[%s397 + $0x8] sm:$0xf]
      %v401 = vld [vmem:[%s397 + $0xc] sm:$0xf]
      %v406 = vunpack.c.l.b16 %v398
      %v407 = vunpack.c.l.b16 %v399
      %v408 = vunpack.c.l.b16 %v400
      %v409 = vunpack.c.l.b16 %v401
      %v410 = vpack.c.b16 %v407, %v406
      %v411 = vpack.c.b16 %v409, %v408
      %414 = vmatprep.subr.bf16.mxu0 0
      %415 = vmatpush1.bf16.msra.mxu0 0
      %416 = vmatprep.subr.bf16.mxu0 0
      %417 = vmatpush1.bf16.msra.mxu0 0
      %418 = vmatprep.subr.bf16.mxu0 0
      %419 = vmatpush1.bf16.msra.mxu0 0
      %420 = vmatprep.subr.bf16.mxu0 0
      %421 = vmatpush1.bf16.msra.mxu0 0
      %422 = vmatprep.subr.bf16.mxu0 0
      %423 = vmatpush1.bf16.msra.mxu0 0
      %424 = vmatprep.subr.bf16.mxu0 0
      %425 = vmatpush1.bf16.msra.mxu0 0
      %426 = vmatprep.subr.bf16.mxu0 0
      %427 = vmatpush1.bf16.msra.mxu0 %v411
      %428 = vmatprep.subr.bf16.mxu0 0
      %429 = vmatpush1.bf16.msra.mxu0 %v410
      %430 = vmatprep.subr.bf16.mxu0 0
      %431 = vmatpush2.bf16.msra.mxu0 0
      %432 = vmatprep.subr.bf16.mxu0 0
      %433 = vmatpush2.bf16.msra.mxu0 0
      %434 = vmatprep.subr.bf16.mxu0 0
      %435 = vmatpush2.bf16.msra.mxu0 0
      %436 = vmatprep.subr.bf16.mxu0 0
      %437 = vmatpush2.bf16.msra.mxu0 0
      %438 = vmatprep.subr.bf16.mxu0 0
      %439 = vmatpush2.bf16.msra.mxu0 0
      %440 = vmatprep.subr.bf16.mxu0 0
      %441 = vmatpush2.bf16.msra.mxu0 0
      %442 = vmatprep.subr.bf16.mxu0 0
      %443 = vmatpush2.bf16.msra.mxu0 0
      %444 = vmatprep.subr.bf16.mxu0 0
      %445 = vmatpush2.bf16.msra.mxu0 0
      %446 = vmatprep.mubr.bf16.mxu0 0
      %447 = vmatmul.mubr.bf16.gmra.mxu0 %v354
      %v448 = vpop.f32.mrf.mxu0
      %v449 = vadd.f32 0.0, %v448
      %v450 = vpop.f32.mrf.mxu0
      %v451 = vpop.f32.mrf.mxu0
      %v452 = vpop.f32.mrf.mxu0
      %453 = vdwg.mxu0
      %v455 = vrot.slane %v449, 1
      %v457 = vadd.f32 %v396, %v455
      %s458 = scalar_lea.vmem %s3, 32
      %v459 = vld [vmem:[%s458] sm:$0xf]
      %v460 = vld [vmem:[%s458 + $0x4] sm:$0xf]
      %v461 = vld [vmem:[%s458 + $0x8] sm:$0xf]
      %v462 = vld [vmem:[%s458 + $0xc] sm:$0xf]
      %v467 = vunpack.c.l.b16 %v459
      %v468 = vunpack.c.l.b16 %v460
      %v469 = vunpack.c.l.b16 %v461
      %v470 = vunpack.c.l.b16 %v462
      %v471 = vpack.c.b16 %v468, %v467
      %v472 = vpack.c.b16 %v470, %v469
      %475 = vmatprep.subr.bf16.mxu0 0
      %476 = vmatpush1.bf16.msra.mxu0 0
      %477 = vmatprep.subr.bf16.mxu0 0
      %478 = vmatpush1.bf16.msra.mxu0 0
      %479 = vmatprep.subr.bf16.mxu0 0
      %480 = vmatpush1.bf16.msra.mxu0 0
      %481 = vmatprep.subr.bf16.mxu0 0
      %482 = vmatpush1.bf16.msra.mxu0 0
      %483 = vmatprep.subr.bf16.mxu0 0
      %484 = vmatpush1.bf16.msra.mxu0 0
      %485 = vmatprep.subr.bf16.mxu0 0
      %486 = vmatpush1.bf16.msra.mxu0 0
      %487 = vmatprep.subr.bf16.mxu0 0
      %488 = vmatpush1.bf16.msra.mxu0 %v472
      %489 = vmatprep.subr.bf16.mxu0 0
      %490 = vmatpush1.bf16.msra.mxu0 %v471
      %491 = vmatprep.subr.bf16.mxu0 0
      %492 = vmatpush2.bf16.msra.mxu0 0
      %493 = vmatprep.subr.bf16.mxu0 0
      %494 = vmatpush2.bf16.msra.mxu0 0
      %495 = vmatprep.subr.bf16.mxu0 0
      %496 = vmatpush2.bf16.msra.mxu0 0
      %497 = vmatprep.subr.bf16.mxu0 0
      %498 = vmatpush2.bf16.msra.mxu0 0
      %499 = vmatprep.subr.bf16.mxu0 0
      %500 = vmatpush2.bf16.msra.mxu0 0
      %501 = vmatprep.subr.bf16.mxu0 0
      %502 = vmatpush2.bf16.msra.mxu0 0
      %503 = vmatprep.subr.bf16.mxu0 0
      %504 = vmatpush2.bf16.msra.mxu0 0
      %505 = vmatprep.subr.bf16.mxu0 0
      %506 = vmatpush2.bf16.msra.mxu0 0
      %507 = vmatprep.mubr.bf16.mxu0 0
      %508 = vmatmul.mubr.bf16.gmra.mxu0 %v354
      %v509 = vpop.f32.mrf.mxu0
      %v510 = vadd.f32 0.0, %v509
      %v511 = vpop.f32.mrf.mxu0
      %v512 = vpop.f32.mrf.mxu0
      %v513 = vpop.f32.mrf.mxu0
      %514 = vdwg.mxu0
      %v516 = vrot.slane %v510, 2
      %v518 = vadd.f32 %v457, %v516
      %s519 = scalar_lea.vmem %s3, 48
      %v520 = vld [vmem:[%s519] sm:$0xf]
      %v521 = vld [vmem:[%s519 + $0x4] sm:$0xf]
      %v522 = vld [vmem:[%s519 + $0x8] sm:$0xf]
      %v523 = vld [vmem:[%s519 + $0xc] sm:$0xf]
      %v528 = vunpack.c.l.b16 %v520
      %v529 = vunpack.c.l.b16 %v521
      %v530 = vunpack.c.l.b16 %v522
      %v531 = vunpack.c.l.b16 %v523
      %v532 = vpack.c.b16 %v529, %v528
      %v533 = vpack.c.b16 %v531, %v530
      %v537 = vsel %vm352, %v334, 0
      %539 = vmatprep.subr.bf16.mxu0 0
      %540 = vmatpush1.bf16.msra.mxu0 0
      %541 = vmatprep.subr.bf16.mxu0 0
      %542 = vmatpush1.bf16.msra.mxu0 0
      %543 = vmatprep.subr.bf16.mxu0 0
      %544 = vmatpush1.bf16.msra.mxu0 0
      %545 = vmatprep.subr.bf16.mxu0 0
      %546 = vmatpush1.bf16.msra.mxu0 0
      %547 = vmatprep.subr.bf16.mxu0 0
      %548 = vmatpush1.bf16.msra.mxu0 0
      %549 = vmatprep.subr.bf16.mxu0 0
      %550 = vmatpush1.bf16.msra.mxu0 0
      %551 = vmatprep.subr.bf16.mxu0 0
      %552 = vmatpush1.bf16.msra.mxu0 %v533
      %553 = vmatprep.subr.bf16.mxu0 0
      %554 = vmatpush1.bf16.msra.mxu0 %v532
      %555 = vmatprep.subr.bf16.mxu0 0
      %556 = vmatpush2.bf16.msra.mxu0 0
      %557 = vmatprep.subr.bf16.mxu0 0
      %558 = vmatpush2.bf16.msra.mxu0 0
      %559 = vmatprep.subr.bf16.mxu0 0
      %560 = vmatpush2.bf16.msra.mxu0 0
      %561 = vmatprep.subr.bf16.mxu0 0
      %562 = vmatpush2.bf16.msra.mxu0 0
      %563 = vmatprep.subr.bf16.mxu0 0
      %564 = vmatpush2.bf16.msra.mxu0 0
      %565 = vmatprep.subr.bf16.mxu0 0
      %566 = vmatpush2.bf16.msra.mxu0 0
      %567 = vmatprep.subr.bf16.mxu0 0
      %568 = vmatpush2.bf16.msra.mxu0 0
      %569 = vmatprep.subr.bf16.mxu0 0
      %570 = vmatpush2.bf16.msra.mxu0 0
      %571 = vmatprep.mubr.bf16.mxu0 0
      %572 = vmatmul.mubr.bf16.gmra.mxu0 %v537
      %v573 = vpop.f32.mrf.mxu0
      %v574 = vadd.f32 0.0, %v573
      %v575 = vpop.f32.mrf.mxu0
      %v576 = vpop.f32.mrf.mxu0
      %v577 = vpop.f32.mrf.mxu0
      %578 = vdwg.mxu0
      %v579 = vadd.f32 %v518, %v574
      %s580 = scalar_lea.vmem %s3, 64
      %v581 = vld [vmem:[%s580] sm:$0xf]
      %v582 = vld [vmem:[%s580 + $0x4] sm:$0xf]
      %v583 = vld [vmem:[%s580 + $0x8] sm:$0xf]
      %v584 = vld [vmem:[%s580 + $0xc] sm:$0xf]
      %v589 = vunpack.c.l.b16 %v581
      %v590 = vunpack.c.l.b16 %v582
      %v591 = vunpack.c.l.b16 %v583
      %v592 = vunpack.c.l.b16 %v584
      %v593 = vpack.c.b16 %v590, %v589
      %v594 = vpack.c.b16 %v592, %v591
      %597 = vmatprep.subr.bf16.mxu0 0
      %598 = vmatpush1.bf16.msra.mxu0 0
      %599 = vmatprep.subr.bf16.mxu0 0
      %600 = vmatpush1.bf16.msra.mxu0 0
      %601 = vmatprep.subr.bf16.mxu0 0
      %602 = vmatpush1.bf16.msra.mxu0 0
      %603 = vmatprep.subr.bf16.mxu0 0
      %604 = vmatpush1.bf16.msra.mxu0 0
      %605 = vmatprep.subr.bf16.mxu0 0
      %606 = vmatpush1.bf16.msra.mxu0 0
      %607 = vmatprep.subr.bf16.mxu0 0
      %608 = vmatpush1.bf16.msra.mxu0 0
      %609 = vmatprep.subr.bf16.mxu0 0
      %610 = vmatpush1.bf16.msra.mxu0 %v594
      %611 = vmatprep.subr.bf16.mxu0 0
      %612 = vmatpush1.bf16.msra.mxu0 %v593
      %613 = vmatprep.subr.bf16.mxu0 0
      %614 = vmatpush2.bf16.msra.mxu0 0
      %615 = vmatprep.subr.bf16.mxu0 0
      %616 = vmatpush2.bf16.msra.mxu0 0
      %617 = vmatprep.subr.bf16.mxu0 0
      %618 = vmatpush2.bf16.msra.mxu0 0
      %619 = vmatprep.subr.bf16.mxu0 0
      %620 = vmatpush2.bf16.msra.mxu0 0
      %621 = vmatprep.subr.bf16.mxu0 0
      %622 = vmatpush2.bf16.msra.mxu0 0
      %623 = vmatprep.subr.bf16.mxu0 0
      %624 = vmatpush2.bf16.msra.mxu0 0
      %625 = vmatprep.subr.bf16.mxu0 0
      %626 = vmatpush2.bf16.msra.mxu0 0
      %627 = vmatprep.subr.bf16.mxu0 0
      %628 = vmatpush2.bf16.msra.mxu0 0
      %629 = vmatprep.mubr.bf16.mxu0 0
      %630 = vmatmul.mubr.bf16.gmra.mxu0 %v537
      %v631 = vpop.f32.mrf.mxu0
      %v632 = vadd.f32 0.0, %v631
      %v633 = vpop.f32.mrf.mxu0
      %v634 = vpop.f32.mrf.mxu0
      %v635 = vpop.f32.mrf.mxu0
      %636 = vdwg.mxu0
      %v638 = vrot.slane %v632, 1
      %v640 = vadd.f32 %v579, %v638
      %s641 = scalar_lea.vmem %s3, 80
      %v642 = vld [vmem:[%s641] sm:$0xf]
      %v643 = vld [vmem:[%s641 + $0x4] sm:$0xf]
      %v644 = vld [vmem:[%s641 + $0x8] sm:$0xf]
      %v645 = vld [vmem:[%s641 + $0xc] sm:$0xf]
      %v650 = vunpack.c.l.b16 %v642
      %v651 = vunpack.c.l.b16 %v643
      %v652 = vunpack.c.l.b16 %v644
      %v653 = vunpack.c.l.b16 %v645
      %v654 = vpack.c.b16 %v651, %v650
      %v655 = vpack.c.b16 %v653, %v652
      %658 = vmatprep.subr.bf16.mxu0 0
      %659 = vmatpush1.bf16.msra.mxu0 0
      %660 = vmatprep.subr.bf16.mxu0 0
      %661 = vmatpush1.bf16.msra.mxu0 0
      %662 = vmatprep.subr.bf16.mxu0 0
      %663 = vmatpush1.bf16.msra.mxu0 0
      %664 = vmatprep.subr.bf16.mxu0 0
      %665 = vmatpush1.bf16.msra.mxu0 0
      %666 = vmatprep.subr.bf16.mxu0 0
      %667 = vmatpush1.bf16.msra.mxu0 0
      %668 = vmatprep.subr.bf16.mxu0 0
      %669 = vmatpush1.bf16.msra.mxu0 0
      %670 = vmatprep.subr.bf16.mxu0 0
      %671 = vmatpush1.bf16.msra.mxu0 %v655
      %672 = vmatprep.subr.bf16.mxu0 0
      %673 = vmatpush1.bf16.msra.mxu0 %v654
      %674 = vmatprep.subr.bf16.mxu0 0
      %675 = vmatpush2.bf16.msra.mxu0 0
      %676 = vmatprep.subr.bf16.mxu0 0
      %677 = vmatpush2.bf16.msra.mxu0 0
      %678 = vmatprep.subr.bf16.mxu0 0
      %679 = vmatpush2.bf16.msra.mxu0 0
      %680 = vmatprep.subr.bf16.mxu0 0
      %681 = vmatpush2.bf16.msra.mxu0 0
      %682 = vmatprep.subr.bf16.mxu0 0
      %683 = vmatpush2.bf16.msra.mxu0 0
      %684 = vmatprep.subr.bf16.mxu0 0
      %685 = vmatpush2.bf16.msra.mxu0 0
      %686 = vmatprep.subr.bf16.mxu0 0
      %687 = vmatpush2.bf16.msra.mxu0 0
      %688 = vmatprep.subr.bf16.mxu0 0
      %689 = vmatpush2.bf16.msra.mxu0 0
      %690 = vmatprep.mubr.bf16.mxu0 0
      %691 = vmatmul.mubr.bf16.gmra.mxu0 %v537
      %v692 = vpop.f32.mrf.mxu0
      %v693 = vadd.f32 0.0, %v692
      %v694 = vpop.f32.mrf.mxu0
      %v695 = vpop.f32.mrf.mxu0
      %v696 = vpop.f32.mrf.mxu0
      %697 = vdwg.mxu0
      %v699 = vrot.slane %v693, 2
      %v701 = vadd.f32 %v640, %v699
      %s702 = scalar_lea.vmem %s3, 96
      %v703 = vld [vmem:[%s702] sm:$0xf]
      %v704 = vld [vmem:[%s702 + $0x4] sm:$0xf]
      %v705 = vld [vmem:[%s702 + $0x8] sm:$0xf]
      %v706 = vld [vmem:[%s702 + $0xc] sm:$0xf]
      %v711 = vunpack.c.l.b16 %v703
      %v712 = vunpack.c.l.b16 %v704
      %v713 = vunpack.c.l.b16 %v705
      %v714 = vunpack.c.l.b16 %v706
      %v715 = vpack.c.b16 %v712, %v711
      %v716 = vpack.c.b16 %v714, %v713
      %v720 = vsel %vm352, %v335, 0
      %722 = vmatprep.subr.bf16.mxu0 0
      %723 = vmatpush1.bf16.msra.mxu0 0
      %724 = vmatprep.subr.bf16.mxu0 0
      %725 = vmatpush1.bf16.msra.mxu0 0
      %726 = vmatprep.subr.bf16.mxu0 0
      %727 = vmatpush1.bf16.msra.mxu0 0
      %728 = vmatprep.subr.bf16.mxu0 0
      %729 = vmatpush1.bf16.msra.mxu0 0
      %730 = vmatprep.subr.bf16.mxu0 0
      %731 = vmatpush1.bf16.msra.mxu0 0
      %732 = vmatprep.subr.bf16.mxu0 0
      %733 = vmatpush1.bf16.msra.mxu0 0
      %734 = vmatprep.subr.bf16.mxu0 0
      %735 = vmatpush1.bf16.msra.mxu0 %v716
      %736 = vmatprep.subr.bf16.mxu0 0
      %737 = vmatpush1.bf16.msra.mxu0 %v715
      %738 = vmatprep.subr.bf16.mxu0 0
      %739 = vmatpush2.bf16.msra.mxu0 0
      %740 = vmatprep.subr.bf16.mxu0 0
      %741 = vmatpush2.bf16.msra.mxu0 0
      %742 = vmatprep.subr.bf16.mxu0 0
      %743 = vmatpush2.bf16.msra.mxu0 0
      %744 = vmatprep.subr.bf16.mxu0 0
      %745 = vmatpush2.bf16.msra.mxu0 0
      %746 = vmatprep.subr.bf16.mxu0 0
      %747 = vmatpush2.bf16.msra.mxu0 0
      %748 = vmatprep.subr.bf16.mxu0 0
      %749 = vmatpush2.bf16.msra.mxu0 0
      %750 = vmatprep.subr.bf16.mxu0 0
      %751 = vmatpush2.bf16.msra.mxu0 0
      %752 = vmatprep.subr.bf16.mxu0 0
      %753 = vmatpush2.bf16.msra.mxu0 0
      %754 = vmatprep.mubr.bf16.mxu0 0
      %755 = vmatmul.mubr.bf16.gmra.mxu0 %v720
      %v756 = vpop.f32.mrf.mxu0
      %v757 = vadd.f32 0.0, %v756
      %v758 = vpop.f32.mrf.mxu0
      %v759 = vpop.f32.mrf.mxu0
      %v760 = vpop.f32.mrf.mxu0
      %761 = vdwg.mxu0
      %v762 = vadd.f32 %v701, %v757
      %s763 = scalar_lea.vmem %s3, 112
      %v764 = vld [vmem:[%s763] sm:$0xf]
      %v765 = vld [vmem:[%s763 + $0x4] sm:$0xf]
      %v766 = vld [vmem:[%s763 + $0x8] sm:$0xf]
      %v767 = vld [vmem:[%s763 + $0xc] sm:$0xf]
      %v772 = vunpack.c.l.b16 %v764
      %v773 = vunpack.c.l.b16 %v765
      %v774 = vunpack.c.l.b16 %v766
      %v775 = vunpack.c.l.b16 %v767
      %v776 = vpack.c.b16 %v773, %v772
      %v777 = vpack.c.b16 %v775, %v774
      %780 = vmatprep.subr.bf16.mxu0 0
      %781 = vmatpush1.bf16.msra.mxu0 0
      %782 = vmatprep.subr.bf16.mxu0 0
      %783 = vmatpush1.bf16.msra.mxu0 0
      %784 = vmatprep.subr.bf16.mxu0 0
      %785 = vmatpush1.bf16.msra.mxu0 0
      %786 = vmatprep.subr.bf16.mxu0 0
      %787 = vmatpush1.bf16.msra.mxu0 0
      %788 = vmatprep.subr.bf16.mxu0 0
      %789 = vmatpush1.bf16.msra.mxu0 0
      %790 = vmatprep.subr.bf16.mxu0 0
      %791 = vmatpush1.bf16.msra.mxu0 0
      %792 = vmatprep.subr.bf16.mxu0 0
      %793 = vmatpush1.bf16.msra.mxu0 %v777
      %794 = vmatprep.subr.bf16.mxu0 0
      %795 = vmatpush1.bf16.msra.mxu0 %v776
      %796 = vmatprep.subr.bf16.mxu0 0
      %797 = vmatpush2.bf16.msra.mxu0 0
      %798 = vmatprep.subr.bf16.mxu0 0
      %799 = vmatpush2.bf16.msra.mxu0 0
      %800 = vmatprep.subr.bf16.mxu0 0
      %801 = vmatpush2.bf16.msra.mxu0 0
      %802 = vmatprep.subr.bf16.mxu0 0
      %803 = vmatpush2.bf16.msra.mxu0 0
      %804 = vmatprep.subr.bf16.mxu0 0
      %805 = vmatpush2.bf16.msra.mxu0 0
      %806 = vmatprep.subr.bf16.mxu0 0
      %807 = vmatpush2.bf16.msra.mxu0 0
      %808 = vmatprep.subr.bf16.mxu0 0
      %809 = vmatpush2.bf16.msra.mxu0 0
      %810 = vmatprep.subr.bf16.mxu0 0
      %811 = vmatpush2.bf16.msra.mxu0 0
      %812 = vmatprep.mubr.bf16.mxu0 0
      %813 = vmatmul.mubr.bf16.gmra.mxu0 %v720
      %v814 = vpop.f32.mrf.mxu0
      %v815 = vadd.f32 0.0, %v814
      %v816 = vpop.f32.mrf.mxu0
      %v817 = vpop.f32.mrf.mxu0
      %v818 = vpop.f32.mrf.mxu0
      %819 = vdwg.mxu0
      %v821 = vrot.slane %v815, 1
      %v823 = vadd.f32 %v762, %v821
      %s824 = scalar_lea.vmem %s3, 128
      %v825 = vld [vmem:[%s824] sm:$0xf]
      %v826 = vld [vmem:[%s824 + $0x4] sm:$0xf]
      %v827 = vld [vmem:[%s824 + $0x8] sm:$0xf]
      %v828 = vld [vmem:[%s824 + $0xc] sm:$0xf]
      %v833 = vunpack.c.l.b16 %v825
      %v834 = vunpack.c.l.b16 %v826
      %v835 = vunpack.c.l.b16 %v827
      %v836 = vunpack.c.l.b16 %v828
      %v837 = vpack.c.b16 %v834, %v833
      %v838 = vpack.c.b16 %v836, %v835
      %841 = vmatprep.subr.bf16.mxu0 0
      %842 = vmatpush1.bf16.msra.mxu0 0
      %843 = vmatprep.subr.bf16.mxu0 0
      %844 = vmatpush1.bf16.msra.mxu0 0
      %845 = vmatprep.subr.bf16.mxu0 0
      %846 = vmatpush1.bf16.msra.mxu0 0
      %847 = vmatprep.subr.bf16.mxu0 0
      %848 = vmatpush1.bf16.msra.mxu0 0
      %849 = vmatprep.subr.bf16.mxu0 0
      %850 = vmatpush1.bf16.msra.mxu0 0
      %851 = vmatprep.subr.bf16.mxu0 0
      %852 = vmatpush1.bf16.msra.mxu0 0
      %853 = vmatprep.subr.bf16.mxu0 0
      %854 = vmatpush1.bf16.msra.mxu0 %v838
      %855 = vmatprep.subr.bf16.mxu0 0
      %856 = vmatpush1.bf16.msra.mxu0 %v837
      %857 = vmatprep.subr.bf16.mxu0 0
      %858 = vmatpush2.bf16.msra.mxu0 0
      %859 = vmatprep.subr.bf16.mxu0 0
      %860 = vmatpush2.bf16.msra.mxu0 0
      %861 = vmatprep.subr.bf16.mxu0 0
      %862 = vmatpush2.bf16.msra.mxu0 0
      %863 = vmatprep.subr.bf16.mxu0 0
      %864 = vmatpush2.bf16.msra.mxu0 0
      %865 = vmatprep.subr.bf16.mxu0 0
      %866 = vmatpush2.bf16.msra.mxu0 0
      %867 = vmatprep.subr.bf16.mxu0 0
      %868 = vmatpush2.bf16.msra.mxu0 0
      %869 = vmatprep.subr.bf16.mxu0 0
      %870 = vmatpush2.bf16.msra.mxu0 0
      %871 = vmatprep.subr.bf16.mxu0 0
      %872 = vmatpush2.bf16.msra.mxu0 0
      %873 = vmatprep.mubr.bf16.mxu0 0
      %874 = vmatmul.mubr.bf16.gmra.mxu0 %v720
      %v875 = vpop.f32.mrf.mxu0
      %v876 = vadd.f32 0.0, %v875
      %v877 = vpop.f32.mrf.mxu0
      %v878 = vpop.f32.mrf.mxu0
      %v879 = vpop.f32.mrf.mxu0
      %880 = vdwg.mxu0
      %v882 = vrot.slane %v876, 2
      %v884 = vadd.f32 %v823, %v882
      %v885 = vld [vmem:[%s4] sm:$0x1]
      %v887 = vlaneseq
      %v888 = vshrl.u32 %v887, 7
      %v889 = vsub.s32 0, %v888
      %v890 = vrot.slane %v885, %v889
      %v892 = vadd.f32 %v884, %v890
      %vm893 = vcmask 257024
      %894 = vst.msk [vmem:[%s331] sm:$0xf] %vm893, %v892
      %p895 = scmp.lt.s32.totalorder %s20, 1
      %s896 = scalar_select %p895, %s20, 1
      %p897 = scmp.lt.s32.totalorder %s21, 3
      %s898 = scalar_select %p897, %s21, 3
      %s899 = smul.addr %s896, 4
      %s900 = sadd.s32 %s898, %s899
      %s901 = smul.addr %s900, 4
      %s902 = scalar_lea.vmem %s5, %s901
      // Predicated region
      $region41: #{generator_forward.19} parent=39 // pred_check
        %p903 = pneg %p178
      $region42: #{generator_forward.19} parent=39 // pred_check_branch
        %905 = sbr.rel (%p903) target = $region44
      $region43: #{generator_forward.19} parent=39 // pred_region
        _
      $region44: #{generator_forward.19} parent=39 // pred_fallthru
        _
    $region40: #{generator_forward.19} parent=5 // pred_fallthru
      _
    %p906 = scmp.le.s32.totalorder 2, %s11
    // Predicated region
    $region45: #{generator_forward.19} parent=5 // pred_check
      %p907 = pneg %p906
    $region46: #{generator_forward.19} parent=5 // pred_check_branch
      %909 = sbr.rel (%p907) target = $region48
    $region47: #{generator_forward.19} parent=5 // pred_region
      %s910 = ssub.s32 %s11, 2
      // Predicated region
      $region49: #{generator_forward.19} parent=47 // pred_check
        %p911 = pneg %p184
      $region50: #{generator_forward.19} parent=47 // pred_check_branch
        %913 = sbr.rel (%p911) target = $region52
      $region51: #{generator_forward.19} parent=47 // pred_region
        %p914 = scmp.lt.s32.totalorder %s22, 1
        %s915 = scalar_select %p914, %s22, 1
        %p916 = scmp.lt.s32.totalorder %s23, 3
        %s917 = scalar_select %p916, %s23, 3
        %s918 = smul.addr %s915, 4
        %s919 = sadd.s32 %s917, %s918
        %s920 = smul.addr %s919, 4
        %s921 = scalar_lea.vmem %s5, %s920
      $region52: #{generator_forward.19} parent=47 // pred_fallthru
        _
    $region48: #{generator_forward.19} parent=5 // pred_fallthru
      _
  $region6: #{generator_forward.19} parent=0 // loop_footer
    %s15 = sadd.s32 1, %s11
  $region7: #{generator_forward.19} parent=0 // loop_footer_branch
    %10 = sbr.rel target = $region3
  $region8: #{generator_forward.19} parent=0 // loop_exit
    _

// kernel: generator_forward.21
$region0: #{generator_forward.21}
  #allocation0 [shape = 'u32[]', space=smem, size = 0x4, offset = 0x4, fixed_abs, tag = 'smem constant byte address 0x4 - core index']
  #allocation1 [shape = 'u32[144,128]{1,0:T(1,128)}', space=vmem, size = 0x12000, scoped, tag = 'internal scratch']
  %s0 = inlined_call_operand.vmem [shape: bf16[2,10,10,32], index: 0, kind: input, shape index: {}, may-alias: {0,1,2}]
  %s1 = inlined_call_operand.vmem [shape: bf16[2,10,10,32], index: 1, kind: input, shape index: {}, may-alias: {0,1,2}]
  %s2 = inlined_call_operand.vmem [shape: bf16[2,10,10,32], index: 2, kind: input, shape index: {}, may-alias: {0,1,2}]
  %s3 = inlined_call_operand.vmem [shape: bf16[3,3,32,32], index: 3, kind: input, shape index: {}]
  %s4 = inlined_call_operand.vmem [shape: f32[1,32], index: 4, kind: input, shape index: {}]
  %s5 = inlined_call_operand.vmem [shape: f32[2,8,8,32], index: 5, kind: output, shape index: {}]
  %s6 = sld [smem:[#allocation0]]
  $region53: #{generator_forward.21} parent=0
    _
  %s8 = ssub.s32 1, %s6
  %s9 = scalar_select 0, %s8, %s6
  loop: start=0, step=1, limit=18
  $region2: #{generator_forward.21} parent=0 // loop_pre_header
    _
  $region3: #{generator_forward.21} parent=0 // loop_header
    %s11 = sphi 0, %s15
    %p12 = scmp.ge.s32.totalorder %s11, 18
    %s18 = sphi 0, %s30
    %s19 = sphi 0, %s26
    %s20 = sphi 0, %s18
    %s21 = sphi 0, %s19
    %s22 = sphi 0, %s20
    %s23 = sphi 0, %s21
    %s35 = sphi 0, %s37
    %s38 = sphi 0, %s35
    %s39 = sphi 0, %s38
    %s55 = sphi 0, %s39
    %s65 = sphi 0, %s67
    %s68 = sphi 0, %s65
    %s69 = sphi 0, %s68
    %s85 = sphi 0, %s69
    %s95 = sphi 0, %s97
    %s98 = sphi 0, %s95
    %s99 = sphi 0, %s98
    %s115 = sphi 0, %s99
    %s119 = sphi 0, %s119
    %s121 = sphi 0, %s119
    %s122 = sphi 0, %s121
    %s136 = sphi 0, %s122
    %s140 = sphi 0, %s140
    %s142 = sphi 0, %s140
    %s143 = sphi 0, %s142
    %s157 = sphi 0, %s143
    %s165 = sphi 0, %s167
    %s168 = sphi 0, %s165
    %s169 = sphi 0, %s168
    %s185 = sphi 0, %s169
  $region4: #{generator_forward.21} parent=0 // loop_header_branch
    %14 = sbr.rel (%p12) target = $region8
  $region5: #{generator_forward.21} parent=0 // loop_body
    %s16 = ssub.s32 %s11, 1
    %s17 = ssub.s32 %s11, 2
    %s24 = sadd.s32 1, %s19
    %p25 = scmp.ge.s32.totalorder %s24, 8
    %s26 = scalar_select %p25, 0, %s24
    %s27 = sadd.s32 1, %s18
    %s28 = scalar_select %p25, %s27, %s18
    %p29 = scmp.ge.s32.totalorder %s28, 2
    %s30 = scalar_select %p29, 0, %s28
    %s31 = ssub.s32 %s18, %s30
    %s32 = ssub.s32 %s19, %s26
    %s33 = sor.u32 %s31, %s32
    %p34 = scmp.eq.s32.totalorder %s33, 0
    %s36 = sadd.s32 %s35, 1
    %s37 = scalar_select %p34, %s35, %s36
    %p40 = pneg %p34
    %p41 = scmp.eq.s32.totalorder %s11, 15
    %p42 = por %p40, %p41
    %p43 = scmp.ne.s32.totalorder %s35, %s38
    %p44 = scmp.eq.s32.totalorder %s11, 0
    %p45 = por %p43, %p44
    %p46 = scmp.ne.s32.totalorder %s35, %s38
    %p47 = scmp.eq.s32.totalorder %s16, 15
    %p48 = por %p46, %p47
    %p49 = scmp.ne.s32.totalorder %s38, %s39
    %p50 = scmp.eq.s32.totalorder %s16, 0
    %p51 = por %p49, %p50
    %p52 = scmp.ne.s32.totalorder %s38, %s39
    %p53 = scmp.eq.s32.totalorder %s17, 15
    %p54 = por %p52, %p53
    %p56 = scmp.ne.s32.totalorder %s39, %s55
    %p57 = scmp.eq.s32.totalorder %s17, 0
    %p58 = por %p56, %p57
    %s59 = sadd.s32 %s19, 1
    %s60 = sadd.s32 %s26, 1
    %s61 = ssub.s32 %s18, %s30
    %s62 = ssub.s32 %s59, %s60
    %s63 = sor.u32 %s61, %s62
    %p64 = scmp.eq.s32.totalorder %s63, 0
    %s66 = sadd.s32 %s65, 1
    %s67 = scalar_select %p64, %s65, %s66
    %p70 = pneg %p64
    %p71 = scmp.eq.s32.totalorder %s11, 15
    %p72 = por %p70, %p71
    %p73 = scmp.ne.s32.totalorder %s65, %s68
    %p74 = scmp.eq.s32.totalorder %s11, 0
    %p75 = por %p73, %p74
    %p76 = scmp.ne.s32.totalorder %s65, %s68
    %p77 = scmp.eq.s32.totalorder %s16, 15
    %p78 = por %p76, %p77
    %p79 = scmp.ne.s32.totalorder %s68, %s69
    %p80 = scmp.eq.s32.totalorder %s16, 0
    %p81 = por %p79, %p80
    %p82 = scmp.ne.s32.totalorder %s68, %s69
    %p83 = scmp.eq.s32.totalorder %s17, 15
    %p84 = por %p82, %p83
    %p86 = scmp.ne.s32.totalorder %s69, %s85
    %p87 = scmp.eq.s32.totalorder %s17, 0
    %p88 = por %p86, %p87
    %s89 = sadd.s32 %s19, 2
    %s90 = sadd.s32 %s26, 2
    %s91 = ssub.s32 %s18, %s30
    %s92 = ssub.s32 %s89, %s90
    %s93 = sor.u32 %s91, %s92
    %p94 = scmp.eq.s32.totalorder %s93, 0
    %s96 = sadd.s32 %s95, 1
    %s97 = scalar_select %p94, %s95, %s96
    %p100 = pneg %p94
    %p101 = scmp.eq.s32.totalorder %s11, 15
    %p102 = por %p100, %p101
    %p103 = scmp.ne.s32.totalorder %s95, %s98
    %p104 = scmp.eq.s32.totalorder %s11, 0
    %p105 = por %p103, %p104
    %p106 = scmp.ne.s32.totalorder %s95, %s98
    %p107 = scmp.eq.s32.totalorder %s16, 15
    %p108 = por %p106, %p107
    %p109 = scmp.ne.s32.totalorder %s98, %s99
    %p110 = scmp.eq.s32.totalorder %s16, 0
    %p111 = por %p109, %p110
    %p112 = scmp.ne.s32.totalorder %s98, %s99
    %p113 = scmp.eq.s32.totalorder %s17, 15
    %p114 = por %p112, %p113
    %p116 = scmp.ne.s32.totalorder %s99, %s115
    %p117 = scmp.eq.s32.totalorder %s17, 0
    %p118 = por %p116, %p117
    %s120 = sadd.s32 %s119, 1
    %p123 = scmp.eq.s32.totalorder %s11, 15
    %p124 = scmp.ne.s32.totalorder %s119, %s121
    %p125 = scmp.eq.s32.totalorder %s11, 0
    %p126 = por %p124, %p125
    %p127 = scmp.ne.s32.totalorder %s119, %s121
    %p128 = scmp.eq.s32.totalorder %s16, 15
    %p129 = por %p127, %p128
    %p130 = scmp.ne.s32.totalorder %s121, %s122
    %p131 = scmp.eq.s32.totalorder %s16, 0
    %p132 = por %p130, %p131
    %p133 = scmp.ne.s32.totalorder %s121, %s122
    %p134 = scmp.eq.s32.totalorder %s17, 15
    %p135 = por %p133, %p134
    %p137 = scmp.ne.s32.totalorder %s122, %s136
    %p138 = scmp.eq.s32.totalorder %s17, 0
    %p139 = por %p137, %p138
    %s141 = sadd.s32 %s140, 1
    %p144 = scmp.eq.s32.totalorder %s11, 15
    %p145 = scmp.ne.s32.totalorder %s140, %s142
    %p146 = scmp.eq.s32.totalorder %s11, 0
    %p147 = por %p145, %p146
    %p148 = scmp.ne.s32.totalorder %s140, %s142
    %p149 = scmp.eq.s32.totalorder %s16, 15
    %p150 = por %p148, %p149
    %p151 = scmp.ne.s32.totalorder %s142, %s143
    %p152 = scmp.eq.s32.totalorder %s16, 0
    %p153 = por %p151, %p152
    %p154 = scmp.ne.s32.totalorder %s142, %s143
    %p155 = scmp.eq.s32.totalorder %s17, 15
    %p156 = por %p154, %p155
    %p158 = scmp.ne.s32.totalorder %s143, %s157
    %p159 = scmp.eq.s32.totalorder %s17, 0
    %p160 = por %p158, %p159
    %s161 = ssub.s32 %s18, %s30
    %s162 = ssub.s32 %s19, %s26
    %s163 = sor.u32 %s161, %s162
    %p164 = scmp.eq.s32.totalorder %s163, 0
    %s166 = sadd.s32 %s165, 1
    %s167 = scalar_select %p164, %s165, %s166
    %p170 = pneg %p164
    %p171 = scmp.eq.s32.totalorder %s11, 15
    %p172 = por %p170, %p171
    %p173 = scmp.ne.s32.totalorder %s165, %s168
    %p174 = scmp.eq.s32.totalorder %s11, 0
    %p175 = por %p173, %p174
    %p176 = scmp.ne.s32.totalorder %s165, %s168
    %p177 = scmp.eq.s32.totalorder %s16, 15
    %p178 = por %p176, %p177
    %p179 = scmp.ne.s32.totalorder %s168, %s169
    %p180 = scmp.eq.s32.totalorder %s16, 0
    %p181 = por %p179, %p180
    %p182 = scmp.ne.s32.totalorder %s168, %s169
    %p183 = scmp.eq.s32.totalorder %s17, 15
    %p184 = por %p182, %p183
    %p186 = scmp.ne.s32.totalorder %s169, %s185
    %p187 = scmp.eq.s32.totalorder %s17, 0
    %p188 = por %p186, %p187
    %p189 = scmp.le.s32.totalorder 1, %s11
    %p190 = scmp.lt.s32.totalorder %s11, 17
    %p191 = pnand %p189, %p190
    %p192 = pneg %p191
    // Predicated region
    $region9: #{generator_forward.21} parent=5 // pred_check
      _
    $region10: #{generator_forward.21} parent=5 // pred_check_branch
      %194 = sbr.rel (%p191) target = $region12
    $region11: #{generator_forward.21} parent=5 // pred_region
      %s195 = ssub.s32 %s11, 1
      // Predicated region
      $region13: #{generator_forward.21} parent=11 // pred_check
        %p196 = pneg %p132
      $region14: #{generator_forward.21} parent=11 // pred_check_branch
        %198 = sbr.rel (%p196) target = $region16
      $region15: #{generator_forward.21} parent=11 // pred_region
        _
      $region16: #{generator_forward.21} parent=11 // pred_fallthru
        _
      // Predicated region
      $region17: #{generator_forward.21} parent=11 // pred_check
        %p199 = pneg %p153
      $region18: #{generator_forward.21} parent=11 // pred_check_branch
        %201 = sbr.rel (%p199) target = $region20
      $region19: #{generator_forward.21} parent=11 // pred_region
        _
      $region20: #{generator_forward.21} parent=11 // pred_fallthru
        _
    $region12: #{generator_forward.21} parent=5 // pred_fallthru
      _
    %p202 = scmp.lt.s32.totalorder %s11, 16
    // Predicated region
    $region21: #{generator_forward.21} parent=5 // pred_check
      %p203 = pneg %p202
    $region22: #{generator_forward.21} parent=5 // pred_check_branch
      %205 = sbr.rel (%p203) target = $region24
    $region23: #{generator_forward.21} parent=5 // pred_region
      // Predicated region
      $region25: #{generator_forward.21} parent=23 // pred_check
        %p206 = pneg %p45
      $region26: #{generator_forward.21} parent=23 // pred_check_branch
        %208 = sbr.rel (%p206) target = $region28
      $region27: #{generator_forward.21} parent=23 // pred_region
        %p209 = scmp.lt.s32.totalorder %s18, 1
        %s210 = scalar_select %p209, %s18, 1
        %p211 = scmp.lt.s32.totalorder %s19, 9
        %s212 = scalar_select %p211, %s19, 9
        %s213 = smul.addr %s212, 2
        %s214 = smul.addr %s210, 20
        %s215 = sadd.s32 %s213, %s214
        %s216 = smul.addr %s215, 4
        %s217 = scalar_lea.vmem %s0, %s216
      $region28: #{generator_forward.21} parent=23 // pred_fallthru
        _
      // Predicated region
      $region29: #{generator_forward.21} parent=23 // pred_check
        %p218 = pneg %p75
      $region30: #{generator_forward.21} parent=23 // pred_check_branch
        %220 = sbr.rel (%p218) target = $region32
      $region31: #{generator_forward.21} parent=23 // pred_region
        %s221 = sadd.s32 %s19, 1
        %p222 = scmp.lt.s32.totalorder %s18, 1
        %s223 = scalar_select %p222, %s18, 1
        %p224 = scmp.lt.s32.totalorder %s221, 9
        %s225 = scalar_select %p224, %s221, 9
        %s226 = smul.addr %s225, 2
        %s227 = smul.addr %s223, 20
        %s228 = sadd.s32 %s226, %s227
        %s229 = smul.addr %s228, 4
        %s230 = scalar_lea.vmem %s1, %s229
        %s231 = sadd.s32 %s19, 1
      $region32: #{generator_forward.21} parent=23 // pred_fallthru
        _
      // Predicated region
      $region33: #{generator_forward.21} parent=23 // pred_check
        %p232 = pneg %p105
      $region34: #{generator_forward.21} parent=23 // pred_check_branch
        %234 = sbr.rel (%p232) target = $region36
      $region35: #{generator_forward.21} parent=23 // pred_region
        %s235 = sadd.s32 %s19, 2
        %p236 = scmp.lt.s32.totalorder %s18, 1
        %s237 = scalar_select %p236, %s18, 1
        %p238 = scmp.lt.s32.totalorder %s235, 9
        %s239 = scalar_select %p238, %s235, 9
        %s240 = smul.addr %s239, 2
        %s241 = smul.addr %s237, 20
        %s242 = sadd.s32 %s240, %s241
        %s243 = smul.addr %s242, 4
        %s244 = scalar_lea.vmem %s2, %s243
        %s245 = sadd.s32 %s19, 2
      $region36: #{generator_forward.21} parent=23 // pred_fallthru
        _
    $region24: #{generator_forward.21} parent=5 // pred_fallthru
      _
    %p246 = scmp.le.s32.totalorder 1, %s11
    %p247 = scmp.lt.s32.totalorder %s11, 17
    %p248 = pnand %p246, %p247
    %p249 = pneg %p248
    // Predicated region
    $region37: #{generator_forward.21} parent=5 // pred_check
      _
    $region38: #{generator_forward.21} parent=5 // pred_check_branch
      %251 = sbr.rel (%p248) target = $region40
    $region39: #{generator_forward.21} parent=5 // pred_region
      %s252 = ssub.s32 %s11, 1
      %p253 = scmp.lt.s32.totalorder %s20, 1
      %s254 = scalar_select %p253, %s20, 1
      %p255 = scmp.lt.s32.totalorder %s21, 9
      %s256 = scalar_select %p255, %s21, 9
      %s257 = smul.addr %s256, 2
      %s258 = smul.addr %s254, 20
      %s259 = sadd.s32 %s257, %s258
      %s260 = smul.addr %s259, 4
      %s261 = scalar_lea.vmem %s0, %s260
      %p262 = pneg %p51
      %p263 = pneg %p48
      %s264 = sadd.s32 %s21, 1
      %p265 = scmp.lt.s32.totalorder %s20, 1
      %s266 = scalar_select %p265, %s20, 1
      %p267 = scmp.lt.s32.totalorder %s264, 9
      %s268 = scalar_select %p267, %s264, 9
      %s269 = smul.addr %s268, 2
      %s270 = smul.addr %s266, 20
      %s271 = sadd.s32 %s269, %s270
      %s272 = smul.addr %s271, 4
      %s273 = scalar_lea.vmem %s1, %s272
      %p274 = pneg %p81
      %p275 = pneg %p78
      %s276 = sadd.s32 %s21, 2
      %p277 = scmp.lt.s32.totalorder %s20, 1
      %s278 = scalar_select %p277, %s20, 1
      %p279 = scmp.lt.s32.totalorder %s276, 9
      %s280 = scalar_select %p279, %s276, 9
      %s281 = smul.addr %s280, 2
      %s282 = smul.addr %s278, 20
      %s283 = sadd.s32 %s281, %s282
      %s284 = smul.addr %s283, 4
      %s285 = scalar_lea.vmem %s2, %s284
      %p286 = pneg %p111
      %p287 = pneg %p108
      %p288 = pneg %p132
      %p289 = pneg %p129
      %p290 = pneg %p153
      %p291 = pneg %p150
      %p292 = pneg %p181
      %p293 = pneg %p178
      %p294 = scmp.lt.s32.totalorder %s20, 1
      %s295 = scalar_select %p294, %s20, 1
      %p296 = scmp.lt.s32.totalorder %s21, 7
      %s297 = scalar_select %p296, %s21, 7
      %s298 = smul.addr %s295, 8
      %s299 = sadd.s32 %s297, %s298
      %s300 = smul.addr %s299, 8
      %s301 = scalar_lea.vmem %s5, %s300
      %p302 = scmp.lt.s32.totalorder %s20, 1
      %s303 = scalar_select %p302, %s20, 1
      %p304 = scmp.lt.s32.totalorder %s21, 9
      %s305 = scalar_select %p304, %s21, 9
      %s306 = smul.addr %s305, 2
      %s307 = smul.addr %s303, 20
      %s308 = sadd.s32 %s306, %s307
      %s309 = smul.addr %s308, 4
      %s310 = scalar_lea.vmem %s0, %s309
      %s311 = sadd.s32 %s21, 1
      %p312 = scmp.lt.s32.totalorder %s20, 1
      %s313 = scalar_select %p312, %s20, 1
      %p314 = scmp.lt.s32.totalorder %s311, 9
      %s315 = scalar_select %p314, %s311, 9
      %s316 = smul.addr %s315, 2
      %s317 = smul.addr %s313, 20
      %s318 = sadd.s32 %s316, %s317
      %s319 = smul.addr %s318, 4
      %s320 = scalar_lea.vmem %s1, %s319
      %s321 = sadd.s32 %s21, 1
      %s322 = sadd.s32 %s21, 2
      %p323 = scmp.lt.s32.totalorder %s20, 1
      %s324 = scalar_select %p323, %s20, 1
      %p325 = scmp.lt.s32.totalorder %s322, 9
      %s326 = scalar_select %p325, %s322, 9
      %s327 = smul.addr %s326, 2
      %s328 = smul.addr %s324, 20
      %s329 = sadd.s32 %s327, %s328
      %s330 = smul.addr %s329, 4
      %s331 = scalar_lea.vmem %s2, %s330
      %s332 = sadd.s32 %s21, 2
      %p333 = scmp.lt.s32.totalorder %s20, 1
      %s334 = scalar_select %p333, %s20, 1
      %p335 = scmp.lt.s32.totalorder %s21, 7
      %s336 = scalar_select %p335, %s21, 7
      %s337 = smul.addr %s334, 8
      %s338 = sadd.s32 %s336, %s337
      %s339 = smul.addr %s338, 8
      %s340 = scalar_lea.vmem %s5, %s339
      %v342 = vld [vmem:[%s310] sm:$0xf]
      %v343 = vld [vmem:[%s310 + $0x4] sm:$0x1]
      %v344 = vld [vmem:[%s320] sm:$0xf]
      %v345 = vld [vmem:[%s320 + $0x4] sm:$0x1]
      %v346 = vld [vmem:[%s331] sm:$0xf]
      %v347 = vld [vmem:[%s331 + $0x4] sm:$0x1]
      %v348 = vld [vmem:[%s3] sm:$0xf]
      %v349 = vld [vmem:[%s3 + $0x4] sm:$0xf]
      %v350 = vld [vmem:[%s3 + $0x8] sm:$0xf]
      %v351 = vld [vmem:[%s3 + $0xc] sm:$0xf]
      %v354 = vunpack.c.l.b16 %v342
      %v355 = vunpack.c.l.b16 %v343
      %v356 = vpack.c.b16 %v355, %v354
      %v361 = vunpack.c.l.b16 %v348
      %v362 = vunpack.c.l.b16 %v349
      %v363 = vunpack.c.l.b16 %v350
      %v364 = vunpack.c.l.b16 %v351
      %v365 = vpack.c.b16 %v362, %v361
      %v366 = vpack.c.b16 %v364, %v363
      %vm369 = vcmask 261120
      %v371 = vsel %vm369, %v356, 0
      %373 = vmatprep.subr.bf16.mxu0 0
      %374 = vmatpush1.bf16.msra.mxu0 0
      %375 = vmatprep.subr.bf16.mxu0 0
      %376 = vmatpush1.bf16.msra.mxu0 0
      %377 = vmatprep.subr.bf16.mxu0 0
      %378 = vmatpush1.bf16.msra.mxu0 0
      %379 = vmatprep.subr.bf16.mxu0 0
      %380 = vmatpush1.bf16.msra.mxu0 0
      %381 = vmatprep.subr.bf16.mxu0 0
      %382 = vmatpush1.bf16.msra.mxu0 0
      %383 = vmatprep.subr.bf16.mxu0 0
      %384 = vmatpush1.bf16.msra.mxu0 0
      %385 = vmatprep.subr.bf16.mxu0 0
      %386 = vmatpush1.bf16.msra.mxu0 %v366
      %387 = vmatprep.subr.bf16.mxu0 0
      %388 = vmatpush1.bf16.msra.mxu0 %v365
      %389 = vmatprep.subr.bf16.mxu0 0
      %390 = vmatpush2.bf16.msra.mxu0 0
      %391 = vmatprep.subr.bf16.mxu0 0
      %392 = vmatpush2.bf16.msra.mxu0 0
      %393 = vmatprep.subr.bf16.mxu0 0
      %394 = vmatpush2.bf16.msra.mxu0 0
      %395 = vmatprep.subr.bf16.mxu0 0
      %396 = vmatpush2.bf16.msra.mxu0 0
      %397 = vmatprep.subr.bf16.mxu0 0
      %398 = vmatpush2.bf16.msra.mxu0 0
      %399 = vmatprep.subr.bf16.mxu0 0
      %400 = vmatpush2.bf16.msra.mxu0 0
      %401 = vmatprep.subr.bf16.mxu0 0
      %402 = vmatpush2.bf16.msra.mxu0 0
      %403 = vmatprep.subr.bf16.mxu0 0
      %404 = vmatpush2.bf16.msra.mxu0 0
      %405 = vmatprep.mubr.bf16.mxu0 0
      %406 = vmatmul.mubr.bf16.gmra.mxu0 %v371
      %v407 = vpop.f32.mrf.mxu0
      %v408 = vadd.f32 0.0, %v407
      %v409 = vpop.f32.mrf.mxu0
      %v410 = vpop.f32.mrf.mxu0
      %v411 = vpop.f32.mrf.mxu0
      %412 = vdwg.mxu0
      %v413 = vadd.f32 %v408, 0.0
      %s414 = scalar_lea.vmem %s3, 16
      %v415 = vld [vmem:[%s414] sm:$0xf]
      %v416 = vld [vmem:[%s414 + $0x4] sm:$0xf]
      %v417 = vld [vmem:[%s414 + $0x8] sm:$0xf]
      %v418 = vld [vmem:[%s414 + $0xc] sm:$0xf]
      %v423 = vunpack.c.l.b16 %v415
      %v424 = vunpack.c.l.b16 %v416
      %v425 = vunpack.c.l.b16 %v417
      %v426 = vunpack.c.l.b16 %v418
      %v427 = vpack.c.b16 %v424, %v423
      %v428 = vpack.c.b16 %v426, %v425
      %431 = vmatprep.subr.bf16.mxu0 0
      %432 = vmatpush1.bf16.msra.mxu0 0
      %433 = vmatprep.subr.bf16.mxu0 0
      %434 = vmatpush1.bf16.msra.mxu0 0
      %435 = vmatprep.subr.bf16.mxu0 0
      %436 = vmatpush1.bf16.msra.mxu0 0
      %437 = vmatprep.subr.bf16.mxu0 0
      %438 = vmatpush1.bf16.msra.mxu0 0
      %439 = vmatprep.subr.bf16.mxu0 0
      %440 = vmatpush1.bf16.msra.mxu0 0
      %441 = vmatprep.subr.bf16.mxu0 0
      %442 = vmatpush1.bf16.msra.mxu0 0
      %443 = vmatprep.subr.bf16.mxu0 0
      %444 = vmatpush1.bf16.msra.mxu0 %v428
      %445 = vmatprep.subr.bf16.mxu0 0
      %446 = vmatpush1.bf16.msra.mxu0 %v427
      %447 = vmatprep.subr.bf16.mxu0 0
      %448 = vmatpush2.bf16.msra.mxu0 0
      %449 = vmatprep.subr.bf16.mxu0 0
      %450 = vmatpush2.bf16.msra.mxu0 0
      %451 = vmatprep.subr.bf16.mxu0 0
      %452 = vmatpush2.bf16.msra.mxu0 0
      %453 = vmatprep.subr.bf16.mxu0 0
      %454 = vmatpush2.bf16.msra.mxu0 0
      %455 = vmatprep.subr.bf16.mxu0 0
      %456 = vmatpush2.bf16.msra.mxu0 0
      %457 = vmatprep.subr.bf16.mxu0 0
      %458 = vmatpush2.bf16.msra.mxu0 0
      %459 = vmatprep.subr.bf16.mxu0 0
      %460 = vmatpush2.bf16.msra.mxu0 0
      %461 = vmatprep.subr.bf16.mxu0 0
      %462 = vmatpush2.bf16.msra.mxu0 0
      %463 = vmatprep.mubr.bf16.mxu0 0
      %464 = vmatmul.mubr.bf16.gmra.mxu0 %v371
      %v465 = vpop.f32.mrf.mxu0
      %v466 = vadd.f32 0.0, %v465
      %v467 = vpop.f32.mrf.mxu0
      %v468 = vpop.f32.mrf.mxu0
      %v469 = vadd.f32 0.0, %v468
      %v470 = vpop.f32.mrf.mxu0
      %471 = vdwg.mxu0
      %vm474 = vcmask 1046528
      %v475 = vrot.slane %v466, 1
      %v476 = vrot.slane %v469, 1
      %v477 = vsel %vm474, %v475, %v476
      %v479 = vadd.f32 %v413, %v477
      %s480 = scalar_lea.vmem %s3, 32
      %v481 = vld [vmem:[%s480] sm:$0xf]
      %v482 = vld [vmem:[%s480 + $0x4] sm:$0xf]
      %v483 = vld [vmem:[%s480 + $0x8] sm:$0xf]
      %v484 = vld [vmem:[%s480 + $0xc] sm:$0xf]
      %v489 = vunpack.c.l.b16 %v481
      %v490 = vunpack.c.l.b16 %v482
      %v491 = vunpack.c.l.b16 %v483
      %v492 = vunpack.c.l.b16 %v484
      %v493 = vpack.c.b16 %v490, %v489
      %v494 = vpack.c.b16 %v492, %v491
      %497 = vmatprep.subr.bf16.mxu0 0
      %498 = vmatpush1.bf16.msra.mxu0 0
      %499 = vmatprep.subr.bf16.mxu0 0
      %500 = vmatpush1.bf16.msra.mxu0 0
      %501 = vmatprep.subr.bf16.mxu0 0
      %502 = vmatpush1.bf16.msra.mxu0 0
      %503 = vmatprep.subr.bf16.mxu0 0
      %504 = vmatpush1.bf16.msra.mxu0 0
      %505 = vmatprep.subr.bf16.mxu0 0
      %506 = vmatpush1.bf16.msra.mxu0 0
      %507 = vmatprep.subr.bf16.mxu0 0
      %508 = vmatpush1.bf16.msra.mxu0 0
      %509 = vmatprep.subr.bf16.mxu0 0
      %510 = vmatpush1.bf16.msra.mxu0 %v494
      %511 = vmatprep.subr.bf16.mxu0 0
      %512 = vmatpush1.bf16.msra.mxu0 %v493
      %513 = vmatprep.subr.bf16.mxu0 0
      %514 = vmatpush2.bf16.msra.mxu0 0
      %515 = vmatprep.subr.bf16.mxu0 0
      %516 = vmatpush2.bf16.msra.mxu0 0
      %517 = vmatprep.subr.bf16.mxu0 0
      %518 = vmatpush2.bf16.msra.mxu0 0
      %519 = vmatprep.subr.bf16.mxu0 0
      %520 = vmatpush2.bf16.msra.mxu0 0
      %521 = vmatprep.subr.bf16.mxu0 0
      %522 = vmatpush2.bf16.msra.mxu0 0
      %523 = vmatprep.subr.bf16.mxu0 0
      %524 = vmatpush2.bf16.msra.mxu0 0
      %525 = vmatprep.subr.bf16.mxu0 0
      %526 = vmatpush2.bf16.msra.mxu0 0
      %527 = vmatprep.subr.bf16.mxu0 0
      %528 = vmatpush2.bf16.msra.mxu0 0
      %529 = vmatprep.mubr.bf16.mxu0 0
      %530 = vmatmul.mubr.bf16.gmra.mxu0 %v371
      %v531 = vpop.f32.mrf.mxu0
      %v532 = vadd.f32 0.0, %v531
      %v533 = vpop.f32.mrf.mxu0
      %v534 = vpop.f32.mrf.mxu0
      %v535 = vadd.f32 0.0, %v534
      %v536 = vpop.f32.mrf.mxu0
      %537 = vdwg.mxu0
      %vm540 = vcmask 1045504
      %v541 = vrot.slane %v532, 2
      %v542 = vrot.slane %v535, 2
      %v543 = vsel %vm540, %v541, %v542
      %v545 = vadd.f32 %v479, %v543
      %s546 = scalar_lea.vmem %s3, 48
      %v547 = vld [vmem:[%s546] sm:$0xf]
      %v548 = vld [vmem:[%s546 + $0x4] sm:$0xf]
      %v549 = vld [vmem:[%s546 + $0x8] sm:$0xf]
      %v550 = vld [vmem:[%s546 + $0xc] sm:$0xf]
      %v553 = vunpack.c.l.b16 %v344
      %v554 = vunpack.c.l.b16 %v345
      %v555 = vpack.c.b16 %v554, %v553
      %v560 = vunpack.c.l.b16 %v547
      %v561 = vunpack.c.l.b16 %v548
      %v562 = vunpack.c.l.b16 %v549
      %v563 = vunpack.c.l.b16 %v550
      %v564 = vpack.c.b16 %v561, %v560
      %v565 = vpack.c.b16 %v563, %v562
      %v569 = vsel %vm369, %v555, 0
      %571 = vmatprep.subr.bf16.mxu0 0
      %572 = vmatpush1.bf16.msra.mxu0 0
      %573 = vmatprep.subr.bf16.mxu0 0
      %574 = vmatpush1.bf16.msra.mxu0 0
      %575 = vmatprep.subr.bf16.mxu0 0
      %576 = vmatpush1.bf16.msra.mxu0 0
      %577 = vmatprep.subr.bf16.mxu0 0
      %578 = vmatpush1.bf16.msra.mxu0 0
      %579 = vmatprep.subr.bf16.mxu0 0
      %580 = vmatpush1.bf16.msra.mxu0 0
      %581 = vmatprep.subr.bf16.mxu0 0
      %582 = vmatpush1.bf16.msra.mxu0 0
      %583 = vmatprep.subr.bf16.mxu0 0
      %584 = vmatpush1.bf16.msra.mxu0 %v565
      %585 = vmatprep.subr.bf16.mxu0 0
      %586 = vmatpush1.bf16.msra.mxu0 %v564
      %587 = vmatprep.subr.bf16.mxu0 0
      %588 = vmatpush2.bf16.msra.mxu0 0
      %589 = vmatprep.subr.bf16.mxu0 0
      %590 = vmatpush2.bf16.msra.mxu0 0
      %591 = vmatprep.subr.bf16.mxu0 0
      %592 = vmatpush2.bf16.msra.mxu0 0
      %593 = vmatprep.subr.bf16.mxu0 0
      %594 = vmatpush2.bf16.msra.mxu0 0
      %595 = vmatprep.subr.bf16.mxu0 0
      %596 = vmatpush2.bf16.msra.mxu0 0
      %597 = vmatprep.subr.bf16.mxu0 0
      %598 = vmatpush2.bf16.msra.mxu0 0
      %599 = vmatprep.subr.bf16.mxu0 0
      %600 = vmatpush2.bf16.msra.mxu0 0
      %601 = vmatprep.subr.bf16.mxu0 0
      %602 = vmatpush2.bf16.msra.mxu0 0
      %603 = vmatprep.mubr.bf16.mxu0 0
      %604 = vmatmul.mubr.bf16.gmra.mxu0 %v569
      %v605 = vpop.f32.mrf.mxu0
      %v606 = vadd.f32 0.0, %v605
      %v607 = vpop.f32.mrf.mxu0
      %v608 = vpop.f32.mrf.mxu0
      %v609 = vpop.f32.mrf.mxu0
      %610 = vdwg.mxu0
      %v611 = vadd.f32 %v545, %v606
      %s612 = scalar_lea.vmem %s3, 64
      %v613 = vld [vmem:[%s612] sm:$0xf]
      %v614 = vld [vmem:[%s612 + $0x4] sm:$0xf]
      %v615 = vld [vmem:[%s612 + $0x8] sm:$0xf]
      %v616 = vld [vmem:[%s612 + $0xc] sm:$0xf]
      %v621 = vunpack.c.l.b16 %v613
      %v622 = vunpack.c.l.b16 %v614
      %v623 = vunpack.c.l.b16 %v615
      %v624 = vunpack.c.l.b16 %v616
      %v625 = vpack.c.b16 %v622, %v621
      %v626 = vpack.c.b16 %v624, %v623
      %629 = vmatprep.subr.bf16.mxu0 0
      %630 = vmatpush1.bf16.msra.mxu0 0
      %631 = vmatprep.subr.bf16.mxu0 0
      %632 = vmatpush1.bf16.msra.mxu0 0
      %633 = vmatprep.subr.bf16.mxu0 0
      %634 = vmatpush1.bf16.msra.mxu0 0
      %635 = vmatprep.subr.bf16.mxu0 0
      %636 = vmatpush1.bf16.msra.mxu0 0
      %637 = vmatprep.subr.bf16.mxu0 0
      %638 = vmatpush1.bf16.msra.mxu0 0
      %639 = vmatprep.subr.bf16.mxu0 0
      %640 = vmatpush1.bf16.msra.mxu0 0
      %641 = vmatprep.subr.bf16.mxu0 0
      %642 = vmatpush1.bf16.msra.mxu0 %v626
      %643 = vmatprep.subr.bf16.mxu0 0
      %644 = vmatpush1.bf16.msra.mxu0 %v625
      %645 = vmatprep.subr.bf16.mxu0 0
      %646 = vmatpush2.bf16.msra.mxu0 0
      %647 = vmatprep.subr.bf16.mxu0 0
      %648 = vmatpush2.bf16.msra.mxu0 0
      %649 = vmatprep.subr.bf16.mxu0 0
      %650 = vmatpush2.bf16.msra.mxu0 0
      %651 = vmatprep.subr.bf16.mxu0 0
      %652 = vmatpush2.bf16.msra.mxu0 0
      %653 = vmatprep.subr.bf16.mxu0 0
      %654 = vmatpush2.bf16.msra.mxu0 0
      %655 = vmatprep.subr.bf16.mxu0 0
      %656 = vmatpush2.bf16.msra.mxu0 0
      %657 = vmatprep.subr.bf16.mxu0 0
      %658 = vmatpush2.bf16.msra.mxu0 0
      %659 = vmatprep.subr.bf16.mxu0 0
      %660 = vmatpush2.bf16.msra.mxu0 0
      %661 = vmatprep.mubr.bf16.mxu0 0
      %662 = vmatmul.mubr.bf16.gmra.mxu0 %v569
      %v663 = vpop.f32.mrf.mxu0
      %v664 = vadd.f32 0.0, %v663
      %v665 = vpop.f32.mrf.mxu0
      %v666 = vpop.f32.mrf.mxu0
      %v667 = vadd.f32 0.0, %v666
      %v668 = vpop.f32.mrf.mxu0
      %669 = vdwg.mxu0
      %v672 = vrot.slane %v664, 1
      %v673 = vrot.slane %v667, 1
      %v674 = vsel %vm474, %v672, %v673
      %v676 = vadd.f32 %v611, %v674
      %s677 = scalar_lea.vmem %s3, 80
      %v678 = vld [vmem:[%s677] sm:$0xf]
      %v679 = vld [vmem:[%s677 + $0x4] sm:$0xf]
      %v680 = vld [vmem:[%s677 + $0x8] sm:$0xf]
      %v681 = vld [vmem:[%s677 + $0xc] sm:$0xf]
      %v686 = vunpack.c.l.b16 %v678
      %v687 = vunpack.c.l.b16 %v679
      %v688 = vunpack.c.l.b16 %v680
      %v689 = vunpack.c.l.b16 %v681
      %v690 = vpack.c.b16 %v687, %v686
      %v691 = vpack.c.b16 %v689, %v688
      %694 = vmatprep.subr.bf16.mxu0 0
      %695 = vmatpush1.bf16.msra.mxu0 0
      %696 = vmatprep.subr.bf16.mxu0 0
      %697 = vmatpush1.bf16.msra.mxu0 0
      %698 = vmatprep.subr.bf16.mxu0 0
      %699 = vmatpush1.bf16.msra.mxu0 0
      %700 = vmatprep.subr.bf16.mxu0 0
      %701 = vmatpush1.bf16.msra.mxu0 0
      %702 = vmatprep.subr.bf16.mxu0 0
      %703 = vmatpush1.bf16.msra.mxu0 0
      %704 = vmatprep.subr.bf16.mxu0 0
      %705 = vmatpush1.bf16.msra.mxu0 0
      %706 = vmatprep.subr.bf16.mxu0 0
      %707 = vmatpush1.bf16.msra.mxu0 %v691
      %708 = vmatprep.subr.bf16.mxu0 0
      %709 = vmatpush1.bf16.msra.mxu0 %v690
      %710 = vmatprep.subr.bf16.mxu0 0
      %711 = vmatpush2.bf16.msra.mxu0 0
      %712 = vmatprep.subr.bf16.mxu0 0
      %713 = vmatpush2.bf16.msra.mxu0 0
      %714 = vmatprep.subr.bf16.mxu0 0
      %715 = vmatpush2.bf16.msra.mxu0 0
      %716 = vmatprep.subr.bf16.mxu0 0
      %717 = vmatpush2.bf16.msra.mxu0 0
      %718 = vmatprep.subr.bf16.mxu0 0
      %719 = vmatpush2.bf16.msra.mxu0 0
      %720 = vmatprep.subr.bf16.mxu0 0
      %721 = vmatpush2.bf16.msra.mxu0 0
      %722 = vmatprep.subr.bf16.mxu0 0
      %723 = vmatpush2.bf16.msra.mxu0 0
      %724 = vmatprep.subr.bf16.mxu0 0
      %725 = vmatpush2.bf16.msra.mxu0 0
      %726 = vmatprep.mubr.bf16.mxu0 0
      %727 = vmatmul.mubr.bf16.gmra.mxu0 %v569
      %v728 = vpop.f32.mrf.mxu0
      %v729 = vadd.f32 0.0, %v728
      %v730 = vpop.f32.mrf.mxu0
      %v731 = vpop.f32.mrf.mxu0
      %v732 = vadd.f32 0.0, %v731
      %v733 = vpop.f32.mrf.mxu0
      %734 = vdwg.mxu0
      %v737 = vrot.slane %v729, 2
      %v738 = vrot.slane %v732, 2
      %v739 = vsel %vm540, %v737, %v738
      %v741 = vadd.f32 %v676, %v739
      %s742 = scalar_lea.vmem %s3, 96
      %v743 = vld [vmem:[%s742] sm:$0xf]
      %v744 = vld [vmem:[%s742 + $0x4] sm:$0xf]
      %v745 = vld [vmem:[%s742 + $0x8] sm:$0xf]
      %v746 = vld [vmem:[%s742 + $0xc] sm:$0xf]
      %v749 = vunpack.c.l.b16 %v346
      %v750 = vunpack.c.l.b16 %v347
      %v751 = vpack.c.b16 %v750, %v749
      %v756 = vunpack.c.l.b16 %v743
      %v757 = vunpack.c.l.b16 %v744
      %v758 = vunpack.c.l.b16 %v745
      %v759 = vunpack.c.l.b16 %v746
      %v760 = vpack.c.b16 %v757, %v756
      %v761 = vpack.c.b16 %v759, %v758
      %v765 = vsel %vm369, %v751, 0
      %767 = vmatprep.subr.bf16.mxu0 0
      %768 = vmatpush1.bf16.msra.mxu0 0
      %769 = vmatprep.subr.bf16.mxu0 0
      %770 = vmatpush1.bf16.msra.mxu0 0
      %771 = vmatprep.subr.bf16.mxu0 0
      %772 = vmatpush1.bf16.msra.mxu0 0
      %773 = vmatprep.subr.bf16.mxu0 0
      %774 = vmatpush1.bf16.msra.mxu0 0
      %775 = vmatprep.subr.bf16.mxu0 0
      %776 = vmatpush1.bf16.msra.mxu0 0
      %777 = vmatprep.subr.bf16.mxu0 0
      %778 = vmatpush1.bf16.msra.mxu0 0
      %779 = vmatprep.subr.bf16.mxu0 0
      %780 = vmatpush1.bf16.msra.mxu0 %v761
      %781 = vmatprep.subr.bf16.mxu0 0
      %782 = vmatpush1.bf16.msra.mxu0 %v760
      %783 = vmatprep.subr.bf16.mxu0 0
      %784 = vmatpush2.bf16.msra.mxu0 0
      %785 = vmatprep.subr.bf16.mxu0 0
      %786 = vmatpush2.bf16.msra.mxu0 0
      %787 = vmatprep.subr.bf16.mxu0 0
      %788 = vmatpush2.bf16.msra.mxu0 0
      %789 = vmatprep.subr.bf16.mxu0 0
      %790 = vmatpush2.bf16.msra.mxu0 0
      %791 = vmatprep.subr.bf16.mxu0 0
      %792 = vmatpush2.bf16.msra.mxu0 0
      %793 = vmatprep.subr.bf16.mxu0 0
      %794 = vmatpush2.bf16.msra.mxu0 0
      %795 = vmatprep.subr.bf16.mxu0 0
      %796 = vmatpush2.bf16.msra.mxu0 0
      %797 = vmatprep.subr.bf16.mxu0 0
      %798 = vmatpush2.bf16.msra.mxu0 0
      %799 = vmatprep.mubr.bf16.mxu0 0
      %800 = vmatmul.mubr.bf16.gmra.mxu0 %v765
      %v801 = vpop.f32.mrf.mxu0
      %v802 = vadd.f32 0.0, %v801
      %v803 = vpop.f32.mrf.mxu0
      %v804 = vpop.f32.mrf.mxu0
      %v805 = vpop.f32.mrf.mxu0
      %806 = vdwg.mxu0
      %v807 = vadd.f32 %v741, %v802
      %s808 = scalar_lea.vmem %s3, 112
      %v809 = vld [vmem:[%s808] sm:$0xf]
      %v810 = vld [vmem:[%s808 + $0x4] sm:$0xf]
      %v811 = vld [vmem:[%s808 + $0x8] sm:$0xf]
      %v812 = vld [vmem:[%s808 + $0xc] sm:$0xf]
      %v817 = vunpack.c.l.b16 %v809
      %v818 = vunpack.c.l.b16 %v810
      %v819 = vunpack.c.l.b16 %v811
      %v820 = vunpack.c.l.b16 %v812
      %v821 = vpack.c.b16 %v818, %v817
      %v822 = vpack.c.b16 %v820, %v819
      %825 = vmatprep.subr.bf16.mxu0 0
      %826 = vmatpush1.bf16.msra.mxu0 0
      %827 = vmatprep.subr.bf16.mxu0 0
      %828 = vmatpush1.bf16.msra.mxu0 0
      %829 = vmatprep.subr.bf16.mxu0 0
      %830 = vmatpush1.bf16.msra.mxu0 0
      %831 = vmatprep.subr.bf16.mxu0 0
      %832 = vmatpush1.bf16.msra.mxu0 0
      %833 = vmatprep.subr.bf16.mxu0 0
      %834 = vmatpush1.bf16.msra.mxu0 0
      %835 = vmatprep.subr.bf16.mxu0 0
      %836 = vmatpush1.bf16.msra.mxu0 0
      %837 = vmatprep.subr.bf16.mxu0 0
      %838 = vmatpush1.bf16.msra.mxu0 %v822
      %839 = vmatprep.subr.bf16.mxu0 0
      %840 = vmatpush1.bf16.msra.mxu0 %v821
      %841 = vmatprep.subr.bf16.mxu0 0
      %842 = vmatpush2.bf16.msra.mxu0 0
      %843 = vmatprep.subr.bf16.mxu0 0
      %844 = vmatpush2.bf16.msra.mxu0 0
      %845 = vmatprep.subr.bf16.mxu0 0
      %846 = vmatpush2.bf16.msra.mxu0 0
      %847 = vmatprep.subr.bf16.mxu0 0
      %848 = vmatpush2.bf16.msra.mxu0 0
      %849 = vmatprep.subr.bf16.mxu0 0
      %850 = vmatpush2.bf16.msra.mxu0 0
      %851 = vmatprep.subr.bf16.mxu0 0
      %852 = vmatpush2.bf16.msra.mxu0 0
      %853 = vmatprep.subr.bf16.mxu0 0
      %854 = vmatpush2.bf16.msra.mxu0 0
      %855 = vmatprep.subr.bf16.mxu0 0
      %856 = vmatpush2.bf16.msra.mxu0 0
      %857 = vmatprep.mubr.bf16.mxu0 0
      %858 = vmatmul.mubr.bf16.gmra.mxu0 %v765
      %v859 = vpop.f32.mrf.mxu0
      %v860 = vadd.f32 0.0, %v859
      %v861 = vpop.f32.mrf.mxu0
      %v862 = vpop.f32.mrf.mxu0
      %v863 = vadd.f32 0.0, %v862
      %v864 = vpop.f32.mrf.mxu0
      %865 = vdwg.mxu0
      %v868 = vrot.slane %v860, 1
      %v869 = vrot.slane %v863, 1
      %v870 = vsel %vm474, %v868, %v869
      %v872 = vadd.f32 %v807, %v870
      %s873 = scalar_lea.vmem %s3, 128
      %v874 = vld [vmem:[%s873] sm:$0xf]
      %v875 = vld [vmem:[%s873 + $0x4] sm:$0xf]
      %v876 = vld [vmem:[%s873 + $0x8] sm:$0xf]
      %v877 = vld [vmem:[%s873 + $0xc] sm:$0xf]
      %v882 = vunpack.c.l.b16 %v874
      %v883 = vunpack.c.l.b16 %v875
      %v884 = vunpack.c.l.b16 %v876
      %v885 = vunpack.c.l.b16 %v877
      %v886 = vpack.c.b16 %v883, %v882
      %v887 = vpack.c.b16 %v885, %v884
      %890 = vmatprep.subr.bf16.mxu0 0
      %891 = vmatpush1.bf16.msra.mxu0 0
      %892 = vmatprep.subr.bf16.mxu0 0
      %893 = vmatpush1.bf16.msra.mxu0 0
      %894 = vmatprep.subr.bf16.mxu0 0
      %895 = vmatpush1.bf16.msra.mxu0 0
      %896 = vmatprep.subr.bf16.mxu0 0
      %897 = vmatpush1.bf16.msra.mxu0 0
      %898 = vmatprep.subr.bf16.mxu0 0
      %899 = vmatpush1.bf16.msra.mxu0 0
      %900 = vmatprep.subr.bf16.mxu0 0
      %901 = vmatpush1.bf16.msra.mxu0 0
      %902 = vmatprep.subr.bf16.mxu0 0
      %903 = vmatpush1.bf16.msra.mxu0 %v887
      %904 = vmatprep.subr.bf16.mxu0 0
      %905 = vmatpush1.bf16.msra.mxu0 %v886
      %906 = vmatprep.subr.bf16.mxu0 0
      %907 = vmatpush2.bf16.msra.mxu0 0
      %908 = vmatprep.subr.bf16.mxu0 0
      %909 = vmatpush2.bf16.msra.mxu0 0
      %910 = vmatprep.subr.bf16.mxu0 0
      %911 = vmatpush2.bf16.msra.mxu0 0
      %912 = vmatprep.subr.bf16.mxu0 0
      %913 = vmatpush2.bf16.msra.mxu0 0
      %914 = vmatprep.subr.bf16.mxu0 0
      %915 = vmatpush2.bf16.msra.mxu0 0
      %916 = vmatprep.subr.bf16.mxu0 0
      %917 = vmatpush2.bf16.msra.mxu0 0
      %918 = vmatprep.subr.bf16.mxu0 0
      %919 = vmatpush2.bf16.msra.mxu0 0
      %920 = vmatprep.subr.bf16.mxu0 0
      %921 = vmatpush2.bf16.msra.mxu0 0
      %922 = vmatprep.mubr.bf16.mxu0 0
      %923 = vmatmul.mubr.bf16.gmra.mxu0 %v765
      %v924 = vpop.f32.mrf.mxu0
      %v925 = vadd.f32 0.0, %v924
      %v926 = vpop.f32.mrf.mxu0
      %v927 = vpop.f32.mrf.mxu0
      %v928 = vadd.f32 0.0, %v927
      %v929 = vpop.f32.mrf.mxu0
      %930 = vdwg.mxu0
      %v933 = vrot.slane %v925, 2
      %v934 = vrot.slane %v928, 2
      %v935 = vsel %vm540, %v933, %v934
      %v937 = vadd.f32 %v872, %v935
      %v938 = vld [vmem:[%s4] sm:$0x1]
      %v940 = vlaneseq
      %v941 = vshrl.u32 %v940, 7
      %v942 = vsub.s32 0, %v941
      %v943 = vrot.slane %v938, %v942
      %v945 = vadd.f32 %v937, %v943
      %946 = vst.msk [vmem:[%s340] sm:$0xff] %vm369, %v945
      %p947 = scmp.lt.s32.totalorder %s20, 1
      %s948 = scalar_select %p947, %s20, 1
      %p949 = scmp.lt.s32.totalorder %s21, 7
      %s950 = scalar_select %p949, %s21, 7
      %s951 = smul.addr %s948, 8
      %s952 = sadd.s32 %s950, %s951
      %s953 = smul.addr %s952, 8
      %s954 = scalar_lea.vmem %s5, %s953
      // Predicated region
      $region41: #{generator_forward.21} parent=39 // pred_check
        %p955 = pneg %p178
      $region42: #{generator_forward.21} parent=39 // pred_check_branch
        %957 = sbr.rel (%p955) target = $region44
      $region43: #{generator_forward.21} parent=39 // pred_region
        _
      $region44: #{generator_forward.21} parent=39 // pred_fallthru
        _
    $region40: #{generator_forward.21} parent=5 // pred_fallthru
      _
    %p958 = scmp.le.s32.totalorder 2, %s11
    // Predicated region
    $region45: #{generator_forward.21} parent=5 // pred_check
      %p959 = pneg %p958
    $region46: #{generator_forward.21} parent=5 // pred_check_branch
      %961 = sbr.rel (%p959) target = $region48
    $region47: #{generator_forward.21} parent=5 // pred_region
      %s962 = ssub.s32 %s11, 2
      // Predicated region
      $region49: #{generator_forward.21} parent=47 // pred_check
        %p963 = pneg %p184
      $region50: #{generator_forward.21} parent=47 // pred_check_branch
        %965 = sbr.rel (%p963) target = $region52
      $region51: #{generator_forward.21} parent=47 // pred_region
        %p966 = scmp.lt.s32.totalorder %s22, 1
        %s967 = scalar_select %p966, %s22, 1
        %p968 = scmp.lt.s32.totalorder %s23, 7
        %s969 = scalar_select %p968, %s23, 7
        %s970 = smul.addr %s967, 8
        %s971 = sadd.s32 %s969, %s970
        %s972 = smul.addr %s971, 8
        %s973 = scalar_lea.vmem %s5, %s972
      $region52: #{generator_forward.21} parent=47 // pred_fallthru
        _
    $region48: #{generator_forward.21} parent=5 // pred_fallthru
      _
  $region6: #{generator_forward.21} parent=0 // loop_footer
    %s15 = sadd.s32 1, %s11
  $region7: #{generator_forward.21} parent=0 // loop_footer_branch
    %10 = sbr.rel target = $region3
  $region8: #{generator_forward.21} parent=0 // loop_exit
    _

// kernel: generator_forward.22
$region0: #{generator_forward.22}
  #allocation0 [shape = 'u32[]', space=smem, size = 0x4, offset = 0x4, fixed_abs, tag = 'smem constant byte address 0x4 - core index']
  #allocation1 [shape = 'u32[144,128]{1,0:T(1,128)}', space=vmem, size = 0x12000, scoped, tag = 'internal scratch']
  %s0 = inlined_call_operand.vmem [shape: f32[2,8,8,32], index: 0, kind: input, shape index: {}]
  %s1 = inlined_call_operand.vmem [shape: f32[2,8,8,1], index: 1, kind: input, shape index: {}]
  %s2 = inlined_call_operand.vmem [shape: f32[1,1,32], index: 2, kind: input, shape index: {}]
  %s3 = inlined_call_operand.vmem [shape: f32[2,1,32], index: 3, kind: input, shape index: {}]
  %s4 = inlined_call_operand.vmem [shape: f32[2,1,32], index: 4, kind: input, shape index: {}]
  %s5 = inlined_call_operand.vmem [shape: f32[2,8,8,32], index: 5, kind: output, shape index: {}]
  %s6 = sld [smem:[#allocation0]]
  $region53: #{generator_forward.22} parent=0
    _
  %s8 = ssub.s32 1, %s6
  %s9 = scalar_select 0, %s8, %s6
  loop: start=0, step=1, limit=4
  $region2: #{generator_forward.22} parent=0 // loop_pre_header
    _
  $region3: #{generator_forward.22} parent=0 // loop_header
    %s11 = sphi 0, %s15
    %p12 = scmp.ge.s32.totalorder %s11, 4
    %s18 = sphi 0, %s30
    %s19 = sphi 0, %s26
    %s20 = sphi 0, %s18
    %s21 = sphi 0, %s19
    %s22 = sphi 0, %s20
    %s23 = sphi 0, %s21
    %s35 = sphi 0, %s37
    %s38 = sphi 0, %s35
    %s39 = sphi 0, %s38
    %s55 = sphi 0, %s39
    %s61 = sphi 0, %s63
    %s64 = sphi 0, %s61
    %s65 = sphi 0, %s64
    %s81 = sphi 0, %s65
    %s87 = sphi 0, %s89
    %s90 = sphi 0, %s87
    %s91 = sphi 0, %s90
    %s107 = sphi 0, %s91
    %s115 = sphi 0, %s117
    %s118 = sphi 0, %s115
    %s119 = sphi 0, %s118
    %s135 = sphi 0, %s119
    %s143 = sphi 0, %s145
    %s146 = sphi 0, %s143
    %s147 = sphi 0, %s146
    %s163 = sphi 0, %s147
    %s171 = sphi 0, %s173
    %s174 = sphi 0, %s171
    %s175 = sphi 0, %s174
    %s191 = sphi 0, %s175
  $region4: #{generator_forward.22} parent=0 // loop_header_branch
    %14 = sbr.rel (%p12) target = $region8
  $region5: #{generator_forward.22} parent=0 // loop_body
    %s16 = ssub.s32 %s11, 1
    %s17 = ssub.s32 %s11, 2
    %s24 = sadd.s32 1, %s19
    %p25 = scmp.ge.s32.totalorder %s24, 1
    %s26 = scalar_select %p25, 0, %s24
    %s27 = sadd.s32 1, %s18
    %s28 = scalar_select %p25, %s27, %s18
    %p29 = scmp.ge.s32.totalorder %s28, 2
    %s30 = scalar_select %p29, 0, %s28
    %s31 = ssub.s32 %s18, %s30
    %s32 = ssub.s32 %s19, %s26
    %s33 = sor.u32 %s31, %s32
    %p34 = scmp.eq.s32.totalorder %s33, 0
    %s36 = sadd.s32 %s35, 1
    %s37 = scalar_select %p34, %s35, %s36
    %p40 = pneg %p34
    %p41 = scmp.eq.s32.totalorder %s11, 1
    %p42 = por %p40, %p41
    %p43 = scmp.ne.s32.totalorder %s35, %s38
    %p44 = scmp.eq.s32.totalorder %s11, 0
    %p45 = por %p43, %p44
    %p46 = scmp.ne.s32.totalorder %s35, %s38
    %p47 = scmp.eq.s32.totalorder %s16, 1
    %p48 = por %p46, %p47
    %p49 = scmp.ne.s32.totalorder %s38, %s39
    %p50 = scmp.eq.s32.totalorder %s16, 0
    %p51 = por %p49, %p50
    %p52 = scmp.ne.s32.totalorder %s38, %s39
    %p53 = scmp.eq.s32.totalorder %s17, 1
    %p54 = por %p52, %p53
    %p56 = scmp.ne.s32.totalorder %s39, %s55
    %p57 = scmp.eq.s32.totalorder %s17, 0
    %p58 = por %p56, %p57
    %s59 = ssub.s32 %s18, %s30
    %p60 = scmp.eq.s32.totalorder %s59, 0
    %s62 = sadd.s32 %s61, 1
    %s63 = scalar_select %p60, %s61, %s62
    %p66 = pneg %p60
    %p67 = scmp.eq.s32.totalorder %s11, 1
    %p68 = por %p66, %p67
    %p69 = scmp.ne.s32.totalorder %s61, %s64
    %p70 = scmp.eq.s32.totalorder %s11, 0
    %p71 = por %p69, %p70
    %p72 = scmp.ne.s32.totalorder %s61, %s64
    %p73 = scmp.eq.s32.totalorder %s16, 1
    %p74 = por %p72, %p73
    %p75 = scmp.ne.s32.totalorder %s64, %s65
    %p76 = scmp.eq.s32.totalorder %s16, 0
    %p77 = por %p75, %p76
    %p78 = scmp.ne.s32.totalorder %s64, %s65
    %p79 = scmp.eq.s32.totalorder %s17, 1
    %p80 = por %p78, %p79
    %p82 = scmp.ne.s32.totalorder %s65, %s81
    %p83 = scmp.eq.s32.totalorder %s17, 0
    %p84 = por %p82, %p83
    %s85 = ssub.s32 %s19, %s26
    %p86 = scmp.eq.s32.totalorder %s85, 0
    %s88 = sadd.s32 %s87, 1
    %s89 = scalar_select %p86, %s87, %s88
    %p92 = pneg %p86
    %p93 = scmp.eq.s32.totalorder %s11, 1
    %p94 = por %p92, %p93
    %p95 = scmp.ne.s32.totalorder %s87, %s90
    %p96 = scmp.eq.s32.totalorder %s11, 0
    %p97 = por %p95, %p96
    %p98 = scmp.ne.s32.totalorder %s87, %s90
    %p99 = scmp.eq.s32.totalorder %s16, 1
    %p100 = por %p98, %p99
    %p101 = scmp.ne.s32.totalorder %s90, %s91
    %p102 = scmp.eq.s32.totalorder %s16, 0
    %p103 = por %p101, %p102
    %p104 = scmp.ne.s32.totalorder %s90, %s91
    %p105 = scmp.eq.s32.totalorder %s17, 1
    %p106 = por %p104, %p105
    %p108 = scmp.ne.s32.totalorder %s91, %s107
    %p109 = scmp.eq.s32.totalorder %s17, 0
    %p110 = por %p108, %p109
    %s111 = ssub.s32 %s18, %s30
    %s112 = ssub.s32 %s19, %s26
    %s113 = sor.u32 %s111, %s112
    %p114 = scmp.eq.s32.totalorder %s113, 0
    %s116 = sadd.s32 %s115, 1
    %s117 = scalar_select %p114, %s115, %s116
    %p120 = pneg %p114
    %p121 = scmp.eq.s32.totalorder %s11, 1
    %p122 = por %p120, %p121
    %p123 = scmp.ne.s32.totalorder %s115, %s118
    %p124 = scmp.eq.s32.totalorder %s11, 0
    %p125 = por %p123, %p124
    %p126 = scmp.ne.s32.totalorder %s115, %s118
    %p127 = scmp.eq.s32.totalorder %s16, 1
    %p128 = por %p126, %p127
    %p129 = scmp.ne.s32.totalorder %s118, %s119
    %p130 = scmp.eq.s32.totalorder %s16, 0
    %p131 = por %p129, %p130
    %p132 = scmp.ne.s32.totalorder %s118, %s119
    %p133 = scmp.eq.s32.totalorder %s17, 1
    %p134 = por %p132, %p133
    %p136 = scmp.ne.s32.totalorder %s119, %s135
    %p137 = scmp.eq.s32.totalorder %s17, 0
    %p138 = por %p136, %p137
    %s139 = ssub.s32 %s18, %s30
    %s140 = ssub.s32 %s19, %s26
    %s141 = sor.u32 %s139, %s140
    %p142 = scmp.eq.s32.totalorder %s141, 0
    %s144 = sadd.s32 %s143, 1
    %s145 = scalar_select %p142, %s143, %s144
    %p148 = pneg %p142
    %p149 = scmp.eq.s32.totalorder %s11, 1
    %p150 = por %p148, %p149
    %p151 = scmp.ne.s32.totalorder %s143, %s146
    %p152 = scmp.eq.s32.totalorder %s11, 0
    %p153 = por %p151, %p152
    %p154 = scmp.ne.s32.totalorder %s143, %s146
    %p155 = scmp.eq.s32.totalorder %s16, 1
    %p156 = por %p154, %p155
    %p157 = scmp.ne.s32.totalorder %s146, %s147
    %p158 = scmp.eq.s32.totalorder %s16, 0
    %p159 = por %p157, %p158
    %p160 = scmp.ne.s32.totalorder %s146, %s147
    %p161 = scmp.eq.s32.totalorder %s17, 1
    %p162 = por %p160, %p161
    %p164 = scmp.ne.s32.totalorder %s147, %s163
    %p165 = scmp.eq.s32.totalorder %s17, 0
    %p166 = por %p164, %p165
    %s167 = ssub.s32 %s18, %s30
    %s168 = ssub.s32 %s19, %s26
    %s169 = sor.u32 %s167, %s168
    %p170 = scmp.eq.s32.totalorder %s169, 0
    %s172 = sadd.s32 %s171, 1
    %s173 = scalar_select %p170, %s171, %s172
    %p176 = pneg %p170
    %p177 = scmp.eq.s32.totalorder %s11, 1
    %p178 = por %p176, %p177
    %p179 = scmp.ne.s32.totalorder %s171, %s174
    %p180 = scmp.eq.s32.totalorder %s11, 0
    %p181 = por %p179, %p180
    %p182 = scmp.ne.s32.totalorder %s171, %s174
    %p183 = scmp.eq.s32.totalorder %s16, 1
    %p184 = por %p182, %p183
    %p185 = scmp.ne.s32.totalorder %s174, %s175
    %p186 = scmp.eq.s32.totalorder %s16, 0
    %p187 = por %p185, %p186
    %p188 = scmp.ne.s32.totalorder %s174, %s175
    %p189 = scmp.eq.s32.totalorder %s17, 1
    %p190 = por %p188, %p189
    %p192 = scmp.ne.s32.totalorder %s175, %s191
    %p193 = scmp.eq.s32.totalorder %s17, 0
    %p194 = por %p192, %p193
    %p195 = scmp.le.s32.totalorder 1, %s11
    %p196 = scmp.lt.s32.totalorder %s11, 3
    %p197 = pnand %p195, %p196
    %p198 = pneg %p197
    // Predicated region
    $region9: #{generator_forward.22} parent=5 // pred_check
      _
    $region10: #{generator_forward.22} parent=5 // pred_check_branch
      %200 = sbr.rel (%p197) target = $region12
    $region11: #{generator_forward.22} parent=5 // pred_region
      %s201 = ssub.s32 %s11, 1
      // Predicated region
      $region13: #{generator_forward.22} parent=11 // pred_check
        %p202 = pneg %p103
      $region14: #{generator_forward.22} parent=11 // pred_check_branch
        %204 = sbr.rel (%p202) target = $region16
      $region15: #{generator_forward.22} parent=11 // pred_region
        %p205 = scmp.lt.s32.totalorder %s21, 0
        %s206 = scalar_select %p205, %s21, 0
        %s207 = scalar_lea.vmem %s2, %s206
      $region16: #{generator_forward.22} parent=11 // pred_fallthru
        _
    $region12: #{generator_forward.22} parent=5 // pred_fallthru
      _
    %p208 = scmp.lt.s32.totalorder %s11, 2
    // Predicated region
    $region17: #{generator_forward.22} parent=5 // pred_check
      %p209 = pneg %p208
    $region18: #{generator_forward.22} parent=5 // pred_check_branch
      %211 = sbr.rel (%p209) target = $region20
    $region19: #{generator_forward.22} parent=5 // pred_region
      // Predicated region
      $region21: #{generator_forward.22} parent=19 // pred_check
        %p212 = pneg %p45
      $region22: #{generator_forward.22} parent=19 // pred_check_branch
        %214 = sbr.rel (%p212) target = $region24
      $region23: #{generator_forward.22} parent=19 // pred_region
        %p215 = scmp.lt.s32.totalorder %s18, 1
        %s216 = scalar_select %p215, %s18, 1
        %p217 = scmp.lt.s32.totalorder %s19, 0
        %s218 = scalar_select %p217, %s19, 0
        %s219 = smul.addr %s216, 8
        %s220 = sadd.s32 %s218, %s219
        %s221 = smul.addr %s220, 8
        %s222 = scalar_lea.vmem %s0, %s221
      $region24: #{generator_forward.22} parent=19 // pred_fallthru
        _
      // Predicated region
      $region25: #{generator_forward.22} parent=19 // pred_check
        %p223 = pneg %p71
      $region26: #{generator_forward.22} parent=19 // pred_check_branch
        %225 = sbr.rel (%p223) target = $region28
      $region27: #{generator_forward.22} parent=19 // pred_region
        %p226 = scmp.lt.s32.totalorder %s18, 1
        %s227 = scalar_select %p226, %s18, 1
        %s228 = smul.addr %s227, 8
        %s229 = smul.addr %s228, 8
        %s230 = scalar_lea.vmem %s1, %s229
      $region28: #{generator_forward.22} parent=19 // pred_fallthru
        _
      // Predicated region
      $region29: #{generator_forward.22} parent=19 // pred_check
        %p231 = pneg %p125
      $region30: #{generator_forward.22} parent=19 // pred_check_branch
        %233 = sbr.rel (%p231) target = $region32
      $region31: #{generator_forward.22} parent=19 // pred_region
        %p234 = scmp.lt.s32.totalorder %s18, 1
        %s235 = scalar_select %p234, %s18, 1
        %p236 = scmp.lt.s32.totalorder %s19, 0
        %s237 = scalar_select %p236, %s19, 0
        %s238 = sadd.s32 %s237, %s235
        %s239 = scalar_lea.vmem %s3, %s238
      $region32: #{generator_forward.22} parent=19 // pred_fallthru
        _
      // Predicated region
      $region33: #{generator_forward.22} parent=19 // pred_check
        %p240 = pneg %p153
      $region34: #{generator_forward.22} parent=19 // pred_check_branch
        %242 = sbr.rel (%p240) target = $region36
      $region35: #{generator_forward.22} parent=19 // pred_region
        %p243 = scmp.lt.s32.totalorder %s18, 1
        %s244 = scalar_select %p243, %s18, 1
        %p245 = scmp.lt.s32.totalorder %s19, 0
        %s246 = scalar_select %p245, %s19, 0
        %s247 = sadd.s32 %s246, %s244
        %s248 = scalar_lea.vmem %s4, %s247
      $region36: #{generator_forward.22} parent=19 // pred_fallthru
        _
    $region20: #{generator_forward.22} parent=5 // pred_fallthru
      _
    %p249 = scmp.le.s32.totalorder 1, %s11
    %p250 = scmp.lt.s32.totalorder %s11, 3
    %p251 = pnand %p249, %p250
    %p252 = pneg %p251
    // Predicated region
    $region37: #{generator_forward.22} parent=5 // pred_check
      _
    $region38: #{generator_forward.22} parent=5 // pred_check_branch
      %254 = sbr.rel (%p251) target = $region40
    $region39: #{generator_forward.22} parent=5 // pred_region
      %s255 = ssub.s32 %s11, 1
      %p256 = scmp.lt.s32.totalorder %s20, 1
      %s257 = scalar_select %p256, %s20, 1
      %p258 = scmp.lt.s32.totalorder %s21, 0
      %s259 = scalar_select %p258, %s21, 0
      %s260 = smul.addr %s257, 8
      %s261 = sadd.s32 %s259, %s260
      %s262 = smul.addr %s261, 8
      %s263 = scalar_lea.vmem %s0, %s262
      %p264 = pneg %p51
      %p265 = pneg %p48
      %p266 = scmp.lt.s32.totalorder %s20, 1
      %s267 = scalar_select %p266, %s20, 1
      %s268 = smul.addr %s267, 8
      %s269 = smul.addr %s268, 8
      %s270 = scalar_lea.vmem %s1, %s269
      %p271 = pneg %p77
      %p272 = pneg %p74
      %p273 = scmp.lt.s32.totalorder %s21, 0
      %s274 = scalar_select %p273, %s21, 0
      %s275 = scalar_lea.vmem %s2, %s274
      %p276 = pneg %p103
      %p277 = pneg %p100
      %p278 = scmp.lt.s32.totalorder %s20, 1
      %s279 = scalar_select %p278, %s20, 1
      %p280 = scmp.lt.s32.totalorder %s21, 0
      %s281 = scalar_select %p280, %s21, 0
      %s282 = sadd.s32 %s281, %s279
      %s283 = scalar_lea.vmem %s3, %s282
      %p284 = pneg %p131
      %p285 = pneg %p128
      %p286 = scmp.lt.s32.totalorder %s20, 1
      %s287 = scalar_select %p286, %s20, 1
      %p288 = scmp.lt.s32.totalorder %s21, 0
      %s289 = scalar_select %p288, %s21, 0
      %s290 = sadd.s32 %s289, %s287
      %s291 = scalar_lea.vmem %s4, %s290
      %p292 = pneg %p159
      %p293 = pneg %p156
      %p294 = pneg %p187
      %p295 = pneg %p184
      %p296 = scmp.lt.s32.totalorder %s20, 1
      %s297 = scalar_select %p296, %s20, 1
      %p298 = scmp.lt.s32.totalorder %s21, 0
      %s299 = scalar_select %p298, %s21, 0
      %s300 = smul.addr %s297, 8
      %s301 = sadd.s32 %s299, %s300
      %s302 = smul.addr %s301, 8
      %s303 = scalar_lea.vmem %s5, %s302
      %p304 = scmp.lt.s32.totalorder %s20, 1
      %s305 = scalar_select %p304, %s20, 1
      %p306 = scmp.lt.s32.totalorder %s21, 0
      %s307 = scalar_select %p306, %s21, 0
      %s308 = smul.addr %s305, 8
      %s309 = sadd.s32 %s307, %s308
      %s310 = smul.addr %s309, 8
      %s311 = scalar_lea.vmem %s0, %s310
      %p312 = scmp.lt.s32.totalorder %s20, 1
      %s313 = scalar_select %p312, %s20, 1
      %s314 = smul.addr %s313, 8
      %s315 = smul.addr %s314, 8
      %s316 = scalar_lea.vmem %s1, %s315
      %p317 = scmp.lt.s32.totalorder %s21, 0
      %s318 = scalar_select %p317, %s21, 0
      %s319 = scalar_lea.vmem %s2, %s318
      %p320 = scmp.lt.s32.totalorder %s20, 1
      %s321 = scalar_select %p320, %s20, 1
      %p322 = scmp.lt.s32.totalorder %s21, 0
      %s323 = scalar_select %p322, %s21, 0
      %s324 = sadd.s32 %s323, %s321
      %s325 = scalar_lea.vmem %s3, %s324
      %p326 = scmp.lt.s32.totalorder %s20, 1
      %s327 = scalar_select %p326, %s20, 1
      %p328 = scmp.lt.s32.totalorder %s21, 0
      %s329 = scalar_select %p328, %s21, 0
      %s330 = sadd.s32 %s329, %s327
      %s331 = scalar_lea.vmem %s4, %s330
      %p332 = scmp.lt.s32.totalorder %s20, 1
      %s333 = scalar_select %p332, %s20, 1
      %p334 = scmp.lt.s32.totalorder %s21, 0
      %s335 = scalar_select %p334, %s21, 0
      %s336 = smul.addr %s333, 8
      %s337 = sadd.s32 %s335, %s336
      %s338 = smul.addr %s337, 8
      %s339 = scalar_lea.vmem %s5, %s338
      %v340 = vld [vmem:[%s311] sm:$0xff]
      %v341 = vld [vmem:[%s311 + $0x8] sm:$0xff]
      %v342 = vld [vmem:[%s311 + $0x10] sm:$0xff]
      %v343 = vld [vmem:[%s311 + $0x18] sm:$0xff]
      %v344 = vld [vmem:[%s311 + $0x20] sm:$0xff]
      %v345 = vld [vmem:[%s311 + $0x28] sm:$0xff]
      %v346 = vld [vmem:[%s311 + $0x30] sm:$0xff]
      %v347 = vld [vmem:[%s311 + $0x38] sm:$0xff]
      %v348 = vld [vmem:[%s316] sm:$0xff]
      %v349 = vld [vmem:[%s316 + $0x8] sm:$0xff]
      %v350 = vld [vmem:[%s316 + $0x10] sm:$0xff]
      %v351 = vld [vmem:[%s316 + $0x18] sm:$0xff]
      %v352 = vld [vmem:[%s316 + $0x20] sm:$0xff]
      %v353 = vld [vmem:[%s316 + $0x28] sm:$0xff]
      %v354 = vld [vmem:[%s316 + $0x30] sm:$0xff]
      %v355 = vld [vmem:[%s316 + $0x38] sm:$0xff]
      %v356 = vld [vmem:[%s319] sm:$0x1]
      %358 = vset.pattern.permute.xlu0 0
      %359 = vperm.xlu0 %358, %v348
      %v360 = vpop.permute.xlu0 %359
      %363 = vset.pattern.permute.xlu0 0
      %364 = vperm.xlu0 %363, %v349
      %v365 = vpop.permute.xlu0 %364
      %368 = vset.pattern.permute.xlu0 0
      %369 = vperm.xlu0 %368, %v350
      %v370 = vpop.permute.xlu0 %369
      %373 = vset.pattern.permute.xlu0 0
      %374 = vperm.xlu0 %373, %v351
      %v375 = vpop.permute.xlu0 %374
      %378 = vset.pattern.permute.xlu0 0
      %379 = vperm.xlu0 %378, %v352
      %v380 = vpop.permute.xlu0 %379
      %383 = vset.pattern.permute.xlu0 0
      %384 = vperm.xlu0 %383, %v353
      %v385 = vpop.permute.xlu0 %384
      %388 = vset.pattern.permute.xlu0 0
      %389 = vperm.xlu0 %388, %v354
      %v390 = vpop.permute.xlu0 %389
      %393 = vset.pattern.permute.xlu0 0
      %394 = vperm.xlu0 %393, %v355
      %v395 = vpop.permute.xlu0 %394
      %v398 = vlaneseq
      %v399 = vshrl.u32 %v398, 7
      %v400 = vsub.s32 0, %v399
      %v401 = vrot.slane %v356, %v400
      %v403 = vmul.f32 %v360, %v401
      %v404 = vmul.f32 %v365, %v401
      %v405 = vmul.f32 %v370, %v401
      %v406 = vmul.f32 %v375, %v401
      %v407 = vmul.f32 %v380, %v401
      %v408 = vmul.f32 %v385, %v401
      %v409 = vmul.f32 %v390, %v401
      %v410 = vmul.f32 %v395, %v401
      %v411 = vadd.f32 %v340, %v403
      %v412 = vadd.f32 %v341, %v404
      %v413 = vadd.f32 %v342, %v405
      %v414 = vadd.f32 %v343, %v406
      %v415 = vadd.f32 %v344, %v407
      %v416 = vadd.f32 %v345, %v408
      %v417 = vadd.f32 %v346, %v409
      %v418 = vadd.f32 %v347, %v410
      %vm419 = vcmp.gt.f32.partialorder %v411, 0.0
      %vm420 = vcmp.gt.f32.partialorder %v412, 0.0
      %vm421 = vcmp.gt.f32.partialorder %v413, 0.0
      %vm422 = vcmp.gt.f32.partialorder %v414, 0.0
      %vm423 = vcmp.gt.f32.partialorder %v415, 0.0
      %vm424 = vcmp.gt.f32.partialorder %v416, 0.0
      %vm425 = vcmp.gt.f32.partialorder %v417, 0.0
      %vm426 = vcmp.gt.f32.partialorder %v418, 0.0
      %v427 = vmul.f32 %v411, 0.2
      %v428 = vmul.f32 %v412, 0.2
      %v429 = vmul.f32 %v413, 0.2
      %v430 = vmul.f32 %v414, 0.2
      %v431 = vmul.f32 %v415, 0.2
      %v432 = vmul.f32 %v416, 0.2
      %v433 = vmul.f32 %v417, 0.2
      %v434 = vmul.f32 %v418, 0.2
      %v435 = vsel %vm419, %v411, %v427
      %v436 = vsel %vm420, %v412, %v428
      %v437 = vsel %vm421, %v413, %v429
      %v438 = vsel %vm422, %v414, %v430
      %v439 = vsel %vm423, %v415, %v431
      %v440 = vsel %vm424, %v416, %v432
      %v441 = vsel %vm425, %v417, %v433
      %v442 = vsel %vm426, %v418, %v434
      %vm443 = vcmask 261120
      %v444 = vsel %vm443, %v435, 0.0
      %v445 = vsel %vm443, %v436, 0.0
      %v446 = vadd.f32 %v444, %v445
      %v447 = vsel %vm443, %v437, 0.0
      %v448 = vadd.f32 %v446, %v447
      %v449 = vsel %vm443, %v438, 0.0
      %v450 = vadd.f32 %v448, %v449
      %v451 = vsel %vm443, %v439, 0.0
      %v452 = vadd.f32 %v450, %v451
      %v453 = vsel %vm443, %v440, 0.0
      %v454 = vadd.f32 %v452, %v453
      %v455 = vsel %vm443, %v441, 0.0
      %v456 = vadd.f32 %v454, %v455
      %v457 = vsel %vm443, %v442, 0.0
      %v458 = vadd.f32 %v456, %v457
      %v459 = vrot.slane %v458, 4
      %v460 = vadd.f32 %v458, %v459
      %v461 = vrot.slane %v460, 2
      %v462 = vadd.f32 %v460, %v461
      %v463 = vrot.slane %v462, 1
      %v464 = vadd.f32 %v462, %v463
      %v465 = vrcp.pop 64.0
      %v466 = vmul.f32 %v464, %v465
      %v467 = vsub.f32 %v435, %v466
      %v468 = vsub.f32 %v436, %v466
      %v469 = vsub.f32 %v437, %v466
      %v470 = vsub.f32 %v438, %v466
      %v471 = vsub.f32 %v439, %v466
      %v472 = vsub.f32 %v440, %v466
      %v473 = vsub.f32 %v441, %v466
      %v474 = vsub.f32 %v442, %v466
      %v475 = vmul.f32 %v467, %v467
      %v476 = vmul.f32 %v468, %v468
      %v477 = vmul.f32 %v469, %v469
      %v478 = vmul.f32 %v470, %v470
      %v479 = vmul.f32 %v471, %v471
      %v480 = vmul.f32 %v472, %v472
      %v481 = vmul.f32 %v473, %v473
      %v482 = vmul.f32 %v474, %v474
      %v483 = vsel %vm443, %v475, 0.0
      %v484 = vsel %vm443, %v476, 0.0
      %v485 = vadd.f32 %v483, %v484
      %v486 = vsel %vm443, %v477, 0.0
      %v487 = vadd.f32 %v485, %v486
      %v488 = vsel %vm443, %v478, 0.0
      %v489 = vadd.f32 %v487, %v488
      %v490 = vsel %vm443, %v479, 0.0
      %v491 = vadd.f32 %v489, %v490
      %v492 = vsel %vm443, %v480, 0.0
      %v493 = vadd.f32 %v491, %v492
      %v494 = vsel %vm443, %v481, 0.0
      %v495 = vadd.f32 %v493, %v494
      %v496 = vsel %vm443, %v482, 0.0
      %v497 = vadd.f32 %v495, %v496
      %v498 = vrot.slane %v497, 4
      %v499 = vadd.f32 %v497, %v498
      %v500 = vrot.slane %v499, 2
      %v501 = vadd.f32 %v499, %v500
      %v502 = vrot.slane %v501, 1
      %v503 = vadd.f32 %v501, %v502
      %v504 = vmul.f32 %v503, %v465
      %v505 = vadd.f32 %v504, 1e-05
      %v506 = vrsqrt.pop %v505
      %v507 = vmul.f32 %v467, %v506
      %v508 = vmul.f32 %v468, %v506
      %v509 = vmul.f32 %v469, %v506
      %v510 = vmul.f32 %v470, %v506
      %v511 = vmul.f32 %v471, %v506
      %v512 = vmul.f32 %v472, %v506
      %v513 = vmul.f32 %v473, %v506
      %v514 = vmul.f32 %v474, %v506
      %v515 = vld [vmem:[%s325] sm:$0x1]
      %v517 = vlaneseq
      %v518 = vshrl.u32 %v517, 7
      %v519 = vsub.s32 0, %v518
      %v520 = vrot.slane %v515, %v519
      %v522 = vmul.f32 %v507, %v520
      %v523 = vmul.f32 %v508, %v520
      %v524 = vmul.f32 %v509, %v520
      %v525 = vmul.f32 %v510, %v520
      %v526 = vmul.f32 %v511, %v520
      %v527 = vmul.f32 %v512, %v520
      %v528 = vmul.f32 %v513, %v520
      %v529 = vmul.f32 %v514, %v520
      %v530 = vld [vmem:[%s331] sm:$0x1]
      %v532 = vlaneseq
      %v533 = vshrl.u32 %v532, 7
      %v534 = vsub.s32 0, %v533
      %v535 = vrot.slane %v530, %v534
      %v537 = vadd.f32 %v522, %v535
      %v538 = vadd.f32 %v523, %v535
      %v539 = vadd.f32 %v524, %v535
      %v540 = vadd.f32 %v525, %v535
      %v541 = vadd.f32 %v526, %v535
      %v542 = vadd.f32 %v527, %v535
      %v543 = vadd.f32 %v528, %v535
      %v544 = vadd.f32 %v529, %v535
      %545 = vst.msk [vmem:[%s339] sm:$0xff] %vm443, %v537
      %546 = vst.msk [vmem:[%s339 + $0x8] sm:$0xff] %vm443, %v538
      %547 = vst.msk [vmem:[%s339 + $0x10] sm:$0xff] %vm443, %v539
      %548 = vst.msk [vmem:[%s339 + $0x18] sm:$0xff] %vm443, %v540
      %549 = vst.msk [vmem:[%s339 + $0x20] sm:$0xff] %vm443, %v541
      %550 = vst.msk [vmem:[%s339 + $0x28] sm:$0xff] %vm443, %v542
      %551 = vst.msk [vmem:[%s339 + $0x30] sm:$0xff] %vm443, %v543
      %552 = vst.msk [vmem:[%s339 + $0x38] sm:$0xff] %vm443, %v544
      %p553 = scmp.lt.s32.totalorder %s20, 1
      %s554 = scalar_select %p553, %s20, 1
      %p555 = scmp.lt.s32.totalorder %s21, 0
      %s556 = scalar_select %p555, %s21, 0
      %s557 = smul.addr %s554, 8
      %s558 = sadd.s32 %s556, %s557
      %s559 = smul.addr %s558, 8
      %s560 = scalar_lea.vmem %s5, %s559
      // Predicated region
      $region41: #{generator_forward.22} parent=39 // pred_check
        %p561 = pneg %p184
      $region42: #{generator_forward.22} parent=39 // pred_check_branch
        %563 = sbr.rel (%p561) target = $region44
      $region43: #{generator_forward.22} parent=39 // pred_region
        _
      $region44: #{generator_forward.22} parent=39 // pred_fallthru
        _
    $region40: #{generator_forward.22} parent=5 // pred_fallthru
      _
    %p564 = scmp.le.s32.totalorder 2, %s11
    // Predicated region
    $region45: #{generator_forward.22} parent=5 // pred_check
      %p565 = pneg %p564
    $region46: #{generator_forward.22} parent=5 // pred_check_branch
      %567 = sbr.rel (%p565) target = $region48
    $region47: #{generator_forward.22} parent=5 // pred_region
      %s568 = ssub.s32 %s11, 2
      // Predicated region
      $region49: #{generator_forward.22} parent=47 // pred_check
        %p569 = pneg %p190
      $region50: #{generator_forward.22} parent=47 // pred_check_branch
        %571 = sbr.rel (%p569) target = $region52
      $region51: #{generator_forward.22} parent=47 // pred_region
        %p572 = scmp.lt.s32.totalorder %s22, 1
        %s573 = scalar_select %p572, %s22, 1
        %p574 = scmp.lt.s32.totalorder %s23, 0
        %s575 = scalar_select %p574, %s23, 0
        %s576 = smul.addr %s573, 8
        %s577 = sadd.s32 %s575, %s576
        %s578 = smul.addr %s577, 8
        %s579 = scalar_lea.vmem %s5, %s578
      $region52: #{generator_forward.22} parent=47 // pred_fallthru
        _
    $region48: #{generator_forward.22} parent=5 // pred_fallthru
      _
  $region6: #{generator_forward.22} parent=0 // loop_footer
    %s15 = sadd.s32 1, %s11
  $region7: #{generator_forward.22} parent=0 // loop_footer_branch
    %10 = sbr.rel target = $region3
  $region8: #{generator_forward.22} parent=0 // loop_exit
    _

// kernel: generator_forward.25
$region0: #{generator_forward.25}
  #allocation0 [shape = 'u32[]', space=smem, size = 0x4, offset = 0x4, fixed_abs, tag = 'smem constant byte address 0x4 - core index']
  #allocation1 [shape = 'u32[144,128]{1,0:T(1,128)}', space=vmem, size = 0x12000, scoped, tag = 'internal scratch']
  %s0 = inlined_call_operand.vmem [shape: bf16[2,18,18,32], index: 0, kind: input, shape index: {}, may-alias: {0,1,2}]
  %s1 = inlined_call_operand.vmem [shape: bf16[2,18,18,32], index: 1, kind: input, shape index: {}, may-alias: {0,1,2}]
  %s2 = inlined_call_operand.vmem [shape: bf16[2,18,18,32], index: 2, kind: input, shape index: {}, may-alias: {0,1,2}]
  %s3 = inlined_call_operand.vmem [shape: bf16[3,3,32,32], index: 3, kind: input, shape index: {}]
  %s4 = inlined_call_operand.vmem [shape: f32[1,32], index: 4, kind: input, shape index: {}]
  %s5 = inlined_call_operand.vmem [shape: f32[2,16,16,32], index: 5, kind: output, shape index: {}]
  %s6 = sld [smem:[#allocation0]]
  $region53: #{generator_forward.25} parent=0
    _
  %s8 = ssub.s32 1, %s6
  %s9 = scalar_select 0, %s8, %s6
  loop: start=0, step=1, limit=34
  $region2: #{generator_forward.25} parent=0 // loop_pre_header
    _
  $region3: #{generator_forward.25} parent=0 // loop_header
    %s11 = sphi 0, %s15
    %p12 = scmp.ge.s32.totalorder %s11, 34
    %s18 = sphi 0, %s30
    %s19 = sphi 0, %s26
    %s20 = sphi 0, %s18
    %s21 = sphi 0, %s19
    %s22 = sphi 0, %s20
    %s23 = sphi 0, %s21
    %s35 = sphi 0, %s37
    %s38 = sphi 0, %s35
    %s39 = sphi 0, %s38
    %s55 = sphi 0, %s39
    %s65 = sphi 0, %s67
    %s68 = sphi 0, %s65
    %s69 = sphi 0, %s68
    %s85 = sphi 0, %s69
    %s95 = sphi 0, %s97
    %s98 = sphi 0, %s95
    %s99 = sphi 0, %s98
    %s115 = sphi 0, %s99
    %s119 = sphi 0, %s119
    %s121 = sphi 0, %s119
    %s122 = sphi 0, %s121
    %s136 = sphi 0, %s122
    %s140 = sphi 0, %s140
    %s142 = sphi 0, %s140
    %s143 = sphi 0, %s142
    %s157 = sphi 0, %s143
    %s165 = sphi 0, %s167
    %s168 = sphi 0, %s165
    %s169 = sphi 0, %s168
    %s185 = sphi 0, %s169
  $region4: #{generator_forward.25} parent=0 // loop_header_branch
    %14 = sbr.rel (%p12) target = $region8
  $region5: #{generator_forward.25} parent=0 // loop_body
    %s16 = ssub.s32 %s11, 1
    %s17 = ssub.s32 %s11, 2
    %s24 = sadd.s32 1, %s19
    %p25 = scmp.ge.s32.totalorder %s24, 16
    %s26 = scalar_select %p25, 0, %s24
    %s27 = sadd.s32 1, %s18
    %s28 = scalar_select %p25, %s27, %s18
    %p29 = scmp.ge.s32.totalorder %s28, 2
    %s30 = scalar_select %p29, 0, %s28
    %s31 = ssub.s32 %s18, %s30
    %s32 = ssub.s32 %s19, %s26
    %s33 = sor.u32 %s31, %s32
    %p34 = scmp.eq.s32.totalorder %s33, 0
    %s36 = sadd.s32 %s35, 1
    %s37 = scalar_select %p34, %s35, %s36
    %p40 = pneg %p34
    %p41 = scmp.eq.s32.totalorder %s11, 31
    %p42 = por %p40, %p41
    %p43 = scmp.ne.s32.totalorder %s35, %s38
    %p44 = scmp.eq.s32.totalorder %s11, 0
    %p45 = por %p43, %p44
    %p46 = scmp.ne.s32.totalorder %s35, %s38
    %p47 = scmp.eq.s32.totalorder %s16, 31
    %p48 = por %p46, %p47
    %p49 = scmp.ne.s32.totalorder %s38, %s39
    %p50 = scmp.eq.s32.totalorder %s16, 0
    %p51 = por %p49, %p50
    %p52 = scmp.ne.s32.totalorder %s38, %s39
    %p53 = scmp.eq.s32.totalorder %s17, 31
    %p54 = por %p52, %p53
    %p56 = scmp.ne.s32.totalorder %s39, %s55
    %p57 = scmp.eq.s32.totalorder %s17, 0
    %p58 = por %p56, %p57
    %s59 = sadd.s32 %s19, 1
    %s60 = sadd.s32 %s26, 1
    %s61 = ssub.s32 %s18, %s30
    %s62 = ssub.s32 %s59, %s60
    %s63 = sor.u32 %s61, %s62
    %p64 = scmp.eq.s32.totalorder %s63, 0
    %s66 = sadd.s32 %s65, 1
    %s67 = scalar_select %p64, %s65, %s66
    %p70 = pneg %p64
    %p71 = scmp.eq.s32.totalorder %s11, 31
    %p72 = por %p70, %p71
    %p73 = scmp.ne.s32.totalorder %s65, %s68
    %p74 = scmp.eq.s32.totalorder %s11, 0
    %p75 = por %p73, %p74
    %p76 = scmp.ne.s32.totalorder %s65, %s68
    %p77 = scmp.eq.s32.totalorder %s16, 31
    %p78 = por %p76, %p77
    %p79 = scmp.ne.s32.totalorder %s68, %s69
    %p80 = scmp.eq.s32.totalorder %s16, 0
    %p81 = por %p79, %p80
    %p82 = scmp.ne.s32.totalorder %s68, %s69
    %p83 = scmp.eq.s32.totalorder %s17, 31
    %p84 = por %p82, %p83
    %p86 = scmp.ne.s32.totalorder %s69, %s85
    %p87 = scmp.eq.s32.totalorder %s17, 0
    %p88 = por %p86, %p87
    %s89 = sadd.s32 %s19, 2
    %s90 = sadd.s32 %s26, 2
    %s91 = ssub.s32 %s18, %s30
    %s92 = ssub.s32 %s89, %s90
    %s93 = sor.u32 %s91, %s92
    %p94 = scmp.eq.s32.totalorder %s93, 0
    %s96 = sadd.s32 %s95, 1
    %s97 = scalar_select %p94, %s95, %s96
    %p100 = pneg %p94
    %p101 = scmp.eq.s32.totalorder %s11, 31
    %p102 = por %p100, %p101
    %p103 = scmp.ne.s32.totalorder %s95, %s98
    %p104 = scmp.eq.s32.totalorder %s11, 0
    %p105 = por %p103, %p104
    %p106 = scmp.ne.s32.totalorder %s95, %s98
    %p107 = scmp.eq.s32.totalorder %s16, 31
    %p108 = por %p106, %p107
    %p109 = scmp.ne.s32.totalorder %s98, %s99
    %p110 = scmp.eq.s32.totalorder %s16, 0
    %p111 = por %p109, %p110
    %p112 = scmp.ne.s32.totalorder %s98, %s99
    %p113 = scmp.eq.s32.totalorder %s17, 31
    %p114 = por %p112, %p113
    %p116 = scmp.ne.s32.totalorder %s99, %s115
    %p117 = scmp.eq.s32.totalorder %s17, 0
    %p118 = por %p116, %p117
    %s120 = sadd.s32 %s119, 1
    %p123 = scmp.eq.s32.totalorder %s11, 31
    %p124 = scmp.ne.s32.totalorder %s119, %s121
    %p125 = scmp.eq.s32.totalorder %s11, 0
    %p126 = por %p124, %p125
    %p127 = scmp.ne.s32.totalorder %s119, %s121
    %p128 = scmp.eq.s32.totalorder %s16, 31
    %p129 = por %p127, %p128
    %p130 = scmp.ne.s32.totalorder %s121, %s122
    %p131 = scmp.eq.s32.totalorder %s16, 0
    %p132 = por %p130, %p131
    %p133 = scmp.ne.s32.totalorder %s121, %s122
    %p134 = scmp.eq.s32.totalorder %s17, 31
    %p135 = por %p133, %p134
    %p137 = scmp.ne.s32.totalorder %s122, %s136
    %p138 = scmp.eq.s32.totalorder %s17, 0
    %p139 = por %p137, %p138
    %s141 = sadd.s32 %s140, 1
    %p144 = scmp.eq.s32.totalorder %s11, 31
    %p145 = scmp.ne.s32.totalorder %s140, %s142
    %p146 = scmp.eq.s32.totalorder %s11, 0
    %p147 = por %p145, %p146
    %p148 = scmp.ne.s32.totalorder %s140, %s142
    %p149 = scmp.eq.s32.totalorder %s16, 31
    %p150 = por %p148, %p149
    %p151 = scmp.ne.s32.totalorder %s142, %s143
    %p152 = scmp.eq.s32.totalorder %s16, 0
    %p153 = por %p151, %p152
    %p154 = scmp.ne.s32.totalorder %s142, %s143
    %p155 = scmp.eq.s32.totalorder %s17, 31
    %p156 = por %p154, %p155
    %p158 = scmp.ne.s32.totalorder %s143, %s157
    %p159 = scmp.eq.s32.totalorder %s17, 0
    %p160 = por %p158, %p159
    %s161 = ssub.s32 %s18, %s30
    %s162 = ssub.s32 %s19, %s26
    %s163 = sor.u32 %s161, %s162
    %p164 = scmp.eq.s32.totalorder %s163, 0
    %s166 = sadd.s32 %s165, 1
    %s167 = scalar_select %p164, %s165, %s166
    %p170 = pneg %p164
    %p171 = scmp.eq.s32.totalorder %s11, 31
    %p172 = por %p170, %p171
    %p173 = scmp.ne.s32.totalorder %s165, %s168
    %p174 = scmp.eq.s32.totalorder %s11, 0
    %p175 = por %p173, %p174
    %p176 = scmp.ne.s32.totalorder %s165, %s168
    %p177 = scmp.eq.s32.totalorder %s16, 31
    %p178 = por %p176, %p177
    %p179 = scmp.ne.s32.totalorder %s168, %s169
    %p180 = scmp.eq.s32.totalorder %s16, 0
    %p181 = por %p179, %p180
    %p182 = scmp.ne.s32.totalorder %s168, %s169
    %p183 = scmp.eq.s32.totalorder %s17, 31
    %p184 = por %p182, %p183
    %p186 = scmp.ne.s32.totalorder %s169, %s185
    %p187 = scmp.eq.s32.totalorder %s17, 0
    %p188 = por %p186, %p187
    %p189 = scmp.le.s32.totalorder 1, %s11
    %p190 = scmp.lt.s32.totalorder %s11, 33
    %p191 = pnand %p189, %p190
    %p192 = pneg %p191
    // Predicated region
    $region9: #{generator_forward.25} parent=5 // pred_check
      _
    $region10: #{generator_forward.25} parent=5 // pred_check_branch
      %194 = sbr.rel (%p191) target = $region12
    $region11: #{generator_forward.25} parent=5 // pred_region
      %s195 = ssub.s32 %s11, 1
      // Predicated region
      $region13: #{generator_forward.25} parent=11 // pred_check
        %p196 = pneg %p132
      $region14: #{generator_forward.25} parent=11 // pred_check_branch
        %198 = sbr.rel (%p196) target = $region16
      $region15: #{generator_forward.25} parent=11 // pred_region
        _
      $region16: #{generator_forward.25} parent=11 // pred_fallthru
        _
      // Predicated region
      $region17: #{generator_forward.25} parent=11 // pred_check
        %p199 = pneg %p153
      $region18: #{generator_forward.25} parent=11 // pred_check_branch
        %201 = sbr.rel (%p199) target = $region20
      $region19: #{generator_forward.25} parent=11 // pred_region
        _
      $region20: #{generator_forward.25} parent=11 // pred_fallthru
        _
    $region12: #{generator_forward.25} parent=5 // pred_fallthru
      _
    %p202 = scmp.lt.s32.totalorder %s11, 32
    // Predicated region
    $region21: #{generator_forward.25} parent=5 // pred_check
      %p203 = pneg %p202
    $region22: #{generator_forward.25} parent=5 // pred_check_branch
      %205 = sbr.rel (%p203) target = $region24
    $region23: #{generator_forward.25} parent=5 // pred_region
      // Predicated region
      $region25: #{generator_forward.25} parent=23 // pred_check
        %p206 = pneg %p45
      $region26: #{generator_forward.25} parent=23 // pred_check_branch
        %208 = sbr.rel (%p206) target = $region28
      $region27: #{generator_forward.25} parent=23 // pred_region
        %p209 = scmp.lt.s32.totalorder %s18, 1
        %s210 = scalar_select %p209, %s18, 1
        %p211 = scmp.lt.s32.totalorder %s19, 17
        %s212 = scalar_select %p211, %s19, 17
        %s213 = smul.addr %s212, 3
        %s214 = smul.addr %s210, 54
        %s215 = sadd.s32 %s213, %s214
        %s216 = smul.addr %s215, 4
        %s217 = scalar_lea.vmem %s0, %s216
      $region28: #{generator_forward.25} parent=23 // pred_fallthru
        _
      // Predicated region
      $region29: #{generator_forward.25} parent=23 // pred_check
        %p218 = pneg %p75
      $region30: #{generator_forward.25} parent=23 // pred_check_branch
        %220 = sbr.rel (%p218) target = $region32
      $region31: #{generator_forward.25} parent=23 // pred_region
        %s221 = sadd.s32 %s19, 1
        %p222 = scmp.lt.s32.totalorder %s18, 1
        %s223 = scalar_select %p222, %s18, 1
        %p224 = scmp.lt.s32.totalorder %s221, 17
        %s225 = scalar_select %p224, %s221, 17
        %s226 = smul.addr %s225, 3
        %s227 = smul.addr %s223, 54
        %s228 = sadd.s32 %s226, %s227
        %s229 = smul.addr %s228, 4
        %s230 = scalar_lea.vmem %s1, %s229
        %s231 = sadd.s32 %s19, 1
      $region32: #{generator_forward.25} parent=23 // pred_fallthru
        _
      // Predicated region
      $region33: #{generator_forward.25} parent=23 // pred_check
        %p232 = pneg %p105
      $region34: #{generator_forward.25} parent=23 // pred_check_branch
        %234 = sbr.rel (%p232) target = $region36
      $region35: #{generator_forward.25} parent=23 // pred_region
        %s235 = sadd.s32 %s19, 2
        %p236 = scmp.lt.s32.totalorder %s18, 1
        %s237 = scalar_select %p236, %s18, 1
        %p238 = scmp.lt.s32.totalorder %s235, 17
        %s239 = scalar_select %p238, %s235, 17
        %s240 = smul.addr %s239, 3
        %s241 = smul.addr %s237, 54
        %s242 = sadd.s32 %s240, %s241
        %s243 = smul.addr %s242, 4
        %s244 = scalar_lea.vmem %s2, %s243
        %s245 = sadd.s32 %s19, 2
      $region36: #{generator_forward.25} parent=23 // pred_fallthru
        _
    $region24: #{generator_forward.25} parent=5 // pred_fallthru
      _
    %p246 = scmp.le.s32.totalorder 1, %s11
    %p247 = scmp.lt.s32.totalorder %s11, 33
    %p248 = pnand %p246, %p247
    %p249 = pneg %p248
    // Predicated region
    $region37: #{generator_forward.25} parent=5 // pred_check
      _
    $region38: #{generator_forward.25} parent=5 // pred_check_branch
      %251 = sbr.rel (%p248) target = $region40
    $region39: #{generator_forward.25} parent=5 // pred_region
      %s252 = ssub.s32 %s11, 1
      %p253 = scmp.lt.s32.totalorder %s20, 1
      %s254 = scalar_select %p253, %s20, 1
      %p255 = scmp.lt.s32.totalorder %s21, 17
      %s256 = scalar_select %p255, %s21, 17
      %s257 = smul.addr %s256, 3
      %s258 = smul.addr %s254, 54
      %s259 = sadd.s32 %s257, %s258
      %s260 = smul.addr %s259, 4
      %s261 = scalar_lea.vmem %s0, %s260
      %p262 = pneg %p51
      %p263 = pneg %p48
      %s264 = sadd.s32 %s21, 1
      %p265 = scmp.lt.s32.totalorder %s20, 1
      %s266 = scalar_select %p265, %s20, 1
      %p267 = scmp.lt.s32.totalorder %s264, 17
      %s268 = scalar_select %p267, %s264, 17
      %s269 = smul.addr %s268, 3
      %s270 = smul.addr %s266, 54
      %s271 = sadd.s32 %s269, %s270
      %s272 = smul.addr %s271, 4
      %s273 = scalar_lea.vmem %s1, %s272
      %p274 = pneg %p81
      %p275 = pneg %p78
      %s276 = sadd.s32 %s21, 2
      %p277 = scmp.lt.s32.totalorder %s20, 1
      %s278 = scalar_select %p277, %s20, 1
      %p279 = scmp.lt.s32.totalorder %s276, 17
      %s280 = scalar_select %p279, %s276, 17
      %s281 = smul.addr %s280, 3
      %s282 = smul.addr %s278, 54
      %s283 = sadd.s32 %s281, %s282
      %s284 = smul.addr %s283, 4
      %s285 = scalar_lea.vmem %s2, %s284
      %p286 = pneg %p111
      %p287 = pneg %p108
      %p288 = pneg %p132
      %p289 = pneg %p129
      %p290 = pneg %p153
      %p291 = pneg %p150
      %p292 = pneg %p181
      %p293 = pneg %p178
      %p294 = scmp.lt.s32.totalorder %s20, 1
      %s295 = scalar_select %p294, %s20, 1
      %p296 = scmp.lt.s32.totalorder %s21, 15
      %s297 = scalar_select %p296, %s21, 15
      %s298 = smul.addr %s297, 2
      %s299 = smul.addr %s295, 32
      %s300 = sadd.s32 %s298, %s299
      %s301 = smul.addr %s300, 8
      %s302 = scalar_lea.vmem %s5, %s301
      %p303 = scmp.lt.s32.totalorder %s20, 1
      %s304 = scalar_select %p303, %s20, 1
      %p305 = scmp.lt.s32.totalorder %s21, 17
      %s306 = scalar_select %p305, %s21, 17
      %s307 = smul.addr %s306, 3
      %s308 = smul.addr %s304, 54
      %s309 = sadd.s32 %s307, %s308
      %s310 = smul.addr %s309, 4
      %s311 = scalar_lea.vmem %s0, %s310
      %s312 = sadd.s32 %s21, 1
      %p313 = scmp.lt.s32.totalorder %s20, 1
      %s314 = scalar_select %p313, %s20, 1
      %p315 = scmp.lt.s32.totalorder %s312, 17
      %s316 = scalar_select %p315, %s312, 17
      %s317 = smul.addr %s316, 3
      %s318 = smul.addr %s314, 54
      %s319 = sadd.s32 %s317, %s318
      %s320 = smul.addr %s319, 4
      %s321 = scalar_lea.vmem %s1, %s320
      %s322 = sadd.s32 %s21, 1
      %s323 = sadd.s32 %s21, 2
      %p324 = scmp.lt.s32.totalorder %s20, 1
      %s325 = scalar_select %p324, %s20, 1
      %p326 = scmp.lt.s32.totalorder %s323, 17
      %s327 = scalar_select %p326, %s323, 17
      %s328 = smul.addr %s327, 3
      %s329 = smul.addr %s325, 54
      %s330 = sadd.s32 %s328, %s329
      %s331 = smul.addr %s330, 4
      %s332 = scalar_lea.vmem %s2, %s331
      %s333 = sadd.s32 %s21, 2
      %p334 = scmp.lt.s32.totalorder %s20, 1
      %s335 = scalar_select %p334, %s20, 1
      %p336 = scmp.lt.s32.totalorder %s21, 15
      %s337 = scalar_select %p336, %s21, 15
      %s338 = smul.addr %s337, 2
      %s339 = smul.addr %s335, 32
      %s340 = sadd.s32 %s338, %s339
      %s341 = smul.addr %s340, 8
      %s342 = scalar_lea.vmem %s5, %s341
      %v344 = vld [vmem:[%s311] sm:$0xf]
      %v345 = vld [vmem:[%s311 + $0x4] sm:$0xf]
      %v346 = vld [vmem:[%s311 + $0x8] sm:$0x1]
      %v347 = vld [vmem:[%s321] sm:$0xf]
      %v348 = vld [vmem:[%s321 + $0x4] sm:$0xf]
      %v349 = vld [vmem:[%s321 + $0x8] sm:$0x1]
      %v350 = vld [vmem:[%s332] sm:$0xf]
      %v351 = vld [vmem:[%s332 + $0x4] sm:$0xf]
      %v352 = vld [vmem:[%s332 + $0x8] sm:$0x1]
      %v353 = vld [vmem:[%s3] sm:$0xf]
      %v354 = vld [vmem:[%s3 + $0x4] sm:$0xf]
      %v355 = vld [vmem:[%s3 + $0x8] sm:$0xf]
      %v356 = vld [vmem:[%s3 + $0xc] sm:$0xf]
      %v360 = vunpack.c.l.b16 %v344
      %v361 = vunpack.c.l.b16 %v345
      %v362 = vunpack.c.l.b16 %v346
      %v363 = vpack.c.b16 %v361, %v360
      %v364 = vpack.c.b16 %v362, %v362
      %v369 = vunpack.c.l.b16 %v353
      %v370 = vunpack.c.l.b16 %v354
      %v371 = vunpack.c.l.b16 %v355
      %v372 = vunpack.c.l.b16 %v356
      %v373 = vpack.c.b16 %v370, %v369
      %v374 = vpack.c.b16 %v372, %v371
      %vm377 = vcmask 261120
      %v379 = vsel %vm377, %v363, 0
      %v382 = vsel %vm377, %v364, 0
      %384 = vmatprep.subr.bf16.mxu0 0
      %385 = vmatpush1.bf16.msra.mxu0 0
      %386 = vmatprep.subr.bf16.mxu0 0
      %387 = vmatpush1.bf16.msra.mxu0 0
      %388 = vmatprep.subr.bf16.mxu0 0
      %389 = vmatpush1.bf16.msra.mxu0 0
      %390 = vmatprep.subr.bf16.mxu0 0
      %391 = vmatpush1.bf16.msra.mxu0 0
      %392 = vmatprep.subr.bf16.mxu0 0
      %393 = vmatpush1.bf16.msra.mxu0 0
      %394 = vmatprep.subr.bf16.mxu0 0
      %395 = vmatpush1.bf16.msra.mxu0 0
      %396 = vmatprep.subr.bf16.mxu0 0
      %397 = vmatpush1.bf16.msra.mxu0 %v374
      %398 = vmatprep.subr.bf16.mxu0 0
      %399 = vmatpush1.bf16.msra.mxu0 %v373
      %400 = vmatprep.subr.bf16.mxu0 0
      %401 = vmatpush2.bf16.msra.mxu0 0
      %402 = vmatprep.subr.bf16.mxu0 0
      %403 = vmatpush2.bf16.msra.mxu0 0
      %404 = vmatprep.subr.bf16.mxu0 0
      %405 = vmatpush2.bf16.msra.mxu0 0
      %406 = vmatprep.subr.bf16.mxu0 0
      %407 = vmatpush2.bf16.msra.mxu0 0
      %408 = vmatprep.subr.bf16.mxu0 0
      %409 = vmatpush2.bf16.msra.mxu0 0
      %410 = vmatprep.subr.bf16.mxu0 0
      %411 = vmatpush2.bf16.msra.mxu0 0
      %412 = vmatprep.subr.bf16.mxu0 0
      %413 = vmatpush2.bf16.msra.mxu0 0
      %414 = vmatprep.subr.bf16.mxu0 0
      %415 = vmatpush2.bf16.msra.mxu0 0
      %416 = vmatprep.mubr.bf16.mxu0 0
      %417 = vmatmul.mubr.bf16.gmra.mxu0 %v379
      %v418 = vpop.f32.mrf.mxu0
      %v419 = vadd.f32 0.0, %v418
      %v420 = vpop.f32.mrf.mxu0
      %v421 = vpop.f32.mrf.mxu0
      %v422 = vadd.f32 0.0, %v421
      %v423 = vpop.f32.mrf.mxu0
      %424 = vmatprep.mubr.bf16.mxu0 0
      %425 = vmatmul.mubr.bf16.gmra.mxu0 %v382
      %v426 = vpop.f32.mrf.mxu0
      %v427 = vpop.f32.mrf.mxu0
      %v428 = vpop.f32.mrf.mxu0
      %v429 = vpop.f32.mrf.mxu0
      %430 = vdwg.mxu0
      %v431 = vadd.f32 %v419, 0.0
      %v432 = vadd.f32 %v422, 0.0
      %s433 = scalar_lea.vmem %s3, 16
      %v434 = vld [vmem:[%s433] sm:$0xf]
      %v435 = vld [vmem:[%s433 + $0x4] sm:$0xf]
      %v436 = vld [vmem:[%s433 + $0x8] sm:$0xf]
      %v437 = vld [vmem:[%s433 + $0xc] sm:$0xf]
      %v442 = vunpack.c.l.b16 %v434
      %v443 = vunpack.c.l.b16 %v435
      %v444 = vunpack.c.l.b16 %v436
      %v445 = vunpack.c.l.b16 %v437
      %v446 = vpack.c.b16 %v443, %v442
      %v447 = vpack.c.b16 %v445, %v444
      %450 = vmatprep.subr.bf16.mxu0 0
      %451 = vmatpush1.bf16.msra.mxu0 0
      %452 = vmatprep.subr.bf16.mxu0 0
      %453 = vmatpush1.bf16.msra.mxu0 0
      %454 = vmatprep.subr.bf16.mxu0 0
      %455 = vmatpush1.bf16.msra.mxu0 0
      %456 = vmatprep.subr.bf16.mxu0 0
      %457 = vmatpush1.bf16.msra.mxu0 0
      %458 = vmatprep.subr.bf16.mxu0 0
      %459 = vmatpush1.bf16.msra.mxu0 0
      %460 = vmatprep.subr.bf16.mxu0 0
      %461 = vmatpush1.bf16.msra.mxu0 0
      %462 = vmatprep.subr.bf16.mxu0 0
      %463 = vmatpush1.bf16.msra.mxu0 %v447
      %464 = vmatprep.subr.bf16.mxu0 0
      %465 = vmatpush1.bf16.msra.mxu0 %v446
      %466 = vmatprep.subr.bf16.mxu0 0
      %467 = vmatpush2.bf16.msra.mxu0 0
      %468 = vmatprep.subr.bf16.mxu0 0
      %469 = vmatpush2.bf16.msra.mxu0 0
      %470 = vmatprep.subr.bf16.mxu0 0
      %471 = vmatpush2.bf16.msra.mxu0 0
      %472 = vmatprep.subr.bf16.mxu0 0
      %473 = vmatpush2.bf16.msra.mxu0 0
      %474 = vmatprep.subr.bf16.mxu0 0
      %475 = vmatpush2.bf16.msra.mxu0 0
      %476 = vmatprep.subr.bf16.mxu0 0
      %477 = vmatpush2.bf16.msra.mxu0 0
      %478 = vmatprep.subr.bf16.mxu0 0
      %479 = vmatpush2.bf16.msra.mxu0 0
      %480 = vmatprep.subr.bf16.mxu0 0
      %481 = vmatpush2.bf16.msra.mxu0 0
      %482 = vmatprep.mubr.bf16.mxu0 0
      %483 = vmatmul.mubr.bf16.gmra.mxu0 %v379
      %v484 = vpop.f32.mrf.mxu0
      %v485 = vadd.f32 0.0, %v484
      %v486 = vpop.f32.mrf.mxu0
      %v487 = vpop.f32.mrf.mxu0
      %v488 = vadd.f32 0.0, %v487
      %v489 = vpop.f32.mrf.mxu0
      %490 = vmatprep.mubr.bf16.mxu0 0
      %491 = vmatmul.mubr.bf16.gmra.mxu0 %v382
      %v492 = vpop.f32.mrf.mxu0
      %v493 = vadd.f32 0.0, %v492
      %v494 = vpop.f32.mrf.mxu0
      %v495 = vpop.f32.mrf.mxu0
      %v496 = vpop.f32.mrf.mxu0
      %497 = vdwg.mxu0
      %vm501 = vcmask 1046528
      %v502 = vrot.slane %v485, 1
      %v503 = vrot.slane %v488, 1
      %v504 = vsel %vm501, %v502, %v503
      %v505 = vrot.slane %v493, 1
      %v506 = vsel %vm501, %v503, %v505
      %v509 = vadd.f32 %v431, %v504
      %v510 = vadd.f32 %v432, %v506
      %s511 = scalar_lea.vmem %s3, 32
      %v512 = vld [vmem:[%s511] sm:$0xf]
      %v513 = vld [vmem:[%s511 + $0x4] sm:$0xf]
      %v514 = vld [vmem:[%s511 + $0x8] sm:$0xf]
      %v515 = vld [vmem:[%s511 + $0xc] sm:$0xf]
      %v520 = vunpack.c.l.b16 %v512
      %v521 = vunpack.c.l.b16 %v513
      %v522 = vunpack.c.l.b16 %v514
      %v523 = vunpack.c.l.b16 %v515
      %v524 = vpack.c.b16 %v521, %v520
      %v525 = vpack.c.b16 %v523, %v522
      %528 = vmatprep.subr.bf16.mxu0 0
      %529 = vmatpush1.bf16.msra.mxu0 0
      %530 = vmatprep.subr.bf16.mxu0 0
      %531 = vmatpush1.bf16.msra.mxu0 0
      %532 = vmatprep.subr.bf16.mxu0 0
      %533 = vmatpush1.bf16.msra.mxu0 0
      %534 = vmatprep.subr.bf16.mxu0 0
      %535 = vmatpush1.bf16.msra.mxu0 0
      %536 = vmatprep.subr.bf16.mxu0 0
      %537 = vmatpush1.bf16.msra.mxu0 0
      %538 = vmatprep.subr.bf16.mxu0 0
      %539 = vmatpush1.bf16.msra.mxu0 0
      %540 = vmatprep.subr.bf16.mxu0 0
      %541 = vmatpush1.bf16.msra.mxu0 %v525
      %542 = vmatprep.subr.bf16.mxu0 0
      %543 = vmatpush1.bf16.msra.mxu0 %v524
      %544 = vmatprep.subr.bf16.mxu0 0
      %545 = vmatpush2.bf16.msra.mxu0 0
      %546 = vmatprep.subr.bf16.mxu0 0
      %547 = vmatpush2.bf16.msra.mxu0 0
      %548 = vmatprep.subr.bf16.mxu0 0
      %549 = vmatpush2.bf16.msra.mxu0 0
      %550 = vmatprep.subr.bf16.mxu0 0
      %551 = vmatpush2.bf16.msra.mxu0 0
      %552 = vmatprep.subr.bf16.mxu0 0
      %553 = vmatpush2.bf16.msra.mxu0 0
      %554 = vmatprep.subr.bf16.mxu0 0
      %555 = vmatpush2.bf16.msra.mxu0 0
      %556 = vmatprep.subr.bf16.mxu0 0
      %557 = vmatpush2.bf16.msra.mxu0 0
      %558 = vmatprep.subr.bf16.mxu0 0
      %559 = vmatpush2.bf16.msra.mxu0 0
      %560 = vmatprep.mubr.bf16.mxu0 0
      %561 = vmatmul.mubr.bf16.gmra.mxu0 %v379
      %v562 = vpop.f32.mrf.mxu0
      %v563 = vadd.f32 0.0, %v562
      %v564 = vpop.f32.mrf.mxu0
      %v565 = vpop.f32.mrf.mxu0
      %v566 = vadd.f32 0.0, %v565
      %v567 = vpop.f32.mrf.mxu0
      %568 = vmatprep.mubr.bf16.mxu0 0
      %569 = vmatmul.mubr.bf16.gmra.mxu0 %v382
      %v570 = vpop.f32.mrf.mxu0
      %v571 = vadd.f32 0.0, %v570
      %v572 = vpop.f32.mrf.mxu0
      %v573 = vpop.f32.mrf.mxu0
      %v574 = vpop.f32.mrf.mxu0
      %575 = vdwg.mxu0
      %vm579 = vcmask 1045504
      %v580 = vrot.slane %v563, 2
      %v581 = vrot.slane %v566, 2
      %v582 = vsel %vm579, %v580, %v581
      %v583 = vrot.slane %v571, 2
      %v584 = vsel %vm579, %v581, %v583
      %v587 = vadd.f32 %v509, %v582
      %v588 = vadd.f32 %v510, %v584
      %s589 = scalar_lea.vmem %s3, 48
      %v590 = vld [vmem:[%s589] sm:$0xf]
      %v591 = vld [vmem:[%s589 + $0x4] sm:$0xf]
      %v592 = vld [vmem:[%s589 + $0x8] sm:$0xf]
      %v593 = vld [vmem:[%s589 + $0xc] sm:$0xf]
      %v597 = vunpack.c.l.b16 %v347
      %v598 = vunpack.c.l.b16 %v348
      %v599 = vunpack.c.l.b16 %v349
      %v600 = vpack.c.b16 %v598, %v597
      %v601 = vpack.c.b16 %v599, %v599
      %v606 = vunpack.c.l.b16 %v590
      %v607 = vunpack.c.l.b16 %v591
      %v608 = vunpack.c.l.b16 %v592
      %v609 = vunpack.c.l.b16 %v593
      %v610 = vpack.c.b16 %v607, %v606
      %v611 = vpack.c.b16 %v609, %v608
      %v615 = vsel %vm377, %v600, 0
      %v618 = vsel %vm377, %v601, 0
      %620 = vmatprep.subr.bf16.mxu0 0
      %621 = vmatpush1.bf16.msra.mxu0 0
      %622 = vmatprep.subr.bf16.mxu0 0
      %623 = vmatpush1.bf16.msra.mxu0 0
      %624 = vmatprep.subr.bf16.mxu0 0
      %625 = vmatpush1.bf16.msra.mxu0 0
      %626 = vmatprep.subr.bf16.mxu0 0
      %627 = vmatpush1.bf16.msra.mxu0 0
      %628 = vmatprep.subr.bf16.mxu0 0
      %629 = vmatpush1.bf16.msra.mxu0 0
      %630 = vmatprep.subr.bf16.mxu0 0
      %631 = vmatpush1.bf16.msra.mxu0 0
      %632 = vmatprep.subr.bf16.mxu0 0
      %633 = vmatpush1.bf16.msra.mxu0 %v611
      %634 = vmatprep.subr.bf16.mxu0 0
      %635 = vmatpush1.bf16.msra.mxu0 %v610
      %636 = vmatprep.subr.bf16.mxu0 0
      %637 = vmatpush2.bf16.msra.mxu0 0
      %638 = vmatprep.subr.bf16.mxu0 0
      %639 = vmatpush2.bf16.msra.mxu0 0
      %640 = vmatprep.subr.bf16.mxu0 0
      %641 = vmatpush2.bf16.msra.mxu0 0
      %642 = vmatprep.subr.bf16.mxu0 0
      %643 = vmatpush2.bf16.msra.mxu0 0
      %644 = vmatprep.subr.bf16.mxu0 0
      %645 = vmatpush2.bf16.msra.mxu0 0
      %646 = vmatprep.subr.bf16.mxu0 0
      %647 = vmatpush2.bf16.msra.mxu0 0
      %648 = vmatprep.subr.bf16.mxu0 0
      %649 = vmatpush2.bf16.msra.mxu0 0
      %650 = vmatprep.subr.bf16.mxu0 0
      %651 = vmatpush2.bf16.msra.mxu0 0
      %652 = vmatprep.mubr.bf16.mxu0 0
      %653 = vmatmul.mubr.bf16.gmra.mxu0 %v615
      %v654 = vpop.f32.mrf.mxu0
      %v655 = vadd.f32 0.0, %v654
      %v656 = vpop.f32.mrf.mxu0
      %v657 = vpop.f32.mrf.mxu0
      %v658 = vadd.f32 0.0, %v657
      %v659 = vpop.f32.mrf.mxu0
      %660 = vmatprep.mubr.bf16.mxu0 0
      %661 = vmatmul.mubr.bf16.gmra.mxu0 %v618
      %v662 = vpop.f32.mrf.mxu0
      %v663 = vpop.f32.mrf.mxu0
      %v664 = vpop.f32.mrf.mxu0
      %v665 = vpop.f32.mrf.mxu0
      %666 = vdwg.mxu0
      %v667 = vadd.f32 %v587, %v655
      %v668 = vadd.f32 %v588, %v658
      %s669 = scalar_lea.vmem %s3, 64
      %v670 = vld [vmem:[%s669] sm:$0xf]
      %v671 = vld [vmem:[%s669 + $0x4] sm:$0xf]
      %v672 = vld [vmem:[%s669 + $0x8] sm:$0xf]
      %v673 = vld [vmem:[%s669 + $0xc] sm:$0xf]
      %v678 = vunpack.c.l.b16 %v670
      %v679 = vunpack.c.l.b16 %v671
      %v680 = vunpack.c.l.b16 %v672
      %v681 = vunpack.c.l.b16 %v673
      %v682 = vpack.c.b16 %v679, %v678
      %v683 = vpack.c.b16 %v681, %v680
      %686 = vmatprep.subr.bf16.mxu0 0
      %687 = vmatpush1.bf16.msra.mxu0 0
      %688 = vmatprep.subr.bf16.mxu0 0
      %689 = vmatpush1.bf16.msra.mxu0 0
      %690 = vmatprep.subr.bf16.mxu0 0
      %691 = vmatpush1.bf16.msra.mxu0 0
      %692 = vmatprep.subr.bf16.mxu0 0
      %693 = vmatpush1.bf16.msra.mxu0 0
      %694 = vmatprep.subr.bf16.mxu0 0
      %695 = vmatpush1.bf16.msra.mxu0 0
      %696 = vmatprep.subr.bf16.mxu0 0
      %697 = vmatpush1.bf16.msra.mxu0 0
      %698 = vmatprep.subr.bf16.mxu0 0
      %699 = vmatpush1.bf16.msra.mxu0 %v683
      %700 = vmatprep.subr.bf16.mxu0 0
      %701 = vmatpush1.bf16.msra.mxu0 %v682
      %702 = vmatprep.subr.bf16.mxu0 0
      %703 = vmatpush2.bf16.msra.mxu0 0
      %704 = vmatprep.subr.bf16.mxu0 0
      %705 = vmatpush2.bf16.msra.mxu0 0
      %706 = vmatprep.subr.bf16.mxu0 0
      %707 = vmatpush2.bf16.msra.mxu0 0
      %708 = vmatprep.subr.bf16.mxu0 0
      %709 = vmatpush2.bf16.msra.mxu0 0
      %710 = vmatprep.subr.bf16.mxu0 0
      %711 = vmatpush2.bf16.msra.mxu0 0
      %712 = vmatprep.subr.bf16.mxu0 0
      %713 = vmatpush2.bf16.msra.mxu0 0
      %714 = vmatprep.subr.bf16.mxu0 0
      %715 = vmatpush2.bf16.msra.mxu0 0
      %716 = vmatprep.subr.bf16.mxu0 0
      %717 = vmatpush2.bf16.msra.mxu0 0
      %718 = vmatprep.mubr.bf16.mxu0 0
      %719 = vmatmul.mubr.bf16.gmra.mxu0 %v615
      %v720 = vpop.f32.mrf.mxu0
      %v721 = vadd.f32 0.0, %v720
      %v722 = vpop.f32.mrf.mxu0
      %v723 = vpop.f32.mrf.mxu0
      %v724 = vadd.f32 0.0, %v723
      %v725 = vpop.f32.mrf.mxu0
      %726 = vmatprep.mubr.bf16.mxu0 0
      %727 = vmatmul.mubr.bf16.gmra.mxu0 %v618
      %v728 = vpop.f32.mrf.mxu0
      %v729 = vadd.f32 0.0, %v728
      %v730 = vpop.f32.mrf.mxu0
      %v731 = vpop.f32.mrf.mxu0
      %v732 = vpop.f32.mrf.mxu0
      %733 = vdwg.mxu0
      %v737 = vrot.slane %v721, 1
      %v738 = vrot.slane %v724, 1
      %v739 = vsel %vm501, %v737, %v738
      %v740 = vrot.slane %v729, 1
      %v741 = vsel %vm501, %v738, %v740
      %v744 = vadd.f32 %v667, %v739
      %v745 = vadd.f32 %v668, %v741
      %s746 = scalar_lea.vmem %s3, 80
      %v747 = vld [vmem:[%s746] sm:$0xf]
      %v748 = vld [vmem:[%s746 + $0x4] sm:$0xf]
      %v749 = vld [vmem:[%s746 + $0x8] sm:$0xf]
      %v750 = vld [vmem:[%s746 + $0xc] sm:$0xf]
      %v755 = vunpack.c.l.b16 %v747
      %v756 = vunpack.c.l.b16 %v748
      %v757 = vunpack.c.l.b16 %v749
      %v758 = vunpack.c.l.b16 %v750
      %v759 = vpack.c.b16 %v756, %v755
      %v760 = vpack.c.b16 %v758, %v757
      %763 = vmatprep.subr.bf16.mxu0 0
      %764 = vmatpush1.bf16.msra.mxu0 0
      %765 = vmatprep.subr.bf16.mxu0 0
      %766 = vmatpush1.bf16.msra.mxu0 0
      %767 = vmatprep.subr.bf16.mxu0 0
      %768 = vmatpush1.bf16.msra.mxu0 0
      %769 = vmatprep.subr.bf16.mxu0 0
      %770 = vmatpush1.bf16.msra.mxu0 0
      %771 = vmatprep.subr.bf16.mxu0 0
      %772 = vmatpush1.bf16.msra.mxu0 0
      %773 = vmatprep.subr.bf16.mxu0 0
      %774 = vmatpush1.bf16.msra.mxu0 0
      %775 = vmatprep.subr.bf16.mxu0 0
      %776 = vmatpush1.bf16.msra.mxu0 %v760
      %777 = vmatprep.subr.bf16.mxu0 0
      %778 = vmatpush1.bf16.msra.mxu0 %v759
      %779 = vmatprep.subr.bf16.mxu0 0
      %780 = vmatpush2.bf16.msra.mxu0 0
      %781 = vmatprep.subr.bf16.mxu0 0
      %782 = vmatpush2.bf16.msra.mxu0 0
      %783 = vmatprep.subr.bf16.mxu0 0
      %784 = vmatpush2.bf16.msra.mxu0 0
      %785 = vmatprep.subr.bf16.mxu0 0
      %786 = vmatpush2.bf16.msra.mxu0 0
      %787 = vmatprep.subr.bf16.mxu0 0
      %788 = vmatpush2.bf16.msra.mxu0 0
      %789 = vmatprep.subr.bf16.mxu0 0
      %790 = vmatpush2.bf16.msra.mxu0 0
      %791 = vmatprep.subr.bf16.mxu0 0
      %792 = vmatpush2.bf16.msra.mxu0 0
      %793 = vmatprep.subr.bf16.mxu0 0
      %794 = vmatpush2.bf16.msra.mxu0 0
      %795 = vmatprep.mubr.bf16.mxu0 0
      %796 = vmatmul.mubr.bf16.gmra.mxu0 %v615
      %v797 = vpop.f32.mrf.mxu0
      %v798 = vadd.f32 0.0, %v797
      %v799 = vpop.f32.mrf.mxu0
      %v800 = vpop.f32.mrf.mxu0
      %v801 = vadd.f32 0.0, %v800
      %v802 = vpop.f32.mrf.mxu0
      %803 = vmatprep.mubr.bf16.mxu0 0
      %804 = vmatmul.mubr.bf16.gmra.mxu0 %v618
      %v805 = vpop.f32.mrf.mxu0
      %v806 = vadd.f32 0.0, %v805
      %v807 = vpop.f32.mrf.mxu0
      %v808 = vpop.f32.mrf.mxu0
      %v809 = vpop.f32.mrf.mxu0
      %810 = vdwg.mxu0
      %v814 = vrot.slane %v798, 2
      %v815 = vrot.slane %v801, 2
      %v816 = vsel %vm579, %v814, %v815
      %v817 = vrot.slane %v806, 2
      %v818 = vsel %vm579, %v815, %v817
      %v821 = vadd.f32 %v744, %v816
      %v822 = vadd.f32 %v745, %v818
      %s823 = scalar_lea.vmem %s3, 96
      %v824 = vld [vmem:[%s823] sm:$0xf]
      %v825 = vld [vmem:[%s823 + $0x4] sm:$0xf]
      %v826 = vld [vmem:[%s823 + $0x8] sm:$0xf]
      %v827 = vld [vmem:[%s823 + $0xc] sm:$0xf]
      %v831 = vunpack.c.l.b16 %v350
      %v832 = vunpack.c.l.b16 %v351
      %v833 = vunpack.c.l.b16 %v352
      %v834 = vpack.c.b16 %v832, %v831
      %v835 = vpack.c.b16 %v833, %v833
      %v840 = vunpack.c.l.b16 %v824
      %v841 = vunpack.c.l.b16 %v825
      %v842 = vunpack.c.l.b16 %v826
      %v843 = vunpack.c.l.b16 %v827
      %v844 = vpack.c.b16 %v841, %v840
      %v845 = vpack.c.b16 %v843, %v842
      %v849 = vsel %vm377, %v834, 0
      %v852 = vsel %vm377, %v835, 0
      %854 = vmatprep.subr.bf16.mxu0 0
      %855 = vmatpush1.bf16.msra.mxu0 0
      %856 = vmatprep.subr.bf16.mxu0 0
      %857 = vmatpush1.bf16.msra.mxu0 0
      %858 = vmatprep.subr.bf16.mxu0 0
      %859 = vmatpush1.bf16.msra.mxu0 0
      %860 = vmatprep.subr.bf16.mxu0 0
      %861 = vmatpush1.bf16.msra.mxu0 0
      %862 = vmatprep.subr.bf16.mxu0 0
      %863 = vmatpush1.bf16.msra.mxu0 0
      %864 = vmatprep.subr.bf16.mxu0 0
      %865 = vmatpush1.bf16.msra.mxu0 0
      %866 = vmatprep.subr.bf16.mxu0 0
      %867 = vmatpush1.bf16.msra.mxu0 %v845
      %868 = vmatprep.subr.bf16.mxu0 0
      %869 = vmatpush1.bf16.msra.mxu0 %v844
      %870 = vmatprep.subr.bf16.mxu0 0
      %871 = vmatpush2.bf16.msra.mxu0 0
      %872 = vmatprep.subr.bf16.mxu0 0
      %873 = vmatpush2.bf16.msra.mxu0 0
      %874 = vmatprep.subr.bf16.mxu0 0
      %875 = vmatpush2.bf16.msra.mxu0 0
      %876 = vmatprep.subr.bf16.mxu0 0
      %877 = vmatpush2.bf16.msra.mxu0 0
      %878 = vmatprep.subr.bf16.mxu0 0
      %879 = vmatpush2.bf16.msra.mxu0 0
      %880 = vmatprep.subr.bf16.mxu0 0
      %881 = vmatpush2.bf16.msra.mxu0 0
      %882 = vmatprep.subr.bf16.mxu0 0
      %883 = vmatpush2.bf16.msra.mxu0 0
      %884 = vmatprep.subr.bf16.mxu0 0
      %885 = vmatpush2.bf16.msra.mxu0 0
      %886 = vmatprep.mubr.bf16.mxu0 0
      %887 = vmatmul.mubr.bf16.gmra.mxu0 %v849
      %v888 = vpop.f32.mrf.mxu0
      %v889 = vadd.f32 0.0, %v888
      %v890 = vpop.f32.mrf.mxu0
      %v891 = vpop.f32.mrf.mxu0
      %v892 = vadd.f32 0.0, %v891
      %v893 = vpop.f32.mrf.mxu0
      %894 = vmatprep.mubr.bf16.mxu0 0
      %895 = vmatmul.mubr.bf16.gmra.mxu0 %v852
      %v896 = vpop.f32.mrf.mxu0
      %v897 = vpop.f32.mrf.mxu0
      %v898 = vpop.f32.mrf.mxu0
      %v899 = vpop.f32.mrf.mxu0
      %900 = vdwg.mxu0
      %v901 = vadd.f32 %v821, %v889
      %v902 = vadd.f32 %v822, %v892
      %s903 = scalar_lea.vmem %s3, 112
      %v904 = vld [vmem:[%s903] sm:$0xf]
      %v905 = vld [vmem:[%s903 + $0x4] sm:$0xf]
      %v906 = vld [vmem:[%s903 + $0x8] sm:$0xf]
      %v907 = vld [vmem:[%s903 + $0xc] sm:$0xf]
      %v912 = vunpack.c.l.b16 %v904
      %v913 = vunpack.c.l.b16 %v905
      %v914 = vunpack.c.l.b16 %v906
      %v915 = vunpack.c.l.b16 %v907
      %v916 = vpack.c.b16 %v913, %v912
      %v917 = vpack.c.b16 %v915, %v914
      %920 = vmatprep.subr.bf16.mxu0 0
      %921 = vmatpush1.bf16.msra.mxu0 0
      %922 = vmatprep.subr.bf16.mxu0 0
      %923 = vmatpush1.bf16.msra.mxu0 0
      %924 = vmatprep.subr.bf16.mxu0 0
      %925 = vmatpush1.bf16.msra.mxu0 0
      %926 = vmatprep.subr.bf16.mxu0 0
      %927 = vmatpush1.bf16.msra.mxu0 0
      %928 = vmatprep.subr.bf16.mxu0 0
      %929 = vmatpush1.bf16.msra.mxu0 0
      %930 = vmatprep.subr.bf16.mxu0 0
      %931 = vmatpush1.bf16.msra.mxu0 0
      %932 = vmatprep.subr.bf16.mxu0 0
      %933 = vmatpush1.bf16.msra.mxu0 %v917
      %934 = vmatprep.subr.bf16.mxu0 0
      %935 = vmatpush1.bf16.msra.mxu0 %v916
      %936 = vmatprep.subr.bf16.mxu0 0
      %937 = vmatpush2.bf16.msra.mxu0 0
      %938 = vmatprep.subr.bf16.mxu0 0
      %939 = vmatpush2.bf16.msra.mxu0 0
      %940 = vmatprep.subr.bf16.mxu0 0
      %941 = vmatpush2.bf16.msra.mxu0 0
      %942 = vmatprep.subr.bf16.mxu0 0
      %943 = vmatpush2.bf16.msra.mxu0 0
      %944 = vmatprep.subr.bf16.mxu0 0
      %945 = vmatpush2.bf16.msra.mxu0 0
      %946 = vmatprep.subr.bf16.mxu0 0
      %947 = vmatpush2.bf16.msra.mxu0 0
      %948 = vmatprep.subr.bf16.mxu0 0
      %949 = vmatpush2.bf16.msra.mxu0 0
      %950 = vmatprep.subr.bf16.mxu0 0
      %951 = vmatpush2.bf16.msra.mxu0 0
      %952 = vmatprep.mubr.bf16.mxu0 0
      %953 = vmatmul.mubr.bf16.gmra.mxu0 %v849
      %v954 = vpop.f32.mrf.mxu0
      %v955 = vadd.f32 0.0, %v954
      %v956 = vpop.f32.mrf.mxu0
      %v957 = vpop.f32.mrf.mxu0
      %v958 = vadd.f32 0.0, %v957
      %v959 = vpop.f32.mrf.mxu0
      %960 = vmatprep.mubr.bf16.mxu0 0
      %961 = vmatmul.mubr.bf16.gmra.mxu0 %v852
      %v962 = vpop.f32.mrf.mxu0
      %v963 = vadd.f32 0.0, %v962
      %v964 = vpop.f32.mrf.mxu0
      %v965 = vpop.f32.mrf.mxu0
      %v966 = vpop.f32.mrf.mxu0
      %967 = vdwg.mxu0
      %v971 = vrot.slane %v955, 1
      %v972 = vrot.slane %v958, 1
      %v973 = vsel %vm501, %v971, %v972
      %v974 = vrot.slane %v963, 1
      %v975 = vsel %vm501, %v972, %v974
      %v978 = vadd.f32 %v901, %v973
      %v979 = vadd.f32 %v902, %v975
      %s980 = scalar_lea.vmem %s3, 128
      %v981 = vld [vmem:[%s980] sm:$0xf]
      %v982 = vld [vmem:[%s980 + $0x4] sm:$0xf]
      %v983 = vld [vmem:[%s980 + $0x8] sm:$0xf]
      %v984 = vld [vmem:[%s980 + $0xc] sm:$0xf]
      %v989 = vunpack.c.l.b16 %v981
      %v990 = vunpack.c.l.b16 %v982
      %v991 = vunpack.c.l.b16 %v983
      %v992 = vunpack.c.l.b16 %v984
      %v993 = vpack.c.b16 %v990, %v989
      %v994 = vpack.c.b16 %v992, %v991
      %997 = vmatprep.subr.bf16.mxu0 0
      %998 = vmatpush1.bf16.msra.mxu0 0
      %999 = vmatprep.subr.bf16.mxu0 0
      %1000 = vmatpush1.bf16.msra.mxu0 0
      %1001 = vmatprep.subr.bf16.mxu0 0
      %1002 = vmatpush1.bf16.msra.mxu0 0
      %1003 = vmatprep.subr.bf16.mxu0 0
      %1004 = vmatpush1.bf16.msra.mxu0 0
      %1005 = vmatprep.subr.bf16.mxu0 0
      %1006 = vmatpush1.bf16.msra.mxu0 0
      %1007 = vmatprep.subr.bf16.mxu0 0
      %1008 = vmatpush1.bf16.msra.mxu0 0
      %1009 = vmatprep.subr.bf16.mxu0 0
      %1010 = vmatpush1.bf16.msra.mxu0 %v994
      %1011 = vmatprep.subr.bf16.mxu0 0
      %1012 = vmatpush1.bf16.msra.mxu0 %v993
      %1013 = vmatprep.subr.bf16.mxu0 0
      %1014 = vmatpush2.bf16.msra.mxu0 0
      %1015 = vmatprep.subr.bf16.mxu0 0
      %1016 = vmatpush2.bf16.msra.mxu0 0
      %1017 = vmatprep.subr.bf16.mxu0 0
      %1018 = vmatpush2.bf16.msra.mxu0 0
      %1019 = vmatprep.subr.bf16.mxu0 0
      %1020 = vmatpush2.bf16.msra.mxu0 0
      %1021 = vmatprep.subr.bf16.mxu0 0
      %1022 = vmatpush2.bf16.msra.mxu0 0
      %1023 = vmatprep.subr.bf16.mxu0 0
      %1024 = vmatpush2.bf16.msra.mxu0 0
      %1025 = vmatprep.subr.bf16.mxu0 0
      %1026 = vmatpush2.bf16.msra.mxu0 0
      %1027 = vmatprep.subr.bf16.mxu0 0
      %1028 = vmatpush2.bf16.msra.mxu0 0
      %1029 = vmatprep.mubr.bf16.mxu0 0
      %1030 = vmatmul.mubr.bf16.gmra.mxu0 %v849
      %v1031 = vpop.f32.mrf.mxu0
      %v1032 = vadd.f32 0.0, %v1031
      %v1033 = vpop.f32.mrf.mxu0
      %v1034 = vpop.f32.mrf.mxu0
      %v1035 = vadd.f32 0.0, %v1034
      %v1036 = vpop.f32.mrf.mxu0
      %1037 = vmatprep.mubr.bf16.mxu0 0
      %1038 = vmatmul.mubr.bf16.gmra.mxu0 %v852
      %v1039 = vpop.f32.mrf.mxu0
      %v1040 = vadd.f32 0.0, %v1039
      %v1041 = vpop.f32.mrf.mxu0
      %v1042 = vpop.f32.mrf.mxu0
      %v1043 = vpop.f32.mrf.mxu0
      %1044 = vdwg.mxu0
      %v1048 = vrot.slane %v1032, 2
      %v1049 = vrot.slane %v1035, 2
      %v1050 = vsel %vm579, %v1048, %v1049
      %v1051 = vrot.slane %v1040, 2
      %v1052 = vsel %vm579, %v1049, %v1051
      %v1055 = vadd.f32 %v978, %v1050
      %v1056 = vadd.f32 %v979, %v1052
      %v1057 = vld [vmem:[%s4] sm:$0x1]
      %v1059 = vlaneseq
      %v1060 = vshrl.u32 %v1059, 7
      %v1061 = vsub.s32 0, %v1060
      %v1062 = vrot.slane %v1057, %v1061
      %v1064 = vadd.f32 %v1055, %v1062
      %v1065 = vadd.f32 %v1056, %v1062
      %1066 = vst.msk [vmem:[%s342] sm:$0xff] %vm377, %v1064
      %1067 = vst.msk [vmem:[%s342 + $0x8] sm:$0xff] %vm377, %v1065
      %p1068 = scmp.lt.s32.totalorder %s20, 1
      %s1069 = scalar_select %p1068, %s20, 1
      %p1070 = scmp.lt.s32.totalorder %s21, 15
      %s1071 = scalar_select %p1070, %s21, 15
      %s1072 = smul.addr %s1071, 2
      %s1073 = smul.addr %s1069, 32
      %s1074 = sadd.s32 %s1072, %s1073
      %s1075 = smul.addr %s1074, 8
      %s1076 = scalar_lea.vmem %s5, %s1075
      // Predicated region
      $region41: #{generator_forward.25} parent=39 // pred_check
        %p1077 = pneg %p178
      $region42: #{generator_forward.25} parent=39 // pred_check_branch
        %1079 = sbr.rel (%p1077) target = $region44
      $region43: #{generator_forward.25} parent=39 // pred_region
        _
      $region44: #{generator_forward.25} parent=39 // pred_fallthru
        _
    $region40: #{generator_forward.25} parent=5 // pred_fallthru
      _
    %p1080 = scmp.le.s32.totalorder 2, %s11
    // Predicated region
    $region45: #{generator_forward.25} parent=5 // pred_check
      %p1081 = pneg %p1080
    $region46: #{generator_forward.25} parent=5 // pred_check_branch
      %1083 = sbr.rel (%p1081) target = $region48
    $region47: #{generator_forward.25} parent=5 // pred_region
      %s1084 = ssub.s32 %s11, 2
      // Predicated region
      $region49: #{generator_forward.25} parent=47 // pred_check
        %p1085 = pneg %p184
      $region50: #{generator_forward.25} parent=47 // pred_check_branch
        %1087 = sbr.rel (%p1085) target = $region52
      $region51: #{generator_forward.25} parent=47 // pred_region
        %p1088 = scmp.lt.s32.totalorder %s22, 1
        %s1089 = scalar_select %p1088, %s22, 1
        %p1090 = scmp.lt.s32.totalorder %s23, 15
        %s1091 = scalar_select %p1090, %s23, 15
        %s1092 = smul.addr %s1091, 2
        %s1093 = smul.addr %s1089, 32
        %s1094 = sadd.s32 %s1092, %s1093
        %s1095 = smul.addr %s1094, 8
        %s1096 = scalar_lea.vmem %s5, %s1095
      $region52: #{generator_forward.25} parent=47 // pred_fallthru
        _
    $region48: #{generator_forward.25} parent=5 // pred_fallthru
      _
  $region6: #{generator_forward.25} parent=0 // loop_footer
    %s15 = sadd.s32 1, %s11
  $region7: #{generator_forward.25} parent=0 // loop_footer_branch
    %10 = sbr.rel target = $region3
  $region8: #{generator_forward.25} parent=0 // loop_exit
    _

// kernel: generator_forward.26
$region0: #{generator_forward.26}
  #allocation0 [shape = 'u32[]', space=smem, size = 0x4, offset = 0x4, fixed_abs, tag = 'smem constant byte address 0x4 - core index']
  #allocation1 [shape = 'u32[144,128]{1,0:T(1,128)}', space=vmem, size = 0x12000, scoped, tag = 'internal scratch']
  %s0 = inlined_call_operand.vmem [shape: f32[2,16,16,32], index: 0, kind: input, shape index: {}]
  %s1 = inlined_call_operand.vmem [shape: f32[2,16,16,1], index: 1, kind: input, shape index: {}]
  %s2 = inlined_call_operand.vmem [shape: f32[1,1,32], index: 2, kind: input, shape index: {}]
  %s3 = inlined_call_operand.vmem [shape: f32[2,1,32], index: 3, kind: input, shape index: {}]
  %s4 = inlined_call_operand.vmem [shape: f32[2,1,32], index: 4, kind: input, shape index: {}]
  %s5 = inlined_call_operand.vmem [shape: f32[2,16,16,32], index: 5, kind: output, shape index: {}]
  %s6 = sld [smem:[#allocation0]]
  $region53: #{generator_forward.26} parent=0
    _
  %s8 = ssub.s32 1, %s6
  %s9 = scalar_select 0, %s8, %s6
  loop: start=0, step=1, limit=4
  $region2: #{generator_forward.26} parent=0 // loop_pre_header
    _
  $region3: #{generator_forward.26} parent=0 // loop_header
    %s11 = sphi 0, %s15
    %p12 = scmp.ge.s32.totalorder %s11, 4
    %s18 = sphi 0, %s30
    %s19 = sphi 0, %s26
    %s20 = sphi 0, %s18
    %s21 = sphi 0, %s19
    %s22 = sphi 0, %s20
    %s23 = sphi 0, %s21
    %s35 = sphi 0, %s37
    %s38 = sphi 0, %s35
    %s39 = sphi 0, %s38
    %s55 = sphi 0, %s39
    %s61 = sphi 0, %s63
    %s64 = sphi 0, %s61
    %s65 = sphi 0, %s64
    %s81 = sphi 0, %s65
    %s87 = sphi 0, %s89
    %s90 = sphi 0, %s87
    %s91 = sphi 0, %s90
    %s107 = sphi 0, %s91
    %s115 = sphi 0, %s117
    %s118 = sphi 0, %s115
    %s119 = sphi 0, %s118
    %s135 = sphi 0, %s119
    %s143 = sphi 0, %s145
    %s146 = sphi 0, %s143
    %s147 = sphi 0, %s146
    %s163 = sphi 0, %s147
    %s171 = sphi 0, %s173
    %s174 = sphi 0, %s171
    %s175 = sphi 0, %s174
    %s191 = sphi 0, %s175
  $region4: #{generator_forward.26} parent=0 // loop_header_branch
    %14 = sbr.rel (%p12) target = $region8
  $region5: #{generator_forward.26} parent=0 // loop_body
    %s16 = ssub.s32 %s11, 1
    %s17 = ssub.s32 %s11, 2
    %s24 = sadd.s32 1, %s19
    %p25 = scmp.ge.s32.totalorder %s24, 1
    %s26 = scalar_select %p25, 0, %s24
    %s27 = sadd.s32 1, %s18
    %s28 = scalar_select %p25, %s27, %s18
    %p29 = scmp.ge.s32.totalorder %s28, 2
    %s30 = scalar_select %p29, 0, %s28
    %s31 = ssub.s32 %s18, %s30
    %s32 = ssub.s32 %s19, %s26
    %s33 = sor.u32 %s31, %s32
    %p34 = scmp.eq.s32.totalorder %s33, 0
    %s36 = sadd.s32 %s35, 1
    %s37 = scalar_select %p34, %s35, %s36
    %p40 = pneg %p34
    %p41 = scmp.eq.s32.totalorder %s11, 1
    %p42 = por %p40, %p41
    %p43 = scmp.ne.s32.totalorder %s35, %s38
    %p44 = scmp.eq.s32.totalorder %s11, 0
    %p45 = por %p43, %p44
    %p46 = scmp.ne.s32.totalorder %s35, %s38
    %p47 = scmp.eq.s32.totalorder %s16, 1
    %p48 = por %p46, %p47
    %p49 = scmp.ne.s32.totalorder %s38, %s39
    %p50 = scmp.eq.s32.totalorder %s16, 0
    %p51 = por %p49, %p50
    %p52 = scmp.ne.s32.totalorder %s38, %s39
    %p53 = scmp.eq.s32.totalorder %s17, 1
    %p54 = por %p52, %p53
    %p56 = scmp.ne.s32.totalorder %s39, %s55
    %p57 = scmp.eq.s32.totalorder %s17, 0
    %p58 = por %p56, %p57
    %s59 = ssub.s32 %s18, %s30
    %p60 = scmp.eq.s32.totalorder %s59, 0
    %s62 = sadd.s32 %s61, 1
    %s63 = scalar_select %p60, %s61, %s62
    %p66 = pneg %p60
    %p67 = scmp.eq.s32.totalorder %s11, 1
    %p68 = por %p66, %p67
    %p69 = scmp.ne.s32.totalorder %s61, %s64
    %p70 = scmp.eq.s32.totalorder %s11, 0
    %p71 = por %p69, %p70
    %p72 = scmp.ne.s32.totalorder %s61, %s64
    %p73 = scmp.eq.s32.totalorder %s16, 1
    %p74 = por %p72, %p73
    %p75 = scmp.ne.s32.totalorder %s64, %s65
    %p76 = scmp.eq.s32.totalorder %s16, 0
    %p77 = por %p75, %p76
    %p78 = scmp.ne.s32.totalorder %s64, %s65
    %p79 = scmp.eq.s32.totalorder %s17, 1
    %p80 = por %p78, %p79
    %p82 = scmp.ne.s32.totalorder %s65, %s81
    %p83 = scmp.eq.s32.totalorder %s17, 0
    %p84 = por %p82, %p83
    %s85 = ssub.s32 %s19, %s26
    %p86 = scmp.eq.s32.totalorder %s85, 0
    %s88 = sadd.s32 %s87, 1
    %s89 = scalar_select %p86, %s87, %s88
    %p92 = pneg %p86
    %p93 = scmp.eq.s32.totalorder %s11, 1
    %p94 = por %p92, %p93
    %p95 = scmp.ne.s32.totalorder %s87, %s90
    %p96 = scmp.eq.s32.totalorder %s11, 0
    %p97 = por %p95, %p96
    %p98 = scmp.ne.s32.totalorder %s87, %s90
    %p99 = scmp.eq.s32.totalorder %s16, 1
    %p100 = por %p98, %p99
    %p101 = scmp.ne.s32.totalorder %s90, %s91
    %p102 = scmp.eq.s32.totalorder %s16, 0
    %p103 = por %p101, %p102
    %p104 = scmp.ne.s32.totalorder %s90, %s91
    %p105 = scmp.eq.s32.totalorder %s17, 1
    %p106 = por %p104, %p105
    %p108 = scmp.ne.s32.totalorder %s91, %s107
    %p109 = scmp.eq.s32.totalorder %s17, 0
    %p110 = por %p108, %p109
    %s111 = ssub.s32 %s18, %s30
    %s112 = ssub.s32 %s19, %s26
    %s113 = sor.u32 %s111, %s112
    %p114 = scmp.eq.s32.totalorder %s113, 0
    %s116 = sadd.s32 %s115, 1
    %s117 = scalar_select %p114, %s115, %s116
    %p120 = pneg %p114
    %p121 = scmp.eq.s32.totalorder %s11, 1
    %p122 = por %p120, %p121
    %p123 = scmp.ne.s32.totalorder %s115, %s118
    %p124 = scmp.eq.s32.totalorder %s11, 0
    %p125 = por %p123, %p124
    %p126 = scmp.ne.s32.totalorder %s115, %s118
    %p127 = scmp.eq.s32.totalorder %s16, 1
    %p128 = por %p126, %p127
    %p129 = scmp.ne.s32.totalorder %s118, %s119
    %p130 = scmp.eq.s32.totalorder %s16, 0
    %p131 = por %p129, %p130
    %p132 = scmp.ne.s32.totalorder %s118, %s119
    %p133 = scmp.eq.s32.totalorder %s17, 1
    %p134 = por %p132, %p133
    %p136 = scmp.ne.s32.totalorder %s119, %s135
    %p137 = scmp.eq.s32.totalorder %s17, 0
    %p138 = por %p136, %p137
    %s139 = ssub.s32 %s18, %s30
    %s140 = ssub.s32 %s19, %s26
    %s141 = sor.u32 %s139, %s140
    %p142 = scmp.eq.s32.totalorder %s141, 0
    %s144 = sadd.s32 %s143, 1
    %s145 = scalar_select %p142, %s143, %s144
    %p148 = pneg %p142
    %p149 = scmp.eq.s32.totalorder %s11, 1
    %p150 = por %p148, %p149
    %p151 = scmp.ne.s32.totalorder %s143, %s146
    %p152 = scmp.eq.s32.totalorder %s11, 0
    %p153 = por %p151, %p152
    %p154 = scmp.ne.s32.totalorder %s143, %s146
    %p155 = scmp.eq.s32.totalorder %s16, 1
    %p156 = por %p154, %p155
    %p157 = scmp.ne.s32.totalorder %s146, %s147
    %p158 = scmp.eq.s32.totalorder %s16, 0
    %p159 = por %p157, %p158
    %p160 = scmp.ne.s32.totalorder %s146, %s147
    %p161 = scmp.eq.s32.totalorder %s17, 1
    %p162 = por %p160, %p161
    %p164 = scmp.ne.s32.totalorder %s147, %s163
    %p165 = scmp.eq.s32.totalorder %s17, 0
    %p166 = por %p164, %p165
    %s167 = ssub.s32 %s18, %s30
    %s168 = ssub.s32 %s19, %s26
    %s169 = sor.u32 %s167, %s168
    %p170 = scmp.eq.s32.totalorder %s169, 0
    %s172 = sadd.s32 %s171, 1
    %s173 = scalar_select %p170, %s171, %s172
    %p176 = pneg %p170
    %p177 = scmp.eq.s32.totalorder %s11, 1
    %p178 = por %p176, %p177
    %p179 = scmp.ne.s32.totalorder %s171, %s174
    %p180 = scmp.eq.s32.totalorder %s11, 0
    %p181 = por %p179, %p180
    %p182 = scmp.ne.s32.totalorder %s171, %s174
    %p183 = scmp.eq.s32.totalorder %s16, 1
    %p184 = por %p182, %p183
    %p185 = scmp.ne.s32.totalorder %s174, %s175
    %p186 = scmp.eq.s32.totalorder %s16, 0
    %p187 = por %p185, %p186
    %p188 = scmp.ne.s32.totalorder %s174, %s175
    %p189 = scmp.eq.s32.totalorder %s17, 1
    %p190 = por %p188, %p189
    %p192 = scmp.ne.s32.totalorder %s175, %s191
    %p193 = scmp.eq.s32.totalorder %s17, 0
    %p194 = por %p192, %p193
    %p195 = scmp.le.s32.totalorder 1, %s11
    %p196 = scmp.lt.s32.totalorder %s11, 3
    %p197 = pnand %p195, %p196
    %p198 = pneg %p197
    // Predicated region
    $region9: #{generator_forward.26} parent=5 // pred_check
      _
    $region10: #{generator_forward.26} parent=5 // pred_check_branch
      %200 = sbr.rel (%p197) target = $region12
    $region11: #{generator_forward.26} parent=5 // pred_region
      %s201 = ssub.s32 %s11, 1
      // Predicated region
      $region13: #{generator_forward.26} parent=11 // pred_check
        %p202 = pneg %p103
      $region14: #{generator_forward.26} parent=11 // pred_check_branch
        %204 = sbr.rel (%p202) target = $region16
      $region15: #{generator_forward.26} parent=11 // pred_region
        %p205 = scmp.lt.s32.totalorder %s21, 0
        %s206 = scalar_select %p205, %s21, 0
        %s207 = scalar_lea.vmem %s2, %s206
      $region16: #{generator_forward.26} parent=11 // pred_fallthru
        _
    $region12: #{generator_forward.26} parent=5 // pred_fallthru
      _
    %p208 = scmp.lt.s32.totalorder %s11, 2
    // Predicated region
    $region17: #{generator_forward.26} parent=5 // pred_check
      %p209 = pneg %p208
    $region18: #{generator_forward.26} parent=5 // pred_check_branch
      %211 = sbr.rel (%p209) target = $region20
    $region19: #{generator_forward.26} parent=5 // pred_region
      // Predicated region
      $region21: #{generator_forward.26} parent=19 // pred_check
        %p212 = pneg %p45
      $region22: #{generator_forward.26} parent=19 // pred_check_branch
        %214 = sbr.rel (%p212) target = $region24
      $region23: #{generator_forward.26} parent=19 // pred_region
        %p215 = scmp.lt.s32.totalorder %s18, 1
        %s216 = scalar_select %p215, %s18, 1
        %p217 = scmp.lt.s32.totalorder %s19, 0
        %s218 = scalar_select %p217, %s19, 0
        %s219 = smul.addr %s216, 32
        %s220 = sadd.s32 %s218, %s219
        %s221 = smul.addr %s220, 8
        %s222 = scalar_lea.vmem %s0, %s221
      $region24: #{generator_forward.26} parent=19 // pred_fallthru
        _
      // Predicated region
      $region25: #{generator_forward.26} parent=19 // pred_check
        %p223 = pneg %p71
      $region26: #{generator_forward.26} parent=19 // pred_check_branch
        %225 = sbr.rel (%p223) target = $region28
      $region27: #{generator_forward.26} parent=19 // pred_region
        %p226 = scmp.lt.s32.totalorder %s18, 1
        %s227 = scalar_select %p226, %s18, 1
        %s228 = smul.addr %s227, 32
        %s229 = smul.addr %s228, 8
        %s230 = scalar_lea.vmem %s1, %s229
      $region28: #{generator_forward.26} parent=19 // pred_fallthru
        _
      // Predicated region
      $region29: #{generator_forward.26} parent=19 // pred_check
        %p231 = pneg %p125
      $region30: #{generator_forward.26} parent=19 // pred_check_branch
        %233 = sbr.rel (%p231) target = $region32
      $region31: #{generator_forward.26} parent=19 // pred_region
        %p234 = scmp.lt.s32.totalorder %s18, 1
        %s235 = scalar_select %p234, %s18, 1
        %p236 = scmp.lt.s32.totalorder %s19, 0
        %s237 = scalar_select %p236, %s19, 0
        %s238 = sadd.s32 %s237, %s235
        %s239 = scalar_lea.vmem %s3, %s238
      $region32: #{generator_forward.26} parent=19 // pred_fallthru
        _
      // Predicated region
      $region33: #{generator_forward.26} parent=19 // pred_check
        %p240 = pneg %p153
      $region34: #{generator_forward.26} parent=19 // pred_check_branch
        %242 = sbr.rel (%p240) target = $region36
      $region35: #{generator_forward.26} parent=19 // pred_region
        %p243 = scmp.lt.s32.totalorder %s18, 1
        %s244 = scalar_select %p243, %s18, 1
        %p245 = scmp.lt.s32.totalorder %s19, 0
        %s246 = scalar_select %p245, %s19, 0
        %s247 = sadd.s32 %s246, %s244
        %s248 = scalar_lea.vmem %s4, %s247
      $region36: #{generator_forward.26} parent=19 // pred_fallthru
        _
    $region20: #{generator_forward.26} parent=5 // pred_fallthru
      _
    %p249 = scmp.le.s32.totalorder 1, %s11
    %p250 = scmp.lt.s32.totalorder %s11, 3
    %p251 = pnand %p249, %p250
    %p252 = pneg %p251
    // Predicated region
    $region37: #{generator_forward.26} parent=5 // pred_check
      _
    $region38: #{generator_forward.26} parent=5 // pred_check_branch
      %254 = sbr.rel (%p251) target = $region40
    $region39: #{generator_forward.26} parent=5 // pred_region
      %s255 = ssub.s32 %s11, 1
      %p256 = scmp.lt.s32.totalorder %s20, 1
      %s257 = scalar_select %p256, %s20, 1
      %p258 = scmp.lt.s32.totalorder %s21, 0
      %s259 = scalar_select %p258, %s21, 0
      %s260 = smul.addr %s257, 32
      %s261 = sadd.s32 %s259, %s260
      %s262 = smul.addr %s261, 8
      %s263 = scalar_lea.vmem %s0, %s262
      %p264 = pneg %p51
      %p265 = pneg %p48
      %p266 = scmp.lt.s32.totalorder %s20, 1
      %s267 = scalar_select %p266, %s20, 1
      %s268 = smul.addr %s267, 32
      %s269 = smul.addr %s268, 8
      %s270 = scalar_lea.vmem %s1, %s269
      %p271 = pneg %p77
      %p272 = pneg %p74
      %p273 = scmp.lt.s32.totalorder %s21, 0
      %s274 = scalar_select %p273, %s21, 0
      %s275 = scalar_lea.vmem %s2, %s274
      %p276 = pneg %p103
      %p277 = pneg %p100
      %p278 = scmp.lt.s32.totalorder %s20, 1
      %s279 = scalar_select %p278, %s20, 1
      %p280 = scmp.lt.s32.totalorder %s21, 0
      %s281 = scalar_select %p280, %s21, 0
      %s282 = sadd.s32 %s281, %s279
      %s283 = scalar_lea.vmem %s3, %s282
      %p284 = pneg %p131
      %p285 = pneg %p128
      %p286 = scmp.lt.s32.totalorder %s20, 1
      %s287 = scalar_select %p286, %s20, 1
      %p288 = scmp.lt.s32.totalorder %s21, 0
      %s289 = scalar_select %p288, %s21, 0
      %s290 = sadd.s32 %s289, %s287
      %s291 = scalar_lea.vmem %s4, %s290
      %p292 = pneg %p159
      %p293 = pneg %p156
      %p294 = pneg %p187
      %p295 = pneg %p184
      %p296 = scmp.lt.s32.totalorder %s20, 1
      %s297 = scalar_select %p296, %s20, 1
      %p298 = scmp.lt.s32.totalorder %s21, 0
      %s299 = scalar_select %p298, %s21, 0
      %s300 = smul.addr %s297, 32
      %s301 = sadd.s32 %s299, %s300
      %s302 = smul.addr %s301, 8
      %s303 = scalar_lea.vmem %s5, %s302
      %p304 = scmp.lt.s32.totalorder %s20, 1
      %s305 = scalar_select %p304, %s20, 1
      %p306 = scmp.lt.s32.totalorder %s21, 0
      %s307 = scalar_select %p306, %s21, 0
      %s308 = smul.addr %s305, 32
      %s309 = sadd.s32 %s307, %s308
      %s310 = smul.addr %s309, 8
      %s311 = scalar_lea.vmem %s0, %s310
      %p312 = scmp.lt.s32.totalorder %s20, 1
      %s313 = scalar_select %p312, %s20, 1
      %s314 = smul.addr %s313, 32
      %s315 = smul.addr %s314, 8
      %s316 = scalar_lea.vmem %s1, %s315
      %p317 = scmp.lt.s32.totalorder %s21, 0
      %s318 = scalar_select %p317, %s21, 0
      %s319 = scalar_lea.vmem %s2, %s318
      %p320 = scmp.lt.s32.totalorder %s20, 1
      %s321 = scalar_select %p320, %s20, 1
      %p322 = scmp.lt.s32.totalorder %s21, 0
      %s323 = scalar_select %p322, %s21, 0
      %s324 = sadd.s32 %s323, %s321
      %s325 = scalar_lea.vmem %s3, %s324
      %p326 = scmp.lt.s32.totalorder %s20, 1
      %s327 = scalar_select %p326, %s20, 1
      %p328 = scmp.lt.s32.totalorder %s21, 0
      %s329 = scalar_select %p328, %s21, 0
      %s330 = sadd.s32 %s329, %s327
      %s331 = scalar_lea.vmem %s4, %s330
      %p332 = scmp.lt.s32.totalorder %s20, 1
      %s333 = scalar_select %p332, %s20, 1
      %p334 = scmp.lt.s32.totalorder %s21, 0
      %s335 = scalar_select %p334, %s21, 0
      %s336 = smul.addr %s333, 32
      %s337 = sadd.s32 %s335, %s336
      %s338 = smul.addr %s337, 8
      %s339 = scalar_lea.vmem %s5, %s338
      %v340 = vld [vmem:[%s311] sm:$0xff]
      %v341 = vld [vmem:[%s311 + $0x8] sm:$0xff]
      %v342 = vld [vmem:[%s311 + $0x10] sm:$0xff]
      %v343 = vld [vmem:[%s311 + $0x18] sm:$0xff]
      %v344 = vld [vmem:[%s311 + $0x20] sm:$0xff]
      %v345 = vld [vmem:[%s311 + $0x28] sm:$0xff]
      %v346 = vld [vmem:[%s311 + $0x30] sm:$0xff]
      %v347 = vld [vmem:[%s311 + $0x38] sm:$0xff]
      %v348 = vld [vmem:[%s311 + $0x40] sm:$0xff]
      %v349 = vld [vmem:[%s311 + $0x48] sm:$0xff]
      %v350 = vld [vmem:[%s311 + $0x50] sm:$0xff]
      %v351 = vld [vmem:[%s311 + $0x58] sm:$0xff]
      %v352 = vld [vmem:[%s311 + $0x60] sm:$0xff]
      %v353 = vld [vmem:[%s311 + $0x68] sm:$0xff]
      %v354 = vld [vmem:[%s311 + $0x70] sm:$0xff]
      %v355 = vld [vmem:[%s311 + $0x78] sm:$0xff]
      %v356 = vld [vmem:[%s311 + $0x80] sm:$0xff]
      %v357 = vld [vmem:[%s311 + $0x88] sm:$0xff]
      %v358 = vld [vmem:[%s311 + $0x90] sm:$0xff]
      %v359 = vld [vmem:[%s311 + $0x98] sm:$0xff]
      %v360 = vld [vmem:[%s311 + $0xa0] sm:$0xff]
      %v361 = vld [vmem:[%s311 + $0xa8] sm:$0xff]
      %v362 = vld [vmem:[%s311 + $0xb0] sm:$0xff]
      %v363 = vld [vmem:[%s311 + $0xb8] sm:$0xff]
      %v364 = vld [vmem:[%s311 + $0xc0] sm:$0xff]
      %v365 = vld [vmem:[%s311 + $0xc8] sm:$0xff]
      %v366 = vld [vmem:[%s311 + $0xd0] sm:$0xff]
      %v367 = vld [vmem:[%s311 + $0xd8] sm:$0xff]
      %v368 = vld [vmem:[%s311 + $0xe0] sm:$0xff]
      %v369 = vld [vmem:[%s311 + $0xe8] sm:$0xff]
      %v370 = vld [vmem:[%s311 + $0xf0] sm:$0xff]
      %v371 = vld [vmem:[%s311 + $0xf8] sm:$0xff]
      %v372 = vld [vmem:[%s316] sm:$0xff]
      %v373 = vld [vmem:[%s316 + $0x8] sm:$0xff]
      %v374 = vld [vmem:[%s316 + $0x10] sm:$0xff]
      %v375 = vld [vmem:[%s316 + $0x18] sm:$0xff]
      %v376 = vld [vmem:[%s316 + $0x20] sm:$0xff]
      %v377 = vld [vmem:[%s316 + $0x28] sm:$0xff]
      %v378 = vld [vmem:[%s316 + $0x30] sm:$0xff]
      %v379 = vld [vmem:[%s316 + $0x38] sm:$0xff]
      %v380 = vld [vmem:[%s316 + $0x40] sm:$0xff]
      %v381 = vld [vmem:[%s316 + $0x48] sm:$0xff]
      %v382 = vld [vmem:[%s316 + $0x50] sm:$0xff]
      %v383 = vld [vmem:[%s316 + $0x58] sm:$0xff]
      %v384 = vld [vmem:[%s316 + $0x60] sm:$0xff]
      %v385 = vld [vmem:[%s316 + $0x68] sm:$0xff]
      %v386 = vld [vmem:[%s316 + $0x70] sm:$0xff]
      %v387 = vld [vmem:[%s316 + $0x78] sm:$0xff]
      %v388 = vld [vmem:[%s316 + $0x80] sm:$0xff]
      %v389 = vld [vmem:[%s316 + $0x88] sm:$0xff]
      %v390 = vld [vmem:[%s316 + $0x90] sm:$0xff]
      %v391 = vld [vmem:[%s316 + $0x98] sm:$0xff]
      %v392 = vld [vmem:[%s316 + $0xa0] sm:$0xff]
      %v393 = vld [vmem:[%s316 + $0xa8] sm:$0xff]
      %v394 = vld [vmem:[%s316 + $0xb0] sm:$0xff]
      %v395 = vld [vmem:[%s316 + $0xb8] sm:$0xff]
      %v396 = vld [vmem:[%s316 + $0xc0] sm:$0xff]
      %v397 = vld [vmem:[%s316 + $0xc8] sm:$0xff]
      %v398 = vld [vmem:[%s316 + $0xd0] sm:$0xff]
      %v399 = vld [vmem:[%s316 + $0xd8] sm:$0xff]
      %v400 = vld [vmem:[%s316 + $0xe0] sm:$0xff]
      %v401 = vld [vmem:[%s316 + $0xe8] sm:$0xff]
      %v402 = vld [vmem:[%s316 + $0xf0] sm:$0xff]
      %v403 = vld [vmem:[%s316 + $0xf8] sm:$0xff]
      %v404 = vld [vmem:[%s319] sm:$0x1]
      %406 = vset.pattern.permute.xlu0 0
      %407 = vperm.xlu0 %406, %v372
      %v408 = vpop.permute.xlu0 %407
      %411 = vset.pattern.permute.xlu0 0
      %412 = vperm.xlu0 %411, %v373
      %v413 = vpop.permute.xlu0 %412
      %416 = vset.pattern.permute.xlu0 0
      %417 = vperm.xlu0 %416, %v374
      %v418 = vpop.permute.xlu0 %417
      %421 = vset.pattern.permute.xlu0 0
      %422 = vperm.xlu0 %421, %v375
      %v423 = vpop.permute.xlu0 %422
      %426 = vset.pattern.permute.xlu0 0
      %427 = vperm.xlu0 %426, %v376
      %v428 = vpop.permute.xlu0 %427
      %431 = vset.pattern.permute.xlu0 0
      %432 = vperm.xlu0 %431, %v377
      %v433 = vpop.permute.xlu0 %432
      %436 = vset.pattern.permute.xlu0 0
      %437 = vperm.xlu0 %436, %v378
      %v438 = vpop.permute.xlu0 %437
      %441 = vset.pattern.permute.xlu0 0
      %442 = vperm.xlu0 %441, %v379
      %v443 = vpop.permute.xlu0 %442
      %446 = vset.pattern.permute.xlu0 0
      %447 = vperm.xlu0 %446, %v380
      %v448 = vpop.permute.xlu0 %447
      %451 = vset.pattern.permute.xlu0 0
      %452 = vperm.xlu0 %451, %v381
      %v453 = vpop.permute.xlu0 %452
      %456 = vset.pattern.permute.xlu0 0
      %457 = vperm.xlu0 %456, %v382
      %v458 = vpop.permute.xlu0 %457
      %461 = vset.pattern.permute.xlu0 0
      %462 = vperm.xlu0 %461, %v383
      %v463 = vpop.permute.xlu0 %462
      %466 = vset.pattern.permute.xlu0 0
      %467 = vperm.xlu0 %466, %v384
      %v468 = vpop.permute.xlu0 %467
      %471 = vset.pattern.permute.xlu0 0
      %472 = vperm.xlu0 %471, %v385
      %v473 = vpop.permute.xlu0 %472
      %476 = vset.pattern.permute.xlu0 0
      %477 = vperm.xlu0 %476, %v386
      %v478 = vpop.permute.xlu0 %477
      %481 = vset.pattern.permute.xlu0 0
      %482 = vperm.xlu0 %481, %v387
      %v483 = vpop.permute.xlu0 %482
      %486 = vset.pattern.permute.xlu0 0
      %487 = vperm.xlu0 %486, %v388
      %v488 = vpop.permute.xlu0 %487
      %491 = vset.pattern.permute.xlu0 0
      %492 = vperm.xlu0 %491, %v389
      %v493 = vpop.permute.xlu0 %492
      %496 = vset.pattern.permute.xlu0 0
      %497 = vperm.xlu0 %496, %v390
      %v498 = vpop.permute.xlu0 %497
      %501 = vset.pattern.permute.xlu0 0
      %502 = vperm.xlu0 %501, %v391
      %v503 = vpop.permute.xlu0 %502
      %506 = vset.pattern.permute.xlu0 0
      %507 = vperm.xlu0 %506, %v392
      %v508 = vpop.permute.xlu0 %507
      %511 = vset.pattern.permute.xlu0 0
      %512 = vperm.xlu0 %511, %v393
      %v513 = vpop.permute.xlu0 %512
      %516 = vset.pattern.permute.xlu0 0
      %517 = vperm.xlu0 %516, %v394
      %v518 = vpop.permute.xlu0 %517
      %521 = vset.pattern.permute.xlu0 0
      %522 = vperm.xlu0 %521, %v395
      %v523 = vpop.permute.xlu0 %522
      %526 = vset.pattern.permute.xlu0 0
      %527 = vperm.xlu0 %526, %v396
      %v528 = vpop.permute.xlu0 %527
      %531 = vset.pattern.permute.xlu0 0
      %532 = vperm.xlu0 %531, %v397
      %v533 = vpop.permute.xlu0 %532
      %536 = vset.pattern.permute.xlu0 0
      %537 = vperm.xlu0 %536, %v398
      %v538 = vpop.permute.xlu0 %537
      %541 = vset.pattern.permute.xlu0 0
      %542 = vperm.xlu0 %541, %v399
      %v543 = vpop.permute.xlu0 %542
      %546 = vset.pattern.permute.xlu0 0
      %547 = vperm.xlu0 %546, %v400
      %v548 = vpop.permute.xlu0 %547
      %551 = vset.pattern.permute.xlu0 0
      %552 = vperm.xlu0 %551, %v401
      %v553 = vpop.permute.xlu0 %552
      %556 = vset.pattern.permute.xlu0 0
      %557 = vperm.xlu0 %556, %v402
      %v558 = vpop.permute.xlu0 %557
      %561 = vset.pattern.permute.xlu0 0
      %562 = vperm.xlu0 %561, %v403
      %v563 = vpop.permute.xlu0 %562
      %v566 = vlaneseq
      %v567 = vshrl.u32 %v566, 7
      %v568 = vsub.s32 0, %v567
      %v569 = vrot.slane %v404, %v568
      %v571 = vmul.f32 %v408, %v569
      %v572 = vmul.f32 %v413, %v569
      %v573 = vmul.f32 %v418, %v569
      %v574 = vmul.f32 %v423, %v569
      %v575 = vmul.f32 %v428, %v569
      %v576 = vmul.f32 %v433, %v569
      %v577 = vmul.f32 %v438, %v569
      %v578 = vmul.f32 %v443, %v569
      %v579 = vmul.f32 %v448, %v569
      %v580 = vmul.f32 %v453, %v569
      %v581 = vmul.f32 %v458, %v569
      %v582 = vmul.f32 %v463, %v569
      %v583 = vmul.f32 %v468, %v569
      %v584 = vmul.f32 %v473, %v569
      %v585 = vmul.f32 %v478, %v569
      %v586 = vmul.f32 %v483, %v569
      %v587 = vmul.f32 %v488, %v569
      %v588 = vmul.f32 %v493, %v569
      %v589 = vmul.f32 %v498, %v569
      %v590 = vmul.f32 %v503, %v569
      %v591 = vmul.f32 %v508, %v569
      %v592 = vmul.f32 %v513, %v569
      %v593 = vmul.f32 %v518, %v569
      %v594 = vmul.f32 %v523, %v569
      %v595 = vmul.f32 %v528, %v569
      %v596 = vmul.f32 %v533, %v569
      %v597 = vmul.f32 %v538, %v569
      %v598 = vmul.f32 %v543, %v569
      %v599 = vmul.f32 %v548, %v569
      %v600 = vmul.f32 %v553, %v569
      %v601 = vmul.f32 %v558, %v569
      %v602 = vmul.f32 %v563, %v569
      %v603 = vadd.f32 %v340, %v571
      %v604 = vadd.f32 %v341, %v572
      %v605 = vadd.f32 %v342, %v573
      %v606 = vadd.f32 %v343, %v574
      %v607 = vadd.f32 %v344, %v575
      %v608 = vadd.f32 %v345, %v576
      %v609 = vadd.f32 %v346, %v577
      %v610 = vadd.f32 %v347, %v578
      %v611 = vadd.f32 %v348, %v579
      %v612 = vadd.f32 %v349, %v580
      %v613 = vadd.f32 %v350, %v581
      %v614 = vadd.f32 %v351, %v582
      %v615 = vadd.f32 %v352, %v583
      %v616 = vadd.f32 %v353, %v584
      %v617 = vadd.f32 %v354, %v585
      %v618 = vadd.f32 %v355, %v586
      %v619 = vadd.f32 %v356, %v587
      %v620 = vadd.f32 %v357, %v588
      %v621 = vadd.f32 %v358, %v589
      %v622 = vadd.f32 %v359, %v590
      %v623 = vadd.f32 %v360, %v591
      %v624 = vadd.f32 %v361, %v592
      %v625 = vadd.f32 %v362, %v593
      %v626 = vadd.f32 %v363, %v594
      %v627 = vadd.f32 %v364, %v595
      %v628 = vadd.f32 %v365, %v596
      %v629 = vadd.f32 %v366, %v597
      %v630 = vadd.f32 %v367, %v598
      %v631 = vadd.f32 %v368, %v599
      %v632 = vadd.f32 %v369, %v600
      %v633 = vadd.f32 %v370, %v601
      %v634 = vadd.f32 %v371, %v602
      %vm635 = vcmp.gt.f32.partialorder %v603, 0.0
      %vm636 = vcmp.gt.f32.partialorder %v604, 0.0
      %vm637 = vcmp.gt.f32.partialorder %v605, 0.0
      %vm638 = vcmp.gt.f32.partialorder %v606, 0.0
      %vm639 = vcmp.gt.f32.partialorder %v607, 0.0
      %vm640 = vcmp.gt.f32.partialorder %v608, 0.0
      %vm641 = vcmp.gt.f32.partialorder %v609, 0.0
      %vm642 = vcmp.gt.f32.partialorder %v610, 0.0
      %vm643 = vcmp.gt.f32.partialorder %v611, 0.0
      %vm644 = vcmp.gt.f32.partialorder %v612, 0.0
      %vm645 = vcmp.gt.f32.partialorder %v613, 0.0
      %vm646 = vcmp.gt.f32.partialorder %v614, 0.0
      %vm647 = vcmp.gt.f32.partialorder %v615, 0.0
      %vm648 = vcmp.gt.f32.partialorder %v616, 0.0
      %vm649 = vcmp.gt.f32.partialorder %v617, 0.0
      %vm650 = vcmp.gt.f32.partialorder %v618, 0.0
      %vm651 = vcmp.gt.f32.partialorder %v619, 0.0
      %vm652 = vcmp.gt.f32.partialorder %v620, 0.0
      %vm653 = vcmp.gt.f32.partialorder %v621, 0.0
      %vm654 = vcmp.gt.f32.partialorder %v622, 0.0
      %vm655 = vcmp.gt.f32.partialorder %v623, 0.0
      %vm656 = vcmp.gt.f32.partialorder %v624, 0.0
      %vm657 = vcmp.gt.f32.partialorder %v625, 0.0
      %vm658 = vcmp.gt.f32.partialorder %v626, 0.0
      %vm659 = vcmp.gt.f32.partialorder %v627, 0.0
      %vm660 = vcmp.gt.f32.partialorder %v628, 0.0
      %vm661 = vcmp.gt.f32.partialorder %v629, 0.0
      %vm662 = vcmp.gt.f32.partialorder %v630, 0.0
      %vm663 = vcmp.gt.f32.partialorder %v631, 0.0
      %vm664 = vcmp.gt.f32.partialorder %v632, 0.0
      %vm665 = vcmp.gt.f32.partialorder %v633, 0.0
      %vm666 = vcmp.gt.f32.partialorder %v634, 0.0
      %v667 = vmul.f32 %v603, 0.2
      %v668 = vmul.f32 %v604, 0.2
      %v669 = vmul.f32 %v605, 0.2
      %v670 = vmul.f32 %v606, 0.2
      %v671 = vmul.f32 %v607, 0.2
      %v672 = vmul.f32 %v608, 0.2
      %v673 = vmul.f32 %v609, 0.2
      %v674 = vmul.f32 %v610, 0.2
      %v675 = vmul.f32 %v611, 0.2
      %v676 = vmul.f32 %v612, 0.2
      %v677 = vmul.f32 %v613, 0.2
      %v678 = vmul.f32 %v614, 0.2
      %v679 = vmul.f32 %v615, 0.2
      %v680 = vmul.f32 %v616, 0.2
      %v681 = vmul.f32 %v617, 0.2
      %v682 = vmul.f32 %v618, 0.2
      %v683 = vmul.f32 %v619, 0.2
      %v684 = vmul.f32 %v620, 0.2
      %v685 = vmul.f32 %v621, 0.2
      %v686 = vmul.f32 %v622, 0.2
      %v687 = vmul.f32 %v623, 0.2
      %v688 = vmul.f32 %v624, 0.2
      %v689 = vmul.f32 %v625, 0.2
      %v690 = vmul.f32 %v626, 0.2
      %v691 = vmul.f32 %v627, 0.2
      %v692 = vmul.f32 %v628, 0.2
      %v693 = vmul.f32 %v629, 0.2
      %v694 = vmul.f32 %v630, 0.2
      %v695 = vmul.f32 %v631, 0.2
      %v696 = vmul.f32 %v632, 0.2
      %v697 = vmul.f32 %v633, 0.2
      %v698 = vmul.f32 %v634, 0.2
      %v699 = vsel %vm635, %v603, %v667
      %v700 = vsel %vm636, %v604, %v668
      %v701 = vsel %vm637, %v605, %v669
      %v702 = vsel %vm638, %v606, %v670
      %v703 = vsel %vm639, %v607, %v671
      %v704 = vsel %vm640, %v608, %v672
      %v705 = vsel %vm641, %v609, %v673
      %v706 = vsel %vm642, %v610, %v674
      %v707 = vsel %vm643, %v611, %v675
      %v708 = vsel %vm644, %v612, %v676
      %v709 = vsel %vm645, %v613, %v677
      %v710 = vsel %vm646, %v614, %v678
      %v711 = vsel %vm647, %v615, %v679
      %v712 = vsel %vm648, %v616, %v680
      %v713 = vsel %vm649, %v617, %v681
      %v714 = vsel %vm650, %v618, %v682
      %v715 = vsel %vm651, %v619, %v683
      %v716 = vsel %vm652, %v620, %v684
      %v717 = vsel %vm653, %v621, %v685
      %v718 = vsel %vm654, %v622, %v686
      %v719 = vsel %vm655, %v623, %v687
      %v720 = vsel %vm656, %v624, %v688
      %v721 = vsel %vm657, %v625, %v689
      %v722 = vsel %vm658, %v626, %v690
      %v723 = vsel %vm659, %v627, %v691
      %v724 = vsel %vm660, %v628, %v692
      %v725 = vsel %vm661, %v629, %v693
      %v726 = vsel %vm662, %v630, %v694
      %v727 = vsel %vm663, %v631, %v695
      %v728 = vsel %vm664, %v632, %v696
      %v729 = vsel %vm665, %v633, %v697
      %v730 = vsel %vm666, %v634, %v698
      %vm731 = vcmask 261120
      %v732 = vsel %vm731, %v699, 0.0
      %v733 = vsel %vm731, %v700, 0.0
      %v734 = vadd.f32 %v732, %v733
      %v735 = vsel %vm731, %v701, 0.0
      %v736 = vadd.f32 %v734, %v735
      %v737 = vsel %vm731, %v702, 0.0
      %v738 = vadd.f32 %v736, %v737
      %v739 = vsel %vm731, %v703, 0.0
      %v740 = vadd.f32 %v738, %v739
      %v741 = vsel %vm731, %v704, 0.0
      %v742 = vadd.f32 %v740, %v741
      %v743 = vsel %vm731, %v705, 0.0
      %v744 = vadd.f32 %v742, %v743
      %v745 = vsel %vm731, %v706, 0.0
      %v746 = vadd.f32 %v744, %v745
      %v747 = vsel %vm731, %v707, 0.0
      %v748 = vadd.f32 %v746, %v747
      %v749 = vsel %vm731, %v708, 0.0
      %v750 = vadd.f32 %v748, %v749
      %v751 = vsel %vm731, %v709, 0.0
      %v752 = vadd.f32 %v750, %v751
      %v753 = vsel %vm731, %v710, 0.0
      %v754 = vadd.f32 %v752, %v753
      %v755 = vsel %vm731, %v711, 0.0
      %v756 = vadd.f32 %v754, %v755
      %v757 = vsel %vm731, %v712, 0.0
      %v758 = vadd.f32 %v756, %v757
      %v759 = vsel %vm731, %v713, 0.0
      %v760 = vadd.f32 %v758, %v759
      %v761 = vsel %vm731, %v714, 0.0
      %v762 = vadd.f32 %v760, %v761
      %v763 = vsel %vm731, %v715, 0.0
      %v764 = vadd.f32 %v762, %v763
      %v765 = vsel %vm731, %v716, 0.0
      %v766 = vadd.f32 %v764, %v765
      %v767 = vsel %vm731, %v717, 0.0
      %v768 = vadd.f32 %v766, %v767
      %v769 = vsel %vm731, %v718, 0.0
      %v770 = vadd.f32 %v768, %v769
      %v771 = vsel %vm731, %v719, 0.0
      %v772 = vadd.f32 %v770, %v771
      %v773 = vsel %vm731, %v720, 0.0
      %v774 = vadd.f32 %v772, %v773
      %v775 = vsel %vm731, %v721, 0.0
      %v776 = vadd.f32 %v774, %v775
      %v777 = vsel %vm731, %v722, 0.0
      %v778 = vadd.f32 %v776, %v777
      %v779 = vsel %vm731, %v723, 0.0
      %v780 = vadd.f32 %v778, %v779
      %v781 = vsel %vm731, %v724, 0.0
      %v782 = vadd.f32 %v780, %v781
      %v783 = vsel %vm731, %v725, 0.0
      %v784 = vadd.f32 %v782, %v783
      %v785 = vsel %vm731, %v726, 0.0
      %v786 = vadd.f32 %v784, %v785
      %v787 = vsel %vm731, %v727, 0.0
      %v788 = vadd.f32 %v786, %v787
      %v789 = vsel %vm731, %v728, 0.0
      %v790 = vadd.f32 %v788, %v789
      %v791 = vsel %vm731, %v729, 0.0
      %v792 = vadd.f32 %v790, %v791
      %v793 = vsel %vm731, %v730, 0.0
      %v794 = vadd.f32 %v792, %v793
      %v795 = vrot.slane %v794, 4
      %v796 = vadd.f32 %v794, %v795
      %v797 = vrot.slane %v796, 2
      %v798 = vadd.f32 %v796, %v797
      %v799 = vrot.slane %v798, 1
      %v800 = vadd.f32 %v798, %v799
      %v801 = vrcp.pop 256.0
      %v802 = vmul.f32 %v800, %v801
      %v803 = vsub.f32 %v699, %v802
      %v804 = vsub.f32 %v700, %v802
      %v805 = vsub.f32 %v701, %v802
      %v806 = vsub.f32 %v702, %v802
      %v807 = vsub.f32 %v703, %v802
      %v808 = vsub.f32 %v704, %v802
      %v809 = vsub.f32 %v705, %v802
      %v810 = vsub.f32 %v706, %v802
      %v811 = vsub.f32 %v707, %v802
      %v812 = vsub.f32 %v708, %v802
      %v813 = vsub.f32 %v709, %v802
      %v814 = vsub.f32 %v710, %v802
      %v815 = vsub.f32 %v711, %v802
      %v816 = vsub.f32 %v712, %v802
      %v817 = vsub.f32 %v713, %v802
      %v818 = vsub.f32 %v714, %v802
      %v819 = vsub.f32 %v715, %v802
      %v820 = vsub.f32 %v716, %v802
      %v821 = vsub.f32 %v717, %v802
      %v822 = vsub.f32 %v718, %v802
      %v823 = vsub.f32 %v719, %v802
      %v824 = vsub.f32 %v720, %v802
      %v825 = vsub.f32 %v721, %v802
      %v826 = vsub.f32 %v722, %v802
      %v827 = vsub.f32 %v723, %v802
      %v828 = vsub.f32 %v724, %v802
      %v829 = vsub.f32 %v725, %v802
      %v830 = vsub.f32 %v726, %v802
      %v831 = vsub.f32 %v727, %v802
      %v832 = vsub.f32 %v728, %v802
      %v833 = vsub.f32 %v729, %v802
      %v834 = vsub.f32 %v730, %v802
      %v835 = vmul.f32 %v803, %v803
      %v836 = vmul.f32 %v804, %v804
      %v837 = vmul.f32 %v805, %v805
      %v838 = vmul.f32 %v806, %v806
      %v839 = vmul.f32 %v807, %v807
      %v840 = vmul.f32 %v808, %v808
      %v841 = vmul.f32 %v809, %v809
      %v842 = vmul.f32 %v810, %v810
      %v843 = vmul.f32 %v811, %v811
      %v844 = vmul.f32 %v812, %v812
      %v845 = vmul.f32 %v813, %v813
      %v846 = vmul.f32 %v814, %v814
      %v847 = vmul.f32 %v815, %v815
      %v848 = vmul.f32 %v816, %v816
      %v849 = vmul.f32 %v817, %v817
      %v850 = vmul.f32 %v818, %v818
      %v851 = vmul.f32 %v819, %v819
      %v852 = vmul.f32 %v820, %v820
      %v853 = vmul.f32 %v821, %v821
      %v854 = vmul.f32 %v822, %v822
      %v855 = vmul.f32 %v823, %v823
      %v856 = vmul.f32 %v824, %v824
      %v857 = vmul.f32 %v825, %v825
      %v858 = vmul.f32 %v826, %v826
      %v859 = vmul.f32 %v827, %v827
      %v860 = vmul.f32 %v828, %v828
      %v861 = vmul.f32 %v829, %v829
      %v862 = vmul.f32 %v830, %v830
      %v863 = vmul.f32 %v831, %v831
      %v864 = vmul.f32 %v832, %v832
      %v865 = vmul.f32 %v833, %v833
      %v866 = vmul.f32 %v834, %v834
      %v867 = vsel %vm731, %v835, 0.0
      %v868 = vsel %vm731, %v836, 0.0
      %v869 = vadd.f32 %v867, %v868
      %v870 = vsel %vm731, %v837, 0.0
      %v871 = vadd.f32 %v869, %v870
      %v872 = vsel %vm731, %v838, 0.0
      %v873 = vadd.f32 %v871, %v872
      %v874 = vsel %vm731, %v839, 0.0
      %v875 = vadd.f32 %v873, %v874
      %v876 = vsel %vm731, %v840, 0.0
      %v877 = vadd.f32 %v875, %v876
      %v878 = vsel %vm731, %v841, 0.0
      %v879 = vadd.f32 %v877, %v878
      %v880 = vsel %vm731, %v842, 0.0
      %v881 = vadd.f32 %v879, %v880
      %v882 = vsel %vm731, %v843, 0.0
      %v883 = vadd.f32 %v881, %v882
      %v884 = vsel %vm731, %v844, 0.0
      %v885 = vadd.f32 %v883, %v884
      %v886 = vsel %vm731, %v845, 0.0
      %v887 = vadd.f32 %v885, %v886
      %v888 = vsel %vm731, %v846, 0.0
      %v889 = vadd.f32 %v887, %v888
      %v890 = vsel %vm731, %v847, 0.0
      %v891 = vadd.f32 %v889, %v890
      %v892 = vsel %vm731, %v848, 0.0
      %v893 = vadd.f32 %v891, %v892
      %v894 = vsel %vm731, %v849, 0.0
      %v895 = vadd.f32 %v893, %v894
      %v896 = vsel %vm731, %v850, 0.0
      %v897 = vadd.f32 %v895, %v896
      %v898 = vsel %vm731, %v851, 0.0
      %v899 = vadd.f32 %v897, %v898
      %v900 = vsel %vm731, %v852, 0.0
      %v901 = vadd.f32 %v899, %v900
      %v902 = vsel %vm731, %v853, 0.0
      %v903 = vadd.f32 %v901, %v902
      %v904 = vsel %vm731, %v854, 0.0
      %v905 = vadd.f32 %v903, %v904
      %v906 = vsel %vm731, %v855, 0.0
      %v907 = vadd.f32 %v905, %v906
      %v908 = vsel %vm731, %v856, 0.0
      %v909 = vadd.f32 %v907, %v908
      %v910 = vsel %vm731, %v857, 0.0
      %v911 = vadd.f32 %v909, %v910
      %v912 = vsel %vm731, %v858, 0.0
      %v913 = vadd.f32 %v911, %v912
      %v914 = vsel %vm731, %v859, 0.0
      %v915 = vadd.f32 %v913, %v914
      %v916 = vsel %vm731, %v860, 0.0
      %v917 = vadd.f32 %v915, %v916
      %v918 = vsel %vm731, %v861, 0.0
      %v919 = vadd.f32 %v917, %v918
      %v920 = vsel %vm731, %v862, 0.0
      %v921 = vadd.f32 %v919, %v920
      %v922 = vsel %vm731, %v863, 0.0
      %v923 = vadd.f32 %v921, %v922
      %v924 = vsel %vm731, %v864, 0.0
      %v925 = vadd.f32 %v923, %v924
      %v926 = vsel %vm731, %v865, 0.0
      %v927 = vadd.f32 %v925, %v926
      %v928 = vsel %vm731, %v866, 0.0
      %v929 = vadd.f32 %v927, %v928
      %v930 = vrot.slane %v929, 4
      %v931 = vadd.f32 %v929, %v930
      %v932 = vrot.slane %v931, 2
      %v933 = vadd.f32 %v931, %v932
      %v934 = vrot.slane %v933, 1
      %v935 = vadd.f32 %v933, %v934
      %v936 = vmul.f32 %v935, %v801
      %v937 = vadd.f32 %v936, 1e-05
      %v938 = vrsqrt.pop %v937
      %v939 = vmul.f32 %v803, %v938
      %v940 = vmul.f32 %v804, %v938
      %v941 = vmul.f32 %v805, %v938
      %v942 = vmul.f32 %v806, %v938
      %v943 = vmul.f32 %v807, %v938
      %v944 = vmul.f32 %v808, %v938
      %v945 = vmul.f32 %v809, %v938
      %v946 = vmul.f32 %v810, %v938
      %v947 = vmul.f32 %v811, %v938
      %v948 = vmul.f32 %v812, %v938
      %v949 = vmul.f32 %v813, %v938
      %v950 = vmul.f32 %v814, %v938
      %v951 = vmul.f32 %v815, %v938
      %v952 = vmul.f32 %v816, %v938
      %v953 = vmul.f32 %v817, %v938
      %v954 = vmul.f32 %v818, %v938
      %v955 = vmul.f32 %v819, %v938
      %v956 = vmul.f32 %v820, %v938
      %v957 = vmul.f32 %v821, %v938
      %v958 = vmul.f32 %v822, %v938
      %v959 = vmul.f32 %v823, %v938
      %v960 = vmul.f32 %v824, %v938
      %v961 = vmul.f32 %v825, %v938
      %v962 = vmul.f32 %v826, %v938
      %v963 = vmul.f32 %v827, %v938
      %v964 = vmul.f32 %v828, %v938
      %v965 = vmul.f32 %v829, %v938
      %v966 = vmul.f32 %v830, %v938
      %v967 = vmul.f32 %v831, %v938
      %v968 = vmul.f32 %v832, %v938
      %v969 = vmul.f32 %v833, %v938
      %v970 = vmul.f32 %v834, %v938
      %v971 = vld [vmem:[%s325] sm:$0x1]
      %v973 = vlaneseq
      %v974 = vshrl.u32 %v973, 7
      %v975 = vsub.s32 0, %v974
      %v976 = vrot.slane %v971, %v975
      %v978 = vmul.f32 %v939, %v976
      %v979 = vmul.f32 %v940, %v976
      %v980 = vmul.f32 %v941, %v976
      %v981 = vmul.f32 %v942, %v976
      %v982 = vmul.f32 %v943, %v976
      %v983 = vmul.f32 %v944, %v976
      %v984 = vmul.f32 %v945, %v976
      %v985 = vmul.f32 %v946, %v976
      %v986 = vmul.f32 %v947, %v976
      %v987 = vmul.f32 %v948, %v976
      %v988 = vmul.f32 %v949, %v976
      %v989 = vmul.f32 %v950, %v976
      %v990 = vmul.f32 %v951, %v976
      %v991 = vmul.f32 %v952, %v976
      %v992 = vmul.f32 %v953, %v976
      %v993 = vmul.f32 %v954, %v976
      %v994 = vmul.f32 %v955, %v976
      %v995 = vmul.f32 %v956, %v976
      %v996 = vmul.f32 %v957, %v976
      %v997 = vmul.f32 %v958, %v976
      %v998 = vmul.f32 %v959, %v976
      %v999 = vmul.f32 %v960, %v976
      %v1000 = vmul.f32 %v961, %v976
      %v1001 = vmul.f32 %v962, %v976
      %v1002 = vmul.f32 %v963, %v976
      %v1003 = vmul.f32 %v964, %v976
      %v1004 = vmul.f32 %v965, %v976
      %v1005 = vmul.f32 %v966, %v976
      %v1006 = vmul.f32 %v967, %v976
      %v1007 = vmul.f32 %v968, %v976
      %v1008 = vmul.f32 %v969, %v976
      %v1009 = vmul.f32 %v970, %v976
      %v1010 = vld [vmem:[%s331] sm:$0x1]
      %v1012 = vlaneseq
      %v1013 = vshrl.u32 %v1012, 7
      %v1014 = vsub.s32 0, %v1013
      %v1015 = vrot.slane %v1010, %v1014
      %v1017 = vadd.f32 %v978, %v1015
      %v1018 = vadd.f32 %v979, %v1015
      %v1019 = vadd.f32 %v980, %v1015
      %v1020 = vadd.f32 %v981, %v1015
      %v1021 = vadd.f32 %v982, %v1015
      %v1022 = vadd.f32 %v983, %v1015
      %v1023 = vadd.f32 %v984, %v1015
      %v1024 = vadd.f32 %v985, %v1015
      %v1025 = vadd.f32 %v986, %v1015
      %v1026 = vadd.f32 %v987, %v1015
      %v1027 = vadd.f32 %v988, %v1015
      %v1028 = vadd.f32 %v989, %v1015
      %v1029 = vadd.f32 %v990, %v1015
      %v1030 = vadd.f32 %v991, %v1015
      %v1031 = vadd.f32 %v992, %v1015
      %v1032 = vadd.f32 %v993, %v1015
      %v1033 = vadd.f32 %v994, %v1015
      %v1034 = vadd.f32 %v995, %v1015
      %v1035 = vadd.f32 %v996, %v1015
      %v1036 = vadd.f32 %v997, %v1015
      %v1037 = vadd.f32 %v998, %v1015
      %v1038 = vadd.f32 %v999, %v1015
      %v1039 = vadd.f32 %v1000, %v1015
      %v1040 = vadd.f32 %v1001, %v1015
      %v1041 = vadd.f32 %v1002, %v1015
      %v1042 = vadd.f32 %v1003, %v1015
      %v1043 = vadd.f32 %v1004, %v1015
      %v1044 = vadd.f32 %v1005, %v1015
      %v1045 = vadd.f32 %v1006, %v1015
      %v1046 = vadd.f32 %v1007, %v1015
      %v1047 = vadd.f32 %v1008, %v1015
      %v1048 = vadd.f32 %v1009, %v1015
      %1049 = vst.msk [vmem:[%s339] sm:$0xff] %vm731, %v1017
      %1050 = vst.msk [vmem:[%s339 + $0x8] sm:$0xff] %vm731, %v1018
      %1051 = vst.msk [vmem:[%s339 + $0x10] sm:$0xff] %vm731, %v1019
      %1052 = vst.msk [vmem:[%s339 + $0x18] sm:$0xff] %vm731, %v1020
      %1053 = vst.msk [vmem:[%s339 + $0x20] sm:$0xff] %vm731, %v1021
      %1054 = vst.msk [vmem:[%s339 + $0x28] sm:$0xff] %vm731, %v1022
      %1055 = vst.msk [vmem:[%s339 + $0x30] sm:$0xff] %vm731, %v1023
      %1056 = vst.msk [vmem:[%s339 + $0x38] sm:$0xff] %vm731, %v1024
      %1057 = vst.msk [vmem:[%s339 + $0x40] sm:$0xff] %vm731, %v1025
      %1058 = vst.msk [vmem:[%s339 + $0x48] sm:$0xff] %vm731, %v1026
      %1059 = vst.msk [vmem:[%s339 + $0x50] sm:$0xff] %vm731, %v1027
      %1060 = vst.msk [vmem:[%s339 + $0x58] sm:$0xff] %vm731, %v1028
      %1061 = vst.msk [vmem:[%s339 + $0x60] sm:$0xff] %vm731, %v1029
      %1062 = vst.msk [vmem:[%s339 + $0x68] sm:$0xff] %vm731, %v1030
      %1063 = vst.msk [vmem:[%s339 + $0x70] sm:$0xff] %vm731, %v1031
      %1064 = vst.msk [vmem:[%s339 + $0x78] sm:$0xff] %vm731, %v1032
      %1065 = vst.msk [vmem:[%s339 + $0x80] sm:$0xff] %vm731, %v1033
      %1066 = vst.msk [vmem:[%s339 + $0x88] sm:$0xff] %vm731, %v1034
      %1067 = vst.msk [vmem:[%s339 + $0x90] sm:$0xff] %vm731, %v1035
      %1068 = vst.msk [vmem:[%s339 + $0x98] sm:$0xff] %vm731, %v1036
      %1069 = vst.msk [vmem:[%s339 + $0xa0] sm:$0xff] %vm731, %v1037
      %1070 = vst.msk [vmem:[%s339 + $0xa8] sm:$0xff] %vm731, %v1038
      %1071 = vst.msk [vmem:[%s339 + $0xb0] sm:$0xff] %vm731, %v1039
      %1072 = vst.msk [vmem:[%s339 + $0xb8] sm:$0xff] %vm731, %v1040
      %1073 = vst.msk [vmem:[%s339 + $0xc0] sm:$0xff] %vm731, %v1041
      %1074 = vst.msk [vmem:[%s339 + $0xc8] sm:$0xff] %vm731, %v1042
      %1075 = vst.msk [vmem:[%s339 + $0xd0] sm:$0xff] %vm731, %v1043
      %1076 = vst.msk [vmem:[%s339 + $0xd8] sm:$0xff] %vm731, %v1044
      %1077 = vst.msk [vmem:[%s339 + $0xe0] sm:$0xff] %vm731, %v1045
      %1078 = vst.msk [vmem:[%s339 + $0xe8] sm:$0xff] %vm731, %v1046
      %1079 = vst.msk [vmem:[%s339 + $0xf0] sm:$0xff] %vm731, %v1047
      %1080 = vst.msk [vmem:[%s339 + $0xf8] sm:$0xff] %vm731, %v1048
      %p1081 = scmp.lt.s32.totalorder %s20, 1
      %s1082 = scalar_select %p1081, %s20, 1
      %p1083 = scmp.lt.s32.totalorder %s21, 0
      %s1084 = scalar_select %p1083, %s21, 0
      %s1085 = smul.addr %s1082, 32
      %s1086 = sadd.s32 %s1084, %s1085
      %s1087 = smul.addr %s1086, 8
      %s1088 = scalar_lea.vmem %s5, %s1087
      // Predicated region
      $region41: #{generator_forward.26} parent=39 // pred_check
        %p1089 = pneg %p184
      $region42: #{generator_forward.26} parent=39 // pred_check_branch
        %1091 = sbr.rel (%p1089) target = $region44
      $region43: #{generator_forward.26} parent=39 // pred_region
        _
      $region44: #{generator_forward.26} parent=39 // pred_fallthru
        _
    $region40: #{generator_forward.26} parent=5 // pred_fallthru
      _
    %p1092 = scmp.le.s32.totalorder 2, %s11
    // Predicated region
    $region45: #{generator_forward.26} parent=5 // pred_check
      %p1093 = pneg %p1092
    $region46: #{generator_forward.26} parent=5 // pred_check_branch
      %1095 = sbr.rel (%p1093) target = $region48
    $region47: #{generator_forward.26} parent=5 // pred_region
      %s1096 = ssub.s32 %s11, 2
      // Predicated region
      $region49: #{generator_forward.26} parent=47 // pred_check
        %p1097 = pneg %p190
      $region50: #{generator_forward.26} parent=47 // pred_check_branch
        %1099 = sbr.rel (%p1097) target = $region52
      $region51: #{generator_forward.26} parent=47 // pred_region
        %p1100 = scmp.lt.s32.totalorder %s22, 1
        %s1101 = scalar_select %p1100, %s22, 1
        %p1102 = scmp.lt.s32.totalorder %s23, 0
        %s1103 = scalar_select %p1102, %s23, 0
        %s1104 = smul.addr %s1101, 32
        %s1105 = sadd.s32 %s1103, %s1104
        %s1106 = smul.addr %s1105, 8
        %s1107 = scalar_lea.vmem %s5, %s1106
      $region52: #{generator_forward.26} parent=47 // pred_fallthru
        _
    $region48: #{generator_forward.26} parent=5 // pred_fallthru
      _
  $region6: #{generator_forward.26} parent=0 // loop_footer
    %s15 = sadd.s32 1, %s11
  $region7: #{generator_forward.26} parent=0 // loop_footer_branch
    %10 = sbr.rel target = $region3
  $region8: #{generator_forward.26} parent=0 // loop_exit
    _

// kernel: generator_forward.29
$region0: #{generator_forward.29}
  #allocation0 [shape = 'u32[]', space=smem, size = 0x4, offset = 0x4, fixed_abs, tag = 'smem constant byte address 0x4 - core index']
  #allocation1 [shape = 'u32[144,128]{1,0:T(1,128)}', space=vmem, size = 0x12000, scoped, tag = 'internal scratch']
  %s0 = inlined_call_operand.vmem [shape: bf16[512,32], index: 0, kind: input, shape index: {}]
  %s1 = inlined_call_operand.vmem [shape: bf16[512,32], index: 1, kind: input, shape index: {}]
  %s2 = inlined_call_operand.vmem [shape: bf16[32,3], index: 2, kind: input, shape index: {}]
  %s3 = inlined_call_operand.vmem [shape: bf16[32,3], index: 3, kind: input, shape index: {}]
  %s4 = inlined_call_operand.vmem [shape: f32[1,3], index: 4, kind: input, shape index: {}]
  %s5 = inlined_call_operand.vmem [shape: f32[512,3], index: 5, kind: output, shape index: {}]
  %s6 = sld [smem:[#allocation0]]
  $region30: #{generator_forward.29} parent=0
    _
  %s8 = ssub.s32 1, %s6
  %s9 = scalar_select 0, %s8, %s6
  // Predicated region
  $region2: #{generator_forward.29} parent=0 // pred_check
    _
  $region3: #{generator_forward.29} parent=0 // pred_check_branch
    %11 = sbr.rel (0) target = $region5
  $region4: #{generator_forward.29} parent=0 // pred_region
    _
  $region5: #{generator_forward.29} parent=0 // pred_fallthru
    _
  // Predicated region
  $region6: #{generator_forward.29} parent=0 // pred_check
    _
  $region7: #{generator_forward.29} parent=0 // pred_check_branch
    %13 = sbr.rel (0) target = $region9
  $region8: #{generator_forward.29} parent=0 // pred_region
    _
  $region9: #{generator_forward.29} parent=0 // pred_fallthru
    _
  // Predicated region
  $region10: #{generator_forward.29} parent=0 // pred_check
    _
  $region11: #{generator_forward.29} parent=0 // pred_check_branch
    %15 = sbr.rel (0) target = $region13
  $region12: #{generator_forward.29} parent=0 // pred_region
    _
  $region13: #{generator_forward.29} parent=0 // pred_fallthru
    _
  // Predicated region
  $region14: #{generator_forward.29} parent=0 // pred_check
    _
  $region15: #{generator_forward.29} parent=0 // pred_check_branch
    %17 = sbr.rel (0) target = $region17
  $region16: #{generator_forward.29} parent=0 // pred_region
    _
  $region17: #{generator_forward.29} parent=0 // pred_fallthru
    _
  // Predicated region
  $region18: #{generator_forward.29} parent=0 // pred_check
    _
  $region19: #{generator_forward.29} parent=0 // pred_check_branch
    %19 = sbr.rel (0) target = $region21
  $region20: #{generator_forward.29} parent=0 // pred_region
    _
  $region21: #{generator_forward.29} parent=0 // pred_fallthru
    _
  %v21 = vld [vmem:[%s0] sm:$0xf]
  %v22 = vld [vmem:[%s0 + $0x4] sm:$0xf]
  %v23 = vld [vmem:[%s0 + $0x8] sm:$0xf]
  %v24 = vld [vmem:[%s0 + $0xc] sm:$0xf]
  %v25 = vld [vmem:[%s0 + $0x10] sm:$0xf]
  %v26 = vld [vmem:[%s0 + $0x14] sm:$0xf]
  %v27 = vld [vmem:[%s0 + $0x18] sm:$0xf]
  %v28 = vld [vmem:[%s0 + $0x1c] sm:$0xf]
  %v29 = vld [vmem:[%s0 + $0x20] sm:$0xf]
  %v30 = vld [vmem:[%s0 + $0x24] sm:$0xf]
  %v31 = vld [vmem:[%s0 + $0x28] sm:$0xf]
  %v32 = vld [vmem:[%s0 + $0x2c] sm:$0xf]
  %v33 = vld [vmem:[%s0 + $0x30] sm:$0xf]
  %v34 = vld [vmem:[%s0 + $0x34] sm:$0xf]
  %v35 = vld [vmem:[%s0 + $0x38] sm:$0xf]
  %v36 = vld [vmem:[%s0 + $0x3c] sm:$0xf]
  %v37 = vld [vmem:[%s0 + $0x40] sm:$0xf]
  %v38 = vld [vmem:[%s0 + $0x44] sm:$0xf]
  %v39 = vld [vmem:[%s0 + $0x48] sm:$0xf]
  %v40 = vld [vmem:[%s0 + $0x4c] sm:$0xf]
  %v41 = vld [vmem:[%s0 + $0x50] sm:$0xf]
  %v42 = vld [vmem:[%s0 + $0x54] sm:$0xf]
  %v43 = vld [vmem:[%s0 + $0x58] sm:$0xf]
  %v44 = vld [vmem:[%s0 + $0x5c] sm:$0xf]
  %v45 = vld [vmem:[%s0 + $0x60] sm:$0xf]
  %v46 = vld [vmem:[%s0 + $0x64] sm:$0xf]
  %v47 = vld [vmem:[%s0 + $0x68] sm:$0xf]
  %v48 = vld [vmem:[%s0 + $0x6c] sm:$0xf]
  %v49 = vld [vmem:[%s0 + $0x70] sm:$0xf]
  %v50 = vld [vmem:[%s0 + $0x74] sm:$0xf]
  %v51 = vld [vmem:[%s0 + $0x78] sm:$0xf]
  %v52 = vld [vmem:[%s0 + $0x7c] sm:$0xf]
  %v53 = vld [vmem:[%s0 + $0x80] sm:$0xf]
  %v54 = vld [vmem:[%s0 + $0x84] sm:$0xf]
  %v55 = vld [vmem:[%s0 + $0x88] sm:$0xf]
  %v56 = vld [vmem:[%s0 + $0x8c] sm:$0xf]
  %v57 = vld [vmem:[%s0 + $0x90] sm:$0xf]
  %v58 = vld [vmem:[%s0 + $0x94] sm:$0xf]
  %v59 = vld [vmem:[%s0 + $0x98] sm:$0xf]
  %v60 = vld [vmem:[%s0 + $0x9c] sm:$0xf]
  %v61 = vld [vmem:[%s0 + $0xa0] sm:$0xf]
  %v62 = vld [vmem:[%s0 + $0xa4] sm:$0xf]
  %v63 = vld [vmem:[%s0 + $0xa8] sm:$0xf]
  %v64 = vld [vmem:[%s0 + $0xac] sm:$0xf]
  %v65 = vld [vmem:[%s0 + $0xb0] sm:$0xf]
  %v66 = vld [vmem:[%s0 + $0xb4] sm:$0xf]
  %v67 = vld [vmem:[%s0 + $0xb8] sm:$0xf]
  %v68 = vld [vmem:[%s0 + $0xbc] sm:$0xf]
  %v69 = vld [vmem:[%s0 + $0xc0] sm:$0xf]
  %v70 = vld [vmem:[%s0 + $0xc4] sm:$0xf]
  %v71 = vld [vmem:[%s0 + $0xc8] sm:$0xf]
  %v72 = vld [vmem:[%s0 + $0xcc] sm:$0xf]
  %v73 = vld [vmem:[%s0 + $0xd0] sm:$0xf]
  %v74 = vld [vmem:[%s0 + $0xd4] sm:$0xf]
  %v75 = vld [vmem:[%s0 + $0xd8] sm:$0xf]
  %v76 = vld [vmem:[%s0 + $0xdc] sm:$0xf]
  %v77 = vld [vmem:[%s0 + $0xe0] sm:$0xf]
  %v78 = vld [vmem:[%s0 + $0xe4] sm:$0xf]
  %v79 = vld [vmem:[%s0 + $0xe8] sm:$0xf]
  %v80 = vld [vmem:[%s0 + $0xec] sm:$0xf]
  %v81 = vld [vmem:[%s0 + $0xf0] sm:$0xf]
  %v82 = vld [vmem:[%s0 + $0xf4] sm:$0xf]
  %v83 = vld [vmem:[%s0 + $0xf8] sm:$0xf]
  %v84 = vld [vmem:[%s0 + $0xfc] sm:$0xf]
  %v85 = vld [vmem:[%s2] sm:$0xf]
  %v86 = vld [vmem:[%s2 + $0x4] sm:$0xf]
  %v87 = vld [vmem:[%s2 + $0x8] sm:$0xf]
  %v88 = vld [vmem:[%s2 + $0xc] sm:$0xf]
  %v89 = vld [vmem:[%s1] sm:$0xf]
  %v90 = vld [vmem:[%s1 + $0x4] sm:$0xf]
  %v91 = vld [vmem:[%s1 + $0x8] sm:$0xf]
  %v92 = vld [vmem:[%s1 + $0xc] sm:$0xf]
  %v93 = vld [vmem:[%s1 + $0x10] sm:$0xf]
  %v94 = vld [vmem:[%s1 + $0x14] sm:$0xf]
  %v95 = vld [vmem:[%s1 + $0x18] sm:$0xf]
  %v96 = vld [vmem:[%s1 + $0x1c] sm:$0xf]
  %v97 = vld [vmem:[%s1 + $0x20] sm:$0xf]
  %v98 = vld [vmem:[%s1 + $0x24] sm:$0xf]
  %v99 = vld [vmem:[%s1 + $0x28] sm:$0xf]
  %v100 = vld [vmem:[%s1 + $0x2c] sm:$0xf]
  %v101 = vld [vmem:[%s1 + $0x30] sm:$0xf]
  %v102 = vld [vmem:[%s1 + $0x34] sm:$0xf]
  %v103 = vld [vmem:[%s1 + $0x38] sm:$0xf]
  %v104 = vld [vmem:[%s1 + $0x3c] sm:$0xf]
  %v105 = vld [vmem:[%s1 + $0x40] sm:$0xf]
  %v106 = vld [vmem:[%s1 + $0x44] sm:$0xf]
  %v107 = vld [vmem:[%s1 + $0x48] sm:$0xf]
  %v108 = vld [vmem:[%s1 + $0x4c] sm:$0xf]
  %v109 = vld [vmem:[%s1 + $0x50] sm:$0xf]
  %v110 = vld [vmem:[%s1 + $0x54] sm:$0xf]
  %v111 = vld [vmem:[%s1 + $0x58] sm:$0xf]
  %v112 = vld [vmem:[%s1 + $0x5c] sm:$0xf]
  %v113 = vld [vmem:[%s1 + $0x60] sm:$0xf]
  %v114 = vld [vmem:[%s1 + $0x64] sm:$0xf]
  %v115 = vld [vmem:[%s1 + $0x68] sm:$0xf]
  %v116 = vld [vmem:[%s1 + $0x6c] sm:$0xf]
  %v117 = vld [vmem:[%s1 + $0x70] sm:$0xf]
  %v118 = vld [vmem:[%s1 + $0x74] sm:$0xf]
  %v119 = vld [vmem:[%s1 + $0x78] sm:$0xf]
  %v120 = vld [vmem:[%s1 + $0x7c] sm:$0xf]
  %v121 = vld [vmem:[%s1 + $0x80] sm:$0xf]
  %v122 = vld [vmem:[%s1 + $0x84] sm:$0xf]
  %v123 = vld [vmem:[%s1 + $0x88] sm:$0xf]
  %v124 = vld [vmem:[%s1 + $0x8c] sm:$0xf]
  %v125 = vld [vmem:[%s1 + $0x90] sm:$0xf]
  %v126 = vld [vmem:[%s1 + $0x94] sm:$0xf]
  %v127 = vld [vmem:[%s1 + $0x98] sm:$0xf]
  %v128 = vld [vmem:[%s1 + $0x9c] sm:$0xf]
  %v129 = vld [vmem:[%s1 + $0xa0] sm:$0xf]
  %v130 = vld [vmem:[%s1 + $0xa4] sm:$0xf]
  %v131 = vld [vmem:[%s1 + $0xa8] sm:$0xf]
  %v132 = vld [vmem:[%s1 + $0xac] sm:$0xf]
  %v133 = vld [vmem:[%s1 + $0xb0] sm:$0xf]
  %v134 = vld [vmem:[%s1 + $0xb4] sm:$0xf]
  %v135 = vld [vmem:[%s1 + $0xb8] sm:$0xf]
  %v136 = vld [vmem:[%s1 + $0xbc] sm:$0xf]
  %v137 = vld [vmem:[%s1 + $0xc0] sm:$0xf]
  %v138 = vld [vmem:[%s1 + $0xc4] sm:$0xf]
  %v139 = vld [vmem:[%s1 + $0xc8] sm:$0xf]
  %v140 = vld [vmem:[%s1 + $0xcc] sm:$0xf]
  %v141 = vld [vmem:[%s1 + $0xd0] sm:$0xf]
  %v142 = vld [vmem:[%s1 + $0xd4] sm:$0xf]
  %v143 = vld [vmem:[%s1 + $0xd8] sm:$0xf]
  %v144 = vld [vmem:[%s1 + $0xdc] sm:$0xf]
  %v145 = vld [vmem:[%s1 + $0xe0] sm:$0xf]
  %v146 = vld [vmem:[%s1 + $0xe4] sm:$0xf]
  %v147 = vld [vmem:[%s1 + $0xe8] sm:$0xf]
  %v148 = vld [vmem:[%s1 + $0xec] sm:$0xf]
  %v149 = vld [vmem:[%s1 + $0xf0] sm:$0xf]
  %v150 = vld [vmem:[%s1 + $0xf4] sm:$0xf]
  %v151 = vld [vmem:[%s1 + $0xf8] sm:$0xf]
  %v152 = vld [vmem:[%s1 + $0xfc] sm:$0xf]
  %v153 = vld [vmem:[%s3] sm:$0xf]
  %v154 = vld [vmem:[%s3 + $0x4] sm:$0xf]
  %v155 = vld [vmem:[%s3 + $0x8] sm:$0xf]
  %v156 = vld [vmem:[%s3 + $0xc] sm:$0xf]
  %v221 = vunpack.c.l.b16 %v89
  %v222 = vunpack.c.l.b16 %v90
  %v223 = vunpack.c.l.b16 %v91
  %v224 = vunpack.c.l.b16 %v92
  %v225 = vunpack.c.l.b16 %v93
  %v226 = vunpack.c.l.b16 %v94
  %v227 = vunpack.c.l.b16 %v95
  %v228 = vunpack.c.l.b16 %v96
  %v229 = vunpack.c.l.b16 %v97
  %v230 = vunpack.c.l.b16 %v98
  %v231 = vunpack.c.l.b16 %v99
  %v232 = vunpack.c.l.b16 %v100
  %v233 = vunpack.c.l.b16 %v101
  %v234 = vunpack.c.l.b16 %v102
  %v235 = vunpack.c.l.b16 %v103
  %v236 = vunpack.c.l.b16 %v104
  %v237 = vunpack.c.l.b16 %v105
  %v238 = vunpack.c.l.b16 %v106
  %v239 = vunpack.c.l.b16 %v107
  %v240 = vunpack.c.l.b16 %v108
  %v241 = vunpack.c.l.b16 %v109
  %v242 = vunpack.c.l.b16 %v110
  %v243 = vunpack.c.l.b16 %v111
  %v244 = vunpack.c.l.b16 %v112
  %v245 = vunpack.c.l.b16 %v113
  %v246 = vunpack.c.l.b16 %v114
  %v247 = vunpack.c.l.b16 %v115
  %v248 = vunpack.c.l.b16 %v116
  %v249 = vunpack.c.l.b16 %v117
  %v250 = vunpack.c.l.b16 %v118
  %v251 = vunpack.c.l.b16 %v119
  %v252 = vunpack.c.l.b16 %v120
  %v253 = vunpack.c.l.b16 %v121
  %v254 = vunpack.c.l.b16 %v122
  %v255 = vunpack.c.l.b16 %v123
  %v256 = vunpack.c.l.b16 %v124
  %v257 = vunpack.c.l.b16 %v125
  %v258 = vunpack.c.l.b16 %v126
  %v259 = vunpack.c.l.b16 %v127
  %v260 = vunpack.c.l.b16 %v128
  %v261 = vunpack.c.l.b16 %v129
  %v262 = vunpack.c.l.b16 %v130
  %v263 = vunpack.c.l.b16 %v131
  %v264 = vunpack.c.l.b16 %v132
  %v265 = vunpack.c.l.b16 %v133
  %v266 = vunpack.c.l.b16 %v134
  %v267 = vunpack.c.l.b16 %v135
  %v268 = vunpack.c.l.b16 %v136
  %v269 = vunpack.c.l.b16 %v137
  %v270 = vunpack.c.l.b16 %v138
  %v271 = vunpack.c.l.b16 %v139
  %v272 = vunpack.c.l.b16 %v140
  %v273 = vunpack.c.l.b16 %v141
  %v274 = vunpack.c.l.b16 %v142
  %v275 = vunpack.c.l.b16 %v143
  %v276 = vunpack.c.l.b16 %v144
  %v277 = vunpack.c.l.b16 %v145
  %v278 = vunpack.c.l.b16 %v146
  %v279 = vunpack.c.l.b16 %v147
  %v280 = vunpack.c.l.b16 %v148
  %v281 = vunpack.c.l.b16 %v149
  %v282 = vunpack.c.l.b16 %v150
  %v283 = vunpack.c.l.b16 %v151
  %v284 = vunpack.c.l.b16 %v152
  %v285 = vpack.c.b16 %v222, %v221
  %v286 = vpack.c.b16 %v224, %v223
  %v287 = vpack.c.b16 %v226, %v225
  %v288 = vpack.c.b16 %v228, %v227
  %v289 = vpack.c.b16 %v230, %v229
  %v290 = vpack.c.b16 %v232, %v231
  %v291 = vpack.c.b16 %v234, %v233
  %v292 = vpack.c.b16 %v236, %v235
  %v293 = vpack.c.b16 %v238, %v237
  %v294 = vpack.c.b16 %v240, %v239
  %v295 = vpack.c.b16 %v242, %v241
  %v296 = vpack.c.b16 %v244, %v243
  %v297 = vpack.c.b16 %v246, %v245
  %v298 = vpack.c.b16 %v248, %v247
  %v299 = vpack.c.b16 %v250, %v249
  %v300 = vpack.c.b16 %v252, %v251
  %v301 = vpack.c.b16 %v254, %v253
  %v302 = vpack.c.b16 %v256, %v255
  %v303 = vpack.c.b16 %v258, %v257
  %v304 = vpack.c.b16 %v260, %v259
  %v305 = vpack.c.b16 %v262, %v261
  %v306 = vpack.c.b16 %v264, %v263
  %v307 = vpack.c.b16 %v266, %v265
  %v308 = vpack.c.b16 %v268, %v267
  %v309 = vpack.c.b16 %v270, %v269
  %v310 = vpack.c.b16 %v272, %v271
  %v311 = vpack.c.b16 %v274, %v273
  %v312 = vpack.c.b16 %v276, %v275
  %v313 = vpack.c.b16 %v278, %v277
  %v314 = vpack.c.b16 %v280, %v279
  %v315 = vpack.c.b16 %v282, %v281
  %v316 = vpack.c.b16 %v284, %v283
  %v321 = vunpack.c.l.b16 %v153
  %v322 = vunpack.c.l.b16 %v154
  %v323 = vunpack.c.l.b16 %v155
  %v324 = vunpack.c.l.b16 %v156
  %v325 = vpack.c.b16 %v322, %v321
  %v326 = vpack.c.b16 %v324, %v323
  %vm329 = vcmask 261120
  %v331 = vsel %vm329, %v285, 0
  %v334 = vsel %vm329, %v286, 0
  %v337 = vsel %vm329, %v287, 0
  %v340 = vsel %vm329, %v288, 0
  %v343 = vsel %vm329, %v289, 0
  %v346 = vsel %vm329, %v290, 0
  %v349 = vsel %vm329, %v291, 0
  %v352 = vsel %vm329, %v292, 0
  %v355 = vsel %vm329, %v293, 0
  %v358 = vsel %vm329, %v294, 0
  %v361 = vsel %vm329, %v295, 0
  %v364 = vsel %vm329, %v296, 0
  %v367 = vsel %vm329, %v297, 0
  %v370 = vsel %vm329, %v298, 0
  %v373 = vsel %vm329, %v299, 0
  %v376 = vsel %vm329, %v300, 0
  %v379 = vsel %vm329, %v301, 0
  %v382 = vsel %vm329, %v302, 0
  %v385 = vsel %vm329, %v303, 0
  %v388 = vsel %vm329, %v304, 0
  %v391 = vsel %vm329, %v305, 0
  %v394 = vsel %vm329, %v306, 0
  %v397 = vsel %vm329, %v307, 0
  %v400 = vsel %vm329, %v308, 0
  %v403 = vsel %vm329, %v309, 0
  %v406 = vsel %vm329, %v310, 0
  %v409 = vsel %vm329, %v311, 0
  %v412 = vsel %vm329, %v312, 0
  %v415 = vsel %vm329, %v313, 0
  %v418 = vsel %vm329, %v314, 0
  %v421 = vsel %vm329, %v315, 0
  %v424 = vsel %vm329, %v316, 0
  %426 = vmatprep.subr.bf16.mxu0 0
  %427 = vmatpush1.bf16.msra.mxu0 0
  %428 = vmatprep.subr.bf16.mxu0 0
  %429 = vmatpush1.bf16.msra.mxu0 0
  %430 = vmatprep.subr.bf16.mxu0 0
  %431 = vmatpush1.bf16.msra.mxu0 0
  %432 = vmatprep.subr.bf16.mxu0 0
  %433 = vmatpush1.bf16.msra.mxu0 0
  %434 = vmatprep.subr.bf16.mxu0 0
  %435 = vmatpush1.bf16.msra.mxu0 0
  %436 = vmatprep.subr.bf16.mxu0 0
  %437 = vmatpush1.bf16.msra.mxu0 0
  %438 = vmatprep.subr.bf16.mxu0 0
  %439 = vmatpush1.bf16.msra.mxu0 %v326
  %440 = vmatprep.subr.bf16.mxu0 0
  %441 = vmatpush1.bf16.msra.mxu0 %v325
  %442 = vmatprep.subr.bf16.mxu0 0
  %443 = vmatpush2.bf16.msra.mxu0 0
  %444 = vmatprep.subr.bf16.mxu0 0
  %445 = vmatpush2.bf16.msra.mxu0 0
  %446 = vmatprep.subr.bf16.mxu0 0
  %447 = vmatpush2.bf16.msra.mxu0 0
  %448 = vmatprep.subr.bf16.mxu0 0
  %449 = vmatpush2.bf16.msra.mxu0 0
  %450 = vmatprep.subr.bf16.mxu0 0
  %451 = vmatpush2.bf16.msra.mxu0 0
  %452 = vmatprep.subr.bf16.mxu0 0
  %453 = vmatpush2.bf16.msra.mxu0 0
  %454 = vmatprep.subr.bf16.mxu0 0
  %455 = vmatpush2.bf16.msra.mxu0 0
  %456 = vmatprep.subr.bf16.mxu0 0
  %457 = vmatpush2.bf16.msra.mxu0 0
  %458 = vmatprep.mubr.bf16.mxu0 0
  %459 = vmatmul.mubr.bf16.gmra.mxu0 %v331
  %v460 = vpop.f32.mrf.mxu0
  %v461 = vadd.f32 0.0, %v460
  %v462 = vpop.f32.mrf.mxu0
  %v463 = vpop.f32.mrf.mxu0
  %v464 = vadd.f32 0.0, %v463
  %v465 = vpop.f32.mrf.mxu0
  %466 = vmatprep.mubr.bf16.mxu0 0
  %467 = vmatmul.mubr.bf16.gmra.mxu0 %v334
  %v468 = vpop.f32.mrf.mxu0
  %v469 = vadd.f32 0.0, %v468
  %v470 = vpop.f32.mrf.mxu0
  %v471 = vpop.f32.mrf.mxu0
  %v472 = vadd.f32 0.0, %v471
  %v473 = vpop.f32.mrf.mxu0
  %474 = vmatprep.mubr.bf16.mxu0 0
  %475 = vmatmul.mubr.bf16.gmra.mxu0 %v337
  %v476 = vpop.f32.mrf.mxu0
  %v477 = vadd.f32 0.0, %v476
  %v478 = vpop.f32.mrf.mxu0
  %v479 = vpop.f32.mrf.mxu0
  %v480 = vadd.f32 0.0, %v479
  %v481 = vpop.f32.mrf.mxu0
  %482 = vmatprep.mubr.bf16.mxu0 0
  %483 = vmatmul.mubr.bf16.gmra.mxu0 %v340
  %v484 = vpop.f32.mrf.mxu0
  %v485 = vadd.f32 0.0, %v484
  %v486 = vpop.f32.mrf.mxu0
  %v487 = vpop.f32.mrf.mxu0
  %v488 = vadd.f32 0.0, %v487
  %v489 = vpop.f32.mrf.mxu0
  %490 = vmatprep.mubr.bf16.mxu0 0
  %491 = vmatmul.mubr.bf16.gmra.mxu0 %v343
  %v492 = vpop.f32.mrf.mxu0
  %v493 = vadd.f32 0.0, %v492
  %v494 = vpop.f32.mrf.mxu0
  %v495 = vpop.f32.mrf.mxu0
  %v496 = vadd.f32 0.0, %v495
  %v497 = vpop.f32.mrf.mxu0
  %498 = vmatprep.mubr.bf16.mxu0 0
  %499 = vmatmul.mubr.bf16.gmra.mxu0 %v346
  %v500 = vpop.f32.mrf.mxu0
  %v501 = vadd.f32 0.0, %v500
  %v502 = vpop.f32.mrf.mxu0
  %v503 = vpop.f32.mrf.mxu0
  %v504 = vadd.f32 0.0, %v503
  %v505 = vpop.f32.mrf.mxu0
  %506 = vmatprep.mubr.bf16.mxu0 0
  %507 = vmatmul.mubr.bf16.gmra.mxu0 %v349
  %v508 = vpop.f32.mrf.mxu0
  %v509 = vadd.f32 0.0, %v508
  %v510 = vpop.f32.mrf.mxu0
  %v511 = vpop.f32.mrf.mxu0
  %v512 = vadd.f32 0.0, %v511
  %v513 = vpop.f32.mrf.mxu0
  %514 = vmatprep.mubr.bf16.mxu0 0
  %515 = vmatmul.mubr.bf16.gmra.mxu0 %v352
  %v516 = vpop.f32.mrf.mxu0
  %v517 = vadd.f32 0.0, %v516
  %v518 = vpop.f32.mrf.mxu0
  %v519 = vpop.f32.mrf.mxu0
  %v520 = vadd.f32 0.0, %v519
  %v521 = vpop.f32.mrf.mxu0
  %522 = vmatprep.mubr.bf16.mxu0 0
  %523 = vmatmul.mubr.bf16.gmra.mxu0 %v355
  %v524 = vpop.f32.mrf.mxu0
  %v525 = vadd.f32 0.0, %v524
  %v526 = vpop.f32.mrf.mxu0
  %v527 = vpop.f32.mrf.mxu0
  %v528 = vadd.f32 0.0, %v527
  %v529 = vpop.f32.mrf.mxu0
  %530 = vmatprep.mubr.bf16.mxu0 0
  %531 = vmatmul.mubr.bf16.gmra.mxu0 %v358
  %v532 = vpop.f32.mrf.mxu0
  %v533 = vadd.f32 0.0, %v532
  %v534 = vpop.f32.mrf.mxu0
  %v535 = vpop.f32.mrf.mxu0
  %v536 = vadd.f32 0.0, %v535
  %v537 = vpop.f32.mrf.mxu0
  %538 = vmatprep.mubr.bf16.mxu0 0
  %539 = vmatmul.mubr.bf16.gmra.mxu0 %v361
  %v540 = vpop.f32.mrf.mxu0
  %v541 = vadd.f32 0.0, %v540
  %v542 = vpop.f32.mrf.mxu0
  %v543 = vpop.f32.mrf.mxu0
  %v544 = vadd.f32 0.0, %v543
  %v545 = vpop.f32.mrf.mxu0
  %546 = vmatprep.mubr.bf16.mxu0 0
  %547 = vmatmul.mubr.bf16.gmra.mxu0 %v364
  %v548 = vpop.f32.mrf.mxu0
  %v549 = vadd.f32 0.0, %v548
  %v550 = vpop.f32.mrf.mxu0
  %v551 = vpop.f32.mrf.mxu0
  %v552 = vadd.f32 0.0, %v551
  %v553 = vpop.f32.mrf.mxu0
  %554 = vmatprep.mubr.bf16.mxu0 0
  %555 = vmatmul.mubr.bf16.gmra.mxu0 %v367
  %v556 = vpop.f32.mrf.mxu0
  %v557 = vadd.f32 0.0, %v556
  %v558 = vpop.f32.mrf.mxu0
  %v559 = vpop.f32.mrf.mxu0
  %v560 = vadd.f32 0.0, %v559
  %v561 = vpop.f32.mrf.mxu0
  %562 = vmatprep.mubr.bf16.mxu0 0
  %563 = vmatmul.mubr.bf16.gmra.mxu0 %v370
  %v564 = vpop.f32.mrf.mxu0
  %v565 = vadd.f32 0.0, %v564
  %v566 = vpop.f32.mrf.mxu0
  %v567 = vpop.f32.mrf.mxu0
  %v568 = vadd.f32 0.0, %v567
  %v569 = vpop.f32.mrf.mxu0
  %570 = vmatprep.mubr.bf16.mxu0 0
  %571 = vmatmul.mubr.bf16.gmra.mxu0 %v373
  %v572 = vpop.f32.mrf.mxu0
  %v573 = vadd.f32 0.0, %v572
  %v574 = vpop.f32.mrf.mxu0
  %v575 = vpop.f32.mrf.mxu0
  %v576 = vadd.f32 0.0, %v575
  %v577 = vpop.f32.mrf.mxu0
  %578 = vmatprep.mubr.bf16.mxu0 0
  %579 = vmatmul.mubr.bf16.gmra.mxu0 %v376
  %v580 = vpop.f32.mrf.mxu0
  %v581 = vadd.f32 0.0, %v580
  %v582 = vpop.f32.mrf.mxu0
  %v583 = vpop.f32.mrf.mxu0
  %v584 = vadd.f32 0.0, %v583
  %v585 = vpop.f32.mrf.mxu0
  %586 = vmatprep.mubr.bf16.mxu0 0
  %587 = vmatmul.mubr.bf16.gmra.mxu0 %v379
  %v588 = vpop.f32.mrf.mxu0
  %v589 = vadd.f32 0.0, %v588
  %v590 = vpop.f32.mrf.mxu0
  %v591 = vpop.f32.mrf.mxu0
  %v592 = vadd.f32 0.0, %v591
  %v593 = vpop.f32.mrf.mxu0
  %594 = vmatprep.mubr.bf16.mxu0 0
  %595 = vmatmul.mubr.bf16.gmra.mxu0 %v382
  %v596 = vpop.f32.mrf.mxu0
  %v597 = vadd.f32 0.0, %v596
  %v598 = vpop.f32.mrf.mxu0
  %v599 = vpop.f32.mrf.mxu0
  %v600 = vadd.f32 0.0, %v599
  %v601 = vpop.f32.mrf.mxu0
  %602 = vmatprep.mubr.bf16.mxu0 0
  %603 = vmatmul.mubr.bf16.gmra.mxu0 %v385
  %v604 = vpop.f32.mrf.mxu0
  %v605 = vadd.f32 0.0, %v604
  %v606 = vpop.f32.mrf.mxu0
  %v607 = vpop.f32.mrf.mxu0
  %v608 = vadd.f32 0.0, %v607
  %v609 = vpop.f32.mrf.mxu0
  %610 = vmatprep.mubr.bf16.mxu0 0
  %611 = vmatmul.mubr.bf16.gmra.mxu0 %v388
  %v612 = vpop.f32.mrf.mxu0
  %v613 = vadd.f32 0.0, %v612
  %v614 = vpop.f32.mrf.mxu0
  %v615 = vpop.f32.mrf.mxu0
  %v616 = vadd.f32 0.0, %v615
  %v617 = vpop.f32.mrf.mxu0
  %618 = vmatprep.mubr.bf16.mxu0 0
  %619 = vmatmul.mubr.bf16.gmra.mxu0 %v391
  %v620 = vpop.f32.mrf.mxu0
  %v621 = vadd.f32 0.0, %v620
  %v622 = vpop.f32.mrf.mxu0
  %v623 = vpop.f32.mrf.mxu0
  %v624 = vadd.f32 0.0, %v623
  %v625 = vpop.f32.mrf.mxu0
  %626 = vmatprep.mubr.bf16.mxu0 0
  %627 = vmatmul.mubr.bf16.gmra.mxu0 %v394
  %v628 = vpop.f32.mrf.mxu0
  %v629 = vadd.f32 0.0, %v628
  %v630 = vpop.f32.mrf.mxu0
  %v631 = vpop.f32.mrf.mxu0
  %v632 = vadd.f32 0.0, %v631
  %v633 = vpop.f32.mrf.mxu0
  %634 = vmatprep.mubr.bf16.mxu0 0
  %635 = vmatmul.mubr.bf16.gmra.mxu0 %v397
  %v636 = vpop.f32.mrf.mxu0
  %v637 = vadd.f32 0.0, %v636
  %v638 = vpop.f32.mrf.mxu0
  %v639 = vpop.f32.mrf.mxu0
  %v640 = vadd.f32 0.0, %v639
  %v641 = vpop.f32.mrf.mxu0
  %642 = vmatprep.mubr.bf16.mxu0 0
  %643 = vmatmul.mubr.bf16.gmra.mxu0 %v400
  %v644 = vpop.f32.mrf.mxu0
  %v645 = vadd.f32 0.0, %v644
  %v646 = vpop.f32.mrf.mxu0
  %v647 = vpop.f32.mrf.mxu0
  %v648 = vadd.f32 0.0, %v647
  %v649 = vpop.f32.mrf.mxu0
  %650 = vmatprep.mubr.bf16.mxu0 0
  %651 = vmatmul.mubr.bf16.gmra.mxu0 %v403
  %v652 = vpop.f32.mrf.mxu0
  %v653 = vadd.f32 0.0, %v652
  %v654 = vpop.f32.mrf.mxu0
  %v655 = vpop.f32.mrf.mxu0
  %v656 = vadd.f32 0.0, %v655
  %v657 = vpop.f32.mrf.mxu0
  %658 = vmatprep.mubr.bf16.mxu0 0
  %659 = vmatmul.mubr.bf16.gmra.mxu0 %v406
  %v660 = vpop.f32.mrf.mxu0
  %v661 = vadd.f32 0.0, %v660
  %v662 = vpop.f32.mrf.mxu0
  %v663 = vpop.f32.mrf.mxu0
  %v664 = vadd.f32 0.0, %v663
  %v665 = vpop.f32.mrf.mxu0
  %666 = vmatprep.mubr.bf16.mxu0 0
  %667 = vmatmul.mubr.bf16.gmra.mxu0 %v409
  %v668 = vpop.f32.mrf.mxu0
  %v669 = vadd.f32 0.0, %v668
  %v670 = vpop.f32.mrf.mxu0
  %v671 = vpop.f32.mrf.mxu0
  %v672 = vadd.f32 0.0, %v671
  %v673 = vpop.f32.mrf.mxu0
  %674 = vmatprep.mubr.bf16.mxu0 0
  %675 = vmatmul.mubr.bf16.gmra.mxu0 %v412
  %v676 = vpop.f32.mrf.mxu0
  %v677 = vadd.f32 0.0, %v676
  %v678 = vpop.f32.mrf.mxu0
  %v679 = vpop.f32.mrf.mxu0
  %v680 = vadd.f32 0.0, %v679
  %v681 = vpop.f32.mrf.mxu0
  %682 = vmatprep.mubr.bf16.mxu0 0
  %683 = vmatmul.mubr.bf16.gmra.mxu0 %v415
  %v684 = vpop.f32.mrf.mxu0
  %v685 = vadd.f32 0.0, %v684
  %v686 = vpop.f32.mrf.mxu0
  %v687 = vpop.f32.mrf.mxu0
  %v688 = vadd.f32 0.0, %v687
  %v689 = vpop.f32.mrf.mxu0
  %690 = vmatprep.mubr.bf16.mxu0 0
  %691 = vmatmul.mubr.bf16.gmra.mxu0 %v418
  %v692 = vpop.f32.mrf.mxu0
  %v693 = vadd.f32 0.0, %v692
  %v694 = vpop.f32.mrf.mxu0
  %v695 = vpop.f32.mrf.mxu0
  %v696 = vadd.f32 0.0, %v695
  %v697 = vpop.f32.mrf.mxu0
  %698 = vmatprep.mubr.bf16.mxu0 0
  %699 = vmatmul.mubr.bf16.gmra.mxu0 %v421
  %v700 = vpop.f32.mrf.mxu0
  %v701 = vadd.f32 0.0, %v700
  %v702 = vpop.f32.mrf.mxu0
  %v703 = vpop.f32.mrf.mxu0
  %v704 = vadd.f32 0.0, %v703
  %v705 = vpop.f32.mrf.mxu0
  %706 = vmatprep.mubr.bf16.mxu0 0
  %707 = vmatmul.mubr.bf16.gmra.mxu0 %v424
  %v708 = vpop.f32.mrf.mxu0
  %v709 = vadd.f32 0.0, %v708
  %v710 = vpop.f32.mrf.mxu0
  %v711 = vpop.f32.mrf.mxu0
  %v712 = vadd.f32 0.0, %v711
  %v713 = vpop.f32.mrf.mxu0
  %714 = vdwg.mxu0
  %v779 = vunpack.c.l.b16 %v21
  %v780 = vunpack.c.l.b16 %v22
  %v781 = vunpack.c.l.b16 %v23
  %v782 = vunpack.c.l.b16 %v24
  %v783 = vunpack.c.l.b16 %v25
  %v784 = vunpack.c.l.b16 %v26
  %v785 = vunpack.c.l.b16 %v27
  %v786 = vunpack.c.l.b16 %v28
  %v787 = vunpack.c.l.b16 %v29
  %v788 = vunpack.c.l.b16 %v30
  %v789 = vunpack.c.l.b16 %v31
  %v790 = vunpack.c.l.b16 %v32
  %v791 = vunpack.c.l.b16 %v33
  %v792 = vunpack.c.l.b16 %v34
  %v793 = vunpack.c.l.b16 %v35
  %v794 = vunpack.c.l.b16 %v36
  %v795 = vunpack.c.l.b16 %v37
  %v796 = vunpack.c.l.b16 %v38
  %v797 = vunpack.c.l.b16 %v39
  %v798 = vunpack.c.l.b16 %v40
  %v799 = vunpack.c.l.b16 %v41
  %v800 = vunpack.c.l.b16 %v42
  %v801 = vunpack.c.l.b16 %v43
  %v802 = vunpack.c.l.b16 %v44
  %v803 = vunpack.c.l.b16 %v45
  %v804 = vunpack.c.l.b16 %v46
  %v805 = vunpack.c.l.b16 %v47
  %v806 = vunpack.c.l.b16 %v48
  %v807 = vunpack.c.l.b16 %v49
  %v808 = vunpack.c.l.b16 %v50
  %v809 = vunpack.c.l.b16 %v51
  %v810 = vunpack.c.l.b16 %v52
  %v811 = vunpack.c.l.b16 %v53
  %v812 = vunpack.c.l.b16 %v54
  %v813 = vunpack.c.l.b16 %v55
  %v814 = vunpack.c.l.b16 %v56
  %v815 = vunpack.c.l.b16 %v57
  %v816 = vunpack.c.l.b16 %v58
  %v817 = vunpack.c.l.b16 %v59
  %v818 = vunpack.c.l.b16 %v60
  %v819 = vunpack.c.l.b16 %v61
  %v820 = vunpack.c.l.b16 %v62
  %v821 = vunpack.c.l.b16 %v63
  %v822 = vunpack.c.l.b16 %v64
  %v823 = vunpack.c.l.b16 %v65
  %v824 = vunpack.c.l.b16 %v66
  %v825 = vunpack.c.l.b16 %v67
  %v826 = vunpack.c.l.b16 %v68
  %v827 = vunpack.c.l.b16 %v69
  %v828 = vunpack.c.l.b16 %v70
  %v829 = vunpack.c.l.b16 %v71
  %v830 = vunpack.c.l.b16 %v72
  %v831 = vunpack.c.l.b16 %v73
  %v832 = vunpack.c.l.b16 %v74
  %v833 = vunpack.c.l.b16 %v75
  %v834 = vunpack.c.l.b16 %v76
  %v835 = vunpack.c.l.b16 %v77
  %v836 = vunpack.c.l.b16 %v78
  %v837 = vunpack.c.l.b16 %v79
  %v838 = vunpack.c.l.b16 %v80
  %v839 = vunpack.c.l.b16 %v81
  %v840 = vunpack.c.l.b16 %v82
  %v841 = vunpack.c.l.b16 %v83
  %v842 = vunpack.c.l.b16 %v84
  %v843 = vpack.c.b16 %v780, %v779
  %v844 = vpack.c.b16 %v782, %v781
  %v845 = vpack.c.b16 %v784, %v783
  %v846 = vpack.c.b16 %v786, %v785
  %v847 = vpack.c.b16 %v788, %v787
  %v848 = vpack.c.b16 %v790, %v789
  %v849 = vpack.c.b16 %v792, %v791
  %v850 = vpack.c.b16 %v794, %v793
  %v851 = vpack.c.b16 %v796, %v795
  %v852 = vpack.c.b16 %v798, %v797
  %v853 = vpack.c.b16 %v800, %v799
  %v854 = vpack.c.b16 %v802, %v801
  %v855 = vpack.c.b16 %v804, %v803
  %v856 = vpack.c.b16 %v806, %v805
  %v857 = vpack.c.b16 %v808, %v807
  %v858 = vpack.c.b16 %v810, %v809
  %v859 = vpack.c.b16 %v812, %v811
  %v860 = vpack.c.b16 %v814, %v813
  %v861 = vpack.c.b16 %v816, %v815
  %v862 = vpack.c.b16 %v818, %v817
  %v863 = vpack.c.b16 %v820, %v819
  %v864 = vpack.c.b16 %v822, %v821
  %v865 = vpack.c.b16 %v824, %v823
  %v866 = vpack.c.b16 %v826, %v825
  %v867 = vpack.c.b16 %v828, %v827
  %v868 = vpack.c.b16 %v830, %v829
  %v869 = vpack.c.b16 %v832, %v831
  %v870 = vpack.c.b16 %v834, %v833
  %v871 = vpack.c.b16 %v836, %v835
  %v872 = vpack.c.b16 %v838, %v837
  %v873 = vpack.c.b16 %v840, %v839
  %v874 = vpack.c.b16 %v842, %v841
  %v879 = vunpack.c.l.b16 %v85
  %v880 = vunpack.c.l.b16 %v86
  %v881 = vunpack.c.l.b16 %v87
  %v882 = vunpack.c.l.b16 %v88
  %v883 = vpack.c.b16 %v880, %v879
  %v884 = vpack.c.b16 %v882, %v881
  %v888 = vsel %vm329, %v843, 0
  %v891 = vsel %vm329, %v844, 0
  %v894 = vsel %vm329, %v845, 0
  %v897 = vsel %vm329, %v846, 0
  %v900 = vsel %vm329, %v847, 0
  %v903 = vsel %vm329, %v848, 0
  %v906 = vsel %vm329, %v849, 0
  %v909 = vsel %vm329, %v850, 0
  %v912 = vsel %vm329, %v851, 0
  %v915 = vsel %vm329, %v852, 0
  %v918 = vsel %vm329, %v853, 0
  %v921 = vsel %vm329, %v854, 0
  %v924 = vsel %vm329, %v855, 0
  %v927 = vsel %vm329, %v856, 0
  %v930 = vsel %vm329, %v857, 0
  %v933 = vsel %vm329, %v858, 0
  %v936 = vsel %vm329, %v859, 0
  %v939 = vsel %vm329, %v860, 0
  %v942 = vsel %vm329, %v861, 0
  %v945 = vsel %vm329, %v862, 0
  %v948 = vsel %vm329, %v863, 0
  %v951 = vsel %vm329, %v864, 0
  %v954 = vsel %vm329, %v865, 0
  %v957 = vsel %vm329, %v866, 0
  %v960 = vsel %vm329, %v867, 0
  %v963 = vsel %vm329, %v868, 0
  %v966 = vsel %vm329, %v869, 0
  %v969 = vsel %vm329, %v870, 0
  %v972 = vsel %vm329, %v871, 0
  %v975 = vsel %vm329, %v872, 0
  %v978 = vsel %vm329, %v873, 0
  %v981 = vsel %vm329, %v874, 0
  %983 = vmatprep.subr.bf16.mxu0 0
  %984 = vmatpush1.bf16.msra.mxu0 0
  %985 = vmatprep.subr.bf16.mxu0 0
  %986 = vmatpush1.bf16.msra.mxu0 0
  %987 = vmatprep.subr.bf16.mxu0 0
  %988 = vmatpush1.bf16.msra.mxu0 0
  %989 = vmatprep.subr.bf16.mxu0 0
  %990 = vmatpush1.bf16.msra.mxu0 0
  %991 = vmatprep.subr.bf16.mxu0 0
  %992 = vmatpush1.bf16.msra.mxu0 0
  %993 = vmatprep.subr.bf16.mxu0 0
  %994 = vmatpush1.bf16.msra.mxu0 0
  %995 = vmatprep.subr.bf16.mxu0 0
  %996 = vmatpush1.bf16.msra.mxu0 %v884
  %997 = vmatprep.subr.bf16.mxu0 0
  %998 = vmatpush1.bf16.msra.mxu0 %v883
  %999 = vmatprep.subr.bf16.mxu0 0
  %1000 = vmatpush2.bf16.msra.mxu0 0
  %1001 = vmatprep.subr.bf16.mxu0 0
  %1002 = vmatpush2.bf16.msra.mxu0 0
  %1003 = vmatprep.subr.bf16.mxu0 0
  %1004 = vmatpush2.bf16.msra.mxu0 0
  %1005 = vmatprep.subr.bf16.mxu0 0
  %1006 = vmatpush2.bf16.msra.mxu0 0
  %1007 = vmatprep.subr.bf16.mxu0 0
  %1008 = vmatpush2.bf16.msra.mxu0 0
  %1009 = vmatprep.subr.bf16.mxu0 0
  %1010 = vmatpush2.bf16.msra.mxu0 0
  %1011 = vmatprep.subr.bf16.mxu0 0
  %1012 = vmatpush2.bf16.msra.mxu0 0
  %1013 = vmatprep.subr.bf16.mxu0 0
  %1014 = vmatpush2.bf16.msra.mxu0 0
  %1015 = vmatprep.mubr.bf16.mxu0 0
  %1016 = vmatmul.mubr.bf16.gmra.mxu0 %v888
  %v1017 = vpop.f32.mrf.mxu0
  %v1018 = vadd.f32 %v461, %v1017
  %v1019 = vpop.f32.mrf.mxu0
  %v1020 = vpop.f32.mrf.mxu0
  %v1021 = vadd.f32 %v464, %v1020
  %v1022 = vpop.f32.mrf.mxu0
  %1023 = vmatprep.mubr.bf16.mxu0 0
  %1024 = vmatmul.mubr.bf16.gmra.mxu0 %v891
  %v1025 = vpop.f32.mrf.mxu0
  %v1026 = vadd.f32 %v469, %v1025
  %v1027 = vpop.f32.mrf.mxu0
  %v1028 = vpop.f32.mrf.mxu0
  %v1029 = vadd.f32 %v472, %v1028
  %v1030 = vpop.f32.mrf.mxu0
  %1031 = vmatprep.mubr.bf16.mxu0 0
  %1032 = vmatmul.mubr.bf16.gmra.mxu0 %v894
  %v1033 = vpop.f32.mrf.mxu0
  %v1034 = vadd.f32 %v477, %v1033
  %v1035 = vpop.f32.mrf.mxu0
  %v1036 = vpop.f32.mrf.mxu0
  %v1037 = vadd.f32 %v480, %v1036
  %v1038 = vpop.f32.mrf.mxu0
  %1039 = vmatprep.mubr.bf16.mxu0 0
  %1040 = vmatmul.mubr.bf16.gmra.mxu0 %v897
  %v1041 = vpop.f32.mrf.mxu0
  %v1042 = vadd.f32 %v485, %v1041
  %v1043 = vpop.f32.mrf.mxu0
  %v1044 = vpop.f32.mrf.mxu0
  %v1045 = vadd.f32 %v488, %v1044
  %v1046 = vpop.f32.mrf.mxu0
  %1047 = vmatprep.mubr.bf16.mxu0 0
  %1048 = vmatmul.mubr.bf16.gmra.mxu0 %v900
  %v1049 = vpop.f32.mrf.mxu0
  %v1050 = vadd.f32 %v493, %v1049
  %v1051 = vpop.f32.mrf.mxu0
  %v1052 = vpop.f32.mrf.mxu0
  %v1053 = vadd.f32 %v496, %v1052
  %v1054 = vpop.f32.mrf.mxu0
  %1055 = vmatprep.mubr.bf16.mxu0 0
  %1056 = vmatmul.mubr.bf16.gmra.mxu0 %v903
  %v1057 = vpop.f32.mrf.mxu0
  %v1058 = vadd.f32 %v501, %v1057
  %v1059 = vpop.f32.mrf.mxu0
  %v1060 = vpop.f32.mrf.mxu0
  %v1061 = vadd.f32 %v504, %v1060
  %v1062 = vpop.f32.mrf.mxu0
  %1063 = vmatprep.mubr.bf16.mxu0 0
  %1064 = vmatmul.mubr.bf16.gmra.mxu0 %v906
  %v1065 = vpop.f32.mrf.mxu0
  %v1066 = vadd.f32 %v509, %v1065
  %v1067 = vpop.f32.mrf.mxu0
  %v1068 = vpop.f32.mrf.mxu0
  %v1069 = vadd.f32 %v512, %v1068
  %v1070 = vpop.f32.mrf.mxu0
  %1071 = vmatprep.mubr.bf16.mxu0 0
  %1072 = vmatmul.mubr.bf16.gmra.mxu0 %v909
  %v1073 = vpop.f32.mrf.mxu0
  %v1074 = vadd.f32 %v517, %v1073
  %v1075 = vpop.f32.mrf.mxu0
  %v1076 = vpop.f32.mrf.mxu0
  %v1077 = vadd.f32 %v520, %v1076
  %v1078 = vpop.f32.mrf.mxu0
  %1079 = vmatprep.mubr.bf16.mxu0 0
  %1080 = vmatmul.mubr.bf16.gmra.mxu0 %v912
  %v1081 = vpop.f32.mrf.mxu0
  %v1082 = vadd.f32 %v525, %v1081
  %v1083 = vpop.f32.mrf.mxu0
  %v1084 = vpop.f32.mrf.mxu0
  %v1085 = vadd.f32 %v528, %v1084
  %v1086 = vpop.f32.mrf.mxu0
  %1087 = vmatprep.mubr.bf16.mxu0 0
  %1088 = vmatmul.mubr.bf16.gmra.mxu0 %v915
  %v1089 = vpop.f32.mrf.mxu0
  %v1090 = vadd.f32 %v533, %v1089
  %v1091 = vpop.f32.mrf.mxu0
  %v1092 = vpop.f32.mrf.mxu0
  %v1093 = vadd.f32 %v536, %v1092
  %v1094 = vpop.f32.mrf.mxu0
  %1095 = vmatprep.mubr.bf16.mxu0 0
  %1096 = vmatmul.mubr.bf16.gmra.mxu0 %v918
  %v1097 = vpop.f32.mrf.mxu0
  %v1098 = vadd.f32 %v541, %v1097
  %v1099 = vpop.f32.mrf.mxu0
  %v1100 = vpop.f32.mrf.mxu0
  %v1101 = vadd.f32 %v544, %v1100
  %v1102 = vpop.f32.mrf.mxu0
  %1103 = vmatprep.mubr.bf16.mxu0 0
  %1104 = vmatmul.mubr.bf16.gmra.mxu0 %v921
  %v1105 = vpop.f32.mrf.mxu0
  %v1106 = vadd.f32 %v549, %v1105
  %v1107 = vpop.f32.mrf.mxu0
  %v1108 = vpop.f32.mrf.mxu0
  %v1109 = vadd.f32 %v552, %v1108
  %v1110 = vpop.f32.mrf.mxu0
  %1111 = vmatprep.mubr.bf16.mxu0 0
  %1112 = vmatmul.mubr.bf16.gmra.mxu0 %v924
  %v1113 = vpop.f32.mrf.mxu0
  %v1114 = vadd.f32 %v557, %v1113
  %v1115 = vpop.f32.mrf.mxu0
  %v1116 = vpop.f32.mrf.mxu0
  %v1117 = vadd.f32 %v560, %v1116
  %v1118 = vpop.f32.mrf.mxu0
  %1119 = vmatprep.mubr.bf16.mxu0 0
  %1120 = vmatmul.mubr.bf16.gmra.mxu0 %v927
  %v1121 = vpop.f32.mrf.mxu0
  %v1122 = vadd.f32 %v565, %v1121
  %v1123 = vpop.f32.mrf.mxu0
  %v1124 = vpop.f32.mrf.mxu0
  %v1125 = vadd.f32 %v568, %v1124
  %v1126 = vpop.f32.mrf.mxu0
  %1127 = vmatprep.mubr.bf16.mxu0 0
  %1128 = vmatmul.mubr.bf16.gmra.mxu0 %v930
  %v1129 = vpop.f32.mrf.mxu0
  %v1130 = vadd.f32 %v573, %v1129
  %v1131 = vpop.f32.mrf.mxu0
  %v1132 = vpop.f32.mrf.mxu0
  %v1133 = vadd.f32 %v576, %v1132
  %v1134 = vpop.f32.mrf.mxu0
  %1135 = vmatprep.mubr.bf16.mxu0 0
  %1136 = vmatmul.mubr.bf16.gmra.mxu0 %v933
  %v1137 = vpop.f32.mrf.mxu0
  %v1138 = vadd.f32 %v581, %v1137
  %v1139 = vpop.f32.mrf.mxu0
  %v1140 = vpop.f32.mrf.mxu0
  %v1141 = vadd.f32 %v584, %v1140
  %v1142 = vpop.f32.mrf.mxu0
  %1143 = vmatprep.mubr.bf16.mxu0 0
  %1144 = vmatmul.mubr.bf16.gmra.mxu0 %v936
  %v1145 = vpop.f32.mrf.mxu0
  %v1146 = vadd.f32 %v589, %v1145
  %v1147 = vpop.f32.mrf.mxu0
  %v1148 = vpop.f32.mrf.mxu0
  %v1149 = vadd.f32 %v592, %v1148
  %v1150 = vpop.f32.mrf.mxu0
  %1151 = vmatprep.mubr.bf16.mxu0 0
  %1152 = vmatmul.mubr.bf16.gmra.mxu0 %v939
  %v1153 = vpop.f32.mrf.mxu0
  %v1154 = vadd.f32 %v597, %v1153
  %v1155 = vpop.f32.mrf.mxu0
  %v1156 = vpop.f32.mrf.mxu0
  %v1157 = vadd.f32 %v600, %v1156
  %v1158 = vpop.f32.mrf.mxu0
  %1159 = vmatprep.mubr.bf16.mxu0 0
  %1160 = vmatmul.mubr.bf16.gmra.mxu0 %v942
  %v1161 = vpop.f32.mrf.mxu0
  %v1162 = vadd.f32 %v605, %v1161
  %v1163 = vpop.f32.mrf.mxu0
  %v1164 = vpop.f32.mrf.mxu0
  %v1165 = vadd.f32 %v608, %v1164
  %v1166 = vpop.f32.mrf.mxu0
  %1167 = vmatprep.mubr.bf16.mxu0 0
  %1168 = vmatmul.mubr.bf16.gmra.mxu0 %v945
  %v1169 = vpop.f32.mrf.mxu0
  %v1170 = vadd.f32 %v613, %v1169
  %v1171 = vpop.f32.mrf.mxu0
  %v1172 = vpop.f32.mrf.mxu0
  %v1173 = vadd.f32 %v616, %v1172
  %v1174 = vpop.f32.mrf.mxu0
  %1175 = vmatprep.mubr.bf16.mxu0 0
  %1176 = vmatmul.mubr.bf16.gmra.mxu0 %v948
  %v1177 = vpop.f32.mrf.mxu0
  %v1178 = vadd.f32 %v621, %v1177
  %v1179 = vpop.f32.mrf.mxu0
  %v1180 = vpop.f32.mrf.mxu0
  %v1181 = vadd.f32 %v624, %v1180
  %v1182 = vpop.f32.mrf.mxu0
  %1183 = vmatprep.mubr.bf16.mxu0 0
  %1184 = vmatmul.mubr.bf16.gmra.mxu0 %v951
  %v1185 = vpop.f32.mrf.mxu0
  %v1186 = vadd.f32 %v629, %v1185
  %v1187 = vpop.f32.mrf.mxu0
  %v1188 = vpop.f32.mrf.mxu0
  %v1189 = vadd.f32 %v632, %v1188
  %v1190 = vpop.f32.mrf.mxu0
  %1191 = vmatprep.mubr.bf16.mxu0 0
  %1192 = vmatmul.mubr.bf16.gmra.mxu0 %v954
  %v1193 = vpop.f32.mrf.mxu0
  %v1194 = vadd.f32 %v637, %v1193
  %v1195 = vpop.f32.mrf.mxu0
  %v1196 = vpop.f32.mrf.mxu0
  %v1197 = vadd.f32 %v640, %v1196
  %v1198 = vpop.f32.mrf.mxu0
  %1199 = vmatprep.mubr.bf16.mxu0 0
  %1200 = vmatmul.mubr.bf16.gmra.mxu0 %v957
  %v1201 = vpop.f32.mrf.mxu0
  %v1202 = vadd.f32 %v645, %v1201
  %v1203 = vpop.f32.mrf.mxu0
  %v1204 = vpop.f32.mrf.mxu0
  %v1205 = vadd.f32 %v648, %v1204
  %v1206 = vpop.f32.mrf.mxu0
  %1207 = vmatprep.mubr.bf16.mxu0 0
  %1208 = vmatmul.mubr.bf16.gmra.mxu0 %v960
  %v1209 = vpop.f32.mrf.mxu0
  %v1210 = vadd.f32 %v653, %v1209
  %v1211 = vpop.f32.mrf.mxu0
  %v1212 = vpop.f32.mrf.mxu0
  %v1213 = vadd.f32 %v656, %v1212
  %v1214 = vpop.f32.mrf.mxu0
  %1215 = vmatprep.mubr.bf16.mxu0 0
  %1216 = vmatmul.mubr.bf16.gmra.mxu0 %v963
  %v1217 = vpop.f32.mrf.mxu0
  %v1218 = vadd.f32 %v661, %v1217
  %v1219 = vpop.f32.mrf.mxu0
  %v1220 = vpop.f32.mrf.mxu0
  %v1221 = vadd.f32 %v664, %v1220
  %v1222 = vpop.f32.mrf.mxu0
  %1223 = vmatprep.mubr.bf16.mxu0 0
  %1224 = vmatmul.mubr.bf16.gmra.mxu0 %v966
  %v1225 = vpop.f32.mrf.mxu0
  %v1226 = vadd.f32 %v669, %v1225
  %v1227 = vpop.f32.mrf.mxu0
  %v1228 = vpop.f32.mrf.mxu0
  %v1229 = vadd.f32 %v672, %v1228
  %v1230 = vpop.f32.mrf.mxu0
  %1231 = vmatprep.mubr.bf16.mxu0 0
  %1232 = vmatmul.mubr.bf16.gmra.mxu0 %v969
  %v1233 = vpop.f32.mrf.mxu0
  %v1234 = vadd.f32 %v677, %v1233
  %v1235 = vpop.f32.mrf.mxu0
  %v1236 = vpop.f32.mrf.mxu0
  %v1237 = vadd.f32 %v680, %v1236
  %v1238 = vpop.f32.mrf.mxu0
  %1239 = vmatprep.mubr.bf16.mxu0 0
  %1240 = vmatmul.mubr.bf16.gmra.mxu0 %v972
  %v1241 = vpop.f32.mrf.mxu0
  %v1242 = vadd.f32 %v685, %v1241
  %v1243 = vpop.f32.mrf.mxu0
  %v1244 = vpop.f32.mrf.mxu0
  %v1245 = vadd.f32 %v688, %v1244
  %v1246 = vpop.f32.mrf.mxu0
  %1247 = vmatprep.mubr.bf16.mxu0 0
  %1248 = vmatmul.mubr.bf16.gmra.mxu0 %v975
  %v1249 = vpop.f32.mrf.mxu0
  %v1250 = vadd.f32 %v693, %v1249
  %v1251 = vpop.f32.mrf.mxu0
  %v1252 = vpop.f32.mrf.mxu0
  %v1253 = vadd.f32 %v696, %v1252
  %v1254 = vpop.f32.mrf.mxu0
  %1255 = vmatprep.mubr.bf16.mxu0 0
  %1256 = vmatmul.mubr.bf16.gmra.mxu0 %v978
  %v1257 = vpop.f32.mrf.mxu0
  %v1258 = vadd.f32 %v701, %v1257
  %v1259 = vpop.f32.mrf.mxu0
  %v1260 = vpop.f32.mrf.mxu0
  %v1261 = vadd.f32 %v704, %v1260
  %v1262 = vpop.f32.mrf.mxu0
  %1263 = vmatprep.mubr.bf16.mxu0 0
  %1264 = vmatmul.mubr.bf16.gmra.mxu0 %v981
  %v1265 = vpop.f32.mrf.mxu0
  %v1266 = vadd.f32 %v709, %v1265
  %v1267 = vpop.f32.mrf.mxu0
  %v1268 = vpop.f32.mrf.mxu0
  %v1269 = vadd.f32 %v712, %v1268
  %v1270 = vpop.f32.mrf.mxu0
  %1271 = vdwg.mxu0
  %v1272 = vld [vmem:[%s4] sm:$0x1]
  %v1274 = vlaneseq
  %v1275 = vshrl.u32 %v1274, 7
  %v1276 = vsub.s32 0, %v1275
  %v1277 = vrot.slane %v1272, %v1276
  %v1279 = vadd.f32 %v1018, %v1277
  %v1280 = vadd.f32 %v1021, %v1277
  %v1281 = vadd.f32 %v1026, %v1277
  %v1282 = vadd.f32 %v1029, %v1277
  %v1283 = vadd.f32 %v1034, %v1277
  %v1284 = vadd.f32 %v1037, %v1277
  %v1285 = vadd.f32 %v1042, %v1277
  %v1286 = vadd.f32 %v1045, %v1277
  %v1287 = vadd.f32 %v1050, %v1277
  %v1288 = vadd.f32 %v1053, %v1277
  %v1289 = vadd.f32 %v1058, %v1277
  %v1290 = vadd.f32 %v1061, %v1277
  %v1291 = vadd.f32 %v1066, %v1277
  %v1292 = vadd.f32 %v1069, %v1277
  %v1293 = vadd.f32 %v1074, %v1277
  %v1294 = vadd.f32 %v1077, %v1277
  %v1295 = vadd.f32 %v1082, %v1277
  %v1296 = vadd.f32 %v1085, %v1277
  %v1297 = vadd.f32 %v1090, %v1277
  %v1298 = vadd.f32 %v1093, %v1277
  %v1299 = vadd.f32 %v1098, %v1277
  %v1300 = vadd.f32 %v1101, %v1277
  %v1301 = vadd.f32 %v1106, %v1277
  %v1302 = vadd.f32 %v1109, %v1277
  %v1303 = vadd.f32 %v1114, %v1277
  %v1304 = vadd.f32 %v1117, %v1277
  %v1305 = vadd.f32 %v1122, %v1277
  %v1306 = vadd.f32 %v1125, %v1277
  %v1307 = vadd.f32 %v1130, %v1277
  %v1308 = vadd.f32 %v1133, %v1277
  %v1309 = vadd.f32 %v1138, %v1277
  %v1310 = vadd.f32 %v1141, %v1277
  %v1311 = vadd.f32 %v1146, %v1277
  %v1312 = vadd.f32 %v1149, %v1277
  %v1313 = vadd.f32 %v1154, %v1277
  %v1314 = vadd.f32 %v1157, %v1277
  %v1315 = vadd.f32 %v1162, %v1277
  %v1316 = vadd.f32 %v1165, %v1277
  %v1317 = vadd.f32 %v1170, %v1277
  %v1318 = vadd.f32 %v1173, %v1277
  %v1319 = vadd.f32 %v1178, %v1277
  %v1320 = vadd.f32 %v1181, %v1277
  %v1321 = vadd.f32 %v1186, %v1277
  %v1322 = vadd.f32 %v1189, %v1277
  %v1323 = vadd.f32 %v1194, %v1277
  %v1324 = vadd.f32 %v1197, %v1277
  %v1325 = vadd.f32 %v1202, %v1277
  %v1326 = vadd.f32 %v1205, %v1277
  %v1327 = vadd.f32 %v1210, %v1277
  %v1328 = vadd.f32 %v1213, %v1277
  %v1329 = vadd.f32 %v1218, %v1277
  %v1330 = vadd.f32 %v1221, %v1277
  %v1331 = vadd.f32 %v1226, %v1277
  %v1332 = vadd.f32 %v1229, %v1277
  %v1333 = vadd.f32 %v1234, %v1277
  %v1334 = vadd.f32 %v1237, %v1277
  %v1335 = vadd.f32 %v1242, %v1277
  %v1336 = vadd.f32 %v1245, %v1277
  %v1337 = vadd.f32 %v1250, %v1277
  %v1338 = vadd.f32 %v1253, %v1277
  %v1339 = vadd.f32 %v1258, %v1277
  %v1340 = vadd.f32 %v1261, %v1277
  %v1341 = vadd.f32 %v1266, %v1277
  %v1342 = vadd.f32 %v1269, %v1277
  %vm1343 = vcmask 23552
  %1344 = vst.msk [vmem:[%s5] sm:$0xff] %vm1343, %v1279
  %1345 = vst.msk [vmem:[%s5 + $0x8] sm:$0xff] %vm1343, %v1280
  %1346 = vst.msk [vmem:[%s5 + $0x10] sm:$0xff] %vm1343, %v1281
  %1347 = vst.msk [vmem:[%s5 + $0x18] sm:$0xff] %vm1343, %v1282
  %1348 = vst.msk [vmem:[%s5 + $0x20] sm:$0xff] %vm1343, %v1283
  %1349 = vst.msk [vmem:[%s5 + $0x28] sm:$0xff] %vm1343, %v1284
  %1350 = vst.msk [vmem:[%s5 + $0x30] sm:$0xff] %vm1343, %v1285
  %1351 = vst.msk [vmem:[%s5 + $0x38] sm:$0xff] %vm1343, %v1286
  %1352 = vst.msk [vmem:[%s5 + $0x40] sm:$0xff] %vm1343, %v1287
  %1353 = vst.msk [vmem:[%s5 + $0x48] sm:$0xff] %vm1343, %v1288
  %1354 = vst.msk [vmem:[%s5 + $0x50] sm:$0xff] %vm1343, %v1289
  %1355 = vst.msk [vmem:[%s5 + $0x58] sm:$0xff] %vm1343, %v1290
  %1356 = vst.msk [vmem:[%s5 + $0x60] sm:$0xff] %vm1343, %v1291
  %1357 = vst.msk [vmem:[%s5 + $0x68] sm:$0xff] %vm1343, %v1292
  %1358 = vst.msk [vmem:[%s5 + $0x70] sm:$0xff] %vm1343, %v1293
  %1359 = vst.msk [vmem:[%s5 + $0x78] sm:$0xff] %vm1343, %v1294
  %1360 = vst.msk [vmem:[%s5 + $0x80] sm:$0xff] %vm1343, %v1295
  %1361 = vst.msk [vmem:[%s5 + $0x88] sm:$0xff] %vm1343, %v1296
  %1362 = vst.msk [vmem:[%s5 + $0x90] sm:$0xff] %vm1343, %v1297
  %1363 = vst.msk [vmem:[%s5 + $0x98] sm:$0xff] %vm1343, %v1298
  %1364 = vst.msk [vmem:[%s5 + $0xa0] sm:$0xff] %vm1343, %v1299
  %1365 = vst.msk [vmem:[%s5 + $0xa8] sm:$0xff] %vm1343, %v1300
  %1366 = vst.msk [vmem:[%s5 + $0xb0] sm:$0xff] %vm1343, %v1301
  %1367 = vst.msk [vmem:[%s5 + $0xb8] sm:$0xff] %vm1343, %v1302
  %1368 = vst.msk [vmem:[%s5 + $0xc0] sm:$0xff] %vm1343, %v1303
  %1369 = vst.msk [vmem:[%s5 + $0xc8] sm:$0xff] %vm1343, %v1304
  %1370 = vst.msk [vmem:[%s5 + $0xd0] sm:$0xff] %vm1343, %v1305
  %1371 = vst.msk [vmem:[%s5 + $0xd8] sm:$0xff] %vm1343, %v1306
  %1372 = vst.msk [vmem:[%s5 + $0xe0] sm:$0xff] %vm1343, %v1307
  %1373 = vst.msk [vmem:[%s5 + $0xe8] sm:$0xff] %vm1343, %v1308
  %1374 = vst.msk [vmem:[%s5 + $0xf0] sm:$0xff] %vm1343, %v1309
  %1375 = vst.msk [vmem:[%s5 + $0xf8] sm:$0xff] %vm1343, %v1310
  %1376 = vst.msk [vmem:[%s5 + $0x100] sm:$0xff] %vm1343, %v1311
  %1377 = vst.msk [vmem:[%s5 + $0x108] sm:$0xff] %vm1343, %v1312
  %1378 = vst.msk [vmem:[%s5 + $0x110] sm:$0xff] %vm1343, %v1313
  %1379 = vst.msk [vmem:[%s5 + $0x118] sm:$0xff] %vm1343, %v1314
  %1380 = vst.msk [vmem:[%s5 + $0x120] sm:$0xff] %vm1343, %v1315
  %1381 = vst.msk [vmem:[%s5 + $0x128] sm:$0xff] %vm1343, %v1316
  %1382 = vst.msk [vmem:[%s5 + $0x130] sm:$0xff] %vm1343, %v1317
  %1383 = vst.msk [vmem:[%s5 + $0x138] sm:$0xff] %vm1343, %v1318
  %1384 = vst.msk [vmem:[%s5 + $0x140] sm:$0xff] %vm1343, %v1319
  %1385 = vst.msk [vmem:[%s5 + $0x148] sm:$0xff] %vm1343, %v1320
  %1386 = vst.msk [vmem:[%s5 + $0x150] sm:$0xff] %vm1343, %v1321
  %1387 = vst.msk [vmem:[%s5 + $0x158] sm:$0xff] %vm1343, %v1322
  %1388 = vst.msk [vmem:[%s5 + $0x160] sm:$0xff] %vm1343, %v1323
  %1389 = vst.msk [vmem:[%s5 + $0x168] sm:$0xff] %vm1343, %v1324
  %1390 = vst.msk [vmem:[%s5 + $0x170] sm:$0xff] %vm1343, %v1325
  %1391 = vst.msk [vmem:[%s5 + $0x178] sm:$0xff] %vm1343, %v1326
  %1392 = vst.msk [vmem:[%s5 + $0x180] sm:$0xff] %vm1343, %v1327
  %1393 = vst.msk [vmem:[%s5 + $0x188] sm:$0xff] %vm1343, %v1328
  %1394 = vst.msk [vmem:[%s5 + $0x190] sm:$0xff] %vm1343, %v1329
  %1395 = vst.msk [vmem:[%s5 + $0x198] sm:$0xff] %vm1343, %v1330
  %1396 = vst.msk [vmem:[%s5 + $0x1a0] sm:$0xff] %vm1343, %v1331
  %1397 = vst.msk [vmem:[%s5 + $0x1a8] sm:$0xff] %vm1343, %v1332
  %1398 = vst.msk [vmem:[%s5 + $0x1b0] sm:$0xff] %vm1343, %v1333
  %1399 = vst.msk [vmem:[%s5 + $0x1b8] sm:$0xff] %vm1343, %v1334
  %1400 = vst.msk [vmem:[%s5 + $0x1c0] sm:$0xff] %vm1343, %v1335
  %1401 = vst.msk [vmem:[%s5 + $0x1c8] sm:$0xff] %vm1343, %v1336
  %1402 = vst.msk [vmem:[%s5 + $0x1d0] sm:$0xff] %vm1343, %v1337
  %1403 = vst.msk [vmem:[%s5 + $0x1d8] sm:$0xff] %vm1343, %v1338
  %1404 = vst.msk [vmem:[%s5 + $0x1e0] sm:$0xff] %vm1343, %v1339
  %1405 = vst.msk [vmem:[%s5 + $0x1e8] sm:$0xff] %vm1343, %v1340
  %1406 = vst.msk [vmem:[%s5 + $0x1f0] sm:$0xff] %vm1343, %v1341
  %1407 = vst.msk [vmem:[%s5 + $0x1f8] sm:$0xff] %vm1343, %v1342
  // Predicated region
  $region22: #{generator_forward.29} parent=0 // pred_check
    _
  $region23: #{generator_forward.29} parent=0 // pred_check_branch
    %1409 = sbr.rel (0) target = $region25
  $region24: #{generator_forward.29} parent=0 // pred_region
    _
  $region25: #{generator_forward.29} parent=0 // pred_fallthru
    _
  // Predicated region
  $region26: #{generator_forward.29} parent=0 // pred_check
    _
  $region27: #{generator_forward.29} parent=0 // pred_check_branch
    %1411 = sbr.rel (0) target = $region29
  $region28: #{generator_forward.29} parent=0 // pred_region
    _
  $region29: #{generator_forward.29} parent=0 // pred_fallthru
    _

</llo_original>
